<compile_context>
chip_gen: v6e
topology: v6e:2x2x1
jax: 0.10.0
libtpu: 0.0.40
codegen_flags: <defaults>
</compile_context>

<pallas_src>
import functools

import jax
import jax.numpy as jnp
from jax.experimental import pallas as pl
from jax.experimental.pallas import tpu as pltpu

EPS = 1e-5

# (dy, dx) tap order; must match the weight-stack order in prepare_params().
_TAPS = tuple((dy, dx) for dy in range(3) for dx in range(3))


def _elu(y):
    # ELU(alpha=1): y if y > 0 else exp(y) - 1   (clamp exp arg for safety)
    return jnp.where(y > 0, y, jnp.exp(jnp.minimum(y, 0.0)) - 1.0)


# ----------------------------- fused kernel --------------------------------

def _conv_bn_elu_block(pad_ref, w_ref, red_ref, til_ref, g_ref, be_ref,
                       act_ref, *, N, H, W, Cin, Cout):
    """3x3 same-conv + training-mode BN (folded scale/shift) + ELU.

    pad_ref : (N*(H+2), (W+2)*Cin)  zero-padded input, rows=(n,h_pad), cols=(w_pad,c)
    w_ref   : (9, W*Cin, W*Cout)    block-diagonal per-tap weights
    red_ref : (W*Cout, Cout)        "sum over w" reducer (0/1 matrix)
    til_ref : (Cout, W*Cout)        "tile over w" broadcaster (0/1 matrix)
    act_ref : (N*(H+2)-2, W*Cout)   slab-layout output; row n*(H+2)+h is valid
    """
    Hp = H + 2
    R = N * Hp - 2          # slab rows covering every sample's output rows
    WC = W * Cout

    # conv: ONE matmul per tap over the whole multi-sample slab (in-kernel
    # im2col via shifted static slices; the unroll along w lives in the
    # block-diagonal weights).  Accumulate in vregs, store once.
    acc = jnp.zeros((R, WC), jnp.float32)
    for t, (dy, dx) in enumerate(_TAPS):
        a = pad_ref[dy:dy + R, dx * Cin: dx * Cin + W * Cin]
        acc = acc + jnp.dot(a, w_ref[t], preferred_element_type=jnp.float32)

    # The 2 slab rows between consecutive samples mix neighbouring samples'
    # padding; zero them so they do not pollute the batch statistics.
    row = jax.lax.broadcasted_iota(jnp.int32, (R, 1), 0)
    y = jnp.where((row % Hp) < H, acc, 0.0)             # (R, W*Cout) f32

    # BatchNorm with batch stats (biased var), folded into one scale/shift FMA.
    # (conv bias is omitted: mean subtraction cancels it exactly.)
    s1 = jnp.sum(y, axis=0, keepdims=True)              # (1, W*Cout)
    s2 = jnp.sum(y * y, axis=0, keepdims=True)
    csum = jnp.dot(s1, red_ref[...], preferred_element_type=jnp.float32)
    csq = jnp.dot(s2, red_ref[...], preferred_element_type=jnp.float32)
    inv_cnt = 1.0 / float(N * H * W)
    mean = csum * inv_cnt                                # (1, Cout)
    var = jnp.maximum(csq * inv_cnt - mean * mean, 0.0)
    scale = g_ref[...] * jax.lax.rsqrt(var + EPS)        # (1, Cout)
    shift = be_ref[...] - scale * mean
    scale_r = jnp.dot(scale, til_ref[...], preferred_element_type=jnp.float32)
    shift_r = jnp.dot(shift, til_ref[...], preferred_element_type=jnp.float32)
    act_ref[...] = _elu(y * scale_r + shift_r)


def _pool_into_pad(src_ref, wp_ref, dst_ref, *, N, H, W, C):
    """2x2/stride-2 max pool of slab-layout activations src_ref, written
    directly into the interior of the next layer's zero-padded buffer."""
    Hp = H + 2
    Ho, Wo = H // 2, W // 2
    Hp2 = Ho + 2
    dst_ref[...] = jnp.zeros(dst_ref.shape, dst_ref.dtype)
    # pool along w (all slab rows at once; junk rows are harmless, never read)
    for wo in range(Wo):
        wp_ref[:, wo * C:(wo + 1) * C] = jnp.maximum(
            src_ref[:, (2 * wo) * C:(2 * wo + 1) * C],
            src_ref[:, (2 * wo + 1) * C:(2 * wo + 2) * C])
    # pool along h and scatter into the padded interior of the next layer
    for n in range(N):
        for ho in range(Ho):
            r0 = n * Hp + 2 * ho
            dst_ref[n * Hp2 + 1 + ho: n * Hp2 + 2 + ho, C: C + Wo * C] = (
                jnp.maximum(wp_ref[r0:r0 + 1, :], wp_ref[r0 + 1:r0 + 2, :]))


def _encoder_kernel(N,
                    x_ref, w1_ref, w2_ref, w3_ref,
                    red1_ref, til1_ref, g1_ref, be1_ref,
                    red2_ref, til2_ref, g2_ref, be2_ref,
                    red3_ref, til3_ref, g3_ref, be3_ref,
                    wd_ref, bd_ref,
                    o_ref,
                    pad1_ref, act1_ref, wp1_ref,
                    pad2_ref, act2_ref, wp2_ref,
                    pad3_ref, act3_ref, di_ref):
    # stage 0: in-kernel zero padding of the raw input into pad1.
    pad1_ref[...] = jnp.zeros(pad1_ref.shape, pad1_ref.dtype)
    for n in range(N):
        pad1_ref[n * 30 + 1: n * 30 + 29, 1:29] = x_ref[n * 28:(n + 1) * 28, :]

    # block 1: conv1(1->8) + bn1 + elu + pool  : 28x28 -> 14x14
    _conv_bn_elu_block(pad1_ref, w1_ref, red1_ref, til1_ref, g1_ref, be1_ref,
                       act1_ref, N=N, H=28, W=28, Cin=1, Cout=8)
    _pool_into_pad(act1_ref, wp1_ref, pad2_ref, N=N, H=28, W=28, C=8)

    # block 2: conv2(8->16) + bn2 + elu + pool : 14x14 -> 7x7
    _conv_bn_elu_block(pad2_ref, w2_ref, red2_ref, til2_ref, g2_ref, be2_ref,
                       act2_ref, N=N, H=14, W=14, Cin=8, Cout=16)
    _pool_into_pad(act2_ref, wp2_ref, pad3_ref, N=N, H=14, W=14, C=16)

    # block 3: conv3(16->32) + bn3 + elu (no pool)
    _conv_bn_elu_block(pad3_ref, w3_ref, red3_ref, til3_ref, g3_ref, be3_ref,
                       act3_ref, N=N, H=7, W=7, Cin=16, Cout=32)

    # gather the (h, w, c)-ordered features into (N, 1568) rows; the dense
    # weight was permuted at param-prep time so no NCHW transpose is needed.
    for n in range(N):
        for h in range(7):
            di_ref[n:n + 1, h * 224:(h + 1) * 224] = (
                act3_ref[n * 9 + h: n * 9 + h + 1, :])

    out = jnp.dot(di_ref[...], wd_ref[...],
                  preferred_element_type=jnp.float32) + bd_ref[...]
    o_ref[...] = _elu(out)


# ------------------------------ pallas_call glue ----------------------------

def _full_spec(shape):
    # Single-block spec: block == full array.
    return pl.BlockSpec(shape, lambda i: (0,) * len(shape))


def encoder_forward(x_nchw, pp):
    N = x_nchw.shape[0]
    x2d = x_nchw.reshape(N * 28, 28)      # (N,1,28,28) -> rows=(n,h), cols=w

    inputs = (x2d, pp["w1"], pp["w2"], pp["w3"],
              pp["red1"], pp["til1"], pp["g1"], pp["be1"],
              pp["red2"], pp["til2"], pp["g2"], pp["be2"],
              pp["red3"], pp["til3"], pp["g3"], pp["be3"],
              pp["wd"], pp["bd"])

    scratch = [
        pltpu.VMEM((N * 30, 30), jnp.float32),        # pad1 (padded input)
        pltpu.VMEM((N * 30 - 2, 224), jnp.float32),   # act1 slab (28*8 cols)
        pltpu.VMEM((N * 30 - 2, 112), jnp.float32),   # wp1  (w-pooled, 14*8)
        pltpu.VMEM((N * 16, 128), jnp.float32),       # pad2 (16*8 cols)
        pltpu.VMEM((N * 16 - 2, 224), jnp.float32),   # act2 slab (14*16)
        pltpu.VMEM((N * 16 - 2, 112), jnp.float32),   # wp2  (7*16)
        pltpu.VMEM((N * 9, 144), jnp.float32),        # pad3 (9*16 cols)
        pltpu.VMEM((N * 9 - 2, 224), jnp.float32),    # act3 slab (7*32)
        pltpu.VMEM((N, 7 * 7 * 32), jnp.float32),     # dense input rows
    ]

    kernel = functools.partial(_encoder_kernel, N)

    return pl.pallas_call(
        kernel,
        out_shape=jax.ShapeDtypeStruct((N, 128), jnp.float32),
        grid=(1,),
        in_specs=[_full_spec(a.shape) for a in inputs],
        out_specs=_full_spec((N, 128)),
        scratch_shapes=scratch,
        compiler_params=pltpu.CompilerParams(
            dimension_semantics=("arbitrary",)),
    )(*inputs)


# ------------------------------ parameter setup -----------------------------

def init_params(key):
    ks = jax.random.split(key, 12)
    p = {}
    # conv weights in PyTorch (Cout, Cin, kh, kw) layout.
    p["w1"] = 0.2 * jax.random.normal(ks[0], (8, 1, 3, 3), jnp.float32)
    p["b1"] = 0.1 * jax.random.normal(ks[1], (8,), jnp.float32)
    p["w2"] = 0.1 * jax.random.normal(ks[2], (16, 8, 3, 3), jnp.float32)
    p["b2"] = 0.1 * jax.random.normal(ks[3], (16,), jnp.float32)
    p["w3"] = 0.1 * jax.random.normal(ks[4], (32, 16, 3, 3), jnp.float32)
    p["b3"] = 0.1 * jax.random.normal(ks[5], (32,), jnp.float32)
    # batchnorm affine params
    p["g1"] = 1.0 + 0.1 * jax.random.normal(ks[6], (8,), jnp.float32)
    p["be1"] = 0.1 * jax.random.normal(ks[7], (8,), jnp.float32)
    p["g2"] = 1.0 + 0.1 * jax.random.normal(ks[8], (16,), jnp.float32)
    p["be2"] = 0.1 * jax.random.normal(ks[9], (16,), jnp.float32)
    p["g3"] = jnp.ones((32,), jnp.float32)
    p["be3"] = jnp.zeros((32,), jnp.float32)
    # dense: PyTorch Linear(1568, 128) weight is (128, 1568)
    p["wd"] = 0.05 * jax.random.normal(ks[10], (128, 7 * 7 * 32), jnp.float32)
    p["bd"] = 0.1 * jax.random.normal(ks[11], (128,), jnp.float32)
    return p


def _blockdiag_taps(w_oihw, W):
    """(Cout,Cin,3,3) -> (9, W*Cin, W*Cout): per-tap block-diagonal matrices."""
    mats = []
    for dy in range(3):
        for dx in range(3):
            k = jnp.transpose(w_oihw[:, :, dy, dx])          # (Cin, Cout)
            mats.append(jnp.kron(jnp.eye(W, dtype=jnp.float32), k))
    return jnp.stack(mats, axis=0)


def _reducers(W, C):
    red = jnp.kron(jnp.ones((W, 1), jnp.float32), jnp.eye(C, dtype=jnp.float32))
    til = jnp.kron(jnp.ones((1, W), jnp.float32), jnp.eye(C, dtype=jnp.float32))
    return red, til   # (W*C, C), (C, W*C)


def prepare_params(p):
    """One-time weight repacking for the fused kernel (done outside the fwd)."""
    pp = {}
    pp["w1"] = _blockdiag_taps(p["w1"], 28)   # (9, 28, 224)
    pp["w2"] = _blockdiag_taps(p["w2"], 14)   # (9, 112, 224)
    pp["w3"] = _blockdiag_taps(p["w3"], 7)    # (9, 112, 224)
    # NOTE: conv biases b1/b2/b3 are intentionally NOT used: training-mode BN
    # subtracts the batch mean, which cancels them exactly.
    pp["red1"], pp["til1"] = _reducers(28, 8)
    pp["red2"], pp["til2"] = _reducers(14, 16)
    pp["red3"], pp["til3"] = _reducers(7, 32)
    pp["g1"], pp["be1"] = p["g1"][None, :], p["be1"][None, :]
    pp["g2"], pp["be2"] = p["g2"][None, :], p["be2"][None, :]
    pp["g3"], pp["be3"] = p["g3"][None, :], p["be3"][None, :]
    # dense weight rows permuted from NCHW-flatten order (c,h,w) to the
    # kernel's (h,w,c) order, eliminating the per-forward transpose.
    pp["wd"] = jnp.transpose(p["wd"].reshape(128, 32, 7, 7),
                             (2, 3, 1, 0)).reshape(7 * 7 * 32, 128)
    pp["bd"] = p["bd"][None, :]
    return pp


# --------------------------- pure-JAX reference ------------------------------

def _reference_forward(x, p):
    def conv(z, w, b):
        y = jax.lax.conv_general_dilated(
            z, w, window_strides=(1, 1), padding=((1, 1), (1, 1)),
            dimension_numbers=("NCHW", "OIHW", "NCHW"))
        return y + b[None, :, None, None]

    def bn(z, g, b):
        mean = jnp.mean(z, axis=(0, 2, 3), keepdims=True)
        var = jnp.mean((z - mean) ** 2, axis=(0, 2, 3), keepdims=True)
        return (g[None, :, None, None] * (z - mean) * jax.lax.rsqrt(var + EPS)
                + b[None, :, None, None])

    def pool(z):
        return jax.lax.reduce_window(z, -jnp.inf, jax.lax.max,
                                     (1, 1, 2, 2), (1, 1, 2, 2), "VALID")

    y = pool(_elu(bn(conv(x, p["w1"], p["b1"]), p["g1"], p["be1"])))
    y = pool(_elu(bn(conv(y, p["w2"], p["b2"]), p["g2"], p["be2"])))
    y = _elu(bn(conv(y, p["w3"], p["b3"]), p["g3"], p["be3"]))
    y = y.reshape(y.shape[0], -1)                      # NCHW flatten
    return _elu(y @ p["wd"].T + p["bd"][None, :])


# ---------------------------------- main -------------------------------------

if __name__ == "__main__":
    key = jax.random.PRNGKey(0)
    kx, kp = jax.random.split(key)
    # 7*7*32 flatten with two 2x2 pools implies a 28x28, single-channel input.
    x = jax.random.normal(kx, (2, 1, 28, 28), jnp.float32)
    params = init_params(kp)
    pp = prepare_params(params)            # one-time weight repacking

    out = jax.block_until_ready(jax.jit(encoder_forward)(x, pp))
    assert out.shape == (2, 128) and out.dtype == jnp.float32
    assert bool(jnp.all(jnp.isfinite(out)))

    ref = jax.block_until_ready(jax.jit(_reference_forward)(x, params))
    assert bool(jnp.allclose(out, ref, rtol=2e-3, atol=2e-3))

    print("KERNEL_OK")
</pallas_src>

<mosaic_0001>
module attributes {stable_mosaic.version = 11 : i64} {
  func.func @_encoder_kernel(%arg0: i32, %arg1: memref<56x28xf32, #tpu.memory_space<vmem>>, %arg2: memref<9x28x224xf32, #tpu.memory_space<vmem>>, %arg3: memref<9x112x224xf32, #tpu.memory_space<vmem>>, %arg4: memref<9x112x224xf32, #tpu.memory_space<vmem>>, %arg5: memref<224x8xf32, #tpu.memory_space<vmem>>, %arg6: memref<8x224xf32, #tpu.memory_space<vmem>>, %arg7: memref<1x8xf32, #tpu.memory_space<vmem>>, %arg8: memref<1x8xf32, #tpu.memory_space<vmem>>, %arg9: memref<224x16xf32, #tpu.memory_space<vmem>>, %arg10: memref<16x224xf32, #tpu.memory_space<vmem>>, %arg11: memref<1x16xf32, #tpu.memory_space<vmem>>, %arg12: memref<1x16xf32, #tpu.memory_space<vmem>>, %arg13: memref<224x32xf32, #tpu.memory_space<vmem>>, %arg14: memref<32x224xf32, #tpu.memory_space<vmem>>, %arg15: memref<1x32xf32, #tpu.memory_space<vmem>>, %arg16: memref<1x32xf32, #tpu.memory_space<vmem>>, %arg17: memref<1568x128xf32, #tpu.memory_space<vmem>>, %arg18: memref<1x128xf32, #tpu.memory_space<vmem>>, %arg19: memref<2x128xf32, #tpu.memory_space<vmem>>, %arg20: memref<60x30xf32, #tpu.memory_space<vmem>>, %arg21: memref<58x224xf32, #tpu.memory_space<vmem>>, %arg22: memref<58x112xf32, #tpu.memory_space<vmem>>, %arg23: memref<32x128xf32, #tpu.memory_space<vmem>>, %arg24: memref<30x224xf32, #tpu.memory_space<vmem>>, %arg25: memref<30x112xf32, #tpu.memory_space<vmem>>, %arg26: memref<18x144xf32, #tpu.memory_space<vmem>>, %arg27: memref<16x224xf32, #tpu.memory_space<vmem>>, %arg28: memref<2x1568xf32, #tpu.memory_space<vmem>>) attributes {dimension_semantics = [#tpu.dimension_semantics<arbitrary>], iteration_bounds = array<i64: 1>, scalar_prefetch = 0 : i64, scratch_operands = 9 : i64, tpu.core_type = #tpu.core_type<tc>, window_params = [{pipeline_mode = #tpu.pipeline_mode<synchronous>, transform_indices = @transform_0, window_bounds = array<i64: 56, 28>}, {pipeline_mode = #tpu.pipeline_mode<synchronous>, transform_indices = @transform_1, window_bounds = array<i64: 9, 28, 224>}, {pipeline_mode = #tpu.pipeline_mode<synchronous>, transform_indices = @transform_2, window_bounds = array<i64: 9, 112, 224>}, {pipeline_mode = #tpu.pipeline_mode<synchronous>, transform_indices = @transform_3, window_bounds = array<i64: 9, 112, 224>}, {pipeline_mode = #tpu.pipeline_mode<synchronous>, transform_indices = @transform_4, window_bounds = array<i64: 224, 8>}, {pipeline_mode = #tpu.pipeline_mode<synchronous>, transform_indices = @transform_5, window_bounds = array<i64: 8, 224>}, {pipeline_mode = #tpu.pipeline_mode<synchronous>, transform_indices = @transform_6, window_bounds = array<i64: 1, 8>}, {pipeline_mode = #tpu.pipeline_mode<synchronous>, transform_indices = @transform_7, window_bounds = array<i64: 1, 8>}, {pipeline_mode = #tpu.pipeline_mode<synchronous>, transform_indices = @transform_8, window_bounds = array<i64: 224, 16>}, {pipeline_mode = #tpu.pipeline_mode<synchronous>, transform_indices = @transform_9, window_bounds = array<i64: 16, 224>}, {pipeline_mode = #tpu.pipeline_mode<synchronous>, transform_indices = @transform_10, window_bounds = array<i64: 1, 16>}, {pipeline_mode = #tpu.pipeline_mode<synchronous>, transform_indices = @transform_11, window_bounds = array<i64: 1, 16>}, {pipeline_mode = #tpu.pipeline_mode<synchronous>, transform_indices = @transform_12, window_bounds = array<i64: 224, 32>}, {pipeline_mode = #tpu.pipeline_mode<synchronous>, transform_indices = @transform_13, window_bounds = array<i64: 32, 224>}, {pipeline_mode = #tpu.pipeline_mode<synchronous>, transform_indices = @transform_14, window_bounds = array<i64: 1, 32>}, {pipeline_mode = #tpu.pipeline_mode<synchronous>, transform_indices = @transform_15, window_bounds = array<i64: 1, 32>}, {pipeline_mode = #tpu.pipeline_mode<synchronous>, transform_indices = @transform_16, window_bounds = array<i64: 1568, 128>}, {pipeline_mode = #tpu.pipeline_mode<synchronous>, transform_indices = @transform_17, window_bounds = array<i64: 1, 128>}, {pipeline_mode = #tpu.pipeline_mode<synchronous>, transform_indices = @transform_18, window_bounds = array<i64: 2, 128>}]} {
    %cst = arith.constant 0.000000e+00 : f32
    %0 = vector.broadcast %cst : f32 to vector<60x30xf32>
    %c0 = arith.constant 0 : index
    %c0_0 = arith.constant 0 : index
    %1 = vector.load %arg20[%c0, %c0_0] : memref<60x30xf32, #tpu.memory_space<vmem>>, vector<60x30xf32>
    tpu.vector_store %arg20[%c0, %c0_0], %0 {strides = array<i32>} : memref<60x30xf32, #tpu.memory_space<vmem>>, vector<60x30xf32>,
    %c0_1 = arith.constant 0 : index
    %c0_2 = arith.constant 0 : index
    %2 = vector.load %arg1[%c0_1, %c0_2] : memref<56x28xf32, #tpu.memory_space<vmem>>, vector<28x28xf32>
    %c1 = arith.constant 1 : index
    %c1_3 = arith.constant 1 : index
    %3 = vector.load %arg20[%c1, %c1_3] : memref<60x30xf32, #tpu.memory_space<vmem>>, vector<28x28xf32>
    tpu.vector_store %arg20[%c1, %c1_3], %2 {strides = array<i32>} : memref<60x30xf32, #tpu.memory_space<vmem>>, vector<28x28xf32>,
    %c28 = arith.constant 28 : index
    %c0_4 = arith.constant 0 : index
    %4 = vector.load %arg1[%c28, %c0_4] : memref<56x28xf32, #tpu.memory_space<vmem>>, vector<28x28xf32>
    %c31 = arith.constant 31 : index
    %c1_5 = arith.constant 1 : index
    %5 = vector.load %arg20[%c31, %c1_5] : memref<60x30xf32, #tpu.memory_space<vmem>>, vector<28x28xf32>
    tpu.vector_store %arg20[%c31, %c1_5], %4 {strides = array<i32>} : memref<60x30xf32, #tpu.memory_space<vmem>>, vector<28x28xf32>,
    %cst_6 = arith.constant 0.000000e+00 : f32
    %6 = vector.broadcast %cst_6 : f32 to vector<58x224xf32>
    %c0_7 = arith.constant 0 : index
    %c0_8 = arith.constant 0 : index
    %7 = vector.load %arg20[%c0_7, %c0_8] : memref<60x30xf32, #tpu.memory_space<vmem>>, vector<58x28xf32>
    %c0_9 = arith.constant 0 : index
    %c0_10 = arith.constant 0 : index
    %c0_11 = arith.constant 0 : index
    %8 = vector.load %arg2[%c0_9, %c0_10, %c0_11] : memref<9x28x224xf32, #tpu.memory_space<vmem>>, vector<1x28x224xf32>
    %9 = vector.shape_cast %8 : vector<1x28x224xf32> to vector<28x224xf32>
    %cst_12 = arith.constant dense<0.000000e+00> : vector<58x224xf32>
    %10 = tpu.matmul %7, %9, %cst_12 {dimension_numbers = #tpu.dot_dimension_numbers<[1], [0], [0], [1], [0, 0, 1, 1], [], []>} : vector<58x28xf32>, vector<28x224xf32>, vector<58x224xf32> -> vector<58x224xf32>
    %11 = arith.addf %6, %10 : vector<58x224xf32>
    %c0_13 = arith.constant 0 : index
    %c1_14 = arith.constant 1 : index
    %12 = vector.load %arg20[%c0_13, %c1_14] : memref<60x30xf32, #tpu.memory_space<vmem>>, vector<58x28xf32>
    %c1_15 = arith.constant 1 : index
    %c0_16 = arith.constant 0 : index
    %c0_17 = arith.constant 0 : index
    %13 = vector.load %arg2[%c1_15, %c0_16, %c0_17] : memref<9x28x224xf32, #tpu.memory_space<vmem>>, vector<1x28x224xf32>
    %14 = vector.shape_cast %13 : vector<1x28x224xf32> to vector<28x224xf32>
    %cst_18 = arith.constant dense<0.000000e+00> : vector<58x224xf32>
    %15 = tpu.matmul %12, %14, %cst_18 {dimension_numbers = #tpu.dot_dimension_numbers<[1], [0], [0], [1], [0, 0, 1, 1], [], []>} : vector<58x28xf32>, vector<28x224xf32>, vector<58x224xf32> -> vector<58x224xf32>
    %16 = arith.addf %11, %15 : vector<58x224xf32>
    %c0_19 = arith.constant 0 : index
    %c2 = arith.constant 2 : index
    %17 = vector.load %arg20[%c0_19, %c2] : memref<60x30xf32, #tpu.memory_space<vmem>>, vector<58x28xf32>
    %c2_20 = arith.constant 2 : index
    %c0_21 = arith.constant 0 : index
    %c0_22 = arith.constant 0 : index
    %18 = vector.load %arg2[%c2_20, %c0_21, %c0_22] : memref<9x28x224xf32, #tpu.memory_space<vmem>>, vector<1x28x224xf32>
    %19 = vector.shape_cast %18 : vector<1x28x224xf32> to vector<28x224xf32>
    %cst_23 = arith.constant dense<0.000000e+00> : vector<58x224xf32>
    %20 = tpu.matmul %17, %19, %cst_23 {dimension_numbers = #tpu.dot_dimension_numbers<[1], [0], [0], [1], [0, 0, 1, 1], [], []>} : vector<58x28xf32>, vector<28x224xf32>, vector<58x224xf32> -> vector<58x224xf32>
    %21 = arith.addf %16, %20 : vector<58x224xf32>
    %c1_24 = arith.constant 1 : index
    %c0_25 = arith.constant 0 : index
    %22 = vector.load %arg20[%c1_24, %c0_25] : memref<60x30xf32, #tpu.memory_space<vmem>>, vector<58x28xf32>
    %c3 = arith.constant 3 : index
    %c0_26 = arith.constant 0 : index
    %c0_27 = arith.constant 0 : index
    %23 = vector.load %arg2[%c3, %c0_26, %c0_27] : memref<9x28x224xf32, #tpu.memory_space<vmem>>, vector<1x28x224xf32>
    %24 = vector.shape_cast %23 : vector<1x28x224xf32> to vector<28x224xf32>
    %cst_28 = arith.constant dense<0.000000e+00> : vector<58x224xf32>
    %25 = tpu.matmul %22, %24, %cst_28 {dimension_numbers = #tpu.dot_dimension_numbers<[1], [0], [0], [1], [0, 0, 1, 1], [], []>} : vector<58x28xf32>, vector<28x224xf32>, vector<58x224xf32> -> vector<58x224xf32>
    %26 = arith.addf %21, %25 : vector<58x224xf32>
    %c1_29 = arith.constant 1 : index
    %c1_30 = arith.constant 1 : index
    %27 = vector.load %arg20[%c1_29, %c1_30] : memref<60x30xf32, #tpu.memory_space<vmem>>, vector<58x28xf32>
    %c4 = arith.constant 4 : index
    %c0_31 = arith.constant 0 : index
    %c0_32 = arith.constant 0 : index
    %28 = vector.load %arg2[%c4, %c0_31, %c0_32] : memref<9x28x224xf32, #tpu.memory_space<vmem>>, vector<1x28x224xf32>
    %29 = vector.shape_cast %28 : vector<1x28x224xf32> to vector<28x224xf32>
    %cst_33 = arith.constant dense<0.000000e+00> : vector<58x224xf32>
    %30 = tpu.matmul %27, %29, %cst_33 {dimension_numbers = #tpu.dot_dimension_numbers<[1], [0], [0], [1], [0, 0, 1, 1], [], []>} : vector<58x28xf32>, vector<28x224xf32>, vector<58x224xf32> -> vector<58x224xf32>
    %31 = arith.addf %26, %30 : vector<58x224xf32>
    %c1_34 = arith.constant 1 : index
    %c2_35 = arith.constant 2 : index
    %32 = vector.load %arg20[%c1_34, %c2_35] : memref<60x30xf32, #tpu.memory_space<vmem>>, vector<58x28xf32>
    %c5 = arith.constant 5 : index
    %c0_36 = arith.constant 0 : index
    %c0_37 = arith.constant 0 : index
    %33 = vector.load %arg2[%c5, %c0_36, %c0_37] : memref<9x28x224xf32, #tpu.memory_space<vmem>>, vector<1x28x224xf32>
    %34 = vector.shape_cast %33 : vector<1x28x224xf32> to vector<28x224xf32>
    %cst_38 = arith.constant dense<0.000000e+00> : vector<58x224xf32>
    %35 = tpu.matmul %32, %34, %cst_38 {dimension_numbers = #tpu.dot_dimension_numbers<[1], [0], [0], [1], [0, 0, 1, 1], [], []>} : vector<58x28xf32>, vector<28x224xf32>, vector<58x224xf32> -> vector<58x224xf32>
    %36 = arith.addf %31, %35 : vector<58x224xf32>
    %c2_39 = arith.constant 2 : index
    %c0_40 = arith.constant 0 : index
    %37 = vector.load %arg20[%c2_39, %c0_40] : memref<60x30xf32, #tpu.memory_space<vmem>>, vector<58x28xf32>
    %c6 = arith.constant 6 : index
    %c0_41 = arith.constant 0 : index
    %c0_42 = arith.constant 0 : index
    %38 = vector.load %arg2[%c6, %c0_41, %c0_42] : memref<9x28x224xf32, #tpu.memory_space<vmem>>, vector<1x28x224xf32>
    %39 = vector.shape_cast %38 : vector<1x28x224xf32> to vector<28x224xf32>
    %cst_43 = arith.constant dense<0.000000e+00> : vector<58x224xf32>
    %40 = tpu.matmul %37, %39, %cst_43 {dimension_numbers = #tpu.dot_dimension_numbers<[1], [0], [0], [1], [0, 0, 1, 1], [], []>} : vector<58x28xf32>, vector<28x224xf32>, vector<58x224xf32> -> vector<58x224xf32>
    %41 = arith.addf %36, %40 : vector<58x224xf32>
    %c2_44 = arith.constant 2 : index
    %c1_45 = arith.constant 1 : index
    %42 = vector.load %arg20[%c2_44, %c1_45] : memref<60x30xf32, #tpu.memory_space<vmem>>, vector<58x28xf32>
    %c7 = arith.constant 7 : index
    %c0_46 = arith.constant 0 : index
    %c0_47 = arith.constant 0 : index
    %43 = vector.load %arg2[%c7, %c0_46, %c0_47] : memref<9x28x224xf32, #tpu.memory_space<vmem>>, vector<1x28x224xf32>
    %44 = vector.shape_cast %43 : vector<1x28x224xf32> to vector<28x224xf32>
    %cst_48 = arith.constant dense<0.000000e+00> : vector<58x224xf32>
    %45 = tpu.matmul %42, %44, %cst_48 {dimension_numbers = #tpu.dot_dimension_numbers<[1], [0], [0], [1], [0, 0, 1, 1], [], []>} : vector<58x28xf32>, vector<28x224xf32>, vector<58x224xf32> -> vector<58x224xf32>
    %46 = arith.addf %41, %45 : vector<58x224xf32>
    %c2_49 = arith.constant 2 : index
    %c2_50 = arith.constant 2 : index
    %47 = vector.load %arg20[%c2_49, %c2_50] : memref<60x30xf32, #tpu.memory_space<vmem>>, vector<58x28xf32>
    %c8 = arith.constant 8 : index
    %c0_51 = arith.constant 0 : index
    %c0_52 = arith.constant 0 : index
    %48 = vector.load %arg2[%c8, %c0_51, %c0_52] : memref<9x28x224xf32, #tpu.memory_space<vmem>>, vector<1x28x224xf32>
    %49 = vector.shape_cast %48 : vector<1x28x224xf32> to vector<28x224xf32>
    %cst_53 = arith.constant dense<0.000000e+00> : vector<58x224xf32>
    %50 = tpu.matmul %47, %49, %cst_53 {dimension_numbers = #tpu.dot_dimension_numbers<[1], [0], [0], [1], [0, 0, 1, 1], [], []>} : vector<58x28xf32>, vector<28x224xf32>, vector<58x224xf32> -> vector<58x224xf32>
    %51 = arith.addf %46, %50 : vector<58x224xf32>
    %52 = tpu.iota {dimensions = array<i32: 0>} : vector<58x1xi32>
    %c30_i32 = arith.constant 30 : i32
    %c0_i32 = arith.constant 0 : i32
    %53 = arith.cmpi eq, %c30_i32, %c0_i32 : i32
    %c1_i32 = arith.constant 1 : i32
    %54 = arith.select %53, %c1_i32, %c30_i32 : i32
    %55 = vector.broadcast %54 : i32 to vector<58x1xi32>
    %56 = arith.remsi %52, %55 : vector<58x1xi32>
    %c0_i32_54 = arith.constant 0 : i32
    %57 = vector.broadcast %c0_i32_54 : i32 to vector<58x1xi32>
    %58 = arith.cmpi ne, %56, %57 : vector<58x1xi32>
    %c0_i32_55 = arith.constant 0 : i32
    %59 = vector.broadcast %c0_i32_55 : i32 to vector<58x1xi32>
    %60 = arith.cmpi slt, %56, %59 : vector<58x1xi32>
    %c0_i32_56 = arith.constant 0 : i32
    %61 = arith.cmpi slt, %54, %c0_i32_56 : i32
    %62 = vector.broadcast %61 : i1 to vector<58x1xi1>
    %63 = vector.broadcast %62 : vector<58x1xi1> to vector<58x1xi1>
    %64 = arith.xori %60, %63 : vector<58x1xi1>
    %65 = arith.andi %64, %58 : vector<58x1xi1>
    %66 = vector.broadcast %54 : i32 to vector<58x1xi32>
    %67 = arith.addi %56, %66 : vector<58x1xi32>
    %68 = arith.select %65, %67, %56 : vector<58x1xi1>, vector<58x1xi32>
    %c28_i32 = arith.constant 28 : i32
    %69 = vector.broadcast %c28_i32 : i32 to vector<58x1xi32>
    %70 = arith.cmpi slt, %68, %69 : vector<58x1xi32>
    %cst_57 = arith.constant 0.000000e+00 : f32
    %71 = vector.shape_cast %70 : vector<58x1xi1> to vector<58x1xi1>
    %72 = vector.broadcast %71 : vector<58x1xi1> to vector<58x224xi1>
    %73 = vector.broadcast %cst_57 : f32 to vector<58x224xf32>
    %74 = arith.select %72, %51, %73 : vector<58x224xi1>, vector<58x224xf32>
    %cst_58 = arith.constant dense<0.000000e+00> : vector<224xf32>
    %75 = vector.multi_reduction <add>, %74, %cst_58 [0] : vector<58x224xf32> to vector<224xf32>
    %76 = vector.shape_cast %75 : vector<224xf32> to vector<1x224xf32>
    %77 = arith.mulf %74, %74 : vector<58x224xf32>
    %cst_59 = arith.constant dense<0.000000e+00> : vector<224xf32>
    %78 = vector.multi_reduction <add>, %77, %cst_59 [0] : vector<58x224xf32> to vector<224xf32>
    %79 = vector.shape_cast %78 : vector<224xf32> to vector<1x224xf32>
    %c0_60 = arith.constant 0 : index
    %c0_61 = arith.constant 0 : index
    %80 = vector.load %arg5[%c0_60, %c0_61] : memref<224x8xf32, #tpu.memory_space<vmem>>, vector<224x8xf32>
    %cst_62 = arith.constant dense<0.000000e+00> : vector<1x8xf32>
    %81 = tpu.matmul %76, %80, %cst_62 {dimension_numbers = #tpu.dot_dimension_numbers<[1], [0], [0], [1], [0, 0, 1, 1], [], []>} : vector<1x224xf32>, vector<224x8xf32>, vector<1x8xf32> -> vector<1x8xf32>
    %c0_63 = arith.constant 0 : index
    %c0_64 = arith.constant 0 : index
    %82 = vector.load %arg5[%c0_63, %c0_64] : memref<224x8xf32, #tpu.memory_space<vmem>>, vector<224x8xf32>
    %cst_65 = arith.constant dense<0.000000e+00> : vector<1x8xf32>
    %83 = tpu.matmul %79, %82, %cst_65 {dimension_numbers = #tpu.dot_dimension_numbers<[1], [0], [0], [1], [0, 0, 1, 1], [], []>} : vector<1x224xf32>, vector<224x8xf32>, vector<1x8xf32> -> vector<1x8xf32>
    %cst_66 = arith.constant 6.37755089E-4 : f32
    %84 = vector.broadcast %cst_66 : f32 to vector<1x8xf32>
    %85 = arith.mulf %81, %84 : vector<1x8xf32>
    %cst_67 = arith.constant 6.37755089E-4 : f32
    %86 = vector.broadcast %cst_67 : f32 to vector<1x8xf32>
    %87 = arith.mulf %83, %86 : vector<1x8xf32>
    %88 = arith.mulf %85, %85 : vector<1x8xf32>
    %89 = arith.subf %87, %88 : vector<1x8xf32>
    %cst_68 = arith.constant 0.000000e+00 : f32
    %90 = vector.broadcast %cst_68 : f32 to vector<1x8xf32>
    %91 = arith.maximumf %89, %90 : vector<1x8xf32>
    %c0_69 = arith.constant 0 : index
    %c0_70 = arith.constant 0 : index
    %92 = vector.load %arg7[%c0_69, %c0_70] : memref<1x8xf32, #tpu.memory_space<vmem>>, vector<1x8xf32>
    %cst_71 = arith.constant 9.99999974E-6 : f32
    %93 = vector.broadcast %cst_71 : f32 to vector<1x8xf32>
    %94 = arith.addf %91, %93 : vector<1x8xf32>
    %95 = math.rsqrt %94 : vector<1x8xf32>
    %96 = arith.mulf %92, %95 : vector<1x8xf32>
    %c0_72 = arith.constant 0 : index
    %c0_73 = arith.constant 0 : index
    %97 = vector.load %arg8[%c0_72, %c0_73] : memref<1x8xf32, #tpu.memory_space<vmem>>, vector<1x8xf32>
    %98 = arith.mulf %96, %85 : vector<1x8xf32>
    %99 = arith.subf %97, %98 : vector<1x8xf32>
    %c0_74 = arith.constant 0 : index
    %c0_75 = arith.constant 0 : index
    %100 = vector.load %arg6[%c0_74, %c0_75] : memref<8x224xf32, #tpu.memory_space<vmem>>, vector<8x224xf32>
    %cst_76 = arith.constant dense<0.000000e+00> : vector<1x224xf32>
    %101 = tpu.matmul %96, %100, %cst_76 {dimension_numbers = #tpu.dot_dimension_numbers<[1], [0], [0], [1], [0, 0, 1, 1], [], []>} : vector<1x8xf32>, vector<8x224xf32>, vector<1x224xf32> -> vector<1x224xf32>
    %c0_77 = arith.constant 0 : index
    %c0_78 = arith.constant 0 : index
    %102 = vector.load %arg6[%c0_77, %c0_78] : memref<8x224xf32, #tpu.memory_space<vmem>>, vector<8x224xf32>
    %cst_79 = arith.constant dense<0.000000e+00> : vector<1x224xf32>
    %103 = tpu.matmul %99, %102, %cst_79 {dimension_numbers = #tpu.dot_dimension_numbers<[1], [0], [0], [1], [0, 0, 1, 1], [], []>} : vector<1x8xf32>, vector<8x224xf32>, vector<1x224xf32> -> vector<1x224xf32>
    %104 = vector.broadcast %101 : vector<1x224xf32> to vector<58x224xf32>
    %105 = arith.mulf %74, %104 : vector<58x224xf32>
    %106 = vector.broadcast %103 : vector<1x224xf32> to vector<58x224xf32>
    %107 = arith.addf %105, %106 : vector<58x224xf32>
    %cst_80 = arith.constant 0.000000e+00 : f32
    %108 = vector.broadcast %cst_80 : f32 to vector<58x224xf32>
    %109 = arith.cmpf ogt, %107, %108 : vector<58x224xf32>
    %cst_81 = arith.constant 0.000000e+00 : f32
    %110 = vector.broadcast %cst_81 : f32 to vector<58x224xf32>
    %111 = arith.minimumf %107, %110 : vector<58x224xf32>
    %112 = math.exp %111 : vector<58x224xf32>
    %cst_82 = arith.constant 1.000000e+00 : f32
    %113 = vector.broadcast %cst_82 : f32 to vector<58x224xf32>
    %114 = arith.subf %112, %113 : vector<58x224xf32>
    %115 = arith.select %109, %107, %114 : vector<58x224xi1>, vector<58x224xf32>
    %c0_83 = arith.constant 0 : index
    %c0_84 = arith.constant 0 : index
    %116 = vector.load %arg21[%c0_83, %c0_84] : memref<58x224xf32, #tpu.memory_space<vmem>>, vector<58x224xf32>
    tpu.vector_store %arg21[%c0_83, %c0_84], %115 {strides = array<i32>} : memref<58x224xf32, #tpu.memory_space<vmem>>, vector<58x224xf32>,
    %cst_85 = arith.constant 0.000000e+00 : f32
    %117 = vector.broadcast %cst_85 : f32 to vector<32x128xf32>
    %c0_86 = arith.constant 0 : index
    %c0_87 = arith.constant 0 : index
    %118 = vector.load %arg23[%c0_86, %c0_87] : memref<32x128xf32, #tpu.memory_space<vmem>>, vector<32x128xf32>
    tpu.vector_store %arg23[%c0_86, %c0_87], %117 {strides = array<i32>} : memref<32x128xf32, #tpu.memory_space<vmem>>, vector<32x128xf32>,
    %c0_88 = arith.constant 0 : index
    %c0_89 = arith.constant 0 : index
    %119 = vector.load %arg21[%c0_88, %c0_89] : memref<58x224xf32, #tpu.memory_space<vmem>>, vector<58x8xf32>
    %c0_90 = arith.constant 0 : index
    %c8_91 = arith.constant 8 : index
    %120 = vector.load %arg21[%c0_90, %c8_91] : memref<58x224xf32, #tpu.memory_space<vmem>>, vector<58x8xf32>
    %121 = arith.maximumf %119, %120 : vector<58x8xf32>
    %c0_92 = arith.constant 0 : index
    %c0_93 = arith.constant 0 : index
    %122 = vector.load %arg22[%c0_92, %c0_93] : memref<58x112xf32, #tpu.memory_space<vmem>>, vector<58x8xf32>
    tpu.vector_store %arg22[%c0_92, %c0_93], %121 {strides = array<i32>} : memref<58x112xf32, #tpu.memory_space<vmem>>, vector<58x8xf32>,
    %c0_94 = arith.constant 0 : index
    %c16 = arith.constant 16 : index
    %123 = vector.load %arg21[%c0_94, %c16] : memref<58x224xf32, #tpu.memory_space<vmem>>, vector<58x8xf32>
    %c0_95 = arith.constant 0 : index
    %c24 = arith.constant 24 : index
    %124 = vector.load %arg21[%c0_95, %c24] : memref<58x224xf32, #tpu.memory_space<vmem>>, vector<58x8xf32>
    %125 = arith.maximumf %123, %124 : vector<58x8xf32>
    %c0_96 = arith.constant 0 : index
    %c8_97 = arith.constant 8 : index
    %126 = vector.load %arg22[%c0_96, %c8_97] : memref<58x112xf32, #tpu.memory_space<vmem>>, vector<58x8xf32>
    tpu.vector_store %arg22[%c0_96, %c8_97], %125 {strides = array<i32>} : memref<58x112xf32, #tpu.memory_space<vmem>>, vector<58x8xf32>,
    %c0_98 = arith.constant 0 : index
    %c32 = arith.constant 32 : index
    %127 = vector.load %arg21[%c0_98, %c32] : memref<58x224xf32, #tpu.memory_space<vmem>>, vector<58x8xf32>
    %c0_99 = arith.constant 0 : index
    %c40 = arith.constant 40 : index
    %128 = vector.load %arg21[%c0_99, %c40] : memref<58x224xf32, #tpu.memory_space<vmem>>, vector<58x8xf32>
    %129 = arith.maximumf %127, %128 : vector<58x8xf32>
    %c0_100 = arith.constant 0 : index
    %c16_101 = arith.constant 16 : index
    %130 = vector.load %arg22[%c0_100, %c16_101] : memref<58x112xf32, #tpu.memory_space<vmem>>, vector<58x8xf32>
    tpu.vector_store %arg22[%c0_100, %c16_101], %129 {strides = array<i32>} : memref<58x112xf32, #tpu.memory_space<vmem>>, vector<58x8xf32>,
    %c0_102 = arith.constant 0 : index
    %c48 = arith.constant 48 : index
    %131 = vector.load %arg21[%c0_102, %c48] : memref<58x224xf32, #tpu.memory_space<vmem>>, vector<58x8xf32>
    %c0_103 = arith.constant 0 : index
    %c56 = arith.constant 56 : index
    %132 = vector.load %arg21[%c0_103, %c56] : memref<58x224xf32, #tpu.memory_space<vmem>>, vector<58x8xf32>
    %133 = arith.maximumf %131, %132 : vector<58x8xf32>
    %c0_104 = arith.constant 0 : index
    %c24_105 = arith.constant 24 : index
    %134 = vector.load %arg22[%c0_104, %c24_105] : memref<58x112xf32, #tpu.memory_space<vmem>>, vector<58x8xf32>
    tpu.vector_store %arg22[%c0_104, %c24_105], %133 {strides = array<i32>} : memref<58x112xf32, #tpu.memory_space<vmem>>, vector<58x8xf32>,
    %c0_106 = arith.constant 0 : index
    %c64 = arith.constant 64 : index
    %135 = vector.load %arg21[%c0_106, %c64] : memref<58x224xf32, #tpu.memory_space<vmem>>, vector<58x8xf32>
    %c0_107 = arith.constant 0 : index
    %c72 = arith.constant 72 : index
    %136 = vector.load %arg21[%c0_107, %c72] : memref<58x224xf32, #tpu.memory_space<vmem>>, vector<58x8xf32>
    %137 = arith.maximumf %135, %136 : vector<58x8xf32>
    %c0_108 = arith.constant 0 : index
    %c32_109 = arith.constant 32 : index
    %138 = vector.load %arg22[%c0_108, %c32_109] : memref<58x112xf32, #tpu.memory_space<vmem>>, vector<58x8xf32>
    tpu.vector_store %arg22[%c0_108, %c32_109], %137 {strides = array<i32>} : memref<58x112xf32, #tpu.memory_space<vmem>>, vector<58x8xf32>,
    %c0_110 = arith.constant 0 : index
    %c80 = arith.constant 80 : index
    %139 = vector.load %arg21[%c0_110, %c80] : memref<58x224xf32, #tpu.memory_space<vmem>>, vector<58x8xf32>
    %c0_111 = arith.constant 0 : index
    %c88 = arith.constant 88 : index
    %140 = vector.load %arg21[%c0_111, %c88] : memref<58x224xf32, #tpu.memory_space<vmem>>, vector<58x8xf32>
    %141 = arith.maximumf %139, %140 : vector<58x8xf32>
    %c0_112 = arith.constant 0 : index
    %c40_113 = arith.constant 40 : index
    %142 = vector.load %arg22[%c0_112, %c40_113] : memref<58x112xf32, #tpu.memory_space<vmem>>, vector<58x8xf32>
    tpu.vector_store %arg22[%c0_112, %c40_113], %141 {strides = array<i32>} : memref<58x112xf32, #tpu.memory_space<vmem>>, vector<58x8xf32>,
    %c0_114 = arith.constant 0 : index
    %c96 = arith.constant 96 : index
    %143 = vector.load %arg21[%c0_114, %c96] : memref<58x224xf32, #tpu.memory_space<vmem>>, vector<58x8xf32>
    %c0_115 = arith.constant 0 : index
    %c104 = arith.constant 104 : index
    %144 = vector.load %arg21[%c0_115, %c104] : memref<58x224xf32, #tpu.memory_space<vmem>>, vector<58x8xf32>
    %145 = arith.maximumf %143, %144 : vector<58x8xf32>
    %c0_116 = arith.constant 0 : index
    %c48_117 = arith.constant 48 : index
    %146 = vector.load %arg22[%c0_116, %c48_117] : memref<58x112xf32, #tpu.memory_space<vmem>>, vector<58x8xf32>
    tpu.vector_store %arg22[%c0_116, %c48_117], %145 {strides = array<i32>} : memref<58x112xf32, #tpu.memory_space<vmem>>, vector<58x8xf32>,
    %c0_118 = arith.constant 0 : index
    %c112 = arith.constant 112 : index
    %147 = vector.load %arg21[%c0_118, %c112] : memref<58x224xf32, #tpu.memory_space<vmem>>, vector<58x8xf32>
    %c0_119 = arith.constant 0 : index
    %c120 = arith.constant 120 : index
    %148 = vector.load %arg21[%c0_119, %c120] : memref<58x224xf32, #tpu.memory_space<vmem>>, vector<58x8xf32>
    %149 = arith.maximumf %147, %148 : vector<58x8xf32>
    %c0_120 = arith.constant 0 : index
    %c56_121 = arith.constant 56 : index
    %150 = vector.load %arg22[%c0_120, %c56_121] : memref<58x112xf32, #tpu.memory_space<vmem>>, vector<58x8xf32>
    tpu.vector_store %arg22[%c0_120, %c56_121], %149 {strides = array<i32>} : memref<58x112xf32, #tpu.memory_space<vmem>>, vector<58x8xf32>,
    %c0_122 = arith.constant 0 : index
    %c128 = arith.constant 128 : index
    %151 = vector.load %arg21[%c0_122, %c128] : memref<58x224xf32, #tpu.memory_space<vmem>>, vector<58x8xf32>
    %c0_123 = arith.constant 0 : index
    %c136 = arith.constant 136 : index
    %152 = vector.load %arg21[%c0_123, %c136] : memref<58x224xf32, #tpu.memory_space<vmem>>, vector<58x8xf32>
    %153 = arith.maximumf %151, %152 : vector<58x8xf32>
    %c0_124 = arith.constant 0 : index
    %c64_125 = arith.constant 64 : index
    %154 = vector.load %arg22[%c0_124, %c64_125] : memref<58x112xf32, #tpu.memory_space<vmem>>, vector<58x8xf32>
    tpu.vector_store %arg22[%c0_124, %c64_125], %153 {strides = array<i32>} : memref<58x112xf32, #tpu.memory_space<vmem>>, vector<58x8xf32>,
    %c0_126 = arith.constant 0 : index
    %c144 = arith.constant 144 : index
    %155 = vector.load %arg21[%c0_126, %c144] : memref<58x224xf32, #tpu.memory_space<vmem>>, vector<58x8xf32>
    %c0_127 = arith.constant 0 : index
    %c152 = arith.constant 152 : index
    %156 = vector.load %arg21[%c0_127, %c152] : memref<58x224xf32, #tpu.memory_space<vmem>>, vector<58x8xf32>
    %157 = arith.maximumf %155, %156 : vector<58x8xf32>
    %c0_128 = arith.constant 0 : index
    %c72_129 = arith.constant 72 : index
    %158 = vector.load %arg22[%c0_128, %c72_129] : memref<58x112xf32, #tpu.memory_space<vmem>>, vector<58x8xf32>
    tpu.vector_store %arg22[%c0_128, %c72_129], %157 {strides = array<i32>} : memref<58x112xf32, #tpu.memory_space<vmem>>, vector<58x8xf32>,
    %c0_130 = arith.constant 0 : index
    %c160 = arith.constant 160 : index
    %159 = vector.load %arg21[%c0_130, %c160] : memref<58x224xf32, #tpu.memory_space<vmem>>, vector<58x8xf32>
    %c0_131 = arith.constant 0 : index
    %c168 = arith.constant 168 : index
    %160 = vector.load %arg21[%c0_131, %c168] : memref<58x224xf32, #tpu.memory_space<vmem>>, vector<58x8xf32>
    %161 = arith.maximumf %159, %160 : vector<58x8xf32>
    %c0_132 = arith.constant 0 : index
    %c80_133 = arith.constant 80 : index
    %162 = vector.load %arg22[%c0_132, %c80_133] : memref<58x112xf32, #tpu.memory_space<vmem>>, vector<58x8xf32>
    tpu.vector_store %arg22[%c0_132, %c80_133], %161 {strides = array<i32>} : memref<58x112xf32, #tpu.memory_space<vmem>>, vector<58x8xf32>,
    %c0_134 = arith.constant 0 : index
    %c176 = arith.constant 176 : index
    %163 = vector.load %arg21[%c0_134, %c176] : memref<58x224xf32, #tpu.memory_space<vmem>>, vector<58x8xf32>
    %c0_135 = arith.constant 0 : index
    %c184 = arith.constant 184 : index
    %164 = vector.load %arg21[%c0_135, %c184] : memref<58x224xf32, #tpu.memory_space<vmem>>, vector<58x8xf32>
    %165 = arith.maximumf %163, %164 : vector<58x8xf32>
    %c0_136 = arith.constant 0 : index
    %c88_137 = arith.constant 88 : index
    %166 = vector.load %arg22[%c0_136, %c88_137] : memref<58x112xf32, #tpu.memory_space<vmem>>, vector<58x8xf32>
    tpu.vector_store %arg22[%c0_136, %c88_137], %165 {strides = array<i32>} : memref<58x112xf32, #tpu.memory_space<vmem>>, vector<58x8xf32>,
    %c0_138 = arith.constant 0 : index
    %c192 = arith.constant 192 : index
    %167 = vector.load %arg21[%c0_138, %c192] : memref<58x224xf32, #tpu.memory_space<vmem>>, vector<58x8xf32>
    %c0_139 = arith.constant 0 : index
    %c200 = arith.constant 200 : index
    %168 = vector.load %arg21[%c0_139, %c200] : memref<58x224xf32, #tpu.memory_space<vmem>>, vector<58x8xf32>
    %169 = arith.maximumf %167, %168 : vector<58x8xf32>
    %c0_140 = arith.constant 0 : index
    %c96_141 = arith.constant 96 : index
    %170 = vector.load %arg22[%c0_140, %c96_141] : memref<58x112xf32, #tpu.memory_space<vmem>>, vector<58x8xf32>
    tpu.vector_store %arg22[%c0_140, %c96_141], %169 {strides = array<i32>} : memref<58x112xf32, #tpu.memory_space<vmem>>, vector<58x8xf32>,
    %c0_142 = arith.constant 0 : index
    %c208 = arith.constant 208 : index
    %171 = vector.load %arg21[%c0_142, %c208] : memref<58x224xf32, #tpu.memory_space<vmem>>, vector<58x8xf32>
    %c0_143 = arith.constant 0 : index
    %c216 = arith.constant 216 : index
    %172 = vector.load %arg21[%c0_143, %c216] : memref<58x224xf32, #tpu.memory_space<vmem>>, vector<58x8xf32>
    %173 = arith.maximumf %171, %172 : vector<58x8xf32>
    %c0_144 = arith.constant 0 : index
    %c104_145 = arith.constant 104 : index
    %174 = vector.load %arg22[%c0_144, %c104_145] : memref<58x112xf32, #tpu.memory_space<vmem>>, vector<58x8xf32>
    tpu.vector_store %arg22[%c0_144, %c104_145], %173 {strides = array<i32>} : memref<58x112xf32, #tpu.memory_space<vmem>>, vector<58x8xf32>,
    %c0_146 = arith.constant 0 : index
    %c0_147 = arith.constant 0 : index
    %175 = vector.load %arg22[%c0_146, %c0_147] : memref<58x112xf32, #tpu.memory_space<vmem>>, vector<1x112xf32>
    %c1_148 = arith.constant 1 : index
    %c0_149 = arith.constant 0 : index
    %176 = vector.load %arg22[%c1_148, %c0_149] : memref<58x112xf32, #tpu.memory_space<vmem>>, vector<1x112xf32>
    %177 = arith.maximumf %175, %176 : vector<1x112xf32>
    %c1_150 = arith.constant 1 : index
    %c8_151 = arith.constant 8 : index
    %178 = vector.load %arg23[%c1_150, %c8_151] : memref<32x128xf32, #tpu.memory_space<vmem>>, vector<1x112xf32>
    tpu.vector_store %arg23[%c1_150, %c8_151], %177 {strides = array<i32>} : memref<32x128xf32, #tpu.memory_space<vmem>>, vector<1x112xf32>,
    %c2_152 = arith.constant 2 : index
    %c0_153 = arith.constant 0 : index
    %179 = vector.load %arg22[%c2_152, %c0_153] : memref<58x112xf32, #tpu.memory_space<vmem>>, vector<1x112xf32>
    %c3_154 = arith.constant 3 : index
    %c0_155 = arith.constant 0 : index
    %180 = vector.load %arg22[%c3_154, %c0_155] : memref<58x112xf32, #tpu.memory_space<vmem>>, vector<1x112xf32>
    %181 = arith.maximumf %179, %180 : vector<1x112xf32>
    %c2_156 = arith.constant 2 : index
    %c8_157 = arith.constant 8 : index
    %182 = vector.load %arg23[%c2_156, %c8_157] : memref<32x128xf32, #tpu.memory_space<vmem>>, vector<1x112xf32>
    tpu.vector_store %arg23[%c2_156, %c8_157], %181 {strides = array<i32>} : memref<32x128xf32, #tpu.memory_space<vmem>>, vector<1x112xf32>,
    %c4_158 = arith.constant 4 : index
    %c0_159 = arith.constant 0 : index
    %183 = vector.load %arg22[%c4_158, %c0_159] : memref<58x112xf32, #tpu.memory_space<vmem>>, vector<1x112xf32>
    %c5_160 = arith.constant 5 : index
    %c0_161 = arith.constant 0 : index
    %184 = vector.load %arg22[%c5_160, %c0_161] : memref<58x112xf32, #tpu.memory_space<vmem>>, vector<1x112xf32>
    %185 = arith.maximumf %183, %184 : vector<1x112xf32>
    %c3_162 = arith.constant 3 : index
    %c8_163 = arith.constant 8 : index
    %186 = vector.load %arg23[%c3_162, %c8_163] : memref<32x128xf32, #tpu.memory_space<vmem>>, vector<1x112xf32>
    tpu.vector_store %arg23[%c3_162, %c8_163], %185 {strides = array<i32>} : memref<32x128xf32, #tpu.memory_space<vmem>>, vector<1x112xf32>,
    %c6_164 = arith.constant 6 : index
    %c0_165 = arith.constant 0 : index
    %187 = vector.load %arg22[%c6_164, %c0_165] : memref<58x112xf32, #tpu.memory_space<vmem>>, vector<1x112xf32>
    %c7_166 = arith.constant 7 : index
    %c0_167 = arith.constant 0 : index
    %188 = vector.load %arg22[%c7_166, %c0_167] : memref<58x112xf32, #tpu.memory_space<vmem>>, vector<1x112xf32>
    %189 = arith.maximumf %187, %188 : vector<1x112xf32>
    %c4_168 = arith.constant 4 : index
    %c8_169 = arith.constant 8 : index
    %190 = vector.load %arg23[%c4_168, %c8_169] : memref<32x128xf32, #tpu.memory_space<vmem>>, vector<1x112xf32>
    tpu.vector_store %arg23[%c4_168, %c8_169], %189 {strides = array<i32>} : memref<32x128xf32, #tpu.memory_space<vmem>>, vector<1x112xf32>,
    %c8_170 = arith.constant 8 : index
    %c0_171 = arith.constant 0 : index
    %191 = vector.load %arg22[%c8_170, %c0_171] : memref<58x112xf32, #tpu.memory_space<vmem>>, vector<1x112xf32>
    %c9 = arith.constant 9 : index
    %c0_172 = arith.constant 0 : index
    %192 = vector.load %arg22[%c9, %c0_172] : memref<58x112xf32, #tpu.memory_space<vmem>>, vector<1x112xf32>
    %193 = arith.maximumf %191, %192 : vector<1x112xf32>
    %c5_173 = arith.constant 5 : index
    %c8_174 = arith.constant 8 : index
    %194 = vector.load %arg23[%c5_173, %c8_174] : memref<32x128xf32, #tpu.memory_space<vmem>>, vector<1x112xf32>
    tpu.vector_store %arg23[%c5_173, %c8_174], %193 {strides = array<i32>} : memref<32x128xf32, #tpu.memory_space<vmem>>, vector<1x112xf32>,
    %c10 = arith.constant 10 : index
    %c0_175 = arith.constant 0 : index
    %195 = vector.load %arg22[%c10, %c0_175] : memref<58x112xf32, #tpu.memory_space<vmem>>, vector<1x112xf32>
    %c11 = arith.constant 11 : index
    %c0_176 = arith.constant 0 : index
    %196 = vector.load %arg22[%c11, %c0_176] : memref<58x112xf32, #tpu.memory_space<vmem>>, vector<1x112xf32>
    %197 = arith.maximumf %195, %196 : vector<1x112xf32>
    %c6_177 = arith.constant 6 : index
    %c8_178 = arith.constant 8 : index
    %198 = vector.load %arg23[%c6_177, %c8_178] : memref<32x128xf32, #tpu.memory_space<vmem>>, vector<1x112xf32>
    tpu.vector_store %arg23[%c6_177, %c8_178], %197 {strides = array<i32>} : memref<32x128xf32, #tpu.memory_space<vmem>>, vector<1x112xf32>,
    %c12 = arith.constant 12 : index
    %c0_179 = arith.constant 0 : index
    %199 = vector.load %arg22[%c12, %c0_179] : memref<58x112xf32, #tpu.memory_space<vmem>>, vector<1x112xf32>
    %c13 = arith.constant 13 : index
    %c0_180 = arith.constant 0 : index
    %200 = vector.load %arg22[%c13, %c0_180] : memref<58x112xf32, #tpu.memory_space<vmem>>, vector<1x112xf32>
    %201 = arith.maximumf %199, %200 : vector<1x112xf32>
    %c7_181 = arith.constant 7 : index
    %c8_182 = arith.constant 8 : index
    %202 = vector.load %arg23[%c7_181, %c8_182] : memref<32x128xf32, #tpu.memory_space<vmem>>, vector<1x112xf32>
    tpu.vector_store %arg23[%c7_181, %c8_182], %201 {strides = array<i32>} : memref<32x128xf32, #tpu.memory_space<vmem>>, vector<1x112xf32>,
    %c14 = arith.constant 14 : index
    %c0_183 = arith.constant 0 : index
    %203 = vector.load %arg22[%c14, %c0_183] : memref<58x112xf32, #tpu.memory_space<vmem>>, vector<1x112xf32>
    %c15 = arith.constant 15 : index
    %c0_184 = arith.constant 0 : index
    %204 = vector.load %arg22[%c15, %c0_184] : memref<58x112xf32, #tpu.memory_space<vmem>>, vector<1x112xf32>
    %205 = arith.maximumf %203, %204 : vector<1x112xf32>
    %c8_185 = arith.constant 8 : index
    %c8_186 = arith.constant 8 : index
    %206 = vector.load %arg23[%c8_185, %c8_186] : memref<32x128xf32, #tpu.memory_space<vmem>>, vector<1x112xf32>
    tpu.vector_store %arg23[%c8_185, %c8_186], %205 {strides = array<i32>} : memref<32x128xf32, #tpu.memory_space<vmem>>, vector<1x112xf32>,
    %c16_187 = arith.constant 16 : index
    %c0_188 = arith.constant 0 : index
    %207 = vector.load %arg22[%c16_187, %c0_188] : memref<58x112xf32, #tpu.memory_space<vmem>>, vector<1x112xf32>
    %c17 = arith.constant 17 : index
    %c0_189 = arith.constant 0 : index
    %208 = vector.load %arg22[%c17, %c0_189] : memref<58x112xf32, #tpu.memory_space<vmem>>, vector<1x112xf32>
    %209 = arith.maximumf %207, %208 : vector<1x112xf32>
    %c9_190 = arith.constant 9 : index
    %c8_191 = arith.constant 8 : index
    %210 = vector.load %arg23[%c9_190, %c8_191] : memref<32x128xf32, #tpu.memory_space<vmem>>, vector<1x112xf32>
    tpu.vector_store %arg23[%c9_190, %c8_191], %209 {strides = array<i32>} : memref<32x128xf32, #tpu.memory_space<vmem>>, vector<1x112xf32>,
    %c18 = arith.constant 18 : index
    %c0_192 = arith.constant 0 : index
    %211 = vector.load %arg22[%c18, %c0_192] : memref<58x112xf32, #tpu.memory_space<vmem>>, vector<1x112xf32>
    %c19 = arith.constant 19 : index
    %c0_193 = arith.constant 0 : index
    %212 = vector.load %arg22[%c19, %c0_193] : memref<58x112xf32, #tpu.memory_space<vmem>>, vector<1x112xf32>
    %213 = arith.maximumf %211, %212 : vector<1x112xf32>
    %c10_194 = arith.constant 10 : index
    %c8_195 = arith.constant 8 : index
    %214 = vector.load %arg23[%c10_194, %c8_195] : memref<32x128xf32, #tpu.memory_space<vmem>>, vector<1x112xf32>
    tpu.vector_store %arg23[%c10_194, %c8_195], %213 {strides = array<i32>} : memref<32x128xf32, #tpu.memory_space<vmem>>, vector<1x112xf32>,
    %c20 = arith.constant 20 : index
    %c0_196 = arith.constant 0 : index
    %215 = vector.load %arg22[%c20, %c0_196] : memref<58x112xf32, #tpu.memory_space<vmem>>, vector<1x112xf32>
    %c21 = arith.constant 21 : index
    %c0_197 = arith.constant 0 : index
    %216 = vector.load %arg22[%c21, %c0_197] : memref<58x112xf32, #tpu.memory_space<vmem>>, vector<1x112xf32>
    %217 = arith.maximumf %215, %216 : vector<1x112xf32>
    %c11_198 = arith.constant 11 : index
    %c8_199 = arith.constant 8 : index
    %218 = vector.load %arg23[%c11_198, %c8_199] : memref<32x128xf32, #tpu.memory_space<vmem>>, vector<1x112xf32>
    tpu.vector_store %arg23[%c11_198, %c8_199], %217 {strides = array<i32>} : memref<32x128xf32, #tpu.memory_space<vmem>>, vector<1x112xf32>,
    %c22 = arith.constant 22 : index
    %c0_200 = arith.constant 0 : index
    %219 = vector.load %arg22[%c22, %c0_200] : memref<58x112xf32, #tpu.memory_space<vmem>>, vector<1x112xf32>
    %c23 = arith.constant 23 : index
    %c0_201 = arith.constant 0 : index
    %220 = vector.load %arg22[%c23, %c0_201] : memref<58x112xf32, #tpu.memory_space<vmem>>, vector<1x112xf32>
    %221 = arith.maximumf %219, %220 : vector<1x112xf32>
    %c12_202 = arith.constant 12 : index
    %c8_203 = arith.constant 8 : index
    %222 = vector.load %arg23[%c12_202, %c8_203] : memref<32x128xf32, #tpu.memory_space<vmem>>, vector<1x112xf32>
    tpu.vector_store %arg23[%c12_202, %c8_203], %221 {strides = array<i32>} : memref<32x128xf32, #tpu.memory_space<vmem>>, vector<1x112xf32>,
    %c24_204 = arith.constant 24 : index
    %c0_205 = arith.constant 0 : index
    %223 = vector.load %arg22[%c24_204, %c0_205] : memref<58x112xf32, #tpu.memory_space<vmem>>, vector<1x112xf32>
    %c25 = arith.constant 25 : index
    %c0_206 = arith.constant 0 : index
    %224 = vector.load %arg22[%c25, %c0_206] : memref<58x112xf32, #tpu.memory_space<vmem>>, vector<1x112xf32>
    %225 = arith.maximumf %223, %224 : vector<1x112xf32>
    %c13_207 = arith.constant 13 : index
    %c8_208 = arith.constant 8 : index
    %226 = vector.load %arg23[%c13_207, %c8_208] : memref<32x128xf32, #tpu.memory_space<vmem>>, vector<1x112xf32>
    tpu.vector_store %arg23[%c13_207, %c8_208], %225 {strides = array<i32>} : memref<32x128xf32, #tpu.memory_space<vmem>>, vector<1x112xf32>,
    %c26 = arith.constant 26 : index
    %c0_209 = arith.constant 0 : index
    %227 = vector.load %arg22[%c26, %c0_209] : memref<58x112xf32, #tpu.memory_space<vmem>>, vector<1x112xf32>
    %c27 = arith.constant 27 : index
    %c0_210 = arith.constant 0 : index
    %228 = vector.load %arg22[%c27, %c0_210] : memref<58x112xf32, #tpu.memory_space<vmem>>, vector<1x112xf32>
    %229 = arith.maximumf %227, %228 : vector<1x112xf32>
    %c14_211 = arith.constant 14 : index
    %c8_212 = arith.constant 8 : index
    %230 = vector.load %arg23[%c14_211, %c8_212] : memref<32x128xf32, #tpu.memory_space<vmem>>, vector<1x112xf32>
    tpu.vector_store %arg23[%c14_211, %c8_212], %229 {strides = array<i32>} : memref<32x128xf32, #tpu.memory_space<vmem>>, vector<1x112xf32>,
    %c30 = arith.constant 30 : index
    %c0_213 = arith.constant 0 : index
    %231 = vector.load %arg22[%c30, %c0_213] : memref<58x112xf32, #tpu.memory_space<vmem>>, vector<1x112xf32>
    %c31_214 = arith.constant 31 : index
    %c0_215 = arith.constant 0 : index
    %232 = vector.load %arg22[%c31_214, %c0_215] : memref<58x112xf32, #tpu.memory_space<vmem>>, vector<1x112xf32>
    %233 = arith.maximumf %231, %232 : vector<1x112xf32>
    %c17_216 = arith.constant 17 : index
    %c8_217 = arith.constant 8 : index
    %234 = vector.load %arg23[%c17_216, %c8_217] : memref<32x128xf32, #tpu.memory_space<vmem>>, vector<1x112xf32>
    tpu.vector_store %arg23[%c17_216, %c8_217], %233 {strides = array<i32>} : memref<32x128xf32, #tpu.memory_space<vmem>>, vector<1x112xf32>,
    %c32_218 = arith.constant 32 : index
    %c0_219 = arith.constant 0 : index
    %235 = vector.load %arg22[%c32_218, %c0_219] : memref<58x112xf32, #tpu.memory_space<vmem>>, vector<1x112xf32>
    %c33 = arith.constant 33 : index
    %c0_220 = arith.constant 0 : index
    %236 = vector.load %arg22[%c33, %c0_220] : memref<58x112xf32, #tpu.memory_space<vmem>>, vector<1x112xf32>
    %237 = arith.maximumf %235, %236 : vector<1x112xf32>
    %c18_221 = arith.constant 18 : index
    %c8_222 = arith.constant 8 : index
    %238 = vector.load %arg23[%c18_221, %c8_222] : memref<32x128xf32, #tpu.memory_space<vmem>>, vector<1x112xf32>
    tpu.vector_store %arg23[%c18_221, %c8_222], %237 {strides = array<i32>} : memref<32x128xf32, #tpu.memory_space<vmem>>, vector<1x112xf32>,
    %c34 = arith.constant 34 : index
    %c0_223 = arith.constant 0 : index
    %239 = vector.load %arg22[%c34, %c0_223] : memref<58x112xf32, #tpu.memory_space<vmem>>, vector<1x112xf32>
    %c35 = arith.constant 35 : index
    %c0_224 = arith.constant 0 : index
    %240 = vector.load %arg22[%c35, %c0_224] : memref<58x112xf32, #tpu.memory_space<vmem>>, vector<1x112xf32>
    %241 = arith.maximumf %239, %240 : vector<1x112xf32>
    %c19_225 = arith.constant 19 : index
    %c8_226 = arith.constant 8 : index
    %242 = vector.load %arg23[%c19_225, %c8_226] : memref<32x128xf32, #tpu.memory_space<vmem>>, vector<1x112xf32>
    tpu.vector_store %arg23[%c19_225, %c8_226], %241 {strides = array<i32>} : memref<32x128xf32, #tpu.memory_space<vmem>>, vector<1x112xf32>,
    %c36 = arith.constant 36 : index
    %c0_227 = arith.constant 0 : index
    %243 = vector.load %arg22[%c36, %c0_227] : memref<58x112xf32, #tpu.memory_space<vmem>>, vector<1x112xf32>
    %c37 = arith.constant 37 : index
    %c0_228 = arith.constant 0 : index
    %244 = vector.load %arg22[%c37, %c0_228] : memref<58x112xf32, #tpu.memory_space<vmem>>, vector<1x112xf32>
    %245 = arith.maximumf %243, %244 : vector<1x112xf32>
    %c20_229 = arith.constant 20 : index
    %c8_230 = arith.constant 8 : index
    %246 = vector.load %arg23[%c20_229, %c8_230] : memref<32x128xf32, #tpu.memory_space<vmem>>, vector<1x112xf32>
    tpu.vector_store %arg23[%c20_229, %c8_230], %245 {strides = array<i32>} : memref<32x128xf32, #tpu.memory_space<vmem>>, vector<1x112xf32>,
    %c38 = arith.constant 38 : index
    %c0_231 = arith.constant 0 : index
    %247 = vector.load %arg22[%c38, %c0_231] : memref<58x112xf32, #tpu.memory_space<vmem>>, vector<1x112xf32>
    %c39 = arith.constant 39 : index
    %c0_232 = arith.constant 0 : index
    %248 = vector.load %arg22[%c39, %c0_232] : memref<58x112xf32, #tpu.memory_space<vmem>>, vector<1x112xf32>
    %249 = arith.maximumf %247, %248 : vector<1x112xf32>
    %c21_233 = arith.constant 21 : index
    %c8_234 = arith.constant 8 : index
    %250 = vector.load %arg23[%c21_233, %c8_234] : memref<32x128xf32, #tpu.memory_space<vmem>>, vector<1x112xf32>
    tpu.vector_store %arg23[%c21_233, %c8_234], %249 {strides = array<i32>} : memref<32x128xf32, #tpu.memory_space<vmem>>, vector<1x112xf32>,
    %c40_235 = arith.constant 40 : index
    %c0_236 = arith.constant 0 : index
    %251 = vector.load %arg22[%c40_235, %c0_236] : memref<58x112xf32, #tpu.memory_space<vmem>>, vector<1x112xf32>
    %c41 = arith.constant 41 : index
    %c0_237 = arith.constant 0 : index
    %252 = vector.load %arg22[%c41, %c0_237] : memref<58x112xf32, #tpu.memory_space<vmem>>, vector<1x112xf32>
    %253 = arith.maximumf %251, %252 : vector<1x112xf32>
    %c22_238 = arith.constant 22 : index
    %c8_239 = arith.constant 8 : index
    %254 = vector.load %arg23[%c22_238, %c8_239] : memref<32x128xf32, #tpu.memory_space<vmem>>, vector<1x112xf32>
    tpu.vector_store %arg23[%c22_238, %c8_239], %253 {strides = array<i32>} : memref<32x128xf32, #tpu.memory_space<vmem>>, vector<1x112xf32>,
    %c42 = arith.constant 42 : index
    %c0_240 = arith.constant 0 : index
    %255 = vector.load %arg22[%c42, %c0_240] : memref<58x112xf32, #tpu.memory_space<vmem>>, vector<1x112xf32>
    %c43 = arith.constant 43 : index
    %c0_241 = arith.constant 0 : index
    %256 = vector.load %arg22[%c43, %c0_241] : memref<58x112xf32, #tpu.memory_space<vmem>>, vector<1x112xf32>
    %257 = arith.maximumf %255, %256 : vector<1x112xf32>
    %c23_242 = arith.constant 23 : index
    %c8_243 = arith.constant 8 : index
    %258 = vector.load %arg23[%c23_242, %c8_243] : memref<32x128xf32, #tpu.memory_space<vmem>>, vector<1x112xf32>
    tpu.vector_store %arg23[%c23_242, %c8_243], %257 {strides = array<i32>} : memref<32x128xf32, #tpu.memory_space<vmem>>, vector<1x112xf32>,
    %c44 = arith.constant 44 : index
    %c0_244 = arith.constant 0 : index
    %259 = vector.load %arg22[%c44, %c0_244] : memref<58x112xf32, #tpu.memory_space<vmem>>, vector<1x112xf32>
    %c45 = arith.constant 45 : index
    %c0_245 = arith.constant 0 : index
    %260 = vector.load %arg22[%c45, %c0_245] : memref<58x112xf32, #tpu.memory_space<vmem>>, vector<1x112xf32>
    %261 = arith.maximumf %259, %260 : vector<1x112xf32>
    %c24_246 = arith.constant 24 : index
    %c8_247 = arith.constant 8 : index
    %262 = vector.load %arg23[%c24_246, %c8_247] : memref<32x128xf32, #tpu.memory_space<vmem>>, vector<1x112xf32>
    tpu.vector_store %arg23[%c24_246, %c8_247], %261 {strides = array<i32>} : memref<32x128xf32, #tpu.memory_space<vmem>>, vector<1x112xf32>,
    %c46 = arith.constant 46 : index
    %c0_248 = arith.constant 0 : index
    %263 = vector.load %arg22[%c46, %c0_248] : memref<58x112xf32, #tpu.memory_space<vmem>>, vector<1x112xf32>
    %c47 = arith.constant 47 : index
    %c0_249 = arith.constant 0 : index
    %264 = vector.load %arg22[%c47, %c0_249] : memref<58x112xf32, #tpu.memory_space<vmem>>, vector<1x112xf32>
    %265 = arith.maximumf %263, %264 : vector<1x112xf32>
    %c25_250 = arith.constant 25 : index
    %c8_251 = arith.constant 8 : index
    %266 = vector.load %arg23[%c25_250, %c8_251] : memref<32x128xf32, #tpu.memory_space<vmem>>, vector<1x112xf32>
    tpu.vector_store %arg23[%c25_250, %c8_251], %265 {strides = array<i32>} : memref<32x128xf32, #tpu.memory_space<vmem>>, vector<1x112xf32>,
    %c48_252 = arith.constant 48 : index
    %c0_253 = arith.constant 0 : index
    %267 = vector.load %arg22[%c48_252, %c0_253] : memref<58x112xf32, #tpu.memory_space<vmem>>, vector<1x112xf32>
    %c49 = arith.constant 49 : index
    %c0_254 = arith.constant 0 : index
    %268 = vector.load %arg22[%c49, %c0_254] : memref<58x112xf32, #tpu.memory_space<vmem>>, vector<1x112xf32>
    %269 = arith.maximumf %267, %268 : vector<1x112xf32>
    %c26_255 = arith.constant 26 : index
    %c8_256 = arith.constant 8 : index
    %270 = vector.load %arg23[%c26_255, %c8_256] : memref<32x128xf32, #tpu.memory_space<vmem>>, vector<1x112xf32>
    tpu.vector_store %arg23[%c26_255, %c8_256], %269 {strides = array<i32>} : memref<32x128xf32, #tpu.memory_space<vmem>>, vector<1x112xf32>,
    %c50 = arith.constant 50 : index
    %c0_257 = arith.constant 0 : index
    %271 = vector.load %arg22[%c50, %c0_257] : memref<58x112xf32, #tpu.memory_space<vmem>>, vector<1x112xf32>
    %c51 = arith.constant 51 : index
    %c0_258 = arith.constant 0 : index
    %272 = vector.load %arg22[%c51, %c0_258] : memref<58x112xf32, #tpu.memory_space<vmem>>, vector<1x112xf32>
    %273 = arith.maximumf %271, %272 : vector<1x112xf32>
    %c27_259 = arith.constant 27 : index
    %c8_260 = arith.constant 8 : index
    %274 = vector.load %arg23[%c27_259, %c8_260] : memref<32x128xf32, #tpu.memory_space<vmem>>, vector<1x112xf32>
    tpu.vector_store %arg23[%c27_259, %c8_260], %273 {strides = array<i32>} : memref<32x128xf32, #tpu.memory_space<vmem>>, vector<1x112xf32>,
    %c52 = arith.constant 52 : index
    %c0_261 = arith.constant 0 : index
    %275 = vector.load %arg22[%c52, %c0_261] : memref<58x112xf32, #tpu.memory_space<vmem>>, vector<1x112xf32>
    %c53 = arith.constant 53 : index
    %c0_262 = arith.constant 0 : index
    %276 = vector.load %arg22[%c53, %c0_262] : memref<58x112xf32, #tpu.memory_space<vmem>>, vector<1x112xf32>
    %277 = arith.maximumf %275, %276 : vector<1x112xf32>
    %c28_263 = arith.constant 28 : index
    %c8_264 = arith.constant 8 : index
    %278 = vector.load %arg23[%c28_263, %c8_264] : memref<32x128xf32, #tpu.memory_space<vmem>>, vector<1x112xf32>
    tpu.vector_store %arg23[%c28_263, %c8_264], %277 {strides = array<i32>} : memref<32x128xf32, #tpu.memory_space<vmem>>, vector<1x112xf32>,
    %c54 = arith.constant 54 : index
    %c0_265 = arith.constant 0 : index
    %279 = vector.load %arg22[%c54, %c0_265] : memref<58x112xf32, #tpu.memory_space<vmem>>, vector<1x112xf32>
    %c55 = arith.constant 55 : index
    %c0_266 = arith.constant 0 : index
    %280 = vector.load %arg22[%c55, %c0_266] : memref<58x112xf32, #tpu.memory_space<vmem>>, vector<1x112xf32>
    %281 = arith.maximumf %279, %280 : vector<1x112xf32>
    %c29 = arith.constant 29 : index
    %c8_267 = arith.constant 8 : index
    %282 = vector.load %arg23[%c29, %c8_267] : memref<32x128xf32, #tpu.memory_space<vmem>>, vector<1x112xf32>
    tpu.vector_store %arg23[%c29, %c8_267], %281 {strides = array<i32>} : memref<32x128xf32, #tpu.memory_space<vmem>>, vector<1x112xf32>,
    %c56_268 = arith.constant 56 : index
    %c0_269 = arith.constant 0 : index
    %283 = vector.load %arg22[%c56_268, %c0_269] : memref<58x112xf32, #tpu.memory_space<vmem>>, vector<1x112xf32>
    %c57 = arith.constant 57 : index
    %c0_270 = arith.constant 0 : index
    %284 = vector.load %arg22[%c57, %c0_270] : memref<58x112xf32, #tpu.memory_space<vmem>>, vector<1x112xf32>
    %285 = arith.maximumf %283, %284 : vector<1x112xf32>
    %c30_271 = arith.constant 30 : index
    %c8_272 = arith.constant 8 : index
    %286 = vector.load %arg23[%c30_271, %c8_272] : memref<32x128xf32, #tpu.memory_space<vmem>>, vector<1x112xf32>
    tpu.vector_store %arg23[%c30_271, %c8_272], %285 {strides = array<i32>} : memref<32x128xf32, #tpu.memory_space<vmem>>, vector<1x112xf32>,
    %cst_273 = arith.constant 0.000000e+00 : f32
    %287 = vector.broadcast %cst_273 : f32 to vector<30x224xf32>
    %c0_274 = arith.constant 0 : index
    %c0_275 = arith.constant 0 : index
    %288 = vector.load %arg23[%c0_274, %c0_275] : memref<32x128xf32, #tpu.memory_space<vmem>>, vector<30x112xf32>
    %c0_276 = arith.constant 0 : index
    %c0_277 = arith.constant 0 : index
    %c0_278 = arith.constant 0 : index
    %289 = vector.load %arg3[%c0_276, %c0_277, %c0_278] : memref<9x112x224xf32, #tpu.memory_space<vmem>>, vector<1x112x224xf32>
    %290 = vector.shape_cast %289 : vector<1x112x224xf32> to vector<112x224xf32>
    %cst_279 = arith.constant dense<0.000000e+00> : vector<30x224xf32>
    %291 = tpu.matmul %288, %290, %cst_279 {dimension_numbers = #tpu.dot_dimension_numbers<[1], [0], [0], [1], [0, 0, 1, 1], [], []>} : vector<30x112xf32>, vector<112x224xf32>, vector<30x224xf32> -> vector<30x224xf32>
    %292 = arith.addf %287, %291 : vector<30x224xf32>
    %c0_280 = arith.constant 0 : index
    %c8_281 = arith.constant 8 : index
    %293 = vector.load %arg23[%c0_280, %c8_281] : memref<32x128xf32, #tpu.memory_space<vmem>>, vector<30x112xf32>
    %c1_282 = arith.constant 1 : index
    %c0_283 = arith.constant 0 : index
    %c0_284 = arith.constant 0 : index
    %294 = vector.load %arg3[%c1_282, %c0_283, %c0_284] : memref<9x112x224xf32, #tpu.memory_space<vmem>>, vector<1x112x224xf32>
    %295 = vector.shape_cast %294 : vector<1x112x224xf32> to vector<112x224xf32>
    %cst_285 = arith.constant dense<0.000000e+00> : vector<30x224xf32>
    %296 = tpu.matmul %293, %295, %cst_285 {dimension_numbers = #tpu.dot_dimension_numbers<[1], [0], [0], [1], [0, 0, 1, 1], [], []>} : vector<30x112xf32>, vector<112x224xf32>, vector<30x224xf32> -> vector<30x224xf32>
    %297 = arith.addf %292, %296 : vector<30x224xf32>
    %c0_286 = arith.constant 0 : index
    %c16_287 = arith.constant 16 : index
    %298 = vector.load %arg23[%c0_286, %c16_287] : memref<32x128xf32, #tpu.memory_space<vmem>>, vector<30x112xf32>
    %c2_288 = arith.constant 2 : index
    %c0_289 = arith.constant 0 : index
    %c0_290 = arith.constant 0 : index
    %299 = vector.load %arg3[%c2_288, %c0_289, %c0_290] : memref<9x112x224xf32, #tpu.memory_space<vmem>>, vector<1x112x224xf32>
    %300 = vector.shape_cast %299 : vector<1x112x224xf32> to vector<112x224xf32>
    %cst_291 = arith.constant dense<0.000000e+00> : vector<30x224xf32>
    %301 = tpu.matmul %298, %300, %cst_291 {dimension_numbers = #tpu.dot_dimension_numbers<[1], [0], [0], [1], [0, 0, 1, 1], [], []>} : vector<30x112xf32>, vector<112x224xf32>, vector<30x224xf32> -> vector<30x224xf32>
    %302 = arith.addf %297, %301 : vector<30x224xf32>
    %c1_292 = arith.constant 1 : index
    %c0_293 = arith.constant 0 : index
    %303 = vector.load %arg23[%c1_292, %c0_293] : memref<32x128xf32, #tpu.memory_space<vmem>>, vector<30x112xf32>
    %c3_294 = arith.constant 3 : index
    %c0_295 = arith.constant 0 : index
    %c0_296 = arith.constant 0 : index
    %304 = vector.load %arg3[%c3_294, %c0_295, %c0_296] : memref<9x112x224xf32, #tpu.memory_space<vmem>>, vector<1x112x224xf32>
    %305 = vector.shape_cast %304 : vector<1x112x224xf32> to vector<112x224xf32>
    %cst_297 = arith.constant dense<0.000000e+00> : vector<30x224xf32>
    %306 = tpu.matmul %303, %305, %cst_297 {dimension_numbers = #tpu.dot_dimension_numbers<[1], [0], [0], [1], [0, 0, 1, 1], [], []>} : vector<30x112xf32>, vector<112x224xf32>, vector<30x224xf32> -> vector<30x224xf32>
    %307 = arith.addf %302, %306 : vector<30x224xf32>
    %c1_298 = arith.constant 1 : index
    %c8_299 = arith.constant 8 : index
    %308 = vector.load %arg23[%c1_298, %c8_299] : memref<32x128xf32, #tpu.memory_space<vmem>>, vector<30x112xf32>
    %c4_300 = arith.constant 4 : index
    %c0_301 = arith.constant 0 : index
    %c0_302 = arith.constant 0 : index
    %309 = vector.load %arg3[%c4_300, %c0_301, %c0_302] : memref<9x112x224xf32, #tpu.memory_space<vmem>>, vector<1x112x224xf32>
    %310 = vector.shape_cast %309 : vector<1x112x224xf32> to vector<112x224xf32>
    %cst_303 = arith.constant dense<0.000000e+00> : vector<30x224xf32>
    %311 = tpu.matmul %308, %310, %cst_303 {dimension_numbers = #tpu.dot_dimension_numbers<[1], [0], [0], [1], [0, 0, 1, 1], [], []>} : vector<30x112xf32>, vector<112x224xf32>, vector<30x224xf32> -> vector<30x224xf32>
    %312 = arith.addf %307, %311 : vector<30x224xf32>
    %c1_304 = arith.constant 1 : index
    %c16_305 = arith.constant 16 : index
    %313 = vector.load %arg23[%c1_304, %c16_305] : memref<32x128xf32, #tpu.memory_space<vmem>>, vector<30x112xf32>
    %c5_306 = arith.constant 5 : index
    %c0_307 = arith.constant 0 : index
    %c0_308 = arith.constant 0 : index
    %314 = vector.load %arg3[%c5_306, %c0_307, %c0_308] : memref<9x112x224xf32, #tpu.memory_space<vmem>>, vector<1x112x224xf32>
    %315 = vector.shape_cast %314 : vector<1x112x224xf32> to vector<112x224xf32>
    %cst_309 = arith.constant dense<0.000000e+00> : vector<30x224xf32>
    %316 = tpu.matmul %313, %315, %cst_309 {dimension_numbers = #tpu.dot_dimension_numbers<[1], [0], [0], [1], [0, 0, 1, 1], [], []>} : vector<30x112xf32>, vector<112x224xf32>, vector<30x224xf32> -> vector<30x224xf32>
    %317 = arith.addf %312, %316 : vector<30x224xf32>
    %c2_310 = arith.constant 2 : index
    %c0_311 = arith.constant 0 : index
    %318 = vector.load %arg23[%c2_310, %c0_311] : memref<32x128xf32, #tpu.memory_space<vmem>>, vector<30x112xf32>
    %c6_312 = arith.constant 6 : index
    %c0_313 = arith.constant 0 : index
    %c0_314 = arith.constant 0 : index
    %319 = vector.load %arg3[%c6_312, %c0_313, %c0_314] : memref<9x112x224xf32, #tpu.memory_space<vmem>>, vector<1x112x224xf32>
    %320 = vector.shape_cast %319 : vector<1x112x224xf32> to vector<112x224xf32>
    %cst_315 = arith.constant dense<0.000000e+00> : vector<30x224xf32>
    %321 = tpu.matmul %318, %320, %cst_315 {dimension_numbers = #tpu.dot_dimension_numbers<[1], [0], [0], [1], [0, 0, 1, 1], [], []>} : vector<30x112xf32>, vector<112x224xf32>, vector<30x224xf32> -> vector<30x224xf32>
    %322 = arith.addf %317, %321 : vector<30x224xf32>
    %c2_316 = arith.constant 2 : index
    %c8_317 = arith.constant 8 : index
    %323 = vector.load %arg23[%c2_316, %c8_317] : memref<32x128xf32, #tpu.memory_space<vmem>>, vector<30x112xf32>
    %c7_318 = arith.constant 7 : index
    %c0_319 = arith.constant 0 : index
    %c0_320 = arith.constant 0 : index
    %324 = vector.load %arg3[%c7_318, %c0_319, %c0_320] : memref<9x112x224xf32, #tpu.memory_space<vmem>>, vector<1x112x224xf32>
    %325 = vector.shape_cast %324 : vector<1x112x224xf32> to vector<112x224xf32>
    %cst_321 = arith.constant dense<0.000000e+00> : vector<30x224xf32>
    %326 = tpu.matmul %323, %325, %cst_321 {dimension_numbers = #tpu.dot_dimension_numbers<[1], [0], [0], [1], [0, 0, 1, 1], [], []>} : vector<30x112xf32>, vector<112x224xf32>, vector<30x224xf32> -> vector<30x224xf32>
    %327 = arith.addf %322, %326 : vector<30x224xf32>
    %c2_322 = arith.constant 2 : index
    %c16_323 = arith.constant 16 : index
    %328 = vector.load %arg23[%c2_322, %c16_323] : memref<32x128xf32, #tpu.memory_space<vmem>>, vector<30x112xf32>
    %c8_324 = arith.constant 8 : index
    %c0_325 = arith.constant 0 : index
    %c0_326 = arith.constant 0 : index
    %329 = vector.load %arg3[%c8_324, %c0_325, %c0_326] : memref<9x112x224xf32, #tpu.memory_space<vmem>>, vector<1x112x224xf32>
    %330 = vector.shape_cast %329 : vector<1x112x224xf32> to vector<112x224xf32>
    %cst_327 = arith.constant dense<0.000000e+00> : vector<30x224xf32>
    %331 = tpu.matmul %328, %330, %cst_327 {dimension_numbers = #tpu.dot_dimension_numbers<[1], [0], [0], [1], [0, 0, 1, 1], [], []>} : vector<30x112xf32>, vector<112x224xf32>, vector<30x224xf32> -> vector<30x224xf32>
    %332 = arith.addf %327, %331 : vector<30x224xf32>
    %333 = tpu.iota {dimensions = array<i32: 0>} : vector<30x1xi32>
    %c16_i32 = arith.constant 16 : i32
    %c0_i32_328 = arith.constant 0 : i32
    %334 = arith.cmpi eq, %c16_i32, %c0_i32_328 : i32
    %c1_i32_329 = arith.constant 1 : i32
    %335 = arith.select %334, %c1_i32_329, %c16_i32 : i32
    %336 = vector.broadcast %335 : i32 to vector<30x1xi32>
    %337 = arith.remsi %333, %336 : vector<30x1xi32>
    %c0_i32_330 = arith.constant 0 : i32
    %338 = vector.broadcast %c0_i32_330 : i32 to vector<30x1xi32>
    %339 = arith.cmpi ne, %337, %338 : vector<30x1xi32>
    %c0_i32_331 = arith.constant 0 : i32
    %340 = vector.broadcast %c0_i32_331 : i32 to vector<30x1xi32>
    %341 = arith.cmpi slt, %337, %340 : vector<30x1xi32>
    %c0_i32_332 = arith.constant 0 : i32
    %342 = arith.cmpi slt, %335, %c0_i32_332 : i32
    %343 = vector.broadcast %342 : i1 to vector<30x1xi1>
    %344 = vector.broadcast %343 : vector<30x1xi1> to vector<30x1xi1>
    %345 = arith.xori %341, %344 : vector<30x1xi1>
    %346 = arith.andi %345, %339 : vector<30x1xi1>
    %347 = vector.broadcast %335 : i32 to vector<30x1xi32>
    %348 = arith.addi %337, %347 : vector<30x1xi32>
    %349 = arith.select %346, %348, %337 : vector<30x1xi1>, vector<30x1xi32>
    %c14_i32 = arith.constant 14 : i32
    %350 = vector.broadcast %c14_i32 : i32 to vector<30x1xi32>
    %351 = arith.cmpi slt, %349, %350 : vector<30x1xi32>
    %cst_333 = arith.constant 0.000000e+00 : f32
    %352 = vector.shape_cast %351 : vector<30x1xi1> to vector<30x1xi1>
    %353 = vector.broadcast %352 : vector<30x1xi1> to vector<30x224xi1>
    %354 = vector.broadcast %cst_333 : f32 to vector<30x224xf32>
    %355 = arith.select %353, %332, %354 : vector<30x224xi1>, vector<30x224xf32>
    %cst_334 = arith.constant dense<0.000000e+00> : vector<224xf32>
    %356 = vector.multi_reduction <add>, %355, %cst_334 [0] : vector<30x224xf32> to vector<224xf32>
    %357 = vector.shape_cast %356 : vector<224xf32> to vector<1x224xf32>
    %358 = arith.mulf %355, %355 : vector<30x224xf32>
    %cst_335 = arith.constant dense<0.000000e+00> : vector<224xf32>
    %359 = vector.multi_reduction <add>, %358, %cst_335 [0] : vector<30x224xf32> to vector<224xf32>
    %360 = vector.shape_cast %359 : vector<224xf32> to vector<1x224xf32>
    %c0_336 = arith.constant 0 : index
    %c0_337 = arith.constant 0 : index
    %361 = vector.load %arg9[%c0_336, %c0_337] : memref<224x16xf32, #tpu.memory_space<vmem>>, vector<224x16xf32>
    %cst_338 = arith.constant dense<0.000000e+00> : vector<1x16xf32>
    %362 = tpu.matmul %357, %361, %cst_338 {dimension_numbers = #tpu.dot_dimension_numbers<[1], [0], [0], [1], [0, 0, 1, 1], [], []>} : vector<1x224xf32>, vector<224x16xf32>, vector<1x16xf32> -> vector<1x16xf32>
    %c0_339 = arith.constant 0 : index
    %c0_340 = arith.constant 0 : index
    %363 = vector.load %arg9[%c0_339, %c0_340] : memref<224x16xf32, #tpu.memory_space<vmem>>, vector<224x16xf32>
    %cst_341 = arith.constant dense<0.000000e+00> : vector<1x16xf32>
    %364 = tpu.matmul %360, %363, %cst_341 {dimension_numbers = #tpu.dot_dimension_numbers<[1], [0], [0], [1], [0, 0, 1, 1], [], []>} : vector<1x224xf32>, vector<224x16xf32>, vector<1x16xf32> -> vector<1x16xf32>
    %cst_342 = arith.constant 0.00255102036 : f32
    %365 = vector.broadcast %cst_342 : f32 to vector<1x16xf32>
    %366 = arith.mulf %362, %365 : vector<1x16xf32>
    %cst_343 = arith.constant 0.00255102036 : f32
    %367 = vector.broadcast %cst_343 : f32 to vector<1x16xf32>
    %368 = arith.mulf %364, %367 : vector<1x16xf32>
    %369 = arith.mulf %366, %366 : vector<1x16xf32>
    %370 = arith.subf %368, %369 : vector<1x16xf32>
    %cst_344 = arith.constant 0.000000e+00 : f32
    %371 = vector.broadcast %cst_344 : f32 to vector<1x16xf32>
    %372 = arith.maximumf %370, %371 : vector<1x16xf32>
    %c0_345 = arith.constant 0 : index
    %c0_346 = arith.constant 0 : index
    %373 = vector.load %arg11[%c0_345, %c0_346] : memref<1x16xf32, #tpu.memory_space<vmem>>, vector<1x16xf32>
    %cst_347 = arith.constant 9.99999974E-6 : f32
    %374 = vector.broadcast %cst_347 : f32 to vector<1x16xf32>
    %375 = arith.addf %372, %374 : vector<1x16xf32>
    %376 = math.rsqrt %375 : vector<1x16xf32>
    %377 = arith.mulf %373, %376 : vector<1x16xf32>
    %c0_348 = arith.constant 0 : index
    %c0_349 = arith.constant 0 : index
    %378 = vector.load %arg12[%c0_348, %c0_349] : memref<1x16xf32, #tpu.memory_space<vmem>>, vector<1x16xf32>
    %379 = arith.mulf %377, %366 : vector<1x16xf32>
    %380 = arith.subf %378, %379 : vector<1x16xf32>
    %c0_350 = arith.constant 0 : index
    %c0_351 = arith.constant 0 : index
    %381 = vector.load %arg10[%c0_350, %c0_351] : memref<16x224xf32, #tpu.memory_space<vmem>>, vector<16x224xf32>
    %cst_352 = arith.constant dense<0.000000e+00> : vector<1x224xf32>
    %382 = tpu.matmul %377, %381, %cst_352 {dimension_numbers = #tpu.dot_dimension_numbers<[1], [0], [0], [1], [0, 0, 1, 1], [], []>} : vector<1x16xf32>, vector<16x224xf32>, vector<1x224xf32> -> vector<1x224xf32>
    %c0_353 = arith.constant 0 : index
    %c0_354 = arith.constant 0 : index
    %383 = vector.load %arg10[%c0_353, %c0_354] : memref<16x224xf32, #tpu.memory_space<vmem>>, vector<16x224xf32>
    %cst_355 = arith.constant dense<0.000000e+00> : vector<1x224xf32>
    %384 = tpu.matmul %380, %383, %cst_355 {dimension_numbers = #tpu.dot_dimension_numbers<[1], [0], [0], [1], [0, 0, 1, 1], [], []>} : vector<1x16xf32>, vector<16x224xf32>, vector<1x224xf32> -> vector<1x224xf32>
    %385 = vector.broadcast %382 : vector<1x224xf32> to vector<30x224xf32>
    %386 = arith.mulf %355, %385 : vector<30x224xf32>
    %387 = vector.broadcast %384 : vector<1x224xf32> to vector<30x224xf32>
    %388 = arith.addf %386, %387 : vector<30x224xf32>
    %cst_356 = arith.constant 0.000000e+00 : f32
    %389 = vector.broadcast %cst_356 : f32 to vector<30x224xf32>
    %390 = arith.cmpf ogt, %388, %389 : vector<30x224xf32>
    %cst_357 = arith.constant 0.000000e+00 : f32
    %391 = vector.broadcast %cst_357 : f32 to vector<30x224xf32>
    %392 = arith.minimumf %388, %391 : vector<30x224xf32>
    %393 = math.exp %392 : vector<30x224xf32>
    %cst_358 = arith.constant 1.000000e+00 : f32
    %394 = vector.broadcast %cst_358 : f32 to vector<30x224xf32>
    %395 = arith.subf %393, %394 : vector<30x224xf32>
    %396 = arith.select %390, %388, %395 : vector<30x224xi1>, vector<30x224xf32>
    %c0_359 = arith.constant 0 : index
    %c0_360 = arith.constant 0 : index
    %397 = vector.load %arg24[%c0_359, %c0_360] : memref<30x224xf32, #tpu.memory_space<vmem>>, vector<30x224xf32>
    tpu.vector_store %arg24[%c0_359, %c0_360], %396 {strides = array<i32>} : memref<30x224xf32, #tpu.memory_space<vmem>>, vector<30x224xf32>,
    %cst_361 = arith.constant 0.000000e+00 : f32
    %398 = vector.broadcast %cst_361 : f32 to vector<18x144xf32>
    %c0_362 = arith.constant 0 : index
    %c0_363 = arith.constant 0 : index
    %399 = vector.load %arg26[%c0_362, %c0_363] : memref<18x144xf32, #tpu.memory_space<vmem>>, vector<18x144xf32>
    tpu.vector_store %arg26[%c0_362, %c0_363], %398 {strides = array<i32>} : memref<18x144xf32, #tpu.memory_space<vmem>>, vector<18x144xf32>,
    %c0_364 = arith.constant 0 : index
    %c0_365 = arith.constant 0 : index
    %400 = vector.load %arg24[%c0_364, %c0_365] : memref<30x224xf32, #tpu.memory_space<vmem>>, vector<30x16xf32>
    %c0_366 = arith.constant 0 : index
    %c16_367 = arith.constant 16 : index
    %401 = vector.load %arg24[%c0_366, %c16_367] : memref<30x224xf32, #tpu.memory_space<vmem>>, vector<30x16xf32>
    %402 = arith.maximumf %400, %401 : vector<30x16xf32>
    %c0_368 = arith.constant 0 : index
    %c0_369 = arith.constant 0 : index
    %403 = vector.load %arg25[%c0_368, %c0_369] : memref<30x112xf32, #tpu.memory_space<vmem>>, vector<30x16xf32>
    tpu.vector_store %arg25[%c0_368, %c0_369], %402 {strides = array<i32>} : memref<30x112xf32, #tpu.memory_space<vmem>>, vector<30x16xf32>,
    %c0_370 = arith.constant 0 : index
    %c32_371 = arith.constant 32 : index
    %404 = vector.load %arg24[%c0_370, %c32_371] : memref<30x224xf32, #tpu.memory_space<vmem>>, vector<30x16xf32>
    %c0_372 = arith.constant 0 : index
    %c48_373 = arith.constant 48 : index
    %405 = vector.load %arg24[%c0_372, %c48_373] : memref<30x224xf32, #tpu.memory_space<vmem>>, vector<30x16xf32>
    %406 = arith.maximumf %404, %405 : vector<30x16xf32>
    %c0_374 = arith.constant 0 : index
    %c16_375 = arith.constant 16 : index
    %407 = vector.load %arg25[%c0_374, %c16_375] : memref<30x112xf32, #tpu.memory_space<vmem>>, vector<30x16xf32>
    tpu.vector_store %arg25[%c0_374, %c16_375], %406 {strides = array<i32>} : memref<30x112xf32, #tpu.memory_space<vmem>>, vector<30x16xf32>,
    %c0_376 = arith.constant 0 : index
    %c64_377 = arith.constant 64 : index
    %408 = vector.load %arg24[%c0_376, %c64_377] : memref<30x224xf32, #tpu.memory_space<vmem>>, vector<30x16xf32>
    %c0_378 = arith.constant 0 : index
    %c80_379 = arith.constant 80 : index
    %409 = vector.load %arg24[%c0_378, %c80_379] : memref<30x224xf32, #tpu.memory_space<vmem>>, vector<30x16xf32>
    %410 = arith.maximumf %408, %409 : vector<30x16xf32>
    %c0_380 = arith.constant 0 : index
    %c32_381 = arith.constant 32 : index
    %411 = vector.load %arg25[%c0_380, %c32_381] : memref<30x112xf32, #tpu.memory_space<vmem>>, vector<30x16xf32>
    tpu.vector_store %arg25[%c0_380, %c32_381], %410 {strides = array<i32>} : memref<30x112xf32, #tpu.memory_space<vmem>>, vector<30x16xf32>,
    %c0_382 = arith.constant 0 : index
    %c96_383 = arith.constant 96 : index
    %412 = vector.load %arg24[%c0_382, %c96_383] : memref<30x224xf32, #tpu.memory_space<vmem>>, vector<30x16xf32>
    %c0_384 = arith.constant 0 : index
    %c112_385 = arith.constant 112 : index
    %413 = vector.load %arg24[%c0_384, %c112_385] : memref<30x224xf32, #tpu.memory_space<vmem>>, vector<30x16xf32>
    %414 = arith.maximumf %412, %413 : vector<30x16xf32>
    %c0_386 = arith.constant 0 : index
    %c48_387 = arith.constant 48 : index
    %415 = vector.load %arg25[%c0_386, %c48_387] : memref<30x112xf32, #tpu.memory_space<vmem>>, vector<30x16xf32>
    tpu.vector_store %arg25[%c0_386, %c48_387], %414 {strides = array<i32>} : memref<30x112xf32, #tpu.memory_space<vmem>>, vector<30x16xf32>,
    %c0_388 = arith.constant 0 : index
    %c128_389 = arith.constant 128 : index
    %416 = vector.load %arg24[%c0_388, %c128_389] : memref<30x224xf32, #tpu.memory_space<vmem>>, vector<30x16xf32>
    %c0_390 = arith.constant 0 : index
    %c144_391 = arith.constant 144 : index
    %417 = vector.load %arg24[%c0_390, %c144_391] : memref<30x224xf32, #tpu.memory_space<vmem>>, vector<30x16xf32>
    %418 = arith.maximumf %416, %417 : vector<30x16xf32>
    %c0_392 = arith.constant 0 : index
    %c64_393 = arith.constant 64 : index
    %419 = vector.load %arg25[%c0_392, %c64_393] : memref<30x112xf32, #tpu.memory_space<vmem>>, vector<30x16xf32>
    tpu.vector_store %arg25[%c0_392, %c64_393], %418 {strides = array<i32>} : memref<30x112xf32, #tpu.memory_space<vmem>>, vector<30x16xf32>,
    %c0_394 = arith.constant 0 : index
    %c160_395 = arith.constant 160 : index
    %420 = vector.load %arg24[%c0_394, %c160_395] : memref<30x224xf32, #tpu.memory_space<vmem>>, vector<30x16xf32>
    %c0_396 = arith.constant 0 : index
    %c176_397 = arith.constant 176 : index
    %421 = vector.load %arg24[%c0_396, %c176_397] : memref<30x224xf32, #tpu.memory_space<vmem>>, vector<30x16xf32>
    %422 = arith.maximumf %420, %421 : vector<30x16xf32>
    %c0_398 = arith.constant 0 : index
    %c80_399 = arith.constant 80 : index
    %423 = vector.load %arg25[%c0_398, %c80_399] : memref<30x112xf32, #tpu.memory_space<vmem>>, vector<30x16xf32>
    tpu.vector_store %arg25[%c0_398, %c80_399], %422 {strides = array<i32>} : memref<30x112xf32, #tpu.memory_space<vmem>>, vector<30x16xf32>,
    %c0_400 = arith.constant 0 : index
    %c192_401 = arith.constant 192 : index
    %424 = vector.load %arg24[%c0_400, %c192_401] : memref<30x224xf32, #tpu.memory_space<vmem>>, vector<30x16xf32>
    %c0_402 = arith.constant 0 : index
    %c208_403 = arith.constant 208 : index
    %425 = vector.load %arg24[%c0_402, %c208_403] : memref<30x224xf32, #tpu.memory_space<vmem>>, vector<30x16xf32>
    %426 = arith.maximumf %424, %425 : vector<30x16xf32>
    %c0_404 = arith.constant 0 : index
    %c96_405 = arith.constant 96 : index
    %427 = vector.load %arg25[%c0_404, %c96_405] : memref<30x112xf32, #tpu.memory_space<vmem>>, vector<30x16xf32>
    tpu.vector_store %arg25[%c0_404, %c96_405], %426 {strides = array<i32>} : memref<30x112xf32, #tpu.memory_space<vmem>>, vector<30x16xf32>,
    %c0_406 = arith.constant 0 : index
    %c0_407 = arith.constant 0 : index
    %428 = vector.load %arg25[%c0_406, %c0_407] : memref<30x112xf32, #tpu.memory_space<vmem>>, vector<1x112xf32>
    %c1_408 = arith.constant 1 : index
    %c0_409 = arith.constant 0 : index
    %429 = vector.load %arg25[%c1_408, %c0_409] : memref<30x112xf32, #tpu.memory_space<vmem>>, vector<1x112xf32>
    %430 = arith.maximumf %428, %429 : vector<1x112xf32>
    %c1_410 = arith.constant 1 : index
    %c16_411 = arith.constant 16 : index
    %431 = vector.load %arg26[%c1_410, %c16_411] : memref<18x144xf32, #tpu.memory_space<vmem>>, vector<1x112xf32>
    tpu.vector_store %arg26[%c1_410, %c16_411], %430 {strides = array<i32>} : memref<18x144xf32, #tpu.memory_space<vmem>>, vector<1x112xf32>,
    %c2_412 = arith.constant 2 : index
    %c0_413 = arith.constant 0 : index
    %432 = vector.load %arg25[%c2_412, %c0_413] : memref<30x112xf32, #tpu.memory_space<vmem>>, vector<1x112xf32>
    %c3_414 = arith.constant 3 : index
    %c0_415 = arith.constant 0 : index
    %433 = vector.load %arg25[%c3_414, %c0_415] : memref<30x112xf32, #tpu.memory_space<vmem>>, vector<1x112xf32>
    %434 = arith.maximumf %432, %433 : vector<1x112xf32>
    %c2_416 = arith.constant 2 : index
    %c16_417 = arith.constant 16 : index
    %435 = vector.load %arg26[%c2_416, %c16_417] : memref<18x144xf32, #tpu.memory_space<vmem>>, vector<1x112xf32>
    tpu.vector_store %arg26[%c2_416, %c16_417], %434 {strides = array<i32>} : memref<18x144xf32, #tpu.memory_space<vmem>>, vector<1x112xf32>,
    %c4_418 = arith.constant 4 : index
    %c0_419 = arith.constant 0 : index
    %436 = vector.load %arg25[%c4_418, %c0_419] : memref<30x112xf32, #tpu.memory_space<vmem>>, vector<1x112xf32>
    %c5_420 = arith.constant 5 : index
    %c0_421 = arith.constant 0 : index
    %437 = vector.load %arg25[%c5_420, %c0_421] : memref<30x112xf32, #tpu.memory_space<vmem>>, vector<1x112xf32>
    %438 = arith.maximumf %436, %437 : vector<1x112xf32>
    %c3_422 = arith.constant 3 : index
    %c16_423 = arith.constant 16 : index
    %439 = vector.load %arg26[%c3_422, %c16_423] : memref<18x144xf32, #tpu.memory_space<vmem>>, vector<1x112xf32>
    tpu.vector_store %arg26[%c3_422, %c16_423], %438 {strides = array<i32>} : memref<18x144xf32, #tpu.memory_space<vmem>>, vector<1x112xf32>,
    %c6_424 = arith.constant 6 : index
    %c0_425 = arith.constant 0 : index
    %440 = vector.load %arg25[%c6_424, %c0_425] : memref<30x112xf32, #tpu.memory_space<vmem>>, vector<1x112xf32>
    %c7_426 = arith.constant 7 : index
    %c0_427 = arith.constant 0 : index
    %441 = vector.load %arg25[%c7_426, %c0_427] : memref<30x112xf32, #tpu.memory_space<vmem>>, vector<1x112xf32>
    %442 = arith.maximumf %440, %441 : vector<1x112xf32>
    %c4_428 = arith.constant 4 : index
    %c16_429 = arith.constant 16 : index
    %443 = vector.load %arg26[%c4_428, %c16_429] : memref<18x144xf32, #tpu.memory_space<vmem>>, vector<1x112xf32>
    tpu.vector_store %arg26[%c4_428, %c16_429], %442 {strides = array<i32>} : memref<18x144xf32, #tpu.memory_space<vmem>>, vector<1x112xf32>,
    %c8_430 = arith.constant 8 : index
    %c0_431 = arith.constant 0 : index
    %444 = vector.load %arg25[%c8_430, %c0_431] : memref<30x112xf32, #tpu.memory_space<vmem>>, vector<1x112xf32>
    %c9_432 = arith.constant 9 : index
    %c0_433 = arith.constant 0 : index
    %445 = vector.load %arg25[%c9_432, %c0_433] : memref<30x112xf32, #tpu.memory_space<vmem>>, vector<1x112xf32>
    %446 = arith.maximumf %444, %445 : vector<1x112xf32>
    %c5_434 = arith.constant 5 : index
    %c16_435 = arith.constant 16 : index
    %447 = vector.load %arg26[%c5_434, %c16_435] : memref<18x144xf32, #tpu.memory_space<vmem>>, vector<1x112xf32>
    tpu.vector_store %arg26[%c5_434, %c16_435], %446 {strides = array<i32>} : memref<18x144xf32, #tpu.memory_space<vmem>>, vector<1x112xf32>,
    %c10_436 = arith.constant 10 : index
    %c0_437 = arith.constant 0 : index
    %448 = vector.load %arg25[%c10_436, %c0_437] : memref<30x112xf32, #tpu.memory_space<vmem>>, vector<1x112xf32>
    %c11_438 = arith.constant 11 : index
    %c0_439 = arith.constant 0 : index
    %449 = vector.load %arg25[%c11_438, %c0_439] : memref<30x112xf32, #tpu.memory_space<vmem>>, vector<1x112xf32>
    %450 = arith.maximumf %448, %449 : vector<1x112xf32>
    %c6_440 = arith.constant 6 : index
    %c16_441 = arith.constant 16 : index
    %451 = vector.load %arg26[%c6_440, %c16_441] : memref<18x144xf32, #tpu.memory_space<vmem>>, vector<1x112xf32>
    tpu.vector_store %arg26[%c6_440, %c16_441], %450 {strides = array<i32>} : memref<18x144xf32, #tpu.memory_space<vmem>>, vector<1x112xf32>,
    %c12_442 = arith.constant 12 : index
    %c0_443 = arith.constant 0 : index
    %452 = vector.load %arg25[%c12_442, %c0_443] : memref<30x112xf32, #tpu.memory_space<vmem>>, vector<1x112xf32>
    %c13_444 = arith.constant 13 : index
    %c0_445 = arith.constant 0 : index
    %453 = vector.load %arg25[%c13_444, %c0_445] : memref<30x112xf32, #tpu.memory_space<vmem>>, vector<1x112xf32>
    %454 = arith.maximumf %452, %453 : vector<1x112xf32>
    %c7_446 = arith.constant 7 : index
    %c16_447 = arith.constant 16 : index
    %455 = vector.load %arg26[%c7_446, %c16_447] : memref<18x144xf32, #tpu.memory_space<vmem>>, vector<1x112xf32>
    tpu.vector_store %arg26[%c7_446, %c16_447], %454 {strides = array<i32>} : memref<18x144xf32, #tpu.memory_space<vmem>>, vector<1x112xf32>,
    %c16_448 = arith.constant 16 : index
    %c0_449 = arith.constant 0 : index
    %456 = vector.load %arg25[%c16_448, %c0_449] : memref<30x112xf32, #tpu.memory_space<vmem>>, vector<1x112xf32>
    %c17_450 = arith.constant 17 : index
    %c0_451 = arith.constant 0 : index
    %457 = vector.load %arg25[%c17_450, %c0_451] : memref<30x112xf32, #tpu.memory_space<vmem>>, vector<1x112xf32>
    %458 = arith.maximumf %456, %457 : vector<1x112xf32>
    %c10_452 = arith.constant 10 : index
    %c16_453 = arith.constant 16 : index
    %459 = vector.load %arg26[%c10_452, %c16_453] : memref<18x144xf32, #tpu.memory_space<vmem>>, vector<1x112xf32>
    tpu.vector_store %arg26[%c10_452, %c16_453], %458 {strides = array<i32>} : memref<18x144xf32, #tpu.memory_space<vmem>>, vector<1x112xf32>,
    %c18_454 = arith.constant 18 : index
    %c0_455 = arith.constant 0 : index
    %460 = vector.load %arg25[%c18_454, %c0_455] : memref<30x112xf32, #tpu.memory_space<vmem>>, vector<1x112xf32>
    %c19_456 = arith.constant 19 : index
    %c0_457 = arith.constant 0 : index
    %461 = vector.load %arg25[%c19_456, %c0_457] : memref<30x112xf32, #tpu.memory_space<vmem>>, vector<1x112xf32>
    %462 = arith.maximumf %460, %461 : vector<1x112xf32>
    %c11_458 = arith.constant 11 : index
    %c16_459 = arith.constant 16 : index
    %463 = vector.load %arg26[%c11_458, %c16_459] : memref<18x144xf32, #tpu.memory_space<vmem>>, vector<1x112xf32>
    tpu.vector_store %arg26[%c11_458, %c16_459], %462 {strides = array<i32>} : memref<18x144xf32, #tpu.memory_space<vmem>>, vector<1x112xf32>,
    %c20_460 = arith.constant 20 : index
    %c0_461 = arith.constant 0 : index
    %464 = vector.load %arg25[%c20_460, %c0_461] : memref<30x112xf32, #tpu.memory_space<vmem>>, vector<1x112xf32>
    %c21_462 = arith.constant 21 : index
    %c0_463 = arith.constant 0 : index
    %465 = vector.load %arg25[%c21_462, %c0_463] : memref<30x112xf32, #tpu.memory_space<vmem>>, vector<1x112xf32>
    %466 = arith.maximumf %464, %465 : vector<1x112xf32>
    %c12_464 = arith.constant 12 : index
    %c16_465 = arith.constant 16 : index
    %467 = vector.load %arg26[%c12_464, %c16_465] : memref<18x144xf32, #tpu.memory_space<vmem>>, vector<1x112xf32>
    tpu.vector_store %arg26[%c12_464, %c16_465], %466 {strides = array<i32>} : memref<18x144xf32, #tpu.memory_space<vmem>>, vector<1x112xf32>,
    %c22_466 = arith.constant 22 : index
    %c0_467 = arith.constant 0 : index
    %468 = vector.load %arg25[%c22_466, %c0_467] : memref<30x112xf32, #tpu.memory_space<vmem>>, vector<1x112xf32>
    %c23_468 = arith.constant 23 : index
    %c0_469 = arith.constant 0 : index
    %469 = vector.load %arg25[%c23_468, %c0_469] : memref<30x112xf32, #tpu.memory_space<vmem>>, vector<1x112xf32>
    %470 = arith.maximumf %468, %469 : vector<1x112xf32>
    %c13_470 = arith.constant 13 : index
    %c16_471 = arith.constant 16 : index
    %471 = vector.load %arg26[%c13_470, %c16_471] : memref<18x144xf32, #tpu.memory_space<vmem>>, vector<1x112xf32>
    tpu.vector_store %arg26[%c13_470, %c16_471], %470 {strides = array<i32>} : memref<18x144xf32, #tpu.memory_space<vmem>>, vector<1x112xf32>,
    %c24_472 = arith.constant 24 : index
    %c0_473 = arith.constant 0 : index
    %472 = vector.load %arg25[%c24_472, %c0_473] : memref<30x112xf32, #tpu.memory_space<vmem>>, vector<1x112xf32>
    %c25_474 = arith.constant 25 : index
    %c0_475 = arith.constant 0 : index
    %473 = vector.load %arg25[%c25_474, %c0_475] : memref<30x112xf32, #tpu.memory_space<vmem>>, vector<1x112xf32>
    %474 = arith.maximumf %472, %473 : vector<1x112xf32>
    %c14_476 = arith.constant 14 : index
    %c16_477 = arith.constant 16 : index
    %475 = vector.load %arg26[%c14_476, %c16_477] : memref<18x144xf32, #tpu.memory_space<vmem>>, vector<1x112xf32>
    tpu.vector_store %arg26[%c14_476, %c16_477], %474 {strides = array<i32>} : memref<18x144xf32, #tpu.memory_space<vmem>>, vector<1x112xf32>,
    %c26_478 = arith.constant 26 : index
    %c0_479 = arith.constant 0 : index
    %476 = vector.load %arg25[%c26_478, %c0_479] : memref<30x112xf32, #tpu.memory_space<vmem>>, vector<1x112xf32>
    %c27_480 = arith.constant 27 : index
    %c0_481 = arith.constant 0 : index
    %477 = vector.load %arg25[%c27_480, %c0_481] : memref<30x112xf32, #tpu.memory_space<vmem>>, vector<1x112xf32>
    %478 = arith.maximumf %476, %477 : vector<1x112xf32>
    %c15_482 = arith.constant 15 : index
    %c16_483 = arith.constant 16 : index
    %479 = vector.load %arg26[%c15_482, %c16_483] : memref<18x144xf32, #tpu.memory_space<vmem>>, vector<1x112xf32>
    tpu.vector_store %arg26[%c15_482, %c16_483], %478 {strides = array<i32>} : memref<18x144xf32, #tpu.memory_space<vmem>>, vector<1x112xf32>,
    %c28_484 = arith.constant 28 : index
    %c0_485 = arith.constant 0 : index
    %480 = vector.load %arg25[%c28_484, %c0_485] : memref<30x112xf32, #tpu.memory_space<vmem>>, vector<1x112xf32>
    %c29_486 = arith.constant 29 : index
    %c0_487 = arith.constant 0 : index
    %481 = vector.load %arg25[%c29_486, %c0_487] : memref<30x112xf32, #tpu.memory_space<vmem>>, vector<1x112xf32>
    %482 = arith.maximumf %480, %481 : vector<1x112xf32>
    %c16_488 = arith.constant 16 : index
    %c16_489 = arith.constant 16 : index
    %483 = vector.load %arg26[%c16_488, %c16_489] : memref<18x144xf32, #tpu.memory_space<vmem>>, vector<1x112xf32>
    tpu.vector_store %arg26[%c16_488, %c16_489], %482 {strides = array<i32>} : memref<18x144xf32, #tpu.memory_space<vmem>>, vector<1x112xf32>,
    %cst_490 = arith.constant 0.000000e+00 : f32
    %484 = vector.broadcast %cst_490 : f32 to vector<16x224xf32>
    %c0_491 = arith.constant 0 : index
    %c0_492 = arith.constant 0 : index
    %485 = vector.load %arg26[%c0_491, %c0_492] : memref<18x144xf32, #tpu.memory_space<vmem>>, vector<16x112xf32>
    %c0_493 = arith.constant 0 : index
    %c0_494 = arith.constant 0 : index
    %c0_495 = arith.constant 0 : index
    %486 = vector.load %arg4[%c0_493, %c0_494, %c0_495] : memref<9x112x224xf32, #tpu.memory_space<vmem>>, vector<1x112x224xf32>
    %487 = vector.shape_cast %486 : vector<1x112x224xf32> to vector<112x224xf32>
    %cst_496 = arith.constant dense<0.000000e+00> : vector<16x224xf32>
    %488 = tpu.matmul %485, %487, %cst_496 {dimension_numbers = #tpu.dot_dimension_numbers<[1], [0], [0], [1], [0, 0, 1, 1], [], []>} : vector<16x112xf32>, vector<112x224xf32>, vector<16x224xf32> -> vector<16x224xf32>
    %489 = arith.addf %484, %488 : vector<16x224xf32>
    %c0_497 = arith.constant 0 : index
    %c16_498 = arith.constant 16 : index
    %490 = vector.load %arg26[%c0_497, %c16_498] : memref<18x144xf32, #tpu.memory_space<vmem>>, vector<16x112xf32>
    %c1_499 = arith.constant 1 : index
    %c0_500 = arith.constant 0 : index
    %c0_501 = arith.constant 0 : index
    %491 = vector.load %arg4[%c1_499, %c0_500, %c0_501] : memref<9x112x224xf32, #tpu.memory_space<vmem>>, vector<1x112x224xf32>
    %492 = vector.shape_cast %491 : vector<1x112x224xf32> to vector<112x224xf32>
    %cst_502 = arith.constant dense<0.000000e+00> : vector<16x224xf32>
    %493 = tpu.matmul %490, %492, %cst_502 {dimension_numbers = #tpu.dot_dimension_numbers<[1], [0], [0], [1], [0, 0, 1, 1], [], []>} : vector<16x112xf32>, vector<112x224xf32>, vector<16x224xf32> -> vector<16x224xf32>
    %494 = arith.addf %489, %493 : vector<16x224xf32>
    %c0_503 = arith.constant 0 : index
    %c32_504 = arith.constant 32 : index
    %495 = vector.load %arg26[%c0_503, %c32_504] : memref<18x144xf32, #tpu.memory_space<vmem>>, vector<16x112xf32>
    %c2_505 = arith.constant 2 : index
    %c0_506 = arith.constant 0 : index
    %c0_507 = arith.constant 0 : index
    %496 = vector.load %arg4[%c2_505, %c0_506, %c0_507] : memref<9x112x224xf32, #tpu.memory_space<vmem>>, vector<1x112x224xf32>
    %497 = vector.shape_cast %496 : vector<1x112x224xf32> to vector<112x224xf32>
    %cst_508 = arith.constant dense<0.000000e+00> : vector<16x224xf32>
    %498 = tpu.matmul %495, %497, %cst_508 {dimension_numbers = #tpu.dot_dimension_numbers<[1], [0], [0], [1], [0, 0, 1, 1], [], []>} : vector<16x112xf32>, vector<112x224xf32>, vector<16x224xf32> -> vector<16x224xf32>
    %499 = arith.addf %494, %498 : vector<16x224xf32>
    %c1_509 = arith.constant 1 : index
    %c0_510 = arith.constant 0 : index
    %500 = vector.load %arg26[%c1_509, %c0_510] : memref<18x144xf32, #tpu.memory_space<vmem>>, vector<16x112xf32>
    %c3_511 = arith.constant 3 : index
    %c0_512 = arith.constant 0 : index
    %c0_513 = arith.constant 0 : index
    %501 = vector.load %arg4[%c3_511, %c0_512, %c0_513] : memref<9x112x224xf32, #tpu.memory_space<vmem>>, vector<1x112x224xf32>
    %502 = vector.shape_cast %501 : vector<1x112x224xf32> to vector<112x224xf32>
    %cst_514 = arith.constant dense<0.000000e+00> : vector<16x224xf32>
    %503 = tpu.matmul %500, %502, %cst_514 {dimension_numbers = #tpu.dot_dimension_numbers<[1], [0], [0], [1], [0, 0, 1, 1], [], []>} : vector<16x112xf32>, vector<112x224xf32>, vector<16x224xf32> -> vector<16x224xf32>
    %504 = arith.addf %499, %503 : vector<16x224xf32>
    %c1_515 = arith.constant 1 : index
    %c16_516 = arith.constant 16 : index
    %505 = vector.load %arg26[%c1_515, %c16_516] : memref<18x144xf32, #tpu.memory_space<vmem>>, vector<16x112xf32>
    %c4_517 = arith.constant 4 : index
    %c0_518 = arith.constant 0 : index
    %c0_519 = arith.constant 0 : index
    %506 = vector.load %arg4[%c4_517, %c0_518, %c0_519] : memref<9x112x224xf32, #tpu.memory_space<vmem>>, vector<1x112x224xf32>
    %507 = vector.shape_cast %506 : vector<1x112x224xf32> to vector<112x224xf32>
    %cst_520 = arith.constant dense<0.000000e+00> : vector<16x224xf32>
    %508 = tpu.matmul %505, %507, %cst_520 {dimension_numbers = #tpu.dot_dimension_numbers<[1], [0], [0], [1], [0, 0, 1, 1], [], []>} : vector<16x112xf32>, vector<112x224xf32>, vector<16x224xf32> -> vector<16x224xf32>
    %509 = arith.addf %504, %508 : vector<16x224xf32>
    %c1_521 = arith.constant 1 : index
    %c32_522 = arith.constant 32 : index
    %510 = vector.load %arg26[%c1_521, %c32_522] : memref<18x144xf32, #tpu.memory_space<vmem>>, vector<16x112xf32>
    %c5_523 = arith.constant 5 : index
    %c0_524 = arith.constant 0 : index
    %c0_525 = arith.constant 0 : index
    %511 = vector.load %arg4[%c5_523, %c0_524, %c0_525] : memref<9x112x224xf32, #tpu.memory_space<vmem>>, vector<1x112x224xf32>
    %512 = vector.shape_cast %511 : vector<1x112x224xf32> to vector<112x224xf32>
    %cst_526 = arith.constant dense<0.000000e+00> : vector<16x224xf32>
    %513 = tpu.matmul %510, %512, %cst_526 {dimension_numbers = #tpu.dot_dimension_numbers<[1], [0], [0], [1], [0, 0, 1, 1], [], []>} : vector<16x112xf32>, vector<112x224xf32>, vector<16x224xf32> -> vector<16x224xf32>
    %514 = arith.addf %509, %513 : vector<16x224xf32>
    %c2_527 = arith.constant 2 : index
    %c0_528 = arith.constant 0 : index
    %515 = vector.load %arg26[%c2_527, %c0_528] : memref<18x144xf32, #tpu.memory_space<vmem>>, vector<16x112xf32>
    %c6_529 = arith.constant 6 : index
    %c0_530 = arith.constant 0 : index
    %c0_531 = arith.constant 0 : index
    %516 = vector.load %arg4[%c6_529, %c0_530, %c0_531] : memref<9x112x224xf32, #tpu.memory_space<vmem>>, vector<1x112x224xf32>
    %517 = vector.shape_cast %516 : vector<1x112x224xf32> to vector<112x224xf32>
    %cst_532 = arith.constant dense<0.000000e+00> : vector<16x224xf32>
    %518 = tpu.matmul %515, %517, %cst_532 {dimension_numbers = #tpu.dot_dimension_numbers<[1], [0], [0], [1], [0, 0, 1, 1], [], []>} : vector<16x112xf32>, vector<112x224xf32>, vector<16x224xf32> -> vector<16x224xf32>
    %519 = arith.addf %514, %518 : vector<16x224xf32>
    %c2_533 = arith.constant 2 : index
    %c16_534 = arith.constant 16 : index
    %520 = vector.load %arg26[%c2_533, %c16_534] : memref<18x144xf32, #tpu.memory_space<vmem>>, vector<16x112xf32>
    %c7_535 = arith.constant 7 : index
    %c0_536 = arith.constant 0 : index
    %c0_537 = arith.constant 0 : index
    %521 = vector.load %arg4[%c7_535, %c0_536, %c0_537] : memref<9x112x224xf32, #tpu.memory_space<vmem>>, vector<1x112x224xf32>
    %522 = vector.shape_cast %521 : vector<1x112x224xf32> to vector<112x224xf32>
    %cst_538 = arith.constant dense<0.000000e+00> : vector<16x224xf32>
    %523 = tpu.matmul %520, %522, %cst_538 {dimension_numbers = #tpu.dot_dimension_numbers<[1], [0], [0], [1], [0, 0, 1, 1], [], []>} : vector<16x112xf32>, vector<112x224xf32>, vector<16x224xf32> -> vector<16x224xf32>
    %524 = arith.addf %519, %523 : vector<16x224xf32>
    %c2_539 = arith.constant 2 : index
    %c32_540 = arith.constant 32 : index
    %525 = vector.load %arg26[%c2_539, %c32_540] : memref<18x144xf32, #tpu.memory_space<vmem>>, vector<16x112xf32>
    %c8_541 = arith.constant 8 : index
    %c0_542 = arith.constant 0 : index
    %c0_543 = arith.constant 0 : index
    %526 = vector.load %arg4[%c8_541, %c0_542, %c0_543] : memref<9x112x224xf32, #tpu.memory_space<vmem>>, vector<1x112x224xf32>
    %527 = vector.shape_cast %526 : vector<1x112x224xf32> to vector<112x224xf32>
    %cst_544 = arith.constant dense<0.000000e+00> : vector<16x224xf32>
    %528 = tpu.matmul %525, %527, %cst_544 {dimension_numbers = #tpu.dot_dimension_numbers<[1], [0], [0], [1], [0, 0, 1, 1], [], []>} : vector<16x112xf32>, vector<112x224xf32>, vector<16x224xf32> -> vector<16x224xf32>
    %529 = arith.addf %524, %528 : vector<16x224xf32>
    %530 = tpu.iota {dimensions = array<i32: 0>} : vector<16x1xi32>
    %c9_i32 = arith.constant 9 : i32
    %c0_i32_545 = arith.constant 0 : i32
    %531 = arith.cmpi eq, %c9_i32, %c0_i32_545 : i32
    %c1_i32_546 = arith.constant 1 : i32
    %532 = arith.select %531, %c1_i32_546, %c9_i32 : i32
    %533 = vector.broadcast %532 : i32 to vector<16x1xi32>
    %534 = arith.remsi %530, %533 : vector<16x1xi32>
    %c0_i32_547 = arith.constant 0 : i32
    %535 = vector.broadcast %c0_i32_547 : i32 to vector<16x1xi32>
    %536 = arith.cmpi ne, %534, %535 : vector<16x1xi32>
    %c0_i32_548 = arith.constant 0 : i32
    %537 = vector.broadcast %c0_i32_548 : i32 to vector<16x1xi32>
    %538 = arith.cmpi slt, %534, %537 : vector<16x1xi32>
    %c0_i32_549 = arith.constant 0 : i32
    %539 = arith.cmpi slt, %532, %c0_i32_549 : i32
    %540 = vector.broadcast %539 : i1 to vector<16x1xi1>
    %541 = vector.broadcast %540 : vector<16x1xi1> to vector<16x1xi1>
    %542 = arith.xori %538, %541 : vector<16x1xi1>
    %543 = arith.andi %542, %536 : vector<16x1xi1>
    %544 = vector.broadcast %532 : i32 to vector<16x1xi32>
    %545 = arith.addi %534, %544 : vector<16x1xi32>
    %546 = arith.select %543, %545, %534 : vector<16x1xi1>, vector<16x1xi32>
    %c7_i32 = arith.constant 7 : i32
    %547 = vector.broadcast %c7_i32 : i32 to vector<16x1xi32>
    %548 = arith.cmpi slt, %546, %547 : vector<16x1xi32>
    %cst_550 = arith.constant 0.000000e+00 : f32
    %549 = vector.shape_cast %548 : vector<16x1xi1> to vector<16x1xi1>
    %550 = vector.broadcast %549 : vector<16x1xi1> to vector<16x224xi1>
    %551 = vector.broadcast %cst_550 : f32 to vector<16x224xf32>
    %552 = arith.select %550, %529, %551 : vector<16x224xi1>, vector<16x224xf32>
    %cst_551 = arith.constant dense<0.000000e+00> : vector<224xf32>
    %553 = vector.multi_reduction <add>, %552, %cst_551 [0] : vector<16x224xf32> to vector<224xf32>
    %554 = vector.shape_cast %553 : vector<224xf32> to vector<1x224xf32>
    %555 = arith.mulf %552, %552 : vector<16x224xf32>
    %cst_552 = arith.constant dense<0.000000e+00> : vector<224xf32>
    %556 = vector.multi_reduction <add>, %555, %cst_552 [0] : vector<16x224xf32> to vector<224xf32>
    %557 = vector.shape_cast %556 : vector<224xf32> to vector<1x224xf32>
    %c0_553 = arith.constant 0 : index
    %c0_554 = arith.constant 0 : index
    %558 = vector.load %arg13[%c0_553, %c0_554] : memref<224x32xf32, #tpu.memory_space<vmem>>, vector<224x32xf32>
    %cst_555 = arith.constant dense<0.000000e+00> : vector<1x32xf32>
    %559 = tpu.matmul %554, %558, %cst_555 {dimension_numbers = #tpu.dot_dimension_numbers<[1], [0], [0], [1], [0, 0, 1, 1], [], []>} : vector<1x224xf32>, vector<224x32xf32>, vector<1x32xf32> -> vector<1x32xf32>
    %c0_556 = arith.constant 0 : index
    %c0_557 = arith.constant 0 : index
    %560 = vector.load %arg13[%c0_556, %c0_557] : memref<224x32xf32, #tpu.memory_space<vmem>>, vector<224x32xf32>
    %cst_558 = arith.constant dense<0.000000e+00> : vector<1x32xf32>
    %561 = tpu.matmul %557, %560, %cst_558 {dimension_numbers = #tpu.dot_dimension_numbers<[1], [0], [0], [1], [0, 0, 1, 1], [], []>} : vector<1x224xf32>, vector<224x32xf32>, vector<1x32xf32> -> vector<1x32xf32>
    %cst_559 = arith.constant 0.0102040814 : f32
    %562 = vector.broadcast %cst_559 : f32 to vector<1x32xf32>
    %563 = arith.mulf %559, %562 : vector<1x32xf32>
    %cst_560 = arith.constant 0.0102040814 : f32
    %564 = vector.broadcast %cst_560 : f32 to vector<1x32xf32>
    %565 = arith.mulf %561, %564 : vector<1x32xf32>
    %566 = arith.mulf %563, %563 : vector<1x32xf32>
    %567 = arith.subf %565, %566 : vector<1x32xf32>
    %cst_561 = arith.constant 0.000000e+00 : f32
    %568 = vector.broadcast %cst_561 : f32 to vector<1x32xf32>
    %569 = arith.maximumf %567, %568 : vector<1x32xf32>
    %c0_562 = arith.constant 0 : index
    %c0_563 = arith.constant 0 : index
    %570 = vector.load %arg15[%c0_562, %c0_563] : memref<1x32xf32, #tpu.memory_space<vmem>>, vector<1x32xf32>
    %cst_564 = arith.constant 9.99999974E-6 : f32
    %571 = vector.broadcast %cst_564 : f32 to vector<1x32xf32>
    %572 = arith.addf %569, %571 : vector<1x32xf32>
    %573 = math.rsqrt %572 : vector<1x32xf32>
    %574 = arith.mulf %570, %573 : vector<1x32xf32>
    %c0_565 = arith.constant 0 : index
    %c0_566 = arith.constant 0 : index
    %575 = vector.load %arg16[%c0_565, %c0_566] : memref<1x32xf32, #tpu.memory_space<vmem>>, vector<1x32xf32>
    %576 = arith.mulf %574, %563 : vector<1x32xf32>
    %577 = arith.subf %575, %576 : vector<1x32xf32>
    %c0_567 = arith.constant 0 : index
    %c0_568 = arith.constant 0 : index
    %578 = vector.load %arg14[%c0_567, %c0_568] : memref<32x224xf32, #tpu.memory_space<vmem>>, vector<32x224xf32>
    %cst_569 = arith.constant dense<0.000000e+00> : vector<1x224xf32>
    %579 = tpu.matmul %574, %578, %cst_569 {dimension_numbers = #tpu.dot_dimension_numbers<[1], [0], [0], [1], [0, 0, 1, 1], [], []>} : vector<1x32xf32>, vector<32x224xf32>, vector<1x224xf32> -> vector<1x224xf32>
    %c0_570 = arith.constant 0 : index
    %c0_571 = arith.constant 0 : index
    %580 = vector.load %arg14[%c0_570, %c0_571] : memref<32x224xf32, #tpu.memory_space<vmem>>, vector<32x224xf32>
    %cst_572 = arith.constant dense<0.000000e+00> : vector<1x224xf32>
    %581 = tpu.matmul %577, %580, %cst_572 {dimension_numbers = #tpu.dot_dimension_numbers<[1], [0], [0], [1], [0, 0, 1, 1], [], []>} : vector<1x32xf32>, vector<32x224xf32>, vector<1x224xf32> -> vector<1x224xf32>
    %582 = vector.broadcast %579 : vector<1x224xf32> to vector<16x224xf32>
    %583 = arith.mulf %552, %582 : vector<16x224xf32>
    %584 = vector.broadcast %581 : vector<1x224xf32> to vector<16x224xf32>
    %585 = arith.addf %583, %584 : vector<16x224xf32>
    %cst_573 = arith.constant 0.000000e+00 : f32
    %586 = vector.broadcast %cst_573 : f32 to vector<16x224xf32>
    %587 = arith.cmpf ogt, %585, %586 : vector<16x224xf32>
    %cst_574 = arith.constant 0.000000e+00 : f32
    %588 = vector.broadcast %cst_574 : f32 to vector<16x224xf32>
    %589 = arith.minimumf %585, %588 : vector<16x224xf32>
    %590 = math.exp %589 : vector<16x224xf32>
    %cst_575 = arith.constant 1.000000e+00 : f32
    %591 = vector.broadcast %cst_575 : f32 to vector<16x224xf32>
    %592 = arith.subf %590, %591 : vector<16x224xf32>
    %593 = arith.select %587, %585, %592 : vector<16x224xi1>, vector<16x224xf32>
    %c0_576 = arith.constant 0 : index
    %c0_577 = arith.constant 0 : index
    %594 = vector.load %arg27[%c0_576, %c0_577] : memref<16x224xf32, #tpu.memory_space<vmem>>, vector<16x224xf32>
    tpu.vector_store %arg27[%c0_576, %c0_577], %593 {strides = array<i32>} : memref<16x224xf32, #tpu.memory_space<vmem>>, vector<16x224xf32>,
    %c0_578 = arith.constant 0 : index
    %c0_579 = arith.constant 0 : index
    %595 = vector.load %arg27[%c0_578, %c0_579] : memref<16x224xf32, #tpu.memory_space<vmem>>, vector<1x224xf32>
    %c0_580 = arith.constant 0 : index
    %c0_581 = arith.constant 0 : index
    %596 = vector.load %arg28[%c0_580, %c0_581] : memref<2x1568xf32, #tpu.memory_space<vmem>>, vector<1x224xf32>
    tpu.vector_store %arg28[%c0_580, %c0_581], %595 {strides = array<i32>} : memref<2x1568xf32, #tpu.memory_space<vmem>>, vector<1x224xf32>,
    %c1_582 = arith.constant 1 : index
    %c0_583 = arith.constant 0 : index
    %597 = vector.load %arg27[%c1_582, %c0_583] : memref<16x224xf32, #tpu.memory_space<vmem>>, vector<1x224xf32>
    %c0_584 = arith.constant 0 : index
    %c224 = arith.constant 224 : index
    %598 = vector.load %arg28[%c0_584, %c224] : memref<2x1568xf32, #tpu.memory_space<vmem>>, vector<1x224xf32>
    tpu.vector_store %arg28[%c0_584, %c224], %597 {strides = array<i32>} : memref<2x1568xf32, #tpu.memory_space<vmem>>, vector<1x224xf32>,
    %c2_585 = arith.constant 2 : index
    %c0_586 = arith.constant 0 : index
    %599 = vector.load %arg27[%c2_585, %c0_586] : memref<16x224xf32, #tpu.memory_space<vmem>>, vector<1x224xf32>
    %c0_587 = arith.constant 0 : index
    %c448 = arith.constant 448 : index
    %600 = vector.load %arg28[%c0_587, %c448] : memref<2x1568xf32, #tpu.memory_space<vmem>>, vector<1x224xf32>
    tpu.vector_store %arg28[%c0_587, %c448], %599 {strides = array<i32>} : memref<2x1568xf32, #tpu.memory_space<vmem>>, vector<1x224xf32>,
    %c3_588 = arith.constant 3 : index
    %c0_589 = arith.constant 0 : index
    %601 = vector.load %arg27[%c3_588, %c0_589] : memref<16x224xf32, #tpu.memory_space<vmem>>, vector<1x224xf32>
    %c0_590 = arith.constant 0 : index
    %c672 = arith.constant 672 : index
    %602 = vector.load %arg28[%c0_590, %c672] : memref<2x1568xf32, #tpu.memory_space<vmem>>, vector<1x224xf32>
    tpu.vector_store %arg28[%c0_590, %c672], %601 {strides = array<i32>} : memref<2x1568xf32, #tpu.memory_space<vmem>>, vector<1x224xf32>,
    %c4_591 = arith.constant 4 : index
    %c0_592 = arith.constant 0 : index
    %603 = vector.load %arg27[%c4_591, %c0_592] : memref<16x224xf32, #tpu.memory_space<vmem>>, vector<1x224xf32>
    %c0_593 = arith.constant 0 : index
    %c896 = arith.constant 896 : index
    %604 = vector.load %arg28[%c0_593, %c896] : memref<2x1568xf32, #tpu.memory_space<vmem>>, vector<1x224xf32>
    tpu.vector_store %arg28[%c0_593, %c896], %603 {strides = array<i32>} : memref<2x1568xf32, #tpu.memory_space<vmem>>, vector<1x224xf32>,
    %c5_594 = arith.constant 5 : index
    %c0_595 = arith.constant 0 : index
    %605 = vector.load %arg27[%c5_594, %c0_595] : memref<16x224xf32, #tpu.memory_space<vmem>>, vector<1x224xf32>
    %c0_596 = arith.constant 0 : index
    %c1120 = arith.constant 1120 : index
    %606 = vector.load %arg28[%c0_596, %c1120] : memref<2x1568xf32, #tpu.memory_space<vmem>>, vector<1x224xf32>
    tpu.vector_store %arg28[%c0_596, %c1120], %605 {strides = array<i32>} : memref<2x1568xf32, #tpu.memory_space<vmem>>, vector<1x224xf32>,
    %c6_597 = arith.constant 6 : index
    %c0_598 = arith.constant 0 : index
    %607 = vector.load %arg27[%c6_597, %c0_598] : memref<16x224xf32, #tpu.memory_space<vmem>>, vector<1x224xf32>
    %c0_599 = arith.constant 0 : index
    %c1344 = arith.constant 1344 : index
    %608 = vector.load %arg28[%c0_599, %c1344] : memref<2x1568xf32, #tpu.memory_space<vmem>>, vector<1x224xf32>
    tpu.vector_store %arg28[%c0_599, %c1344], %607 {strides = array<i32>} : memref<2x1568xf32, #tpu.memory_space<vmem>>, vector<1x224xf32>,
    %c9_600 = arith.constant 9 : index
    %c0_601 = arith.constant 0 : index
    %609 = vector.load %arg27[%c9_600, %c0_601] : memref<16x224xf32, #tpu.memory_space<vmem>>, vector<1x224xf32>
    %c1_602 = arith.constant 1 : index
    %c0_603 = arith.constant 0 : index
    %610 = vector.load %arg28[%c1_602, %c0_603] : memref<2x1568xf32, #tpu.memory_space<vmem>>, vector<1x224xf32>
    tpu.vector_store %arg28[%c1_602, %c0_603], %609 {strides = array<i32>} : memref<2x1568xf32, #tpu.memory_space<vmem>>, vector<1x224xf32>,
    %c10_604 = arith.constant 10 : index
    %c0_605 = arith.constant 0 : index
    %611 = vector.load %arg27[%c10_604, %c0_605] : memref<16x224xf32, #tpu.memory_space<vmem>>, vector<1x224xf32>
    %c1_606 = arith.constant 1 : index
    %c224_607 = arith.constant 224 : index
    %612 = vector.load %arg28[%c1_606, %c224_607] : memref<2x1568xf32, #tpu.memory_space<vmem>>, vector<1x224xf32>
    tpu.vector_store %arg28[%c1_606, %c224_607], %611 {strides = array<i32>} : memref<2x1568xf32, #tpu.memory_space<vmem>>, vector<1x224xf32>,
    %c11_608 = arith.constant 11 : index
    %c0_609 = arith.constant 0 : index
    %613 = vector.load %arg27[%c11_608, %c0_609] : memref<16x224xf32, #tpu.memory_space<vmem>>, vector<1x224xf32>
    %c1_610 = arith.constant 1 : index
    %c448_611 = arith.constant 448 : index
    %614 = vector.load %arg28[%c1_610, %c448_611] : memref<2x1568xf32, #tpu.memory_space<vmem>>, vector<1x224xf32>
    tpu.vector_store %arg28[%c1_610, %c448_611], %613 {strides = array<i32>} : memref<2x1568xf32, #tpu.memory_space<vmem>>, vector<1x224xf32>,
    %c12_612 = arith.constant 12 : index
    %c0_613 = arith.constant 0 : index
    %615 = vector.load %arg27[%c12_612, %c0_613] : memref<16x224xf32, #tpu.memory_space<vmem>>, vector<1x224xf32>
    %c1_614 = arith.constant 1 : index
    %c672_615 = arith.constant 672 : index
    %616 = vector.load %arg28[%c1_614, %c672_615] : memref<2x1568xf32, #tpu.memory_space<vmem>>, vector<1x224xf32>
    tpu.vector_store %arg28[%c1_614, %c672_615], %615 {strides = array<i32>} : memref<2x1568xf32, #tpu.memory_space<vmem>>, vector<1x224xf32>,
    %c13_616 = arith.constant 13 : index
    %c0_617 = arith.constant 0 : index
    %617 = vector.load %arg27[%c13_616, %c0_617] : memref<16x224xf32, #tpu.memory_space<vmem>>, vector<1x224xf32>
    %c1_618 = arith.constant 1 : index
    %c896_619 = arith.constant 896 : index
    %618 = vector.load %arg28[%c1_618, %c896_619] : memref<2x1568xf32, #tpu.memory_space<vmem>>, vector<1x224xf32>
    tpu.vector_store %arg28[%c1_618, %c896_619], %617 {strides = array<i32>} : memref<2x1568xf32, #tpu.memory_space<vmem>>, vector<1x224xf32>,
    %c14_620 = arith.constant 14 : index
    %c0_621 = arith.constant 0 : index
    %619 = vector.load %arg27[%c14_620, %c0_621] : memref<16x224xf32, #tpu.memory_space<vmem>>, vector<1x224xf32>
    %c1_622 = arith.constant 1 : index
    %c1120_623 = arith.constant 1120 : index
    %620 = vector.load %arg28[%c1_622, %c1120_623] : memref<2x1568xf32, #tpu.memory_space<vmem>>, vector<1x224xf32>
    tpu.vector_store %arg28[%c1_622, %c1120_623], %619 {strides = array<i32>} : memref<2x1568xf32, #tpu.memory_space<vmem>>, vector<1x224xf32>,
    %c15_624 = arith.constant 15 : index
    %c0_625 = arith.constant 0 : index
    %621 = vector.load %arg27[%c15_624, %c0_625] : memref<16x224xf32, #tpu.memory_space<vmem>>, vector<1x224xf32>
    %c1_626 = arith.constant 1 : index
    %c1344_627 = arith.constant 1344 : index
    %622 = vector.load %arg28[%c1_626, %c1344_627] : memref<2x1568xf32, #tpu.memory_space<vmem>>, vector<1x224xf32>
    tpu.vector_store %arg28[%c1_626, %c1344_627], %621 {strides = array<i32>} : memref<2x1568xf32, #tpu.memory_space<vmem>>, vector<1x224xf32>,
    %c0_628 = arith.constant 0 : index
    %c0_629 = arith.constant 0 : index
    %623 = vector.load %arg28[%c0_628, %c0_629] : memref<2x1568xf32, #tpu.memory_space<vmem>>, vector<2x1568xf32>
    %c0_630 = arith.constant 0 : index
    %c0_631 = arith.constant 0 : index
    %624 = vector.load %arg17[%c0_630, %c0_631] : memref<1568x128xf32, #tpu.memory_space<vmem>>, vector<1568x128xf32>
    %cst_632 = arith.constant dense<0.000000e+00> : vector<2x128xf32>
    %625 = tpu.matmul %623, %624, %cst_632 {dimension_numbers = #tpu.dot_dimension_numbers<[1], [0], [0], [1], [0, 0, 1, 1], [], []>} : vector<2x1568xf32>, vector<1568x128xf32>, vector<2x128xf32> -> vector<2x128xf32>
    %c0_633 = arith.constant 0 : index
    %c0_634 = arith.constant 0 : index
    %626 = vector.load %arg18[%c0_633, %c0_634] : memref<1x128xf32, #tpu.memory_space<vmem>>, vector<1x128xf32>
    %627 = vector.broadcast %626 : vector<1x128xf32> to vector<2x128xf32>
    %628 = arith.addf %625, %627 : vector<2x128xf32>
    %cst_635 = arith.constant 0.000000e+00 : f32
    %629 = vector.broadcast %cst_635 : f32 to vector<2x128xf32>
    %630 = arith.cmpf ogt, %628, %629 : vector<2x128xf32>
    %cst_636 = arith.constant 0.000000e+00 : f32
    %631 = vector.broadcast %cst_636 : f32 to vector<2x128xf32>
    %632 = arith.minimumf %628, %631 : vector<2x128xf32>
    %633 = math.exp %632 : vector<2x128xf32>
    %cst_637 = arith.constant 1.000000e+00 : f32
    %634 = vector.broadcast %cst_637 : f32 to vector<2x128xf32>
    %635 = arith.subf %633, %634 : vector<2x128xf32>
    %636 = arith.select %630, %628, %635 : vector<2x128xi1>, vector<2x128xf32>
    %c0_638 = arith.constant 0 : index
    %c0_639 = arith.constant 0 : index
    %637 = vector.load %arg19[%c0_638, %c0_639] : memref<2x128xf32, #tpu.memory_space<vmem>>, vector<2x128xf32>
    tpu.vector_store %arg19[%c0_638, %c0_639], %636 {strides = array<i32>} : memref<2x128xf32, #tpu.memory_space<vmem>>, vector<2x128xf32>,
    return
  }
  func.func @transform_0(%arg0: i32) -> (i32, i32) {
    %c0_i32 = arith.constant 0 : i32
    %c0_i32_0 = arith.constant 0 : i32
    %c0_i32_1 = arith.constant 0 : i32
    return %c0_i32, %c0_i32_0 : i32, i32
  }
  func.func @transform_1(%arg0: i32) -> (i32, i32, i32) {
    %c0_i32 = arith.constant 0 : i32
    %c0_i32_0 = arith.constant 0 : i32
    %c0_i32_1 = arith.constant 0 : i32
    %c0_i32_2 = arith.constant 0 : i32
    return %c0_i32, %c0_i32_0, %c0_i32_1 : i32, i32, i32
  }
  func.func @transform_2(%arg0: i32) -> (i32, i32, i32) {
    %c0_i32 = arith.constant 0 : i32
    %c0_i32_0 = arith.constant 0 : i32
    %c0_i32_1 = arith.constant 0 : i32
    %c0_i32_2 = arith.constant 0 : i32
    return %c0_i32, %c0_i32_0, %c0_i32_1 : i32, i32, i32
  }
  func.func @transform_3(%arg0: i32) -> (i32, i32, i32) {
    %c0_i32 = arith.constant 0 : i32
    %c0_i32_0 = arith.constant 0 : i32
    %c0_i32_1 = arith.constant 0 : i32
    %c0_i32_2 = arith.constant 0 : i32
    return %c0_i32, %c0_i32_0, %c0_i32_1 : i32, i32, i32
  }
  func.func @transform_4(%arg0: i32) -> (i32, i32) {
    %c0_i32 = arith.constant 0 : i32
    %c0_i32_0 = arith.constant 0 : i32
    %c0_i32_1 = arith.constant 0 : i32
    return %c0_i32, %c0_i32_0 : i32, i32
  }
  func.func @transform_5(%arg0: i32) -> (i32, i32) {
    %c0_i32 = arith.constant 0 : i32
    %c0_i32_0 = arith.constant 0 : i32
    %c0_i32_1 = arith.constant 0 : i32
    return %c0_i32, %c0_i32_0 : i32, i32
  }
  func.func @transform_6(%arg0: i32) -> (i32, i32) {
    %c0_i32 = arith.constant 0 : i32
    %c0_i32_0 = arith.constant 0 : i32
    %c0_i32_1 = arith.constant 0 : i32
    return %c0_i32, %c0_i32_0 : i32, i32
  }
  func.func @transform_7(%arg0: i32) -> (i32, i32) {
    %c0_i32 = arith.constant 0 : i32
    %c0_i32_0 = arith.constant 0 : i32
    %c0_i32_1 = arith.constant 0 : i32
    return %c0_i32, %c0_i32_0 : i32, i32
  }
  func.func @transform_8(%arg0: i32) -> (i32, i32) {
    %c0_i32 = arith.constant 0 : i32
    %c0_i32_0 = arith.constant 0 : i32
    %c0_i32_1 = arith.constant 0 : i32
    return %c0_i32, %c0_i32_0 : i32, i32
  }
  func.func @transform_9(%arg0: i32) -> (i32, i32) {
    %c0_i32 = arith.constant 0 : i32
    %c0_i32_0 = arith.constant 0 : i32
    %c0_i32_1 = arith.constant 0 : i32
    return %c0_i32, %c0_i32_0 : i32, i32
  }
  func.func @transform_10(%arg0: i32) -> (i32, i32) {
    %c0_i32 = arith.constant 0 : i32
    %c0_i32_0 = arith.constant 0 : i32
    %c0_i32_1 = arith.constant 0 : i32
    return %c0_i32, %c0_i32_0 : i32, i32
  }
  func.func @transform_11(%arg0: i32) -> (i32, i32) {
    %c0_i32 = arith.constant 0 : i32
    %c0_i32_0 = arith.constant 0 : i32
    %c0_i32_1 = arith.constant 0 : i32
    return %c0_i32, %c0_i32_0 : i32, i32
  }
  func.func @transform_12(%arg0: i32) -> (i32, i32) {
    %c0_i32 = arith.constant 0 : i32
    %c0_i32_0 = arith.constant 0 : i32
    %c0_i32_1 = arith.constant 0 : i32
    return %c0_i32, %c0_i32_0 : i32, i32
  }
  func.func @transform_13(%arg0: i32) -> (i32, i32) {
    %c0_i32 = arith.constant 0 : i32
    %c0_i32_0 = arith.constant 0 : i32
    %c0_i32_1 = arith.constant 0 : i32
    return %c0_i32, %c0_i32_0 : i32, i32
  }
  func.func @transform_14(%arg0: i32) -> (i32, i32) {
    %c0_i32 = arith.constant 0 : i32
    %c0_i32_0 = arith.constant 0 : i32
    %c0_i32_1 = arith.constant 0 : i32
    return %c0_i32, %c0_i32_0 : i32, i32
  }
  func.func @transform_15(%arg0: i32) -> (i32, i32) {
    %c0_i32 = arith.constant 0 : i32
    %c0_i32_0 = arith.constant 0 : i32
    %c0_i32_1 = arith.constant 0 : i32
    return %c0_i32, %c0_i32_0 : i32, i32
  }
  func.func @transform_16(%arg0: i32) -> (i32, i32) {
    %c0_i32 = arith.constant 0 : i32
    %c0_i32_0 = arith.constant 0 : i32
    %c0_i32_1 = arith.constant 0 : i32
    return %c0_i32, %c0_i32_0 : i32, i32
  }
  func.func @transform_17(%arg0: i32) -> (i32, i32) {
    %c0_i32 = arith.constant 0 : i32
    %c0_i32_0 = arith.constant 0 : i32
    %c0_i32_1 = arith.constant 0 : i32
    return %c0_i32, %c0_i32_0 : i32, i32
  }
  func.func @transform_18(%arg0: i32) -> (i32, i32) {
    %c0_i32 = arith.constant 0 : i32
    %c0_i32_0 = arith.constant 0 : i32
    %c0_i32_1 = arith.constant 0 : i32
    return %c0_i32, %c0_i32_0 : i32, i32
  }
}

</mosaic_0001>

<llo_original>
// kernel: encoder_forward.1
$region0: #{encoder_forward.1}
  #allocation0 [shape = 'u32[]', space=smem, size = 0x4, offset = 0x4, fixed_abs, tag = 'smem constant byte address 0x4 - core index']
  #allocation1 [shape = 'u32[144,128]{1,0:T(1,128)}', space=vmem, size = 0x12000, scoped, tag = 'internal scratch']
  #allocation2 [shape = 'f32[60,30]{1,0:T(8,128)}', space=vmem, size = 0x8000, scoped, tag = 'scratch operand']
  #allocation3 [shape = 'f32[58,224]{1,0:T(8,128)}', space=vmem, size = 0x10000, scoped, tag = 'scratch operand']
  #allocation4 [shape = 'f32[58,112]{1,0:T(8,128)}', space=vmem, size = 0x8000, scoped, tag = 'scratch operand']
  #allocation5 [shape = 'f32[32,128]{1,0:T(8,128)}', space=vmem, size = 0x4000, scoped, tag = 'scratch operand']
  #allocation6 [shape = 'f32[30,224]{1,0:T(8,128)}', space=vmem, size = 0x8000, scoped, tag = 'scratch operand']
  #allocation7 [shape = 'f32[30,112]{1,0:T(8,128)}', space=vmem, size = 0x4000, scoped, tag = 'scratch operand']
  #allocation8 [shape = 'f32[18,144]{1,0:T(8,128)}', space=vmem, size = 0x6000, scoped, tag = 'scratch operand']
  #allocation9 [shape = 'f32[16,224]{1,0:T(8,128)}', space=vmem, size = 0x4000, scoped, tag = 'scratch operand']
  #allocation10 [shape = 'f32[2,1568]{1,0:T(2,128)}', space=vmem, size = 0x3400, scoped, tag = 'scratch operand']
  %s0 = inlined_call_operand.vmem [shape: f32[56,28], index: 0, kind: input, shape index: {}]
  %s1 = inlined_call_operand.vmem [shape: f32[9,28,224], index: 1, kind: input, shape index: {}]
  %s2 = inlined_call_operand.hbm [shape: f32[9,112,224], index: 2, kind: input, shape index: {}]
  %s3 = inlined_call_operand.hbm [shape: f32[9,112,224], index: 3, kind: input, shape index: {}]
  %s4 = inlined_call_operand.vmem [shape: f32[224,8], index: 4, kind: input, shape index: {}]
  %s5 = inlined_call_operand.vmem [shape: f32[8,224], index: 5, kind: input, shape index: {}]
  %s6 = inlined_call_operand.vmem [shape: f32[1,8], index: 6, kind: input, shape index: {}]
  %s7 = inlined_call_operand.vmem [shape: f32[1,8], index: 7, kind: input, shape index: {}]
  %s8 = inlined_call_operand.vmem [shape: f32[224,16], index: 8, kind: input, shape index: {}]
  %s9 = inlined_call_operand.vmem [shape: f32[16,224], index: 9, kind: input, shape index: {}]
  %s10 = inlined_call_operand.vmem [shape: f32[1,16], index: 10, kind: input, shape index: {}]
  %s11 = inlined_call_operand.vmem [shape: f32[1,16], index: 11, kind: input, shape index: {}]
  %s12 = inlined_call_operand.vmem [shape: f32[224,32], index: 12, kind: input, shape index: {}]
  %s13 = inlined_call_operand.vmem [shape: f32[32,224], index: 13, kind: input, shape index: {}]
  %s14 = inlined_call_operand.vmem [shape: f32[1,32], index: 14, kind: input, shape index: {}]
  %s15 = inlined_call_operand.vmem [shape: f32[1,32], index: 15, kind: input, shape index: {}]
  %s16 = inlined_call_operand.hbm [shape: f32[1568,128], index: 16, kind: input, shape index: {}]
  %s17 = inlined_call_operand.vmem [shape: f32[1,128], index: 17, kind: input, shape index: {}]
  %s18 = inlined_call_operand.hbm [shape: f32[2,128], index: 18, kind: output, shape index: {}]
  %s19 = sld [smem:[#allocation0]]
  $region94: #{encoder_forward.1} parent=0
    _
  %s21 = ssub.s32 1, %s19
  %s22 = scalar_select 0, %s21, %s19
  $region1: #{encoder_forward.1} parent=0
    #allocation11 [shape = 'u8[1032192]{0}', space=vmem, size = 0xfc000, scoped, tag = 'input window, operand 2, single buffered']
    #allocation12 [shape = 's32[1]{0}', space=sflag, size = 0x4, scoped, tag = 'scoped memory for encoder_forward.1']
    #allocation13 [shape = 's32[1]{0}', space=sflag, size = 0x4, scoped, tag = 'scoped memory for encoder_forward.1']
    #allocation14 [shape = 'u8[1032192]{0}', space=vmem, size = 0xfc000, scoped, tag = 'input window, operand 3, single buffered']
    #allocation15 [shape = 's32[1]{0}', space=sflag, size = 0x4, scoped, tag = 'scoped memory for encoder_forward.1']
    #allocation16 [shape = 'u8[802816]{0}', space=vmem, size = 0xc4000, scoped, tag = 'input window, operand 16, single buffered']
    #allocation17 [shape = 'u8[1024]{0}', space=vmem, size = 0x400, scoped, tag = 'output window, operand 0, single buffered']
    %23 = vsyncpa [#allocation12], 0
    %24 = vsyncpa [#allocation15], 0
    %25 = vsyncpa [#allocation13], 0
    // Predicated region
    $region2: #{encoder_forward.1} parent=1 // pred_check
      _
    $region3: #{encoder_forward.1} parent=1 // pred_check_branch
      %27 = sbr.rel (0) target = $region5
    $region4: #{encoder_forward.1} parent=1 // pred_region
      _
    $region5: #{encoder_forward.1} parent=1 // pred_fallthru
      _
    // Predicated region
    $region6: #{encoder_forward.1} parent=1 // pred_check
      _
    $region7: #{encoder_forward.1} parent=1 // pred_check_branch
      %29 = sbr.rel (0) target = $region9
    $region8: #{encoder_forward.1} parent=1 // pred_region
      _
    $region9: #{encoder_forward.1} parent=1 // pred_fallthru
      _
    // Predicated region
    $region10: #{encoder_forward.1} parent=1 // pred_check
      _
    $region11: #{encoder_forward.1} parent=1 // pred_check_branch
      %31 = sbr.rel (0) target = $region13
    $region12: #{encoder_forward.1} parent=1 // pred_region
      %s33 = ssub.s32 32256, 32256
      %34 = vsyncadd [#allocation12], %s33
      %s35 = sshll.u32 [#allocation11], 4
      %s36 = int_to_ptr.vmem [resolvable:$true] %s35
      %41 = dma.hbm_to_vmem [thread:$0]  %s2, 32256, %s36, [#allocation12], 256, 256, 16
    $region13: #{encoder_forward.1} parent=1 // pred_fallthru
      _
    // Predicated region
    $region14: #{encoder_forward.1} parent=1 // pred_check
      _
    $region15: #{encoder_forward.1} parent=1 // pred_check_branch
      %43 = sbr.rel (0) target = $region17
    $region16: #{encoder_forward.1} parent=1 // pred_region
      %s45 = ssub.s32 32256, 32256
      %46 = vsyncadd [#allocation15], %s45
      %s47 = sshll.u32 [#allocation14], 4
      %s48 = int_to_ptr.vmem [resolvable:$true] %s47
      %53 = dma.hbm_to_vmem [thread:$0]  %s3, 32256, %s48, [#allocation15], 256, 256, 16
    $region17: #{encoder_forward.1} parent=1 // pred_fallthru
      _
    // Predicated region
    $region18: #{encoder_forward.1} parent=1 // pred_check
      _
    $region19: #{encoder_forward.1} parent=1 // pred_check_branch
      %55 = sbr.rel (0) target = $region21
    $region20: #{encoder_forward.1} parent=1 // pred_region
      _
    $region21: #{encoder_forward.1} parent=1 // pred_fallthru
      _
    // Predicated region
    $region22: #{encoder_forward.1} parent=1 // pred_check
      _
    $region23: #{encoder_forward.1} parent=1 // pred_check_branch
      %57 = sbr.rel (0) target = $region25
    $region24: #{encoder_forward.1} parent=1 // pred_region
      _
    $region25: #{encoder_forward.1} parent=1 // pred_fallthru
      _
    // Predicated region
    $region26: #{encoder_forward.1} parent=1 // pred_check
      _
    $region27: #{encoder_forward.1} parent=1 // pred_check_branch
      %59 = sbr.rel (0) target = $region29
    $region28: #{encoder_forward.1} parent=1 // pred_region
      _
    $region29: #{encoder_forward.1} parent=1 // pred_fallthru
      _
    // Predicated region
    $region30: #{encoder_forward.1} parent=1 // pred_check
      _
    $region31: #{encoder_forward.1} parent=1 // pred_check_branch
      %61 = sbr.rel (0) target = $region33
    $region32: #{encoder_forward.1} parent=1 // pred_region
      _
    $region33: #{encoder_forward.1} parent=1 // pred_fallthru
      _
    // Predicated region
    $region34: #{encoder_forward.1} parent=1 // pred_check
      _
    $region35: #{encoder_forward.1} parent=1 // pred_check_branch
      %63 = sbr.rel (0) target = $region37
    $region36: #{encoder_forward.1} parent=1 // pred_region
      _
    $region37: #{encoder_forward.1} parent=1 // pred_fallthru
      _
    // Predicated region
    $region38: #{encoder_forward.1} parent=1 // pred_check
      _
    $region39: #{encoder_forward.1} parent=1 // pred_check_branch
      %65 = sbr.rel (0) target = $region41
    $region40: #{encoder_forward.1} parent=1 // pred_region
      _
    $region41: #{encoder_forward.1} parent=1 // pred_fallthru
      _
    // Predicated region
    $region42: #{encoder_forward.1} parent=1 // pred_check
      _
    $region43: #{encoder_forward.1} parent=1 // pred_check_branch
      %67 = sbr.rel (0) target = $region45
    $region44: #{encoder_forward.1} parent=1 // pred_region
      _
    $region45: #{encoder_forward.1} parent=1 // pred_fallthru
      _
    // Predicated region
    $region46: #{encoder_forward.1} parent=1 // pred_check
      _
    $region47: #{encoder_forward.1} parent=1 // pred_check_branch
      %69 = sbr.rel (0) target = $region49
    $region48: #{encoder_forward.1} parent=1 // pred_region
      _
    $region49: #{encoder_forward.1} parent=1 // pred_fallthru
      _
    // Predicated region
    $region50: #{encoder_forward.1} parent=1 // pred_check
      _
    $region51: #{encoder_forward.1} parent=1 // pred_check_branch
      %71 = sbr.rel (0) target = $region53
    $region52: #{encoder_forward.1} parent=1 // pred_region
      _
    $region53: #{encoder_forward.1} parent=1 // pred_fallthru
      _
    // Predicated region
    $region54: #{encoder_forward.1} parent=1 // pred_check
      _
    $region55: #{encoder_forward.1} parent=1 // pred_check_branch
      %73 = sbr.rel (0) target = $region57
    $region56: #{encoder_forward.1} parent=1 // pred_region
      _
    $region57: #{encoder_forward.1} parent=1 // pred_fallthru
      _
    // Predicated region
    $region58: #{encoder_forward.1} parent=1 // pred_check
      _
    $region59: #{encoder_forward.1} parent=1 // pred_check_branch
      %75 = sbr.rel (0) target = $region61
    $region60: #{encoder_forward.1} parent=1 // pred_region
      _
    $region61: #{encoder_forward.1} parent=1 // pred_fallthru
      _
    // Predicated region
    $region62: #{encoder_forward.1} parent=1 // pred_check
      _
    $region63: #{encoder_forward.1} parent=1 // pred_check_branch
      %77 = sbr.rel (0) target = $region65
    $region64: #{encoder_forward.1} parent=1 // pred_region
      _
    $region65: #{encoder_forward.1} parent=1 // pred_fallthru
      _
    // Predicated region
    $region66: #{encoder_forward.1} parent=1 // pred_check
      _
    $region67: #{encoder_forward.1} parent=1 // pred_check_branch
      %79 = sbr.rel (0) target = $region69
    $region68: #{encoder_forward.1} parent=1 // pred_region
      %s81 = ssub.s32 25088, 25088
      %82 = vsyncadd [#allocation15], %s81
      %s83 = sshll.u32 [#allocation16], 4
      %s84 = int_to_ptr.vmem [resolvable:$true] %s83
      %89 = dma.hbm_to_vmem [thread:$0]  %s16, 25088, %s84, [#allocation15], 128, 128, 8
    $region69: #{encoder_forward.1} parent=1 // pred_fallthru
      _
    // Predicated region
    $region70: #{encoder_forward.1} parent=1 // pred_check
      _
    $region71: #{encoder_forward.1} parent=1 // pred_check_branch
      %91 = sbr.rel (0) target = $region73
    $region72: #{encoder_forward.1} parent=1 // pred_region
      _
    $region73: #{encoder_forward.1} parent=1 // pred_fallthru
      _
    // Predicated region
    $region74: #{encoder_forward.1} parent=1 // pred_check
      _
    $region75: #{encoder_forward.1} parent=1 // pred_check_branch
      %93 = sbr.rel (0) target = $region77
    $region76: #{encoder_forward.1} parent=1 // pred_region
      %94 = dma.done [#allocation12], 32256
    $region77: #{encoder_forward.1} parent=1 // pred_fallthru
      _
    // Predicated region
    $region78: #{encoder_forward.1} parent=1 // pred_check
      _
    $region79: #{encoder_forward.1} parent=1 // pred_check_branch
      %96 = sbr.rel (0) target = $region81
    $region80: #{encoder_forward.1} parent=1 // pred_region
      %97 = dma.done [#allocation15], 32256
    $region81: #{encoder_forward.1} parent=1 // pred_fallthru
      _
    // Predicated region
    $region82: #{encoder_forward.1} parent=1 // pred_check
      _
    $region83: #{encoder_forward.1} parent=1 // pred_check_branch
      %99 = sbr.rel (0) target = $region85
    $region84: #{encoder_forward.1} parent=1 // pred_region
      %100 = dma.done [#allocation15], 25088
    $region85: #{encoder_forward.1} parent=1 // pred_fallthru
      _
    %vm101 = vcmask 244736
    %102 = vst.msk [vmem:[#allocation2] sm:$0xff] %vm101, 0.0
    %103 = vst.msk [vmem:[#allocation2 + $0x8] sm:$0xff] %vm101, 0.0
    %104 = vst.msk [vmem:[#allocation2 + $0x10] sm:$0xff] %vm101, 0.0
    %105 = vst.msk [vmem:[#allocation2 + $0x18] sm:$0xff] %vm101, 0.0
    %106 = vst.msk [vmem:[#allocation2 + $0x20] sm:$0xff] %vm101, 0.0
    %107 = vst.msk [vmem:[#allocation2 + $0x28] sm:$0xff] %vm101, 0.0
    %108 = vst.msk [vmem:[#allocation2 + $0x30] sm:$0xff] %vm101, 0.0
    %vm109 = vcmask 240640
    %110 = vst.msk [vmem:[#allocation2 + $0x38] sm:$0xf] %vm109, 0.0
    %v111 = vld [vmem:[%s0] sm:$0xff]
    %v112 = vld [vmem:[%s0 + $0x8] sm:$0xff]
    %v113 = vld [vmem:[%s0 + $0x10] sm:$0xff]
    %v114 = vld [vmem:[%s0 + $0x18] sm:$0xf]
    %119 = vrot.lane.b32.xlu0 %v111, 1
    %v120 = vpop.permute.xlu0 %119
    %121 = vrot.lane.b32.xlu0 %v112, 1
    %v122 = vpop.permute.xlu0 %121
    %123 = vrot.lane.b32.xlu0 %v113, 1
    %v124 = vpop.permute.xlu0 %123
    %125 = vrot.lane.b32.xlu0 %v114, 1
    %v126 = vpop.permute.xlu0 %125
    %vm131 = vcmask 236552
    %132 = vst.msk [vmem:[#allocation2 + $0x1] sm:$0xff] %vm131, %v120
    %133 = vst.msk [vmem:[#allocation2 + $0x9] sm:$0xff] %vm131, %v122
    %134 = vst.msk [vmem:[#allocation2 + $0x11] sm:$0xff] %vm131, %v124
    %vm135 = vcmask 232456
    %136 = vst.msk [vmem:[#allocation2 + $0x19] sm:$0xf] %vm135, %v126
    %v137 = vld [vmem:[%s0 + $0x1c] sm:$0xff]
    %v138 = vld [vmem:[%s0 + $0x24] sm:$0xff]
    %v139 = vld [vmem:[%s0 + $0x2c] sm:$0xff]
    %v140 = vld [vmem:[%s0 + $0x34] sm:$0xf]
    %145 = vrot.lane.b32.xlu0 %v137, 1
    %v146 = vpop.permute.xlu0 %145
    %147 = vrot.lane.b32.xlu0 %v138, 1
    %v148 = vpop.permute.xlu0 %147
    %149 = vrot.lane.b32.xlu0 %v139, 1
    %v150 = vpop.permute.xlu0 %149
    %151 = vrot.lane.b32.xlu0 %v140, 1
    %v152 = vpop.permute.xlu0 %151
    %157 = vst.msk [vmem:[#allocation2 + $0x1f] sm:$0xff] %vm131, %v146
    %158 = vst.msk [vmem:[#allocation2 + $0x27] sm:$0xff] %vm131, %v148
    %159 = vst.msk [vmem:[#allocation2 + $0x2f] sm:$0xff] %vm131, %v150
    %160 = vst.msk [vmem:[#allocation2 + $0x37] sm:$0xf] %vm135, %v152
    %v161 = vld [vmem:[#allocation2] sm:$0xff]
    %v162 = vld [vmem:[#allocation2 + $0x8] sm:$0xff]
    %v163 = vld [vmem:[#allocation2 + $0x10] sm:$0xff]
    %v164 = vld [vmem:[#allocation2 + $0x18] sm:$0xff]
    %v165 = vld [vmem:[#allocation2 + $0x20] sm:$0xff]
    %v166 = vld [vmem:[#allocation2 + $0x28] sm:$0xff]
    %v167 = vld [vmem:[#allocation2 + $0x30] sm:$0xff]
    %v168 = vld [vmem:[#allocation2 + $0x38] sm:$0x3]
    %v169 = vld [vmem:[%s1] sm:$0xff]
    %v170 = vld [vmem:[%s1 + $0x8] sm:$0xff]
    %v171 = vld [vmem:[%s1 + $0x10] sm:$0xff]
    %v172 = vld [vmem:[%s1 + $0x18] sm:$0xff]
    %v173 = vld [vmem:[%s1 + $0x20] sm:$0xff]
    %v174 = vld [vmem:[%s1 + $0x28] sm:$0xff]
    %v175 = vld [vmem:[%s1 + $0x30] sm:$0xf]
    %v176 = vld [vmem:[%s1 + $0x38] sm:$0xf]
    %s177 = scalar_lea.vmem %s1, 64
    %v178 = vld [vmem:[%s177] sm:$0xff]
    %v179 = vld [vmem:[%s177 + $0x8] sm:$0xff]
    %v180 = vld [vmem:[%s177 + $0x10] sm:$0xff]
    %v181 = vld [vmem:[%s177 + $0x18] sm:$0xff]
    %v182 = vld [vmem:[%s177 + $0x20] sm:$0xff]
    %v183 = vld [vmem:[%s177 + $0x28] sm:$0xff]
    %v184 = vld [vmem:[%s177 + $0x30] sm:$0xf]
    %v185 = vld [vmem:[%s177 + $0x38] sm:$0xf]
    %194 = vrot.lane.b32.xlu0 %v161, 127
    %v195 = vpop.permute.xlu0 %194
    %196 = vrot.lane.b32.xlu0 %v162, 127
    %v197 = vpop.permute.xlu0 %196
    %198 = vrot.lane.b32.xlu0 %v163, 127
    %v199 = vpop.permute.xlu0 %198
    %200 = vrot.lane.b32.xlu0 %v164, 127
    %v201 = vpop.permute.xlu0 %200
    %202 = vrot.lane.b32.xlu0 %v165, 127
    %v203 = vpop.permute.xlu0 %202
    %204 = vrot.lane.b32.xlu0 %v166, 127
    %v205 = vpop.permute.xlu0 %204
    %206 = vrot.lane.b32.xlu0 %v167, 127
    %v207 = vpop.permute.xlu0 %206
    %208 = vrot.lane.b32.xlu0 %v168, 127
    %v209 = vpop.permute.xlu0 %208
    %vm210 = vcmask 228352
    %v211 = vsel %vm210, %v195, 0
    %v213 = vsel %vm210, %v197, 0
    %v215 = vsel %vm210, %v199, 0
    %v217 = vsel %vm210, %v201, 0
    %v219 = vsel %vm210, %v203, 0
    %v221 = vsel %vm210, %v205, 0
    %v223 = vsel %vm210, %v207, 0
    %v225 = vsel %vm210, %v209, 0
    %vm227 = vcmask 1043456
    %v229 = vsel %vm227, %v184, 0
    %v232 = vsel %vm227, %v185, 0
    %234 = vmatprep.subr.mxu0 0.0
    %235 = vmatpush1.msra.mxu0 0.0
    %236 = vmatprep.subr.mxu0 0.0
    %237 = vmatpush1.msra.mxu0 0.0
    %238 = vmatprep.subr.mxu0 0.0
    %239 = vmatpush1.msra.mxu0 0.0
    %240 = vmatprep.subr.mxu0 0.0
    %241 = vmatpush1.msra.mxu0 0.0
    %242 = vmatprep.subr.mxu0 0.0
    %243 = vmatpush1.msra.mxu0 0.0
    %244 = vmatprep.subr.mxu0 0.0
    %245 = vmatpush1.msra.mxu0 0.0
    %246 = vmatprep.subr.mxu0 0.0
    %247 = vmatpush1.msra.mxu0 0.0
    %248 = vmatprep.subr.mxu0 0.0
    %249 = vmatpush1.msra.mxu0 0.0
    %250 = vmatprep.subr.mxu0 0.0
    %251 = vmatpush1.msra.mxu0 0.0
    %252 = vmatprep.subr.mxu0 0.0
    %253 = vmatpush1.msra.mxu0 0.0
    %254 = vmatprep.subr.mxu0 0.0
    %255 = vmatpush1.msra.mxu0 0.0
    %256 = vmatprep.subr.mxu0 0.0
    %257 = vmatpush1.msra.mxu0 0.0
    %258 = vmatprep.subr.mxu0 %v232
    %259 = vmatpush1.msra.mxu0 %v229
    %260 = vmatprep.subr.mxu0 %v183
    %261 = vmatpush1.msra.mxu0 %v182
    %262 = vmatprep.subr.mxu0 %v181
    %263 = vmatpush1.msra.mxu0 %v180
    %264 = vmatprep.subr.mxu0 %v179
    %265 = vmatpush1.msra.mxu0 %v178
    %266 = vmatprep.subr.mxu0 0.0
    %267 = vmatpush2.msra.mxu0 0.0
    %268 = vmatprep.subr.mxu0 0.0
    %269 = vmatpush2.msra.mxu0 0.0
    %270 = vmatprep.subr.mxu0 0.0
    %271 = vmatpush2.msra.mxu0 0.0
    %272 = vmatprep.subr.mxu0 0.0
    %273 = vmatpush2.msra.mxu0 0.0
    %274 = vmatprep.subr.mxu0 0.0
    %275 = vmatpush2.msra.mxu0 0.0
    %276 = vmatprep.subr.mxu0 0.0
    %277 = vmatpush2.msra.mxu0 0.0
    %278 = vmatprep.subr.mxu0 0.0
    %279 = vmatpush2.msra.mxu0 0.0
    %280 = vmatprep.subr.mxu0 0.0
    %281 = vmatpush2.msra.mxu0 0.0
    %282 = vmatprep.subr.mxu0 0.0
    %283 = vmatpush2.msra.mxu0 0.0
    %284 = vmatprep.subr.mxu0 0.0
    %285 = vmatpush2.msra.mxu0 0.0
    %286 = vmatprep.subr.mxu0 0.0
    %287 = vmatpush2.msra.mxu0 0.0
    %288 = vmatprep.subr.mxu0 0.0
    %289 = vmatpush2.msra.mxu0 0.0
    %290 = vmatprep.subr.mxu0 0.0
    %291 = vmatpush2.msra.mxu0 0.0
    %292 = vmatprep.subr.mxu0 0.0
    %293 = vmatpush2.msra.mxu0 0.0
    %294 = vmatprep.subr.mxu0 0.0
    %295 = vmatpush2.msra.mxu0 0.0
    %296 = vmatprep.subr.mxu0 0.0
    %297 = vmatpush2.msra.mxu0 0.0
    %298 = vmatprep.mubr.f32.mxu0 0.0
    %299 = vmatmul.mubr.f32.gmra.mxu0 %v211
    %v300 = vpop.f32.mrf.mxu0
    %v301 = vadd.f32 0.0, %v300
    %v302 = vpop.f32.mrf.mxu0
    %v303 = vadd.f32 0.0, %v302
    %304 = vmatprep.mubr.f32.mxu0 0.0
    %305 = vmatmul.mubr.f32.gmra.mxu0 %v213
    %v306 = vpop.f32.mrf.mxu0
    %v307 = vadd.f32 0.0, %v306
    %v308 = vpop.f32.mrf.mxu0
    %v309 = vadd.f32 0.0, %v308
    %310 = vmatprep.mubr.f32.mxu0 0.0
    %311 = vmatmul.mubr.f32.gmra.mxu0 %v215
    %v312 = vpop.f32.mrf.mxu0
    %v313 = vadd.f32 0.0, %v312
    %v314 = vpop.f32.mrf.mxu0
    %v315 = vadd.f32 0.0, %v314
    %316 = vmatprep.mubr.f32.mxu0 0.0
    %317 = vmatmul.mubr.f32.gmra.mxu0 %v217
    %v318 = vpop.f32.mrf.mxu0
    %v319 = vadd.f32 0.0, %v318
    %v320 = vpop.f32.mrf.mxu0
    %v321 = vadd.f32 0.0, %v320
    %322 = vmatprep.mubr.f32.mxu0 0.0
    %323 = vmatmul.mubr.f32.gmra.mxu0 %v219
    %v324 = vpop.f32.mrf.mxu0
    %v325 = vadd.f32 0.0, %v324
    %v326 = vpop.f32.mrf.mxu0
    %v327 = vadd.f32 0.0, %v326
    %328 = vmatprep.mubr.f32.mxu0 0.0
    %329 = vmatmul.mubr.f32.gmra.mxu0 %v221
    %v330 = vpop.f32.mrf.mxu0
    %v331 = vadd.f32 0.0, %v330
    %v332 = vpop.f32.mrf.mxu0
    %v333 = vadd.f32 0.0, %v332
    %334 = vmatprep.mubr.f32.mxu0 0.0
    %335 = vmatmul.mubr.f32.gmra.mxu0 %v223
    %v336 = vpop.f32.mrf.mxu0
    %v337 = vadd.f32 0.0, %v336
    %v338 = vpop.f32.mrf.mxu0
    %v339 = vadd.f32 0.0, %v338
    %340 = vmatprep.mubr.f32.mxu0 0.0
    %341 = vmatmul.mubr.f32.gmra.mxu0 %v225
    %v342 = vpop.f32.mrf.mxu0
    %v343 = vadd.f32 0.0, %v342
    %v344 = vpop.f32.mrf.mxu0
    %v345 = vadd.f32 0.0, %v344
    %346 = vdwg.mxu0
    %v347 = vsel %vm210, %v161, 0
    %v349 = vsel %vm210, %v162, 0
    %v351 = vsel %vm210, %v163, 0
    %v353 = vsel %vm210, %v164, 0
    %v355 = vsel %vm210, %v165, 0
    %v357 = vsel %vm210, %v166, 0
    %v359 = vsel %vm210, %v167, 0
    %v361 = vsel %vm210, %v168, 0
    %v364 = vsel %vm227, %v175, 0
    %v367 = vsel %vm227, %v176, 0
    %369 = vmatprep.subr.mxu0 0.0
    %370 = vmatpush1.msra.mxu0 0.0
    %371 = vmatprep.subr.mxu0 0.0
    %372 = vmatpush1.msra.mxu0 0.0
    %373 = vmatprep.subr.mxu0 0.0
    %374 = vmatpush1.msra.mxu0 0.0
    %375 = vmatprep.subr.mxu0 0.0
    %376 = vmatpush1.msra.mxu0 0.0
    %377 = vmatprep.subr.mxu0 0.0
    %378 = vmatpush1.msra.mxu0 0.0
    %379 = vmatprep.subr.mxu0 0.0
    %380 = vmatpush1.msra.mxu0 0.0
    %381 = vmatprep.subr.mxu0 0.0
    %382 = vmatpush1.msra.mxu0 0.0
    %383 = vmatprep.subr.mxu0 0.0
    %384 = vmatpush1.msra.mxu0 0.0
    %385 = vmatprep.subr.mxu0 0.0
    %386 = vmatpush1.msra.mxu0 0.0
    %387 = vmatprep.subr.mxu0 0.0
    %388 = vmatpush1.msra.mxu0 0.0
    %389 = vmatprep.subr.mxu0 0.0
    %390 = vmatpush1.msra.mxu0 0.0
    %391 = vmatprep.subr.mxu0 0.0
    %392 = vmatpush1.msra.mxu0 0.0
    %393 = vmatprep.subr.mxu0 %v367
    %394 = vmatpush1.msra.mxu0 %v364
    %395 = vmatprep.subr.mxu0 %v174
    %396 = vmatpush1.msra.mxu0 %v173
    %397 = vmatprep.subr.mxu0 %v172
    %398 = vmatpush1.msra.mxu0 %v171
    %399 = vmatprep.subr.mxu0 %v170
    %400 = vmatpush1.msra.mxu0 %v169
    %401 = vmatprep.subr.mxu0 0.0
    %402 = vmatpush2.msra.mxu0 0.0
    %403 = vmatprep.subr.mxu0 0.0
    %404 = vmatpush2.msra.mxu0 0.0
    %405 = vmatprep.subr.mxu0 0.0
    %406 = vmatpush2.msra.mxu0 0.0
    %407 = vmatprep.subr.mxu0 0.0
    %408 = vmatpush2.msra.mxu0 0.0
    %409 = vmatprep.subr.mxu0 0.0
    %410 = vmatpush2.msra.mxu0 0.0
    %411 = vmatprep.subr.mxu0 0.0
    %412 = vmatpush2.msra.mxu0 0.0
    %413 = vmatprep.subr.mxu0 0.0
    %414 = vmatpush2.msra.mxu0 0.0
    %415 = vmatprep.subr.mxu0 0.0
    %416 = vmatpush2.msra.mxu0 0.0
    %417 = vmatprep.subr.mxu0 0.0
    %418 = vmatpush2.msra.mxu0 0.0
    %419 = vmatprep.subr.mxu0 0.0
    %420 = vmatpush2.msra.mxu0 0.0
    %421 = vmatprep.subr.mxu0 0.0
    %422 = vmatpush2.msra.mxu0 0.0
    %423 = vmatprep.subr.mxu0 0.0
    %424 = vmatpush2.msra.mxu0 0.0
    %425 = vmatprep.subr.mxu0 0.0
    %426 = vmatpush2.msra.mxu0 0.0
    %427 = vmatprep.subr.mxu0 0.0
    %428 = vmatpush2.msra.mxu0 0.0
    %429 = vmatprep.subr.mxu0 0.0
    %430 = vmatpush2.msra.mxu0 0.0
    %431 = vmatprep.subr.mxu0 0.0
    %432 = vmatpush2.msra.mxu0 0.0
    %433 = vmatprep.mubr.f32.mxu0 0.0
    %434 = vmatmul.mubr.f32.gmra.mxu0 %v347
    %v435 = vpop.f32.mrf.mxu0
    %v436 = vadd.f32 %v301, %v435
    %v437 = vpop.f32.mrf.mxu0
    %v438 = vadd.f32 %v303, %v437
    %439 = vmatprep.mubr.f32.mxu0 0.0
    %440 = vmatmul.mubr.f32.gmra.mxu0 %v349
    %v441 = vpop.f32.mrf.mxu0
    %v442 = vadd.f32 %v307, %v441
    %v443 = vpop.f32.mrf.mxu0
    %v444 = vadd.f32 %v309, %v443
    %445 = vmatprep.mubr.f32.mxu0 0.0
    %446 = vmatmul.mubr.f32.gmra.mxu0 %v351
    %v447 = vpop.f32.mrf.mxu0
    %v448 = vadd.f32 %v313, %v447
    %v449 = vpop.f32.mrf.mxu0
    %v450 = vadd.f32 %v315, %v449
    %451 = vmatprep.mubr.f32.mxu0 0.0
    %452 = vmatmul.mubr.f32.gmra.mxu0 %v353
    %v453 = vpop.f32.mrf.mxu0
    %v454 = vadd.f32 %v319, %v453
    %v455 = vpop.f32.mrf.mxu0
    %v456 = vadd.f32 %v321, %v455
    %457 = vmatprep.mubr.f32.mxu0 0.0
    %458 = vmatmul.mubr.f32.gmra.mxu0 %v355
    %v459 = vpop.f32.mrf.mxu0
    %v460 = vadd.f32 %v325, %v459
    %v461 = vpop.f32.mrf.mxu0
    %v462 = vadd.f32 %v327, %v461
    %463 = vmatprep.mubr.f32.mxu0 0.0
    %464 = vmatmul.mubr.f32.gmra.mxu0 %v357
    %v465 = vpop.f32.mrf.mxu0
    %v466 = vadd.f32 %v331, %v465
    %v467 = vpop.f32.mrf.mxu0
    %v468 = vadd.f32 %v333, %v467
    %469 = vmatprep.mubr.f32.mxu0 0.0
    %470 = vmatmul.mubr.f32.gmra.mxu0 %v359
    %v471 = vpop.f32.mrf.mxu0
    %v472 = vadd.f32 %v337, %v471
    %v473 = vpop.f32.mrf.mxu0
    %v474 = vadd.f32 %v339, %v473
    %475 = vmatprep.mubr.f32.mxu0 0.0
    %476 = vmatmul.mubr.f32.gmra.mxu0 %v361
    %v477 = vpop.f32.mrf.mxu0
    %v478 = vadd.f32 %v343, %v477
    %v479 = vpop.f32.mrf.mxu0
    %v480 = vadd.f32 %v345, %v479
    %481 = vdwg.mxu0
    %s482 = scalar_lea.vmem %s1, 128
    %v483 = vld [vmem:[%s482] sm:$0xff]
    %v484 = vld [vmem:[%s482 + $0x8] sm:$0xff]
    %v485 = vld [vmem:[%s482 + $0x10] sm:$0xff]
    %v486 = vld [vmem:[%s482 + $0x18] sm:$0xff]
    %v487 = vld [vmem:[%s482 + $0x20] sm:$0xff]
    %v488 = vld [vmem:[%s482 + $0x28] sm:$0xff]
    %v489 = vld [vmem:[%s482 + $0x30] sm:$0xf]
    %v490 = vld [vmem:[%s482 + $0x38] sm:$0xf]
    %491 = vrot.lane.b32.xlu0 %v161, 126
    %v492 = vpop.permute.xlu0 %491
    %493 = vrot.lane.b32.xlu0 %v162, 126
    %v494 = vpop.permute.xlu0 %493
    %495 = vrot.lane.b32.xlu0 %v163, 126
    %v496 = vpop.permute.xlu0 %495
    %497 = vrot.lane.b32.xlu0 %v164, 126
    %v498 = vpop.permute.xlu0 %497
    %499 = vrot.lane.b32.xlu0 %v165, 126
    %v500 = vpop.permute.xlu0 %499
    %501 = vrot.lane.b32.xlu0 %v166, 126
    %v502 = vpop.permute.xlu0 %501
    %503 = vrot.lane.b32.xlu0 %v167, 126
    %v504 = vpop.permute.xlu0 %503
    %505 = vrot.lane.b32.xlu0 %v168, 126
    %v506 = vpop.permute.xlu0 %505
    %v507 = vsel %vm210, %v492, 0
    %v509 = vsel %vm210, %v494, 0
    %v511 = vsel %vm210, %v496, 0
    %v513 = vsel %vm210, %v498, 0
    %v515 = vsel %vm210, %v500, 0
    %v517 = vsel %vm210, %v502, 0
    %v519 = vsel %vm210, %v504, 0
    %v521 = vsel %vm210, %v506, 0
    %v524 = vsel %vm227, %v489, 0
    %v527 = vsel %vm227, %v490, 0
    %529 = vmatprep.subr.mxu0 0.0
    %530 = vmatpush1.msra.mxu0 0.0
    %531 = vmatprep.subr.mxu0 0.0
    %532 = vmatpush1.msra.mxu0 0.0
    %533 = vmatprep.subr.mxu0 0.0
    %534 = vmatpush1.msra.mxu0 0.0
    %535 = vmatprep.subr.mxu0 0.0
    %536 = vmatpush1.msra.mxu0 0.0
    %537 = vmatprep.subr.mxu0 0.0
    %538 = vmatpush1.msra.mxu0 0.0
    %539 = vmatprep.subr.mxu0 0.0
    %540 = vmatpush1.msra.mxu0 0.0
    %541 = vmatprep.subr.mxu0 0.0
    %542 = vmatpush1.msra.mxu0 0.0
    %543 = vmatprep.subr.mxu0 0.0
    %544 = vmatpush1.msra.mxu0 0.0
    %545 = vmatprep.subr.mxu0 0.0
    %546 = vmatpush1.msra.mxu0 0.0
    %547 = vmatprep.subr.mxu0 0.0
    %548 = vmatpush1.msra.mxu0 0.0
    %549 = vmatprep.subr.mxu0 0.0
    %550 = vmatpush1.msra.mxu0 0.0
    %551 = vmatprep.subr.mxu0 0.0
    %552 = vmatpush1.msra.mxu0 0.0
    %553 = vmatprep.subr.mxu0 %v527
    %554 = vmatpush1.msra.mxu0 %v524
    %555 = vmatprep.subr.mxu0 %v488
    %556 = vmatpush1.msra.mxu0 %v487
    %557 = vmatprep.subr.mxu0 %v486
    %558 = vmatpush1.msra.mxu0 %v485
    %559 = vmatprep.subr.mxu0 %v484
    %560 = vmatpush1.msra.mxu0 %v483
    %561 = vmatprep.subr.mxu0 0.0
    %562 = vmatpush2.msra.mxu0 0.0
    %563 = vmatprep.subr.mxu0 0.0
    %564 = vmatpush2.msra.mxu0 0.0
    %565 = vmatprep.subr.mxu0 0.0
    %566 = vmatpush2.msra.mxu0 0.0
    %567 = vmatprep.subr.mxu0 0.0
    %568 = vmatpush2.msra.mxu0 0.0
    %569 = vmatprep.subr.mxu0 0.0
    %570 = vmatpush2.msra.mxu0 0.0
    %571 = vmatprep.subr.mxu0 0.0
    %572 = vmatpush2.msra.mxu0 0.0
    %573 = vmatprep.subr.mxu0 0.0
    %574 = vmatpush2.msra.mxu0 0.0
    %575 = vmatprep.subr.mxu0 0.0
    %576 = vmatpush2.msra.mxu0 0.0
    %577 = vmatprep.subr.mxu0 0.0
    %578 = vmatpush2.msra.mxu0 0.0
    %579 = vmatprep.subr.mxu0 0.0
    %580 = vmatpush2.msra.mxu0 0.0
    %581 = vmatprep.subr.mxu0 0.0
    %582 = vmatpush2.msra.mxu0 0.0
    %583 = vmatprep.subr.mxu0 0.0
    %584 = vmatpush2.msra.mxu0 0.0
    %585 = vmatprep.subr.mxu0 0.0
    %586 = vmatpush2.msra.mxu0 0.0
    %587 = vmatprep.subr.mxu0 0.0
    %588 = vmatpush2.msra.mxu0 0.0
    %589 = vmatprep.subr.mxu0 0.0
    %590 = vmatpush2.msra.mxu0 0.0
    %591 = vmatprep.subr.mxu0 0.0
    %592 = vmatpush2.msra.mxu0 0.0
    %593 = vmatprep.mubr.f32.mxu0 0.0
    %594 = vmatmul.mubr.f32.gmra.mxu0 %v507
    %v595 = vpop.f32.mrf.mxu0
    %v596 = vadd.f32 0.0, %v595
    %v597 = vpop.f32.mrf.mxu0
    %v598 = vadd.f32 0.0, %v597
    %599 = vmatprep.mubr.f32.mxu0 0.0
    %600 = vmatmul.mubr.f32.gmra.mxu0 %v509
    %v601 = vpop.f32.mrf.mxu0
    %v602 = vadd.f32 0.0, %v601
    %v603 = vpop.f32.mrf.mxu0
    %v604 = vadd.f32 0.0, %v603
    %605 = vmatprep.mubr.f32.mxu0 0.0
    %606 = vmatmul.mubr.f32.gmra.mxu0 %v511
    %v607 = vpop.f32.mrf.mxu0
    %v608 = vadd.f32 0.0, %v607
    %v609 = vpop.f32.mrf.mxu0
    %v610 = vadd.f32 0.0, %v609
    %611 = vmatprep.mubr.f32.mxu0 0.0
    %612 = vmatmul.mubr.f32.gmra.mxu0 %v513
    %v613 = vpop.f32.mrf.mxu0
    %v614 = vadd.f32 0.0, %v613
    %v615 = vpop.f32.mrf.mxu0
    %v616 = vadd.f32 0.0, %v615
    %617 = vmatprep.mubr.f32.mxu0 0.0
    %618 = vmatmul.mubr.f32.gmra.mxu0 %v515
    %v619 = vpop.f32.mrf.mxu0
    %v620 = vadd.f32 0.0, %v619
    %v621 = vpop.f32.mrf.mxu0
    %v622 = vadd.f32 0.0, %v621
    %623 = vmatprep.mubr.f32.mxu0 0.0
    %624 = vmatmul.mubr.f32.gmra.mxu0 %v517
    %v625 = vpop.f32.mrf.mxu0
    %v626 = vadd.f32 0.0, %v625
    %v627 = vpop.f32.mrf.mxu0
    %v628 = vadd.f32 0.0, %v627
    %629 = vmatprep.mubr.f32.mxu0 0.0
    %630 = vmatmul.mubr.f32.gmra.mxu0 %v519
    %v631 = vpop.f32.mrf.mxu0
    %v632 = vadd.f32 0.0, %v631
    %v633 = vpop.f32.mrf.mxu0
    %v634 = vadd.f32 0.0, %v633
    %635 = vmatprep.mubr.f32.mxu0 0.0
    %636 = vmatmul.mubr.f32.gmra.mxu0 %v521
    %v637 = vpop.f32.mrf.mxu0
    %v638 = vadd.f32 0.0, %v637
    %v639 = vpop.f32.mrf.mxu0
    %v640 = vadd.f32 0.0, %v639
    %641 = vdwg.mxu0
    %v642 = vadd.f32 %v436, %v596
    %v643 = vadd.f32 %v438, %v598
    %v644 = vadd.f32 %v442, %v602
    %v645 = vadd.f32 %v444, %v604
    %v646 = vadd.f32 %v448, %v608
    %v647 = vadd.f32 %v450, %v610
    %v648 = vadd.f32 %v454, %v614
    %v649 = vadd.f32 %v456, %v616
    %v650 = vadd.f32 %v460, %v620
    %v651 = vadd.f32 %v462, %v622
    %v652 = vadd.f32 %v466, %v626
    %v653 = vadd.f32 %v468, %v628
    %v654 = vadd.f32 %v472, %v632
    %v655 = vadd.f32 %v474, %v634
    %v656 = vadd.f32 %v478, %v638
    %v657 = vadd.f32 %v480, %v640
    %v658 = vld [vmem:[#allocation2 + $0x1] sm:$0xff]
    %v659 = vld [vmem:[#allocation2 + $0x9] sm:$0xff]
    %v660 = vld [vmem:[#allocation2 + $0x11] sm:$0xff]
    %v661 = vld [vmem:[#allocation2 + $0x19] sm:$0xff]
    %v662 = vld [vmem:[#allocation2 + $0x21] sm:$0xff]
    %v663 = vld [vmem:[#allocation2 + $0x29] sm:$0xff]
    %v664 = vld [vmem:[#allocation2 + $0x31] sm:$0xff]
    %v665 = vld [vmem:[#allocation2 + $0x39] sm:$0x3]
    %s666 = scalar_lea.vmem %s1, 192
    %v667 = vld [vmem:[%s666] sm:$0xff]
    %v668 = vld [vmem:[%s666 + $0x8] sm:$0xff]
    %v669 = vld [vmem:[%s666 + $0x10] sm:$0xff]
    %v670 = vld [vmem:[%s666 + $0x18] sm:$0xff]
    %v671 = vld [vmem:[%s666 + $0x20] sm:$0xff]
    %v672 = vld [vmem:[%s666 + $0x28] sm:$0xff]
    %v673 = vld [vmem:[%s666 + $0x30] sm:$0xf]
    %v674 = vld [vmem:[%s666 + $0x38] sm:$0xf]
    %v676 = vsel %vm210, %v658, 0
    %v679 = vsel %vm210, %v659, 0
    %v682 = vsel %vm210, %v660, 0
    %v685 = vsel %vm210, %v661, 0
    %v688 = vsel %vm210, %v662, 0
    %v691 = vsel %vm210, %v663, 0
    %v694 = vsel %vm210, %v664, 0
    %v697 = vsel %vm210, %v665, 0
    %v700 = vsel %vm227, %v673, 0
    %v703 = vsel %vm227, %v674, 0
    %705 = vmatprep.subr.mxu0 0.0
    %706 = vmatpush1.msra.mxu0 0.0
    %707 = vmatprep.subr.mxu0 0.0
    %708 = vmatpush1.msra.mxu0 0.0
    %709 = vmatprep.subr.mxu0 0.0
    %710 = vmatpush1.msra.mxu0 0.0
    %711 = vmatprep.subr.mxu0 0.0
    %712 = vmatpush1.msra.mxu0 0.0
    %713 = vmatprep.subr.mxu0 0.0
    %714 = vmatpush1.msra.mxu0 0.0
    %715 = vmatprep.subr.mxu0 0.0
    %716 = vmatpush1.msra.mxu0 0.0
    %717 = vmatprep.subr.mxu0 0.0
    %718 = vmatpush1.msra.mxu0 0.0
    %719 = vmatprep.subr.mxu0 0.0
    %720 = vmatpush1.msra.mxu0 0.0
    %721 = vmatprep.subr.mxu0 0.0
    %722 = vmatpush1.msra.mxu0 0.0
    %723 = vmatprep.subr.mxu0 0.0
    %724 = vmatpush1.msra.mxu0 0.0
    %725 = vmatprep.subr.mxu0 0.0
    %726 = vmatpush1.msra.mxu0 0.0
    %727 = vmatprep.subr.mxu0 0.0
    %728 = vmatpush1.msra.mxu0 0.0
    %729 = vmatprep.subr.mxu0 %v703
    %730 = vmatpush1.msra.mxu0 %v700
    %731 = vmatprep.subr.mxu0 %v672
    %732 = vmatpush1.msra.mxu0 %v671
    %733 = vmatprep.subr.mxu0 %v670
    %734 = vmatpush1.msra.mxu0 %v669
    %735 = vmatprep.subr.mxu0 %v668
    %736 = vmatpush1.msra.mxu0 %v667
    %737 = vmatprep.subr.mxu0 0.0
    %738 = vmatpush2.msra.mxu0 0.0
    %739 = vmatprep.subr.mxu0 0.0
    %740 = vmatpush2.msra.mxu0 0.0
    %741 = vmatprep.subr.mxu0 0.0
    %742 = vmatpush2.msra.mxu0 0.0
    %743 = vmatprep.subr.mxu0 0.0
    %744 = vmatpush2.msra.mxu0 0.0
    %745 = vmatprep.subr.mxu0 0.0
    %746 = vmatpush2.msra.mxu0 0.0
    %747 = vmatprep.subr.mxu0 0.0
    %748 = vmatpush2.msra.mxu0 0.0
    %749 = vmatprep.subr.mxu0 0.0
    %750 = vmatpush2.msra.mxu0 0.0
    %751 = vmatprep.subr.mxu0 0.0
    %752 = vmatpush2.msra.mxu0 0.0
    %753 = vmatprep.subr.mxu0 0.0
    %754 = vmatpush2.msra.mxu0 0.0
    %755 = vmatprep.subr.mxu0 0.0
    %756 = vmatpush2.msra.mxu0 0.0
    %757 = vmatprep.subr.mxu0 0.0
    %758 = vmatpush2.msra.mxu0 0.0
    %759 = vmatprep.subr.mxu0 0.0
    %760 = vmatpush2.msra.mxu0 0.0
    %761 = vmatprep.subr.mxu0 0.0
    %762 = vmatpush2.msra.mxu0 0.0
    %763 = vmatprep.subr.mxu0 0.0
    %764 = vmatpush2.msra.mxu0 0.0
    %765 = vmatprep.subr.mxu0 0.0
    %766 = vmatpush2.msra.mxu0 0.0
    %767 = vmatprep.subr.mxu0 0.0
    %768 = vmatpush2.msra.mxu0 0.0
    %769 = vmatprep.mubr.f32.mxu0 0.0
    %770 = vmatmul.mubr.f32.gmra.mxu0 %v676
    %v771 = vpop.f32.mrf.mxu0
    %v772 = vadd.f32 0.0, %v771
    %v773 = vpop.f32.mrf.mxu0
    %v774 = vadd.f32 0.0, %v773
    %775 = vmatprep.mubr.f32.mxu0 0.0
    %776 = vmatmul.mubr.f32.gmra.mxu0 %v679
    %v777 = vpop.f32.mrf.mxu0
    %v778 = vadd.f32 0.0, %v777
    %v779 = vpop.f32.mrf.mxu0
    %v780 = vadd.f32 0.0, %v779
    %781 = vmatprep.mubr.f32.mxu0 0.0
    %782 = vmatmul.mubr.f32.gmra.mxu0 %v682
    %v783 = vpop.f32.mrf.mxu0
    %v784 = vadd.f32 0.0, %v783
    %v785 = vpop.f32.mrf.mxu0
    %v786 = vadd.f32 0.0, %v785
    %787 = vmatprep.mubr.f32.mxu0 0.0
    %788 = vmatmul.mubr.f32.gmra.mxu0 %v685
    %v789 = vpop.f32.mrf.mxu0
    %v790 = vadd.f32 0.0, %v789
    %v791 = vpop.f32.mrf.mxu0
    %v792 = vadd.f32 0.0, %v791
    %793 = vmatprep.mubr.f32.mxu0 0.0
    %794 = vmatmul.mubr.f32.gmra.mxu0 %v688
    %v795 = vpop.f32.mrf.mxu0
    %v796 = vadd.f32 0.0, %v795
    %v797 = vpop.f32.mrf.mxu0
    %v798 = vadd.f32 0.0, %v797
    %799 = vmatprep.mubr.f32.mxu0 0.0
    %800 = vmatmul.mubr.f32.gmra.mxu0 %v691
    %v801 = vpop.f32.mrf.mxu0
    %v802 = vadd.f32 0.0, %v801
    %v803 = vpop.f32.mrf.mxu0
    %v804 = vadd.f32 0.0, %v803
    %805 = vmatprep.mubr.f32.mxu0 0.0
    %806 = vmatmul.mubr.f32.gmra.mxu0 %v694
    %v807 = vpop.f32.mrf.mxu0
    %v808 = vadd.f32 0.0, %v807
    %v809 = vpop.f32.mrf.mxu0
    %v810 = vadd.f32 0.0, %v809
    %811 = vmatprep.mubr.f32.mxu0 0.0
    %812 = vmatmul.mubr.f32.gmra.mxu0 %v697
    %v813 = vpop.f32.mrf.mxu0
    %v814 = vadd.f32 0.0, %v813
    %v815 = vpop.f32.mrf.mxu0
    %v816 = vadd.f32 0.0, %v815
    %817 = vdwg.mxu0
    %v818 = vadd.f32 %v642, %v772
    %v819 = vadd.f32 %v643, %v774
    %v820 = vadd.f32 %v644, %v778
    %v821 = vadd.f32 %v645, %v780
    %v822 = vadd.f32 %v646, %v784
    %v823 = vadd.f32 %v647, %v786
    %v824 = vadd.f32 %v648, %v790
    %v825 = vadd.f32 %v649, %v792
    %v826 = vadd.f32 %v650, %v796
    %v827 = vadd.f32 %v651, %v798
    %v828 = vadd.f32 %v652, %v802
    %v829 = vadd.f32 %v653, %v804
    %v830 = vadd.f32 %v654, %v808
    %v831 = vadd.f32 %v655, %v810
    %v832 = vadd.f32 %v656, %v814
    %v833 = vadd.f32 %v657, %v816
    %s834 = scalar_lea.vmem %s1, 256
    %v835 = vld [vmem:[%s834] sm:$0xff]
    %v836 = vld [vmem:[%s834 + $0x8] sm:$0xff]
    %v837 = vld [vmem:[%s834 + $0x10] sm:$0xff]
    %v838 = vld [vmem:[%s834 + $0x18] sm:$0xff]
    %v839 = vld [vmem:[%s834 + $0x20] sm:$0xff]
    %v840 = vld [vmem:[%s834 + $0x28] sm:$0xff]
    %v841 = vld [vmem:[%s834 + $0x30] sm:$0xf]
    %v842 = vld [vmem:[%s834 + $0x38] sm:$0xf]
    %843 = vrot.lane.b32.xlu0 %v658, 127
    %v844 = vpop.permute.xlu0 %843
    %845 = vrot.lane.b32.xlu0 %v659, 127
    %v846 = vpop.permute.xlu0 %845
    %847 = vrot.lane.b32.xlu0 %v660, 127
    %v848 = vpop.permute.xlu0 %847
    %849 = vrot.lane.b32.xlu0 %v661, 127
    %v850 = vpop.permute.xlu0 %849
    %851 = vrot.lane.b32.xlu0 %v662, 127
    %v852 = vpop.permute.xlu0 %851
    %853 = vrot.lane.b32.xlu0 %v663, 127
    %v854 = vpop.permute.xlu0 %853
    %855 = vrot.lane.b32.xlu0 %v664, 127
    %v856 = vpop.permute.xlu0 %855
    %857 = vrot.lane.b32.xlu0 %v665, 127
    %v858 = vpop.permute.xlu0 %857
    %v859 = vsel %vm210, %v844, 0
    %v861 = vsel %vm210, %v846, 0
    %v863 = vsel %vm210, %v848, 0
    %v865 = vsel %vm210, %v850, 0
    %v867 = vsel %vm210, %v852, 0
    %v869 = vsel %vm210, %v854, 0
    %v871 = vsel %vm210, %v856, 0
    %v873 = vsel %vm210, %v858, 0
    %v876 = vsel %vm227, %v841, 0
    %v879 = vsel %vm227, %v842, 0
    %881 = vmatprep.subr.mxu0 0.0
    %882 = vmatpush1.msra.mxu0 0.0
    %883 = vmatprep.subr.mxu0 0.0
    %884 = vmatpush1.msra.mxu0 0.0
    %885 = vmatprep.subr.mxu0 0.0
    %886 = vmatpush1.msra.mxu0 0.0
    %887 = vmatprep.subr.mxu0 0.0
    %888 = vmatpush1.msra.mxu0 0.0
    %889 = vmatprep.subr.mxu0 0.0
    %890 = vmatpush1.msra.mxu0 0.0
    %891 = vmatprep.subr.mxu0 0.0
    %892 = vmatpush1.msra.mxu0 0.0
    %893 = vmatprep.subr.mxu0 0.0
    %894 = vmatpush1.msra.mxu0 0.0
    %895 = vmatprep.subr.mxu0 0.0
    %896 = vmatpush1.msra.mxu0 0.0
    %897 = vmatprep.subr.mxu0 0.0
    %898 = vmatpush1.msra.mxu0 0.0
    %899 = vmatprep.subr.mxu0 0.0
    %900 = vmatpush1.msra.mxu0 0.0
    %901 = vmatprep.subr.mxu0 0.0
    %902 = vmatpush1.msra.mxu0 0.0
    %903 = vmatprep.subr.mxu0 0.0
    %904 = vmatpush1.msra.mxu0 0.0
    %905 = vmatprep.subr.mxu0 %v879
    %906 = vmatpush1.msra.mxu0 %v876
    %907 = vmatprep.subr.mxu0 %v840
    %908 = vmatpush1.msra.mxu0 %v839
    %909 = vmatprep.subr.mxu0 %v838
    %910 = vmatpush1.msra.mxu0 %v837
    %911 = vmatprep.subr.mxu0 %v836
    %912 = vmatpush1.msra.mxu0 %v835
    %913 = vmatprep.subr.mxu0 0.0
    %914 = vmatpush2.msra.mxu0 0.0
    %915 = vmatprep.subr.mxu0 0.0
    %916 = vmatpush2.msra.mxu0 0.0
    %917 = vmatprep.subr.mxu0 0.0
    %918 = vmatpush2.msra.mxu0 0.0
    %919 = vmatprep.subr.mxu0 0.0
    %920 = vmatpush2.msra.mxu0 0.0
    %921 = vmatprep.subr.mxu0 0.0
    %922 = vmatpush2.msra.mxu0 0.0
    %923 = vmatprep.subr.mxu0 0.0
    %924 = vmatpush2.msra.mxu0 0.0
    %925 = vmatprep.subr.mxu0 0.0
    %926 = vmatpush2.msra.mxu0 0.0
    %927 = vmatprep.subr.mxu0 0.0
    %928 = vmatpush2.msra.mxu0 0.0
    %929 = vmatprep.subr.mxu0 0.0
    %930 = vmatpush2.msra.mxu0 0.0
    %931 = vmatprep.subr.mxu0 0.0
    %932 = vmatpush2.msra.mxu0 0.0
    %933 = vmatprep.subr.mxu0 0.0
    %934 = vmatpush2.msra.mxu0 0.0
    %935 = vmatprep.subr.mxu0 0.0
    %936 = vmatpush2.msra.mxu0 0.0
    %937 = vmatprep.subr.mxu0 0.0
    %938 = vmatpush2.msra.mxu0 0.0
    %939 = vmatprep.subr.mxu0 0.0
    %940 = vmatpush2.msra.mxu0 0.0
    %941 = vmatprep.subr.mxu0 0.0
    %942 = vmatpush2.msra.mxu0 0.0
    %943 = vmatprep.subr.mxu0 0.0
    %944 = vmatpush2.msra.mxu0 0.0
    %945 = vmatprep.mubr.f32.mxu0 0.0
    %946 = vmatmul.mubr.f32.gmra.mxu0 %v859
    %v947 = vpop.f32.mrf.mxu0
    %v948 = vadd.f32 0.0, %v947
    %v949 = vpop.f32.mrf.mxu0
    %v950 = vadd.f32 0.0, %v949
    %951 = vmatprep.mubr.f32.mxu0 0.0
    %952 = vmatmul.mubr.f32.gmra.mxu0 %v861
    %v953 = vpop.f32.mrf.mxu0
    %v954 = vadd.f32 0.0, %v953
    %v955 = vpop.f32.mrf.mxu0
    %v956 = vadd.f32 0.0, %v955
    %957 = vmatprep.mubr.f32.mxu0 0.0
    %958 = vmatmul.mubr.f32.gmra.mxu0 %v863
    %v959 = vpop.f32.mrf.mxu0
    %v960 = vadd.f32 0.0, %v959
    %v961 = vpop.f32.mrf.mxu0
    %v962 = vadd.f32 0.0, %v961
    %963 = vmatprep.mubr.f32.mxu0 0.0
    %964 = vmatmul.mubr.f32.gmra.mxu0 %v865
    %v965 = vpop.f32.mrf.mxu0
    %v966 = vadd.f32 0.0, %v965
    %v967 = vpop.f32.mrf.mxu0
    %v968 = vadd.f32 0.0, %v967
    %969 = vmatprep.mubr.f32.mxu0 0.0
    %970 = vmatmul.mubr.f32.gmra.mxu0 %v867
    %v971 = vpop.f32.mrf.mxu0
    %v972 = vadd.f32 0.0, %v971
    %v973 = vpop.f32.mrf.mxu0
    %v974 = vadd.f32 0.0, %v973
    %975 = vmatprep.mubr.f32.mxu0 0.0
    %976 = vmatmul.mubr.f32.gmra.mxu0 %v869
    %v977 = vpop.f32.mrf.mxu0
    %v978 = vadd.f32 0.0, %v977
    %v979 = vpop.f32.mrf.mxu0
    %v980 = vadd.f32 0.0, %v979
    %981 = vmatprep.mubr.f32.mxu0 0.0
    %982 = vmatmul.mubr.f32.gmra.mxu0 %v871
    %v983 = vpop.f32.mrf.mxu0
    %v984 = vadd.f32 0.0, %v983
    %v985 = vpop.f32.mrf.mxu0
    %v986 = vadd.f32 0.0, %v985
    %987 = vmatprep.mubr.f32.mxu0 0.0
    %988 = vmatmul.mubr.f32.gmra.mxu0 %v873
    %v989 = vpop.f32.mrf.mxu0
    %v990 = vadd.f32 0.0, %v989
    %v991 = vpop.f32.mrf.mxu0
    %v992 = vadd.f32 0.0, %v991
    %993 = vdwg.mxu0
    %v994 = vadd.f32 %v818, %v948
    %v995 = vadd.f32 %v819, %v950
    %v996 = vadd.f32 %v820, %v954
    %v997 = vadd.f32 %v821, %v956
    %v998 = vadd.f32 %v822, %v960
    %v999 = vadd.f32 %v823, %v962
    %v1000 = vadd.f32 %v824, %v966
    %v1001 = vadd.f32 %v825, %v968
    %v1002 = vadd.f32 %v826, %v972
    %v1003 = vadd.f32 %v827, %v974
    %v1004 = vadd.f32 %v828, %v978
    %v1005 = vadd.f32 %v829, %v980
    %v1006 = vadd.f32 %v830, %v984
    %v1007 = vadd.f32 %v831, %v986
    %v1008 = vadd.f32 %v832, %v990
    %v1009 = vadd.f32 %v833, %v992
    %s1010 = scalar_lea.vmem %s1, 320
    %v1011 = vld [vmem:[%s1010] sm:$0xff]
    %v1012 = vld [vmem:[%s1010 + $0x8] sm:$0xff]
    %v1013 = vld [vmem:[%s1010 + $0x10] sm:$0xff]
    %v1014 = vld [vmem:[%s1010 + $0x18] sm:$0xff]
    %v1015 = vld [vmem:[%s1010 + $0x20] sm:$0xff]
    %v1016 = vld [vmem:[%s1010 + $0x28] sm:$0xff]
    %v1017 = vld [vmem:[%s1010 + $0x30] sm:$0xf]
    %v1018 = vld [vmem:[%s1010 + $0x38] sm:$0xf]
    %1019 = vrot.lane.b32.xlu0 %v658, 126
    %v1020 = vpop.permute.xlu0 %1019
    %1021 = vrot.lane.b32.xlu0 %v659, 126
    %v1022 = vpop.permute.xlu0 %1021
    %1023 = vrot.lane.b32.xlu0 %v660, 126
    %v1024 = vpop.permute.xlu0 %1023
    %1025 = vrot.lane.b32.xlu0 %v661, 126
    %v1026 = vpop.permute.xlu0 %1025
    %1027 = vrot.lane.b32.xlu0 %v662, 126
    %v1028 = vpop.permute.xlu0 %1027
    %1029 = vrot.lane.b32.xlu0 %v663, 126
    %v1030 = vpop.permute.xlu0 %1029
    %1031 = vrot.lane.b32.xlu0 %v664, 126
    %v1032 = vpop.permute.xlu0 %1031
    %1033 = vrot.lane.b32.xlu0 %v665, 126
    %v1034 = vpop.permute.xlu0 %1033
    %v1035 = vsel %vm210, %v1020, 0
    %v1037 = vsel %vm210, %v1022, 0
    %v1039 = vsel %vm210, %v1024, 0
    %v1041 = vsel %vm210, %v1026, 0
    %v1043 = vsel %vm210, %v1028, 0
    %v1045 = vsel %vm210, %v1030, 0
    %v1047 = vsel %vm210, %v1032, 0
    %v1049 = vsel %vm210, %v1034, 0
    %v1052 = vsel %vm227, %v1017, 0
    %v1055 = vsel %vm227, %v1018, 0
    %1057 = vmatprep.subr.mxu0 0.0
    %1058 = vmatpush1.msra.mxu0 0.0
    %1059 = vmatprep.subr.mxu0 0.0
    %1060 = vmatpush1.msra.mxu0 0.0
    %1061 = vmatprep.subr.mxu0 0.0
    %1062 = vmatpush1.msra.mxu0 0.0
    %1063 = vmatprep.subr.mxu0 0.0
    %1064 = vmatpush1.msra.mxu0 0.0
    %1065 = vmatprep.subr.mxu0 0.0
    %1066 = vmatpush1.msra.mxu0 0.0
    %1067 = vmatprep.subr.mxu0 0.0
    %1068 = vmatpush1.msra.mxu0 0.0
    %1069 = vmatprep.subr.mxu0 0.0
    %1070 = vmatpush1.msra.mxu0 0.0
    %1071 = vmatprep.subr.mxu0 0.0
    %1072 = vmatpush1.msra.mxu0 0.0
    %1073 = vmatprep.subr.mxu0 0.0
    %1074 = vmatpush1.msra.mxu0 0.0
    %1075 = vmatprep.subr.mxu0 0.0
    %1076 = vmatpush1.msra.mxu0 0.0
    %1077 = vmatprep.subr.mxu0 0.0
    %1078 = vmatpush1.msra.mxu0 0.0
    %1079 = vmatprep.subr.mxu0 0.0
    %1080 = vmatpush1.msra.mxu0 0.0
    %1081 = vmatprep.subr.mxu0 %v1055
    %1082 = vmatpush1.msra.mxu0 %v1052
    %1083 = vmatprep.subr.mxu0 %v1016
    %1084 = vmatpush1.msra.mxu0 %v1015
    %1085 = vmatprep.subr.mxu0 %v1014
    %1086 = vmatpush1.msra.mxu0 %v1013
    %1087 = vmatprep.subr.mxu0 %v1012
    %1088 = vmatpush1.msra.mxu0 %v1011
    %1089 = vmatprep.subr.mxu0 0.0
    %1090 = vmatpush2.msra.mxu0 0.0
    %1091 = vmatprep.subr.mxu0 0.0
    %1092 = vmatpush2.msra.mxu0 0.0
    %1093 = vmatprep.subr.mxu0 0.0
    %1094 = vmatpush2.msra.mxu0 0.0
    %1095 = vmatprep.subr.mxu0 0.0
    %1096 = vmatpush2.msra.mxu0 0.0
    %1097 = vmatprep.subr.mxu0 0.0
    %1098 = vmatpush2.msra.mxu0 0.0
    %1099 = vmatprep.subr.mxu0 0.0
    %1100 = vmatpush2.msra.mxu0 0.0
    %1101 = vmatprep.subr.mxu0 0.0
    %1102 = vmatpush2.msra.mxu0 0.0
    %1103 = vmatprep.subr.mxu0 0.0
    %1104 = vmatpush2.msra.mxu0 0.0
    %1105 = vmatprep.subr.mxu0 0.0
    %1106 = vmatpush2.msra.mxu0 0.0
    %1107 = vmatprep.subr.mxu0 0.0
    %1108 = vmatpush2.msra.mxu0 0.0
    %1109 = vmatprep.subr.mxu0 0.0
    %1110 = vmatpush2.msra.mxu0 0.0
    %1111 = vmatprep.subr.mxu0 0.0
    %1112 = vmatpush2.msra.mxu0 0.0
    %1113 = vmatprep.subr.mxu0 0.0
    %1114 = vmatpush2.msra.mxu0 0.0
    %1115 = vmatprep.subr.mxu0 0.0
    %1116 = vmatpush2.msra.mxu0 0.0
    %1117 = vmatprep.subr.mxu0 0.0
    %1118 = vmatpush2.msra.mxu0 0.0
    %1119 = vmatprep.subr.mxu0 0.0
    %1120 = vmatpush2.msra.mxu0 0.0
    %1121 = vmatprep.mubr.f32.mxu0 0.0
    %1122 = vmatmul.mubr.f32.gmra.mxu0 %v1035
    %v1123 = vpop.f32.mrf.mxu0
    %v1124 = vadd.f32 0.0, %v1123
    %v1125 = vpop.f32.mrf.mxu0
    %v1126 = vadd.f32 0.0, %v1125
    %1127 = vmatprep.mubr.f32.mxu0 0.0
    %1128 = vmatmul.mubr.f32.gmra.mxu0 %v1037
    %v1129 = vpop.f32.mrf.mxu0
    %v1130 = vadd.f32 0.0, %v1129
    %v1131 = vpop.f32.mrf.mxu0
    %v1132 = vadd.f32 0.0, %v1131
    %1133 = vmatprep.mubr.f32.mxu0 0.0
    %1134 = vmatmul.mubr.f32.gmra.mxu0 %v1039
    %v1135 = vpop.f32.mrf.mxu0
    %v1136 = vadd.f32 0.0, %v1135
    %v1137 = vpop.f32.mrf.mxu0
    %v1138 = vadd.f32 0.0, %v1137
    %1139 = vmatprep.mubr.f32.mxu0 0.0
    %1140 = vmatmul.mubr.f32.gmra.mxu0 %v1041
    %v1141 = vpop.f32.mrf.mxu0
    %v1142 = vadd.f32 0.0, %v1141
    %v1143 = vpop.f32.mrf.mxu0
    %v1144 = vadd.f32 0.0, %v1143
    %1145 = vmatprep.mubr.f32.mxu0 0.0
    %1146 = vmatmul.mubr.f32.gmra.mxu0 %v1043
    %v1147 = vpop.f32.mrf.mxu0
    %v1148 = vadd.f32 0.0, %v1147
    %v1149 = vpop.f32.mrf.mxu0
    %v1150 = vadd.f32 0.0, %v1149
    %1151 = vmatprep.mubr.f32.mxu0 0.0
    %1152 = vmatmul.mubr.f32.gmra.mxu0 %v1045
    %v1153 = vpop.f32.mrf.mxu0
    %v1154 = vadd.f32 0.0, %v1153
    %v1155 = vpop.f32.mrf.mxu0
    %v1156 = vadd.f32 0.0, %v1155
    %1157 = vmatprep.mubr.f32.mxu0 0.0
    %1158 = vmatmul.mubr.f32.gmra.mxu0 %v1047
    %v1159 = vpop.f32.mrf.mxu0
    %v1160 = vadd.f32 0.0, %v1159
    %v1161 = vpop.f32.mrf.mxu0
    %v1162 = vadd.f32 0.0, %v1161
    %1163 = vmatprep.mubr.f32.mxu0 0.0
    %1164 = vmatmul.mubr.f32.gmra.mxu0 %v1049
    %v1165 = vpop.f32.mrf.mxu0
    %v1166 = vadd.f32 0.0, %v1165
    %v1167 = vpop.f32.mrf.mxu0
    %v1168 = vadd.f32 0.0, %v1167
    %1169 = vdwg.mxu0
    %v1170 = vadd.f32 %v994, %v1124
    %v1171 = vadd.f32 %v995, %v1126
    %v1172 = vadd.f32 %v996, %v1130
    %v1173 = vadd.f32 %v997, %v1132
    %v1174 = vadd.f32 %v998, %v1136
    %v1175 = vadd.f32 %v999, %v1138
    %v1176 = vadd.f32 %v1000, %v1142
    %v1177 = vadd.f32 %v1001, %v1144
    %v1178 = vadd.f32 %v1002, %v1148
    %v1179 = vadd.f32 %v1003, %v1150
    %v1180 = vadd.f32 %v1004, %v1154
    %v1181 = vadd.f32 %v1005, %v1156
    %v1182 = vadd.f32 %v1006, %v1160
    %v1183 = vadd.f32 %v1007, %v1162
    %v1184 = vadd.f32 %v1008, %v1166
    %v1185 = vadd.f32 %v1009, %v1168
    %v1186 = vld [vmem:[#allocation2 + $0x2] sm:$0xff]
    %v1187 = vld [vmem:[#allocation2 + $0xa] sm:$0xff]
    %v1188 = vld [vmem:[#allocation2 + $0x12] sm:$0xff]
    %v1189 = vld [vmem:[#allocation2 + $0x1a] sm:$0xff]
    %v1190 = vld [vmem:[#allocation2 + $0x22] sm:$0xff]
    %v1191 = vld [vmem:[#allocation2 + $0x2a] sm:$0xff]
    %v1192 = vld [vmem:[#allocation2 + $0x32] sm:$0xff]
    %v1193 = vld [vmem:[#allocation2 + $0x3a] sm:$0x3]
    %s1194 = scalar_lea.vmem %s1, 384
    %v1195 = vld [vmem:[%s1194] sm:$0xff]
    %v1196 = vld [vmem:[%s1194 + $0x8] sm:$0xff]
    %v1197 = vld [vmem:[%s1194 + $0x10] sm:$0xff]
    %v1198 = vld [vmem:[%s1194 + $0x18] sm:$0xff]
    %v1199 = vld [vmem:[%s1194 + $0x20] sm:$0xff]
    %v1200 = vld [vmem:[%s1194 + $0x28] sm:$0xff]
    %v1201 = vld [vmem:[%s1194 + $0x30] sm:$0xf]
    %v1202 = vld [vmem:[%s1194 + $0x38] sm:$0xf]
    %v1204 = vsel %vm210, %v1186, 0
    %v1207 = vsel %vm210, %v1187, 0
    %v1210 = vsel %vm210, %v1188, 0
    %v1213 = vsel %vm210, %v1189, 0
    %v1216 = vsel %vm210, %v1190, 0
    %v1219 = vsel %vm210, %v1191, 0
    %v1222 = vsel %vm210, %v1192, 0
    %v1225 = vsel %vm210, %v1193, 0
    %v1228 = vsel %vm227, %v1201, 0
    %v1231 = vsel %vm227, %v1202, 0
    %1233 = vmatprep.subr.mxu0 0.0
    %1234 = vmatpush1.msra.mxu0 0.0
    %1235 = vmatprep.subr.mxu0 0.0
    %1236 = vmatpush1.msra.mxu0 0.0
    %1237 = vmatprep.subr.mxu0 0.0
    %1238 = vmatpush1.msra.mxu0 0.0
    %1239 = vmatprep.subr.mxu0 0.0
    %1240 = vmatpush1.msra.mxu0 0.0
    %1241 = vmatprep.subr.mxu0 0.0
    %1242 = vmatpush1.msra.mxu0 0.0
    %1243 = vmatprep.subr.mxu0 0.0
    %1244 = vmatpush1.msra.mxu0 0.0
    %1245 = vmatprep.subr.mxu0 0.0
    %1246 = vmatpush1.msra.mxu0 0.0
    %1247 = vmatprep.subr.mxu0 0.0
    %1248 = vmatpush1.msra.mxu0 0.0
    %1249 = vmatprep.subr.mxu0 0.0
    %1250 = vmatpush1.msra.mxu0 0.0
    %1251 = vmatprep.subr.mxu0 0.0
    %1252 = vmatpush1.msra.mxu0 0.0
    %1253 = vmatprep.subr.mxu0 0.0
    %1254 = vmatpush1.msra.mxu0 0.0
    %1255 = vmatprep.subr.mxu0 0.0
    %1256 = vmatpush1.msra.mxu0 0.0
    %1257 = vmatprep.subr.mxu0 %v1231
    %1258 = vmatpush1.msra.mxu0 %v1228
    %1259 = vmatprep.subr.mxu0 %v1200
    %1260 = vmatpush1.msra.mxu0 %v1199
    %1261 = vmatprep.subr.mxu0 %v1198
    %1262 = vmatpush1.msra.mxu0 %v1197
    %1263 = vmatprep.subr.mxu0 %v1196
    %1264 = vmatpush1.msra.mxu0 %v1195
    %1265 = vmatprep.subr.mxu0 0.0
    %1266 = vmatpush2.msra.mxu0 0.0
    %1267 = vmatprep.subr.mxu0 0.0
    %1268 = vmatpush2.msra.mxu0 0.0
    %1269 = vmatprep.subr.mxu0 0.0
    %1270 = vmatpush2.msra.mxu0 0.0
    %1271 = vmatprep.subr.mxu0 0.0
    %1272 = vmatpush2.msra.mxu0 0.0
    %1273 = vmatprep.subr.mxu0 0.0
    %1274 = vmatpush2.msra.mxu0 0.0
    %1275 = vmatprep.subr.mxu0 0.0
    %1276 = vmatpush2.msra.mxu0 0.0
    %1277 = vmatprep.subr.mxu0 0.0
    %1278 = vmatpush2.msra.mxu0 0.0
    %1279 = vmatprep.subr.mxu0 0.0
    %1280 = vmatpush2.msra.mxu0 0.0
    %1281 = vmatprep.subr.mxu0 0.0
    %1282 = vmatpush2.msra.mxu0 0.0
    %1283 = vmatprep.subr.mxu0 0.0
    %1284 = vmatpush2.msra.mxu0 0.0
    %1285 = vmatprep.subr.mxu0 0.0
    %1286 = vmatpush2.msra.mxu0 0.0
    %1287 = vmatprep.subr.mxu0 0.0
    %1288 = vmatpush2.msra.mxu0 0.0
    %1289 = vmatprep.subr.mxu0 0.0
    %1290 = vmatpush2.msra.mxu0 0.0
    %1291 = vmatprep.subr.mxu0 0.0
    %1292 = vmatpush2.msra.mxu0 0.0
    %1293 = vmatprep.subr.mxu0 0.0
    %1294 = vmatpush2.msra.mxu0 0.0
    %1295 = vmatprep.subr.mxu0 0.0
    %1296 = vmatpush2.msra.mxu0 0.0
    %1297 = vmatprep.mubr.f32.mxu0 0.0
    %1298 = vmatmul.mubr.f32.gmra.mxu0 %v1204
    %v1299 = vpop.f32.mrf.mxu0
    %v1300 = vadd.f32 0.0, %v1299
    %v1301 = vpop.f32.mrf.mxu0
    %v1302 = vadd.f32 0.0, %v1301
    %1303 = vmatprep.mubr.f32.mxu0 0.0
    %1304 = vmatmul.mubr.f32.gmra.mxu0 %v1207
    %v1305 = vpop.f32.mrf.mxu0
    %v1306 = vadd.f32 0.0, %v1305
    %v1307 = vpop.f32.mrf.mxu0
    %v1308 = vadd.f32 0.0, %v1307
    %1309 = vmatprep.mubr.f32.mxu0 0.0
    %1310 = vmatmul.mubr.f32.gmra.mxu0 %v1210
    %v1311 = vpop.f32.mrf.mxu0
    %v1312 = vadd.f32 0.0, %v1311
    %v1313 = vpop.f32.mrf.mxu0
    %v1314 = vadd.f32 0.0, %v1313
    %1315 = vmatprep.mubr.f32.mxu0 0.0
    %1316 = vmatmul.mubr.f32.gmra.mxu0 %v1213
    %v1317 = vpop.f32.mrf.mxu0
    %v1318 = vadd.f32 0.0, %v1317
    %v1319 = vpop.f32.mrf.mxu0
    %v1320 = vadd.f32 0.0, %v1319
    %1321 = vmatprep.mubr.f32.mxu0 0.0
    %1322 = vmatmul.mubr.f32.gmra.mxu0 %v1216
    %v1323 = vpop.f32.mrf.mxu0
    %v1324 = vadd.f32 0.0, %v1323
    %v1325 = vpop.f32.mrf.mxu0
    %v1326 = vadd.f32 0.0, %v1325
    %1327 = vmatprep.mubr.f32.mxu0 0.0
    %1328 = vmatmul.mubr.f32.gmra.mxu0 %v1219
    %v1329 = vpop.f32.mrf.mxu0
    %v1330 = vadd.f32 0.0, %v1329
    %v1331 = vpop.f32.mrf.mxu0
    %v1332 = vadd.f32 0.0, %v1331
    %1333 = vmatprep.mubr.f32.mxu0 0.0
    %1334 = vmatmul.mubr.f32.gmra.mxu0 %v1222
    %v1335 = vpop.f32.mrf.mxu0
    %v1336 = vadd.f32 0.0, %v1335
    %v1337 = vpop.f32.mrf.mxu0
    %v1338 = vadd.f32 0.0, %v1337
    %1339 = vmatprep.mubr.f32.mxu0 0.0
    %1340 = vmatmul.mubr.f32.gmra.mxu0 %v1225
    %v1341 = vpop.f32.mrf.mxu0
    %v1342 = vadd.f32 0.0, %v1341
    %v1343 = vpop.f32.mrf.mxu0
    %v1344 = vadd.f32 0.0, %v1343
    %1345 = vdwg.mxu0
    %v1346 = vadd.f32 %v1170, %v1300
    %v1347 = vadd.f32 %v1171, %v1302
    %v1348 = vadd.f32 %v1172, %v1306
    %v1349 = vadd.f32 %v1173, %v1308
    %v1350 = vadd.f32 %v1174, %v1312
    %v1351 = vadd.f32 %v1175, %v1314
    %v1352 = vadd.f32 %v1176, %v1318
    %v1353 = vadd.f32 %v1177, %v1320
    %v1354 = vadd.f32 %v1178, %v1324
    %v1355 = vadd.f32 %v1179, %v1326
    %v1356 = vadd.f32 %v1180, %v1330
    %v1357 = vadd.f32 %v1181, %v1332
    %v1358 = vadd.f32 %v1182, %v1336
    %v1359 = vadd.f32 %v1183, %v1338
    %v1360 = vadd.f32 %v1184, %v1342
    %v1361 = vadd.f32 %v1185, %v1344
    %s1362 = scalar_lea.vmem %s1, 448
    %v1363 = vld [vmem:[%s1362] sm:$0xff]
    %v1364 = vld [vmem:[%s1362 + $0x8] sm:$0xff]
    %v1365 = vld [vmem:[%s1362 + $0x10] sm:$0xff]
    %v1366 = vld [vmem:[%s1362 + $0x18] sm:$0xff]
    %v1367 = vld [vmem:[%s1362 + $0x20] sm:$0xff]
    %v1368 = vld [vmem:[%s1362 + $0x28] sm:$0xff]
    %v1369 = vld [vmem:[%s1362 + $0x30] sm:$0xf]
    %v1370 = vld [vmem:[%s1362 + $0x38] sm:$0xf]
    %1371 = vrot.lane.b32.xlu0 %v1186, 127
    %v1372 = vpop.permute.xlu0 %1371
    %1373 = vrot.lane.b32.xlu0 %v1187, 127
    %v1374 = vpop.permute.xlu0 %1373
    %1375 = vrot.lane.b32.xlu0 %v1188, 127
    %v1376 = vpop.permute.xlu0 %1375
    %1377 = vrot.lane.b32.xlu0 %v1189, 127
    %v1378 = vpop.permute.xlu0 %1377
    %1379 = vrot.lane.b32.xlu0 %v1190, 127
    %v1380 = vpop.permute.xlu0 %1379
    %1381 = vrot.lane.b32.xlu0 %v1191, 127
    %v1382 = vpop.permute.xlu0 %1381
    %1383 = vrot.lane.b32.xlu0 %v1192, 127
    %v1384 = vpop.permute.xlu0 %1383
    %1385 = vrot.lane.b32.xlu0 %v1193, 127
    %v1386 = vpop.permute.xlu0 %1385
    %v1387 = vsel %vm210, %v1372, 0
    %v1389 = vsel %vm210, %v1374, 0
    %v1391 = vsel %vm210, %v1376, 0
    %v1393 = vsel %vm210, %v1378, 0
    %v1395 = vsel %vm210, %v1380, 0
    %v1397 = vsel %vm210, %v1382, 0
    %v1399 = vsel %vm210, %v1384, 0
    %v1401 = vsel %vm210, %v1386, 0
    %v1404 = vsel %vm227, %v1369, 0
    %v1407 = vsel %vm227, %v1370, 0
    %1409 = vmatprep.subr.mxu0 0.0
    %1410 = vmatpush1.msra.mxu0 0.0
    %1411 = vmatprep.subr.mxu0 0.0
    %1412 = vmatpush1.msra.mxu0 0.0
    %1413 = vmatprep.subr.mxu0 0.0
    %1414 = vmatpush1.msra.mxu0 0.0
    %1415 = vmatprep.subr.mxu0 0.0
    %1416 = vmatpush1.msra.mxu0 0.0
    %1417 = vmatprep.subr.mxu0 0.0
    %1418 = vmatpush1.msra.mxu0 0.0
    %1419 = vmatprep.subr.mxu0 0.0
    %1420 = vmatpush1.msra.mxu0 0.0
    %1421 = vmatprep.subr.mxu0 0.0
    %1422 = vmatpush1.msra.mxu0 0.0
    %1423 = vmatprep.subr.mxu0 0.0
    %1424 = vmatpush1.msra.mxu0 0.0
    %1425 = vmatprep.subr.mxu0 0.0
    %1426 = vmatpush1.msra.mxu0 0.0
    %1427 = vmatprep.subr.mxu0 0.0
    %1428 = vmatpush1.msra.mxu0 0.0
    %1429 = vmatprep.subr.mxu0 0.0
    %1430 = vmatpush1.msra.mxu0 0.0
    %1431 = vmatprep.subr.mxu0 0.0
    %1432 = vmatpush1.msra.mxu0 0.0
    %1433 = vmatprep.subr.mxu0 %v1407
    %1434 = vmatpush1.msra.mxu0 %v1404
    %1435 = vmatprep.subr.mxu0 %v1368
    %1436 = vmatpush1.msra.mxu0 %v1367
    %1437 = vmatprep.subr.mxu0 %v1366
    %1438 = vmatpush1.msra.mxu0 %v1365
    %1439 = vmatprep.subr.mxu0 %v1364
    %1440 = vmatpush1.msra.mxu0 %v1363
    %1441 = vmatprep.subr.mxu0 0.0
    %1442 = vmatpush2.msra.mxu0 0.0
    %1443 = vmatprep.subr.mxu0 0.0
    %1444 = vmatpush2.msra.mxu0 0.0
    %1445 = vmatprep.subr.mxu0 0.0
    %1446 = vmatpush2.msra.mxu0 0.0
    %1447 = vmatprep.subr.mxu0 0.0
    %1448 = vmatpush2.msra.mxu0 0.0
    %1449 = vmatprep.subr.mxu0 0.0
    %1450 = vmatpush2.msra.mxu0 0.0
    %1451 = vmatprep.subr.mxu0 0.0
    %1452 = vmatpush2.msra.mxu0 0.0
    %1453 = vmatprep.subr.mxu0 0.0
    %1454 = vmatpush2.msra.mxu0 0.0
    %1455 = vmatprep.subr.mxu0 0.0
    %1456 = vmatpush2.msra.mxu0 0.0
    %1457 = vmatprep.subr.mxu0 0.0
    %1458 = vmatpush2.msra.mxu0 0.0
    %1459 = vmatprep.subr.mxu0 0.0
    %1460 = vmatpush2.msra.mxu0 0.0
    %1461 = vmatprep.subr.mxu0 0.0
    %1462 = vmatpush2.msra.mxu0 0.0
    %1463 = vmatprep.subr.mxu0 0.0
    %1464 = vmatpush2.msra.mxu0 0.0
    %1465 = vmatprep.subr.mxu0 0.0
    %1466 = vmatpush2.msra.mxu0 0.0
    %1467 = vmatprep.subr.mxu0 0.0
    %1468 = vmatpush2.msra.mxu0 0.0
    %1469 = vmatprep.subr.mxu0 0.0
    %1470 = vmatpush2.msra.mxu0 0.0
    %1471 = vmatprep.subr.mxu0 0.0
    %1472 = vmatpush2.msra.mxu0 0.0
    %1473 = vmatprep.mubr.f32.mxu0 0.0
    %1474 = vmatmul.mubr.f32.gmra.mxu0 %v1387
    %v1475 = vpop.f32.mrf.mxu0
    %v1476 = vadd.f32 0.0, %v1475
    %v1477 = vpop.f32.mrf.mxu0
    %v1478 = vadd.f32 0.0, %v1477
    %1479 = vmatprep.mubr.f32.mxu0 0.0
    %1480 = vmatmul.mubr.f32.gmra.mxu0 %v1389
    %v1481 = vpop.f32.mrf.mxu0
    %v1482 = vadd.f32 0.0, %v1481
    %v1483 = vpop.f32.mrf.mxu0
    %v1484 = vadd.f32 0.0, %v1483
    %1485 = vmatprep.mubr.f32.mxu0 0.0
    %1486 = vmatmul.mubr.f32.gmra.mxu0 %v1391
    %v1487 = vpop.f32.mrf.mxu0
    %v1488 = vadd.f32 0.0, %v1487
    %v1489 = vpop.f32.mrf.mxu0
    %v1490 = vadd.f32 0.0, %v1489
    %1491 = vmatprep.mubr.f32.mxu0 0.0
    %1492 = vmatmul.mubr.f32.gmra.mxu0 %v1393
    %v1493 = vpop.f32.mrf.mxu0
    %v1494 = vadd.f32 0.0, %v1493
    %v1495 = vpop.f32.mrf.mxu0
    %v1496 = vadd.f32 0.0, %v1495
    %1497 = vmatprep.mubr.f32.mxu0 0.0
    %1498 = vmatmul.mubr.f32.gmra.mxu0 %v1395
    %v1499 = vpop.f32.mrf.mxu0
    %v1500 = vadd.f32 0.0, %v1499
    %v1501 = vpop.f32.mrf.mxu0
    %v1502 = vadd.f32 0.0, %v1501
    %1503 = vmatprep.mubr.f32.mxu0 0.0
    %1504 = vmatmul.mubr.f32.gmra.mxu0 %v1397
    %v1505 = vpop.f32.mrf.mxu0
    %v1506 = vadd.f32 0.0, %v1505
    %v1507 = vpop.f32.mrf.mxu0
    %v1508 = vadd.f32 0.0, %v1507
    %1509 = vmatprep.mubr.f32.mxu0 0.0
    %1510 = vmatmul.mubr.f32.gmra.mxu0 %v1399
    %v1511 = vpop.f32.mrf.mxu0
    %v1512 = vadd.f32 0.0, %v1511
    %v1513 = vpop.f32.mrf.mxu0
    %v1514 = vadd.f32 0.0, %v1513
    %1515 = vmatprep.mubr.f32.mxu0 0.0
    %1516 = vmatmul.mubr.f32.gmra.mxu0 %v1401
    %v1517 = vpop.f32.mrf.mxu0
    %v1518 = vadd.f32 0.0, %v1517
    %v1519 = vpop.f32.mrf.mxu0
    %v1520 = vadd.f32 0.0, %v1519
    %1521 = vdwg.mxu0
    %v1522 = vadd.f32 %v1346, %v1476
    %v1523 = vadd.f32 %v1347, %v1478
    %v1524 = vadd.f32 %v1348, %v1482
    %v1525 = vadd.f32 %v1349, %v1484
    %v1526 = vadd.f32 %v1350, %v1488
    %v1527 = vadd.f32 %v1351, %v1490
    %v1528 = vadd.f32 %v1352, %v1494
    %v1529 = vadd.f32 %v1353, %v1496
    %v1530 = vadd.f32 %v1354, %v1500
    %v1531 = vadd.f32 %v1355, %v1502
    %v1532 = vadd.f32 %v1356, %v1506
    %v1533 = vadd.f32 %v1357, %v1508
    %v1534 = vadd.f32 %v1358, %v1512
    %v1535 = vadd.f32 %v1359, %v1514
    %v1536 = vadd.f32 %v1360, %v1518
    %v1537 = vadd.f32 %v1361, %v1520
    %s1538 = scalar_lea.vmem %s1, 512
    %v1539 = vld [vmem:[%s1538] sm:$0xff]
    %v1540 = vld [vmem:[%s1538 + $0x8] sm:$0xff]
    %v1541 = vld [vmem:[%s1538 + $0x10] sm:$0xff]
    %v1542 = vld [vmem:[%s1538 + $0x18] sm:$0xff]
    %v1543 = vld [vmem:[%s1538 + $0x20] sm:$0xff]
    %v1544 = vld [vmem:[%s1538 + $0x28] sm:$0xff]
    %v1545 = vld [vmem:[%s1538 + $0x30] sm:$0xf]
    %v1546 = vld [vmem:[%s1538 + $0x38] sm:$0xf]
    %1547 = vrot.lane.b32.xlu0 %v1186, 126
    %v1548 = vpop.permute.xlu0 %1547
    %1549 = vrot.lane.b32.xlu0 %v1187, 126
    %v1550 = vpop.permute.xlu0 %1549
    %1551 = vrot.lane.b32.xlu0 %v1188, 126
    %v1552 = vpop.permute.xlu0 %1551
    %1553 = vrot.lane.b32.xlu0 %v1189, 126
    %v1554 = vpop.permute.xlu0 %1553
    %1555 = vrot.lane.b32.xlu0 %v1190, 126
    %v1556 = vpop.permute.xlu0 %1555
    %1557 = vrot.lane.b32.xlu0 %v1191, 126
    %v1558 = vpop.permute.xlu0 %1557
    %1559 = vrot.lane.b32.xlu0 %v1192, 126
    %v1560 = vpop.permute.xlu0 %1559
    %1561 = vrot.lane.b32.xlu0 %v1193, 126
    %v1562 = vpop.permute.xlu0 %1561
    %v1563 = vsel %vm210, %v1548, 0
    %v1565 = vsel %vm210, %v1550, 0
    %v1567 = vsel %vm210, %v1552, 0
    %v1569 = vsel %vm210, %v1554, 0
    %v1571 = vsel %vm210, %v1556, 0
    %v1573 = vsel %vm210, %v1558, 0
    %v1575 = vsel %vm210, %v1560, 0
    %v1577 = vsel %vm210, %v1562, 0
    %v1580 = vsel %vm227, %v1545, 0
    %v1583 = vsel %vm227, %v1546, 0
    %1585 = vmatprep.subr.mxu0 0.0
    %1586 = vmatpush1.msra.mxu0 0.0
    %1587 = vmatprep.subr.mxu0 0.0
    %1588 = vmatpush1.msra.mxu0 0.0
    %1589 = vmatprep.subr.mxu0 0.0
    %1590 = vmatpush1.msra.mxu0 0.0
    %1591 = vmatprep.subr.mxu0 0.0
    %1592 = vmatpush1.msra.mxu0 0.0
    %1593 = vmatprep.subr.mxu0 0.0
    %1594 = vmatpush1.msra.mxu0 0.0
    %1595 = vmatprep.subr.mxu0 0.0
    %1596 = vmatpush1.msra.mxu0 0.0
    %1597 = vmatprep.subr.mxu0 0.0
    %1598 = vmatpush1.msra.mxu0 0.0
    %1599 = vmatprep.subr.mxu0 0.0
    %1600 = vmatpush1.msra.mxu0 0.0
    %1601 = vmatprep.subr.mxu0 0.0
    %1602 = vmatpush1.msra.mxu0 0.0
    %1603 = vmatprep.subr.mxu0 0.0
    %1604 = vmatpush1.msra.mxu0 0.0
    %1605 = vmatprep.subr.mxu0 0.0
    %1606 = vmatpush1.msra.mxu0 0.0
    %1607 = vmatprep.subr.mxu0 0.0
    %1608 = vmatpush1.msra.mxu0 0.0
    %1609 = vmatprep.subr.mxu0 %v1583
    %1610 = vmatpush1.msra.mxu0 %v1580
    %1611 = vmatprep.subr.mxu0 %v1544
    %1612 = vmatpush1.msra.mxu0 %v1543
    %1613 = vmatprep.subr.mxu0 %v1542
    %1614 = vmatpush1.msra.mxu0 %v1541
    %1615 = vmatprep.subr.mxu0 %v1540
    %1616 = vmatpush1.msra.mxu0 %v1539
    %1617 = vmatprep.subr.mxu0 0.0
    %1618 = vmatpush2.msra.mxu0 0.0
    %1619 = vmatprep.subr.mxu0 0.0
    %1620 = vmatpush2.msra.mxu0 0.0
    %1621 = vmatprep.subr.mxu0 0.0
    %1622 = vmatpush2.msra.mxu0 0.0
    %1623 = vmatprep.subr.mxu0 0.0
    %1624 = vmatpush2.msra.mxu0 0.0
    %1625 = vmatprep.subr.mxu0 0.0
    %1626 = vmatpush2.msra.mxu0 0.0
    %1627 = vmatprep.subr.mxu0 0.0
    %1628 = vmatpush2.msra.mxu0 0.0
    %1629 = vmatprep.subr.mxu0 0.0
    %1630 = vmatpush2.msra.mxu0 0.0
    %1631 = vmatprep.subr.mxu0 0.0
    %1632 = vmatpush2.msra.mxu0 0.0
    %1633 = vmatprep.subr.mxu0 0.0
    %1634 = vmatpush2.msra.mxu0 0.0
    %1635 = vmatprep.subr.mxu0 0.0
    %1636 = vmatpush2.msra.mxu0 0.0
    %1637 = vmatprep.subr.mxu0 0.0
    %1638 = vmatpush2.msra.mxu0 0.0
    %1639 = vmatprep.subr.mxu0 0.0
    %1640 = vmatpush2.msra.mxu0 0.0
    %1641 = vmatprep.subr.mxu0 0.0
    %1642 = vmatpush2.msra.mxu0 0.0
    %1643 = vmatprep.subr.mxu0 0.0
    %1644 = vmatpush2.msra.mxu0 0.0
    %1645 = vmatprep.subr.mxu0 0.0
    %1646 = vmatpush2.msra.mxu0 0.0
    %1647 = vmatprep.subr.mxu0 0.0
    %1648 = vmatpush2.msra.mxu0 0.0
    %1649 = vmatprep.mubr.f32.mxu0 0.0
    %1650 = vmatmul.mubr.f32.gmra.mxu0 %v1563
    %v1651 = vpop.f32.mrf.mxu0
    %v1652 = vadd.f32 0.0, %v1651
    %v1653 = vpop.f32.mrf.mxu0
    %v1654 = vadd.f32 0.0, %v1653
    %1655 = vmatprep.mubr.f32.mxu0 0.0
    %1656 = vmatmul.mubr.f32.gmra.mxu0 %v1565
    %v1657 = vpop.f32.mrf.mxu0
    %v1658 = vadd.f32 0.0, %v1657
    %v1659 = vpop.f32.mrf.mxu0
    %v1660 = vadd.f32 0.0, %v1659
    %1661 = vmatprep.mubr.f32.mxu0 0.0
    %1662 = vmatmul.mubr.f32.gmra.mxu0 %v1567
    %v1663 = vpop.f32.mrf.mxu0
    %v1664 = vadd.f32 0.0, %v1663
    %v1665 = vpop.f32.mrf.mxu0
    %v1666 = vadd.f32 0.0, %v1665
    %1667 = vmatprep.mubr.f32.mxu0 0.0
    %1668 = vmatmul.mubr.f32.gmra.mxu0 %v1569
    %v1669 = vpop.f32.mrf.mxu0
    %v1670 = vadd.f32 0.0, %v1669
    %v1671 = vpop.f32.mrf.mxu0
    %v1672 = vadd.f32 0.0, %v1671
    %1673 = vmatprep.mubr.f32.mxu0 0.0
    %1674 = vmatmul.mubr.f32.gmra.mxu0 %v1571
    %v1675 = vpop.f32.mrf.mxu0
    %v1676 = vadd.f32 0.0, %v1675
    %v1677 = vpop.f32.mrf.mxu0
    %v1678 = vadd.f32 0.0, %v1677
    %1679 = vmatprep.mubr.f32.mxu0 0.0
    %1680 = vmatmul.mubr.f32.gmra.mxu0 %v1573
    %v1681 = vpop.f32.mrf.mxu0
    %v1682 = vadd.f32 0.0, %v1681
    %v1683 = vpop.f32.mrf.mxu0
    %v1684 = vadd.f32 0.0, %v1683
    %1685 = vmatprep.mubr.f32.mxu0 0.0
    %1686 = vmatmul.mubr.f32.gmra.mxu0 %v1575
    %v1687 = vpop.f32.mrf.mxu0
    %v1688 = vadd.f32 0.0, %v1687
    %v1689 = vpop.f32.mrf.mxu0
    %v1690 = vadd.f32 0.0, %v1689
    %1691 = vmatprep.mubr.f32.mxu0 0.0
    %1692 = vmatmul.mubr.f32.gmra.mxu0 %v1577
    %v1693 = vpop.f32.mrf.mxu0
    %v1694 = vadd.f32 0.0, %v1693
    %v1695 = vpop.f32.mrf.mxu0
    %v1696 = vadd.f32 0.0, %v1695
    %1697 = vdwg.mxu0
    %v1698 = vadd.f32 %v1522, %v1652
    %v1699 = vadd.f32 %v1523, %v1654
    %v1700 = vadd.f32 %v1524, %v1658
    %v1701 = vadd.f32 %v1525, %v1660
    %v1702 = vadd.f32 %v1526, %v1664
    %v1703 = vadd.f32 %v1527, %v1666
    %v1704 = vadd.f32 %v1528, %v1670
    %v1705 = vadd.f32 %v1529, %v1672
    %v1706 = vadd.f32 %v1530, %v1676
    %v1707 = vadd.f32 %v1531, %v1678
    %v1708 = vadd.f32 %v1532, %v1682
    %v1709 = vadd.f32 %v1533, %v1684
    %v1710 = vadd.f32 %v1534, %v1688
    %v1711 = vadd.f32 %v1535, %v1690
    %v1712 = vadd.f32 %v1536, %v1694
    %v1713 = vadd.f32 %v1537, %v1696
    %v1714 = vlaneseq
    %v1715 = vshrl.u32 %v1714, 7
    %v1716 = vadd.s32 %v1715, 8
    %v1717 = vadd.s32 %v1715, 16
    %v1718 = vadd.s32 %v1715, 24
    %v1719 = vadd.s32 %v1715, 32
    %v1720 = vadd.s32 %v1715, 40
    %v1721 = vadd.s32 %v1715, 48
    %v1722 = vadd.s32 %v1715, 56
    %vm1723 = vcmp.lt.s32.totalorder %v1715, 0
    %v1724 = vsub.s32 0, %v1715
    %v1725 = vsel %vm1723, %v1724, %v1715
    %v1726 = vmul.u32.u64.compose %v1725, 2290649225
    %v1727 = vextract.low.u32 %v1726
    %v1728 = vextract.high.u32 %v1726
    %v1729 = vshrl.u32 %v1728, 4
    %v1730 = vmul.u32 %v1729, 30
    %v1731 = vsub.s32 %v1725, %v1730
    %v1732 = vsub.s32 0, %v1731
    %v1733 = vsel %vm1723, %v1732, %v1731
    %vm1734 = vcmp.lt.s32.totalorder %v1716, 0
    %v1735 = vsub.s32 0, %v1716
    %v1736 = vsel %vm1734, %v1735, %v1716
    %v1737 = vmul.u32.u64.compose %v1736, 2290649225
    %v1738 = vextract.low.u32 %v1737
    %v1739 = vextract.high.u32 %v1737
    %v1740 = vshrl.u32 %v1739, 4
    %v1741 = vmul.u32 %v1740, 30
    %v1742 = vsub.s32 %v1736, %v1741
    %v1743 = vsub.s32 0, %v1742
    %v1744 = vsel %vm1734, %v1743, %v1742
    %vm1745 = vcmp.lt.s32.totalorder %v1717, 0
    %v1746 = vsub.s32 0, %v1717
    %v1747 = vsel %vm1745, %v1746, %v1717
    %v1748 = vmul.u32.u64.compose %v1747, 2290649225
    %v1749 = vextract.low.u32 %v1748
    %v1750 = vextract.high.u32 %v1748
    %v1751 = vshrl.u32 %v1750, 4
    %v1752 = vmul.u32 %v1751, 30
    %v1753 = vsub.s32 %v1747, %v1752
    %v1754 = vsub.s32 0, %v1753
    %v1755 = vsel %vm1745, %v1754, %v1753
    %vm1756 = vcmp.lt.s32.totalorder %v1718, 0
    %v1757 = vsub.s32 0, %v1718
    %v1758 = vsel %vm1756, %v1757, %v1718
    %v1759 = vmul.u32.u64.compose %v1758, 2290649225
    %v1760 = vextract.low.u32 %v1759
    %v1761 = vextract.high.u32 %v1759
    %v1762 = vshrl.u32 %v1761, 4
    %v1763 = vmul.u32 %v1762, 30
    %v1764 = vsub.s32 %v1758, %v1763
    %v1765 = vsub.s32 0, %v1764
    %v1766 = vsel %vm1756, %v1765, %v1764
    %vm1767 = vcmp.lt.s32.totalorder %v1719, 0
    %v1768 = vsub.s32 0, %v1719
    %v1769 = vsel %vm1767, %v1768, %v1719
    %v1770 = vmul.u32.u64.compose %v1769, 2290649225
    %v1771 = vextract.low.u32 %v1770
    %v1772 = vextract.high.u32 %v1770
    %v1773 = vshrl.u32 %v1772, 4
    %v1774 = vmul.u32 %v1773, 30
    %v1775 = vsub.s32 %v1769, %v1774
    %v1776 = vsub.s32 0, %v1775
    %v1777 = vsel %vm1767, %v1776, %v1775
    %vm1778 = vcmp.lt.s32.totalorder %v1720, 0
    %v1779 = vsub.s32 0, %v1720
    %v1780 = vsel %vm1778, %v1779, %v1720
    %v1781 = vmul.u32.u64.compose %v1780, 2290649225
    %v1782 = vextract.low.u32 %v1781
    %v1783 = vextract.high.u32 %v1781
    %v1784 = vshrl.u32 %v1783, 4
    %v1785 = vmul.u32 %v1784, 30
    %v1786 = vsub.s32 %v1780, %v1785
    %v1787 = vsub.s32 0, %v1786
    %v1788 = vsel %vm1778, %v1787, %v1786
    %vm1789 = vcmp.lt.s32.totalorder %v1721, 0
    %v1790 = vsub.s32 0, %v1721
    %v1791 = vsel %vm1789, %v1790, %v1721
    %v1792 = vmul.u32.u64.compose %v1791, 2290649225
    %v1793 = vextract.low.u32 %v1792
    %v1794 = vextract.high.u32 %v1792
    %v1795 = vshrl.u32 %v1794, 4
    %v1796 = vmul.u32 %v1795, 30
    %v1797 = vsub.s32 %v1791, %v1796
    %v1798 = vsub.s32 0, %v1797
    %v1799 = vsel %vm1789, %v1798, %v1797
    %vm1800 = vcmp.lt.s32.totalorder %v1722, 0
    %v1801 = vsub.s32 0, %v1722
    %v1802 = vsel %vm1800, %v1801, %v1722
    %v1803 = vmul.u32.u64.compose %v1802, 2290649225
    %v1804 = vextract.low.u32 %v1803
    %v1805 = vextract.high.u32 %v1803
    %v1806 = vshrl.u32 %v1805, 4
    %v1807 = vmul.u32 %v1806, 30
    %v1808 = vsub.s32 %v1802, %v1807
    %v1809 = vsub.s32 0, %v1808
    %v1810 = vsel %vm1800, %v1809, %v1808
    %vm1811 = vcmp.ne.s32.totalorder %v1733, 0
    %vm1812 = vcmp.ne.s32.totalorder %v1744, 0
    %vm1813 = vcmp.ne.s32.totalorder %v1755, 0
    %vm1814 = vcmp.ne.s32.totalorder %v1766, 0
    %vm1815 = vcmp.ne.s32.totalorder %v1777, 0
    %vm1816 = vcmp.ne.s32.totalorder %v1788, 0
    %vm1817 = vcmp.ne.s32.totalorder %v1799, 0
    %vm1818 = vcmp.ne.s32.totalorder %v1810, 0
    %vm1819 = vcmp.lt.s32.totalorder %v1733, 0
    %vm1820 = vcmp.lt.s32.totalorder %v1744, 0
    %vm1821 = vcmp.lt.s32.totalorder %v1755, 0
    %vm1822 = vcmp.lt.s32.totalorder %v1766, 0
    %vm1823 = vcmp.lt.s32.totalorder %v1777, 0
    %vm1824 = vcmp.lt.s32.totalorder %v1788, 0
    %vm1825 = vcmp.lt.s32.totalorder %v1799, 0
    %vm1826 = vcmp.lt.s32.totalorder %v1810, 0
    %vm1827 = vmand %vm1819, %vm1811
    %vm1828 = vmand %vm1820, %vm1812
    %vm1829 = vmand %vm1821, %vm1813
    %vm1830 = vmand %vm1822, %vm1814
    %vm1831 = vmand %vm1823, %vm1815
    %vm1832 = vmand %vm1824, %vm1816
    %vm1833 = vmand %vm1825, %vm1817
    %vm1834 = vmand %vm1826, %vm1818
    %v1835 = vadd.s32 %v1733, 30
    %v1836 = vadd.s32 %v1744, 30
    %v1837 = vadd.s32 %v1755, 30
    %v1838 = vadd.s32 %v1766, 30
    %v1839 = vadd.s32 %v1777, 30
    %v1840 = vadd.s32 %v1788, 30
    %v1841 = vadd.s32 %v1799, 30
    %v1842 = vadd.s32 %v1810, 30
    %v1843 = vsel %vm1827, %v1835, %v1733
    %v1844 = vsel %vm1828, %v1836, %v1744
    %v1845 = vsel %vm1829, %v1837, %v1755
    %v1846 = vsel %vm1830, %v1838, %v1766
    %v1847 = vsel %vm1831, %v1839, %v1777
    %v1848 = vsel %vm1832, %v1840, %v1788
    %v1849 = vsel %vm1833, %v1841, %v1799
    %v1850 = vsel %vm1834, %v1842, %v1810
    %vm1851 = vcmp.lt.s32.totalorder %v1843, 28
    %vm1852 = vcmp.lt.s32.totalorder %v1844, 28
    %vm1853 = vcmp.lt.s32.totalorder %v1845, 28
    %vm1854 = vcmp.lt.s32.totalorder %v1846, 28
    %vm1855 = vcmp.lt.s32.totalorder %v1847, 28
    %vm1856 = vcmp.lt.s32.totalorder %v1848, 28
    %vm1857 = vcmp.lt.s32.totalorder %v1849, 28
    %vm1858 = vcmp.lt.s32.totalorder %v1850, 28
    %v1859 = vsel %vm1851, 1, 0
    %v1860 = vsel %vm1852, 1, 0
    %v1861 = vsel %vm1853, 1, 0
    %v1862 = vsel %vm1854, 1, 0
    %v1863 = vsel %vm1855, 1, 0
    %v1864 = vsel %vm1856, 1, 0
    %v1865 = vsel %vm1857, 1, 0
    %v1866 = vsel %vm1858, 1, 0
    %vm1867 = vcmp.eq.s32.totalorder %v1859, 1
    %vm1868 = vcmp.eq.s32.totalorder %v1860, 1
    %vm1869 = vcmp.eq.s32.totalorder %v1861, 1
    %vm1870 = vcmp.eq.s32.totalorder %v1862, 1
    %vm1871 = vcmp.eq.s32.totalorder %v1863, 1
    %vm1872 = vcmp.eq.s32.totalorder %v1864, 1
    %vm1873 = vcmp.eq.s32.totalorder %v1865, 1
    %vm1874 = vcmp.eq.s32.totalorder %v1866, 1
    %v1875 = vsel %vm1867, %v1698, 0.0
    %v1876 = vsel %vm1867, %v1699, 0.0
    %v1877 = vsel %vm1868, %v1700, 0.0
    %v1878 = vsel %vm1868, %v1701, 0.0
    %v1879 = vsel %vm1869, %v1702, 0.0
    %v1880 = vsel %vm1869, %v1703, 0.0
    %v1881 = vsel %vm1870, %v1704, 0.0
    %v1882 = vsel %vm1870, %v1705, 0.0
    %v1883 = vsel %vm1871, %v1706, 0.0
    %v1884 = vsel %vm1871, %v1707, 0.0
    %v1885 = vsel %vm1872, %v1708, 0.0
    %v1886 = vsel %vm1872, %v1709, 0.0
    %v1887 = vsel %vm1873, %v1710, 0.0
    %v1888 = vsel %vm1873, %v1711, 0.0
    %v1889 = vsel %vm1874, %v1712, 0.0
    %v1890 = vsel %vm1874, %v1713, 0.0
    %v1891 = vadd.f32 %v1875, %v1877
    %v1892 = vadd.f32 %v1891, %v1879
    %v1893 = vadd.f32 %v1892, %v1881
    %v1894 = vadd.f32 %v1893, %v1883
    %v1895 = vadd.f32 %v1894, %v1885
    %v1896 = vadd.f32 %v1895, %v1887
    %vm1897 = vcmask 1041408
    %v1898 = vsel %vm1897, %v1889, 0.0
    %v1899 = vadd.f32 %v1896, %v1898
    %v1900 = vrot.slane %v1899, 4
    %v1901 = vadd.f32 %v1899, %v1900
    %v1902 = vrot.slane %v1901, 2
    %v1903 = vadd.f32 %v1901, %v1902
    %v1904 = vrot.slane %v1903, 1
    %v1905 = vadd.f32 %v1903, %v1904
    %vm1906 = vcmask 785408
    %v1907 = vsel %vm1906, %v1876, 0.0
    %v1908 = vsel %vm1906, %v1878, 0.0
    %v1909 = vadd.f32 %v1907, %v1908
    %v1910 = vsel %vm1906, %v1880, 0.0
    %v1911 = vadd.f32 %v1909, %v1910
    %v1912 = vsel %vm1906, %v1882, 0.0
    %v1913 = vadd.f32 %v1911, %v1912
    %v1914 = vsel %vm1906, %v1884, 0.0
    %v1915 = vadd.f32 %v1913, %v1914
    %v1916 = vsel %vm1906, %v1886, 0.0
    %v1917 = vadd.f32 %v1915, %v1916
    %v1918 = vsel %vm1906, %v1888, 0.0
    %v1919 = vadd.f32 %v1917, %v1918
    %vm1920 = vcmask 779264
    %v1921 = vsel %vm1920, %v1890, 0.0
    %v1922 = vadd.f32 %v1919, %v1921
    %v1923 = vrot.slane %v1922, 4
    %v1924 = vadd.f32 %v1922, %v1923
    %v1925 = vrot.slane %v1924, 2
    %v1926 = vadd.f32 %v1924, %v1925
    %v1927 = vrot.slane %v1926, 1
    %v1928 = vadd.f32 %v1926, %v1927
    %v1929 = vmul.f32 %v1875, %v1875
    %v1930 = vmul.f32 %v1876, %v1876
    %v1931 = vmul.f32 %v1877, %v1877
    %v1932 = vmul.f32 %v1878, %v1878
    %v1933 = vmul.f32 %v1879, %v1879
    %v1934 = vmul.f32 %v1880, %v1880
    %v1935 = vmul.f32 %v1881, %v1881
    %v1936 = vmul.f32 %v1882, %v1882
    %v1937 = vmul.f32 %v1883, %v1883
    %v1938 = vmul.f32 %v1884, %v1884
    %v1939 = vmul.f32 %v1885, %v1885
    %v1940 = vmul.f32 %v1886, %v1886
    %v1941 = vmul.f32 %v1887, %v1887
    %v1942 = vmul.f32 %v1888, %v1888
    %v1943 = vmul.f32 %v1889, %v1889
    %v1944 = vmul.f32 %v1890, %v1890
    %v1945 = vadd.f32 %v1929, %v1931
    %v1946 = vadd.f32 %v1945, %v1933
    %v1947 = vadd.f32 %v1946, %v1935
    %v1948 = vadd.f32 %v1947, %v1937
    %v1949 = vadd.f32 %v1948, %v1939
    %v1950 = vadd.f32 %v1949, %v1941
    %v1951 = vsel %vm1897, %v1943, 0.0
    %v1952 = vadd.f32 %v1950, %v1951
    %v1953 = vrot.slane %v1952, 4
    %v1954 = vadd.f32 %v1952, %v1953
    %v1955 = vrot.slane %v1954, 2
    %v1956 = vadd.f32 %v1954, %v1955
    %v1957 = vrot.slane %v1956, 1
    %v1958 = vadd.f32 %v1956, %v1957
    %v1959 = vsel %vm1906, %v1930, 0.0
    %v1960 = vsel %vm1906, %v1932, 0.0
    %v1961 = vadd.f32 %v1959, %v1960
    %v1962 = vsel %vm1906, %v1934, 0.0
    %v1963 = vadd.f32 %v1961, %v1962
    %v1964 = vsel %vm1906, %v1936, 0.0
    %v1965 = vadd.f32 %v1963, %v1964
    %v1966 = vsel %vm1906, %v1938, 0.0
    %v1967 = vadd.f32 %v1965, %v1966
    %v1968 = vsel %vm1906, %v1940, 0.0
    %v1969 = vadd.f32 %v1967, %v1968
    %v1970 = vsel %vm1906, %v1942, 0.0
    %v1971 = vadd.f32 %v1969, %v1970
    %v1972 = vsel %vm1920, %v1944, 0.0
    %v1973 = vadd.f32 %v1971, %v1972
    %v1974 = vrot.slane %v1973, 4
    %v1975 = vadd.f32 %v1973, %v1974
    %v1976 = vrot.slane %v1975, 2
    %v1977 = vadd.f32 %v1975, %v1976
    %v1978 = vrot.slane %v1977, 1
    %v1979 = vadd.f32 %v1977, %v1978
    %v1980 = vld [vmem:[%s4] sm:$0xff]
    %v1981 = vld [vmem:[%s4 + $0x8] sm:$0xff]
    %v1982 = vld [vmem:[%s4 + $0x10] sm:$0xff]
    %v1983 = vld [vmem:[%s4 + $0x18] sm:$0xff]
    %v1984 = vld [vmem:[%s4 + $0x20] sm:$0xff]
    %v1985 = vld [vmem:[%s4 + $0x28] sm:$0xff]
    %v1986 = vld [vmem:[%s4 + $0x30] sm:$0xff]
    %v1987 = vld [vmem:[%s4 + $0x38] sm:$0xff]
    %v1988 = vld [vmem:[%s4 + $0x40] sm:$0xff]
    %v1989 = vld [vmem:[%s4 + $0x48] sm:$0xff]
    %v1990 = vld [vmem:[%s4 + $0x50] sm:$0xff]
    %v1991 = vld [vmem:[%s4 + $0x58] sm:$0xff]
    %v1992 = vld [vmem:[%s4 + $0x60] sm:$0xff]
    %v1993 = vld [vmem:[%s4 + $0x68] sm:$0xff]
    %v1994 = vld [vmem:[%s4 + $0x70] sm:$0xff]
    %v1995 = vld [vmem:[%s4 + $0x78] sm:$0xff]
    %v1996 = vld [vmem:[%s4 + $0x80] sm:$0xff]
    %v1997 = vld [vmem:[%s4 + $0x88] sm:$0xff]
    %v1998 = vld [vmem:[%s4 + $0x90] sm:$0xff]
    %v1999 = vld [vmem:[%s4 + $0x98] sm:$0xff]
    %v2000 = vld [vmem:[%s4 + $0xa0] sm:$0xff]
    %v2001 = vld [vmem:[%s4 + $0xa8] sm:$0xff]
    %v2002 = vld [vmem:[%s4 + $0xb0] sm:$0xff]
    %v2003 = vld [vmem:[%s4 + $0xb8] sm:$0xff]
    %v2004 = vld [vmem:[%s4 + $0xc0] sm:$0xff]
    %v2005 = vld [vmem:[%s4 + $0xc8] sm:$0xff]
    %v2006 = vld [vmem:[%s4 + $0xd0] sm:$0xff]
    %v2007 = vld [vmem:[%s4 + $0xd8] sm:$0xff]
    %v2009 = vsel %vm1906, %v1928, 0
    %2011 = vmatprep.subr.mxu0 0.0
    %2012 = vmatpush1.msra.mxu0 %v1995
    %2013 = vmatprep.subr.mxu0 0.0
    %2014 = vmatpush1.msra.mxu0 %v1994
    %2015 = vmatprep.subr.mxu0 0.0
    %2016 = vmatpush1.msra.mxu0 %v1993
    %2017 = vmatprep.subr.mxu0 0.0
    %2018 = vmatpush1.msra.mxu0 %v1992
    %2019 = vmatprep.subr.mxu0 0.0
    %2020 = vmatpush1.msra.mxu0 %v1991
    %2021 = vmatprep.subr.mxu0 0.0
    %2022 = vmatpush1.msra.mxu0 %v1990
    %2023 = vmatprep.subr.mxu0 0.0
    %2024 = vmatpush1.msra.mxu0 %v1989
    %2025 = vmatprep.subr.mxu0 0.0
    %2026 = vmatpush1.msra.mxu0 %v1988
    %2027 = vmatprep.subr.mxu0 0.0
    %2028 = vmatpush1.msra.mxu0 %v1987
    %2029 = vmatprep.subr.mxu0 0.0
    %2030 = vmatpush1.msra.mxu0 %v1986
    %2031 = vmatprep.subr.mxu0 0.0
    %2032 = vmatpush1.msra.mxu0 %v1985
    %2033 = vmatprep.subr.mxu0 0.0
    %2034 = vmatpush1.msra.mxu0 %v1984
    %2035 = vmatprep.subr.mxu0 0.0
    %2036 = vmatpush1.msra.mxu0 %v1983
    %2037 = vmatprep.subr.mxu0 0.0
    %2038 = vmatpush1.msra.mxu0 %v1982
    %2039 = vmatprep.subr.mxu0 0.0
    %2040 = vmatpush1.msra.mxu0 %v1981
    %2041 = vmatprep.subr.mxu0 0.0
    %2042 = vmatpush1.msra.mxu0 %v1980
    %2043 = vmatprep.subr.mxu0 0.0
    %2044 = vmatpush2.msra.mxu0 0.0
    %2045 = vmatprep.subr.mxu0 0.0
    %2046 = vmatpush2.msra.mxu0 0.0
    %2047 = vmatprep.subr.mxu0 0.0
    %2048 = vmatpush2.msra.mxu0 0.0
    %2049 = vmatprep.subr.mxu0 0.0
    %2050 = vmatpush2.msra.mxu0 0.0
    %2051 = vmatprep.subr.mxu0 0.0
    %2052 = vmatpush2.msra.mxu0 %v2007
    %2053 = vmatprep.subr.mxu0 0.0
    %2054 = vmatpush2.msra.mxu0 %v2006
    %2055 = vmatprep.subr.mxu0 0.0
    %2056 = vmatpush2.msra.mxu0 %v2005
    %2057 = vmatprep.subr.mxu0 0.0
    %2058 = vmatpush2.msra.mxu0 %v2004
    %2059 = vmatprep.subr.mxu0 0.0
    %2060 = vmatpush2.msra.mxu0 %v2003
    %2061 = vmatprep.subr.mxu0 0.0
    %2062 = vmatpush2.msra.mxu0 %v2002
    %2063 = vmatprep.subr.mxu0 0.0
    %2064 = vmatpush2.msra.mxu0 %v2001
    %2065 = vmatprep.subr.mxu0 0.0
    %2066 = vmatpush2.msra.mxu0 %v2000
    %2067 = vmatprep.subr.mxu0 0.0
    %2068 = vmatpush2.msra.mxu0 %v1999
    %2069 = vmatprep.subr.mxu0 0.0
    %2070 = vmatpush2.msra.mxu0 %v1998
    %2071 = vmatprep.subr.mxu0 0.0
    %2072 = vmatpush2.msra.mxu0 %v1997
    %2073 = vmatprep.subr.mxu0 0.0
    %2074 = vmatpush2.msra.mxu0 %v1996
    %2075 = vmatprep.mubr.f32.mxu0 %v2009
    %2076 = vmatmul.mubr.f32.gmra.mxu0 %v1905
    %v2077 = vpop.f32.mrf.mxu0
    %v2078 = vadd.f32 0.0, %v2077
    %v2079 = vpop.f32.mrf.mxu0
    %2080 = vdwg.mxu0
    %v2082 = vsel %vm1906, %v1979, 0
    %2084 = vmatprep.subr.mxu0 0.0
    %2085 = vmatpush1.msra.mxu0 %v1995
    %2086 = vmatprep.subr.mxu0 0.0
    %2087 = vmatpush1.msra.mxu0 %v1994
    %2088 = vmatprep.subr.mxu0 0.0
    %2089 = vmatpush1.msra.mxu0 %v1993
    %2090 = vmatprep.subr.mxu0 0.0
    %2091 = vmatpush1.msra.mxu0 %v1992
    %2092 = vmatprep.subr.mxu0 0.0
    %2093 = vmatpush1.msra.mxu0 %v1991
    %2094 = vmatprep.subr.mxu0 0.0
    %2095 = vmatpush1.msra.mxu0 %v1990
    %2096 = vmatprep.subr.mxu0 0.0
    %2097 = vmatpush1.msra.mxu0 %v1989
    %2098 = vmatprep.subr.mxu0 0.0
    %2099 = vmatpush1.msra.mxu0 %v1988
    %2100 = vmatprep.subr.mxu0 0.0
    %2101 = vmatpush1.msra.mxu0 %v1987
    %2102 = vmatprep.subr.mxu0 0.0
    %2103 = vmatpush1.msra.mxu0 %v1986
    %2104 = vmatprep.subr.mxu0 0.0
    %2105 = vmatpush1.msra.mxu0 %v1985
    %2106 = vmatprep.subr.mxu0 0.0
    %2107 = vmatpush1.msra.mxu0 %v1984
    %2108 = vmatprep.subr.mxu0 0.0
    %2109 = vmatpush1.msra.mxu0 %v1983
    %2110 = vmatprep.subr.mxu0 0.0
    %2111 = vmatpush1.msra.mxu0 %v1982
    %2112 = vmatprep.subr.mxu0 0.0
    %2113 = vmatpush1.msra.mxu0 %v1981
    %2114 = vmatprep.subr.mxu0 0.0
    %2115 = vmatpush1.msra.mxu0 %v1980
    %2116 = vmatprep.subr.mxu0 0.0
    %2117 = vmatpush2.msra.mxu0 0.0
    %2118 = vmatprep.subr.mxu0 0.0
    %2119 = vmatpush2.msra.mxu0 0.0
    %2120 = vmatprep.subr.mxu0 0.0
    %2121 = vmatpush2.msra.mxu0 0.0
    %2122 = vmatprep.subr.mxu0 0.0
    %2123 = vmatpush2.msra.mxu0 0.0
    %2124 = vmatprep.subr.mxu0 0.0
    %2125 = vmatpush2.msra.mxu0 %v2007
    %2126 = vmatprep.subr.mxu0 0.0
    %2127 = vmatpush2.msra.mxu0 %v2006
    %2128 = vmatprep.subr.mxu0 0.0
    %2129 = vmatpush2.msra.mxu0 %v2005
    %2130 = vmatprep.subr.mxu0 0.0
    %2131 = vmatpush2.msra.mxu0 %v2004
    %2132 = vmatprep.subr.mxu0 0.0
    %2133 = vmatpush2.msra.mxu0 %v2003
    %2134 = vmatprep.subr.mxu0 0.0
    %2135 = vmatpush2.msra.mxu0 %v2002
    %2136 = vmatprep.subr.mxu0 0.0
    %2137 = vmatpush2.msra.mxu0 %v2001
    %2138 = vmatprep.subr.mxu0 0.0
    %2139 = vmatpush2.msra.mxu0 %v2000
    %2140 = vmatprep.subr.mxu0 0.0
    %2141 = vmatpush2.msra.mxu0 %v1999
    %2142 = vmatprep.subr.mxu0 0.0
    %2143 = vmatpush2.msra.mxu0 %v1998
    %2144 = vmatprep.subr.mxu0 0.0
    %2145 = vmatpush2.msra.mxu0 %v1997
    %2146 = vmatprep.subr.mxu0 0.0
    %2147 = vmatpush2.msra.mxu0 %v1996
    %2148 = vmatprep.mubr.f32.mxu0 %v2082
    %2149 = vmatmul.mubr.f32.gmra.mxu0 %v1958
    %v2150 = vpop.f32.mrf.mxu0
    %v2151 = vadd.f32 0.0, %v2150
    %v2152 = vpop.f32.mrf.mxu0
    %2153 = vdwg.mxu0
    %v2154 = vmul.f32 %v2078, 0.0006377551
    %v2155 = vmul.f32 %v2151, 0.0006377551
    %v2156 = vmul.f32 %v2154, %v2154
    %v2157 = vsub.f32 %v2155, %v2156
    %v2158 = vmax.f32 %v2157, 0.0
    %v2159 = vld [vmem:[%s6] sm:$0x1]
    %v2160 = vadd.f32 %v2158, 1e-05
    %v2161 = vrsqrt.pop %v2160
    %v2162 = vmul.f32 %v2159, %v2161
    %v2163 = vld [vmem:[%s7] sm:$0x1]
    %v2164 = vmul.f32 %v2162, %v2154
    %v2165 = vsub.f32 %v2163, %v2164
    %v2166 = vld [vmem:[%s5] sm:$0xff]
    %v2167 = vld [vmem:[%s5 + $0x8] sm:$0xff]
    %vm2168 = vcmask 64512
    %v2170 = vsel %vm2168, %v2162, 0
    %2172 = vmatprep.subr.mxu0 0.0
    %2173 = vmatpush1.msra.mxu0 0.0
    %2174 = vmatprep.subr.mxu0 0.0
    %2175 = vmatpush1.msra.mxu0 0.0
    %2176 = vmatprep.subr.mxu0 0.0
    %2177 = vmatpush1.msra.mxu0 0.0
    %2178 = vmatprep.subr.mxu0 0.0
    %2179 = vmatpush1.msra.mxu0 0.0
    %2180 = vmatprep.subr.mxu0 0.0
    %2181 = vmatpush1.msra.mxu0 0.0
    %2182 = vmatprep.subr.mxu0 0.0
    %2183 = vmatpush1.msra.mxu0 0.0
    %2184 = vmatprep.subr.mxu0 0.0
    %2185 = vmatpush1.msra.mxu0 0.0
    %2186 = vmatprep.subr.mxu0 0.0
    %2187 = vmatpush1.msra.mxu0 0.0
    %2188 = vmatprep.subr.mxu0 0.0
    %2189 = vmatpush1.msra.mxu0 0.0
    %2190 = vmatprep.subr.mxu0 0.0
    %2191 = vmatpush1.msra.mxu0 0.0
    %2192 = vmatprep.subr.mxu0 0.0
    %2193 = vmatpush1.msra.mxu0 0.0
    %2194 = vmatprep.subr.mxu0 0.0
    %2195 = vmatpush1.msra.mxu0 0.0
    %2196 = vmatprep.subr.mxu0 0.0
    %2197 = vmatpush1.msra.mxu0 0.0
    %2198 = vmatprep.subr.mxu0 0.0
    %2199 = vmatpush1.msra.mxu0 0.0
    %2200 = vmatprep.subr.mxu0 0.0
    %2201 = vmatpush1.msra.mxu0 0.0
    %2202 = vmatprep.subr.mxu0 %v2167
    %2203 = vmatpush1.msra.mxu0 %v2166
    %2204 = vmatprep.subr.mxu0 0.0
    %2205 = vmatpush2.msra.mxu0 0.0
    %2206 = vmatprep.subr.mxu0 0.0
    %2207 = vmatpush2.msra.mxu0 0.0
    %2208 = vmatprep.subr.mxu0 0.0
    %2209 = vmatpush2.msra.mxu0 0.0
    %2210 = vmatprep.subr.mxu0 0.0
    %2211 = vmatpush2.msra.mxu0 0.0
    %2212 = vmatprep.subr.mxu0 0.0
    %2213 = vmatpush2.msra.mxu0 0.0
    %2214 = vmatprep.subr.mxu0 0.0
    %2215 = vmatpush2.msra.mxu0 0.0
    %2216 = vmatprep.subr.mxu0 0.0
    %2217 = vmatpush2.msra.mxu0 0.0
    %2218 = vmatprep.subr.mxu0 0.0
    %2219 = vmatpush2.msra.mxu0 0.0
    %2220 = vmatprep.subr.mxu0 0.0
    %2221 = vmatpush2.msra.mxu0 0.0
    %2222 = vmatprep.subr.mxu0 0.0
    %2223 = vmatpush2.msra.mxu0 0.0
    %2224 = vmatprep.subr.mxu0 0.0
    %2225 = vmatpush2.msra.mxu0 0.0
    %2226 = vmatprep.subr.mxu0 0.0
    %2227 = vmatpush2.msra.mxu0 0.0
    %2228 = vmatprep.subr.mxu0 0.0
    %2229 = vmatpush2.msra.mxu0 0.0
    %2230 = vmatprep.subr.mxu0 0.0
    %2231 = vmatpush2.msra.mxu0 0.0
    %2232 = vmatprep.subr.mxu0 0.0
    %2233 = vmatpush2.msra.mxu0 0.0
    %2234 = vmatprep.subr.mxu0 0.0
    %2235 = vmatpush2.msra.mxu0 0.0
    %2236 = vmatprep.mubr.f32.mxu0 0.0
    %2237 = vmatmul.mubr.f32.gmra.mxu0 %v2170
    %v2238 = vpop.f32.mrf.mxu0
    %v2239 = vadd.f32 0.0, %v2238
    %v2240 = vpop.f32.mrf.mxu0
    %v2241 = vadd.f32 0.0, %v2240
    %2242 = vdwg.mxu0
    %v2244 = vsel %vm2168, %v2165, 0
    %2246 = vmatprep.subr.mxu0 0.0
    %2247 = vmatpush1.msra.mxu0 0.0
    %2248 = vmatprep.subr.mxu0 0.0
    %2249 = vmatpush1.msra.mxu0 0.0
    %2250 = vmatprep.subr.mxu0 0.0
    %2251 = vmatpush1.msra.mxu0 0.0
    %2252 = vmatprep.subr.mxu0 0.0
    %2253 = vmatpush1.msra.mxu0 0.0
    %2254 = vmatprep.subr.mxu0 0.0
    %2255 = vmatpush1.msra.mxu0 0.0
    %2256 = vmatprep.subr.mxu0 0.0
    %2257 = vmatpush1.msra.mxu0 0.0
    %2258 = vmatprep.subr.mxu0 0.0
    %2259 = vmatpush1.msra.mxu0 0.0
    %2260 = vmatprep.subr.mxu0 0.0
    %2261 = vmatpush1.msra.mxu0 0.0
    %2262 = vmatprep.subr.mxu0 0.0
    %2263 = vmatpush1.msra.mxu0 0.0
    %2264 = vmatprep.subr.mxu0 0.0
    %2265 = vmatpush1.msra.mxu0 0.0
    %2266 = vmatprep.subr.mxu0 0.0
    %2267 = vmatpush1.msra.mxu0 0.0
    %2268 = vmatprep.subr.mxu0 0.0
    %2269 = vmatpush1.msra.mxu0 0.0
    %2270 = vmatprep.subr.mxu0 0.0
    %2271 = vmatpush1.msra.mxu0 0.0
    %2272 = vmatprep.subr.mxu0 0.0
    %2273 = vmatpush1.msra.mxu0 0.0
    %2274 = vmatprep.subr.mxu0 0.0
    %2275 = vmatpush1.msra.mxu0 0.0
    %2276 = vmatprep.subr.mxu0 %v2167
    %2277 = vmatpush1.msra.mxu0 %v2166
    %2278 = vmatprep.subr.mxu0 0.0
    %2279 = vmatpush2.msra.mxu0 0.0
    %2280 = vmatprep.subr.mxu0 0.0
    %2281 = vmatpush2.msra.mxu0 0.0
    %2282 = vmatprep.subr.mxu0 0.0
    %2283 = vmatpush2.msra.mxu0 0.0
    %2284 = vmatprep.subr.mxu0 0.0
    %2285 = vmatpush2.msra.mxu0 0.0
    %2286 = vmatprep.subr.mxu0 0.0
    %2287 = vmatpush2.msra.mxu0 0.0
    %2288 = vmatprep.subr.mxu0 0.0
    %2289 = vmatpush2.msra.mxu0 0.0
    %2290 = vmatprep.subr.mxu0 0.0
    %2291 = vmatpush2.msra.mxu0 0.0
    %2292 = vmatprep.subr.mxu0 0.0
    %2293 = vmatpush2.msra.mxu0 0.0
    %2294 = vmatprep.subr.mxu0 0.0
    %2295 = vmatpush2.msra.mxu0 0.0
    %2296 = vmatprep.subr.mxu0 0.0
    %2297 = vmatpush2.msra.mxu0 0.0
    %2298 = vmatprep.subr.mxu0 0.0
    %2299 = vmatpush2.msra.mxu0 0.0
    %2300 = vmatprep.subr.mxu0 0.0
    %2301 = vmatpush2.msra.mxu0 0.0
    %2302 = vmatprep.subr.mxu0 0.0
    %2303 = vmatpush2.msra.mxu0 0.0
    %2304 = vmatprep.subr.mxu0 0.0
    %2305 = vmatpush2.msra.mxu0 0.0
    %2306 = vmatprep.subr.mxu0 0.0
    %2307 = vmatpush2.msra.mxu0 0.0
    %2308 = vmatprep.subr.mxu0 0.0
    %2309 = vmatpush2.msra.mxu0 0.0
    %2310 = vmatprep.mubr.f32.mxu0 0.0
    %2311 = vmatmul.mubr.f32.gmra.mxu0 %v2244
    %v2312 = vpop.f32.mrf.mxu0
    %v2313 = vadd.f32 0.0, %v2312
    %v2314 = vpop.f32.mrf.mxu0
    %v2315 = vadd.f32 0.0, %v2314
    %2316 = vdwg.mxu0
    %v2317 = vlaneseq
    %v2318 = vshrl.u32 %v2317, 7
    %v2319 = vsub.s32 0, %v2318
    %v2320 = vrot.slane %v2239, %v2319
    %v2321 = vlaneseq
    %v2322 = vshrl.u32 %v2321, 7
    %v2323 = vsub.s32 0, %v2322
    %v2324 = vrot.slane %v2241, %v2323
    %v2325 = vmul.f32 %v1875, %v2320
    %v2326 = vmul.f32 %v1876, %v2324
    %v2327 = vmul.f32 %v1877, %v2320
    %v2328 = vmul.f32 %v1878, %v2324
    %v2329 = vmul.f32 %v1879, %v2320
    %v2330 = vmul.f32 %v1880, %v2324
    %v2331 = vmul.f32 %v1881, %v2320
    %v2332 = vmul.f32 %v1882, %v2324
    %v2333 = vmul.f32 %v1883, %v2320
    %v2334 = vmul.f32 %v1884, %v2324
    %v2335 = vmul.f32 %v1885, %v2320
    %v2336 = vmul.f32 %v1886, %v2324
    %v2337 = vmul.f32 %v1887, %v2320
    %v2338 = vmul.f32 %v1888, %v2324
    %v2339 = vmul.f32 %v1889, %v2320
    %v2340 = vmul.f32 %v1890, %v2324
    %v2341 = vlaneseq
    %v2342 = vshrl.u32 %v2341, 7
    %v2343 = vsub.s32 0, %v2342
    %v2344 = vrot.slane %v2313, %v2343
    %v2345 = vlaneseq
    %v2346 = vshrl.u32 %v2345, 7
    %v2347 = vsub.s32 0, %v2346
    %v2348 = vrot.slane %v2315, %v2347
    %v2349 = vadd.f32 %v2325, %v2344
    %v2350 = vadd.f32 %v2326, %v2348
    %v2351 = vadd.f32 %v2327, %v2344
    %v2352 = vadd.f32 %v2328, %v2348
    %v2353 = vadd.f32 %v2329, %v2344
    %v2354 = vadd.f32 %v2330, %v2348
    %v2355 = vadd.f32 %v2331, %v2344
    %v2356 = vadd.f32 %v2332, %v2348
    %v2357 = vadd.f32 %v2333, %v2344
    %v2358 = vadd.f32 %v2334, %v2348
    %v2359 = vadd.f32 %v2335, %v2344
    %v2360 = vadd.f32 %v2336, %v2348
    %v2361 = vadd.f32 %v2337, %v2344
    %v2362 = vadd.f32 %v2338, %v2348
    %v2363 = vadd.f32 %v2339, %v2344
    %v2364 = vadd.f32 %v2340, %v2348
    %vm2365 = vcmp.gt.f32.partialorder %v2349, 0.0
    %vm2366 = vcmp.gt.f32.partialorder %v2350, 0.0
    %vm2367 = vcmp.gt.f32.partialorder %v2351, 0.0
    %vm2368 = vcmp.gt.f32.partialorder %v2352, 0.0
    %vm2369 = vcmp.gt.f32.partialorder %v2353, 0.0
    %vm2370 = vcmp.gt.f32.partialorder %v2354, 0.0
    %vm2371 = vcmp.gt.f32.partialorder %v2355, 0.0
    %vm2372 = vcmp.gt.f32.partialorder %v2356, 0.0
    %vm2373 = vcmp.gt.f32.partialorder %v2357, 0.0
    %vm2374 = vcmp.gt.f32.partialorder %v2358, 0.0
    %vm2375 = vcmp.gt.f32.partialorder %v2359, 0.0
    %vm2376 = vcmp.gt.f32.partialorder %v2360, 0.0
    %vm2377 = vcmp.gt.f32.partialorder %v2361, 0.0
    %vm2378 = vcmp.gt.f32.partialorder %v2362, 0.0
    %vm2379 = vcmp.gt.f32.partialorder %v2363, 0.0
    %vm2380 = vcmp.gt.f32.partialorder %v2364, 0.0
    %v2381 = vmin.f32 %v2349, 0.0
    %v2382 = vmin.f32 %v2350, 0.0
    %v2383 = vmin.f32 %v2351, 0.0
    %v2384 = vmin.f32 %v2352, 0.0
    %v2385 = vmin.f32 %v2353, 0.0
    %v2386 = vmin.f32 %v2354, 0.0
    %v2387 = vmin.f32 %v2355, 0.0
    %v2388 = vmin.f32 %v2356, 0.0
    %v2389 = vmin.f32 %v2357, 0.0
    %v2390 = vmin.f32 %v2358, 0.0
    %v2391 = vmin.f32 %v2359, 0.0
    %v2392 = vmin.f32 %v2360, 0.0
    %v2393 = vmin.f32 %v2361, 0.0
    %v2394 = vmin.f32 %v2362, 0.0
    %v2395 = vmin.f32 %v2363, 0.0
    %v2396 = vmin.f32 %v2364, 0.0
    %v2397 = vmul.f32 %v2381, 1.442695
    %v2398 = vpow.pop %v2397
    %v2399 = vmul.f32 %v2382, 1.442695
    %v2400 = vpow.pop %v2399
    %v2401 = vmul.f32 %v2383, 1.442695
    %v2402 = vpow.pop %v2401
    %v2403 = vmul.f32 %v2384, 1.442695
    %v2404 = vpow.pop %v2403
    %v2405 = vmul.f32 %v2385, 1.442695
    %v2406 = vpow.pop %v2405
    %v2407 = vmul.f32 %v2386, 1.442695
    %v2408 = vpow.pop %v2407
    %v2409 = vmul.f32 %v2387, 1.442695
    %v2410 = vpow.pop %v2409
    %v2411 = vmul.f32 %v2388, 1.442695
    %v2412 = vpow.pop %v2411
    %v2413 = vmul.f32 %v2389, 1.442695
    %v2414 = vpow.pop %v2413
    %v2415 = vmul.f32 %v2390, 1.442695
    %v2416 = vpow.pop %v2415
    %v2417 = vmul.f32 %v2391, 1.442695
    %v2418 = vpow.pop %v2417
    %v2419 = vmul.f32 %v2392, 1.442695
    %v2420 = vpow.pop %v2419
    %v2421 = vmul.f32 %v2393, 1.442695
    %v2422 = vpow.pop %v2421
    %v2423 = vmul.f32 %v2394, 1.442695
    %v2424 = vpow.pop %v2423
    %v2425 = vmul.f32 %v2395, 1.442695
    %v2426 = vpow.pop %v2425
    %v2427 = vmul.f32 %v2396, 1.442695
    %v2428 = vpow.pop %v2427
    %v2429 = vsub.f32 %v2398, 1.0
    %v2430 = vsub.f32 %v2400, 1.0
    %v2431 = vsub.f32 %v2402, 1.0
    %v2432 = vsub.f32 %v2404, 1.0
    %v2433 = vsub.f32 %v2406, 1.0
    %v2434 = vsub.f32 %v2408, 1.0
    %v2435 = vsub.f32 %v2410, 1.0
    %v2436 = vsub.f32 %v2412, 1.0
    %v2437 = vsub.f32 %v2414, 1.0
    %v2438 = vsub.f32 %v2416, 1.0
    %v2439 = vsub.f32 %v2418, 1.0
    %v2440 = vsub.f32 %v2420, 1.0
    %v2441 = vsub.f32 %v2422, 1.0
    %v2442 = vsub.f32 %v2424, 1.0
    %v2443 = vsub.f32 %v2426, 1.0
    %v2444 = vsub.f32 %v2428, 1.0
    %v2445 = vsel %vm2365, %v2349, %v2429
    %v2446 = vsel %vm2366, %v2350, %v2430
    %v2447 = vsel %vm2367, %v2351, %v2431
    %v2448 = vsel %vm2368, %v2352, %v2432
    %v2449 = vsel %vm2369, %v2353, %v2433
    %v2450 = vsel %vm2370, %v2354, %v2434
    %v2451 = vsel %vm2371, %v2355, %v2435
    %v2452 = vsel %vm2372, %v2356, %v2436
    %v2453 = vsel %vm2373, %v2357, %v2437
    %v2454 = vsel %vm2374, %v2358, %v2438
    %v2455 = vsel %vm2375, %v2359, %v2439
    %v2456 = vsel %vm2376, %v2360, %v2440
    %v2457 = vsel %vm2377, %v2361, %v2441
    %v2458 = vsel %vm2378, %v2362, %v2442
    %v2459 = vsel %vm2379, %v2363, %v2443
    %v2460 = vsel %vm2380, %v2364, %v2444
    %2461 = vst [vmem:[#allocation3] sm:$0xff] %v2445
    %2462 = vst.msk [vmem:[#allocation3 + $0x8] sm:$0xff] %vm1906, %v2446
    %2463 = vst [vmem:[#allocation3 + $0x10] sm:$0xff] %v2447
    %2464 = vst.msk [vmem:[#allocation3 + $0x18] sm:$0xff] %vm1906, %v2448
    %2465 = vst [vmem:[#allocation3 + $0x20] sm:$0xff] %v2449
    %2466 = vst.msk [vmem:[#allocation3 + $0x28] sm:$0xff] %vm1906, %v2450
    %2467 = vst [vmem:[#allocation3 + $0x30] sm:$0xff] %v2451
    %2468 = vst.msk [vmem:[#allocation3 + $0x38] sm:$0xff] %vm1906, %v2452
    %2469 = vst [vmem:[#allocation3 + $0x40] sm:$0xff] %v2453
    %2470 = vst.msk [vmem:[#allocation3 + $0x48] sm:$0xff] %vm1906, %v2454
    %2471 = vst [vmem:[#allocation3 + $0x50] sm:$0xff] %v2455
    %2472 = vst.msk [vmem:[#allocation3 + $0x58] sm:$0xff] %vm1906, %v2456
    %2473 = vst [vmem:[#allocation3 + $0x60] sm:$0xff] %v2457
    %2474 = vst.msk [vmem:[#allocation3 + $0x68] sm:$0xff] %vm1906, %v2458
    %2475 = vst [vmem:[#allocation3 + $0x70] sm:$0x3] %v2459
    %2476 = vst.msk [vmem:[#allocation3 + $0x78] sm:$0x3] %vm1920, %v2460
    %2477 = vst [vmem:[#allocation5] sm:$0xff] 0.0
    %2478 = vst [vmem:[#allocation5 + $0x8] sm:$0xff] 0.0
    %2479 = vst [vmem:[#allocation5 + $0x10] sm:$0xff] 0.0
    %2480 = vst [vmem:[#allocation5 + $0x18] sm:$0xff] 0.0
    %v2481 = vld [vmem:[#allocation3] sm:$0xff]
    %v2482 = vld [vmem:[#allocation3 + $0x10] sm:$0xff]
    %v2483 = vld [vmem:[#allocation3 + $0x20] sm:$0xff]
    %v2484 = vld [vmem:[#allocation3 + $0x30] sm:$0xff]
    %v2485 = vld [vmem:[#allocation3 + $0x40] sm:$0xff]
    %v2486 = vld [vmem:[#allocation3 + $0x50] sm:$0xff]
    %v2487 = vld [vmem:[#allocation3 + $0x60] sm:$0xff]
    %v2488 = vld [vmem:[#allocation3 + $0x70] sm:$0x3]
    %2497 = vrot.lane.b32.xlu0 %v2481, 120
    %v2498 = vpop.permute.xlu0 %2497
    %2499 = vrot.lane.b32.xlu0 %v2482, 120
    %v2500 = vpop.permute.xlu0 %2499
    %2501 = vrot.lane.b32.xlu0 %v2483, 120
    %v2502 = vpop.permute.xlu0 %2501
    %2503 = vrot.lane.b32.xlu0 %v2484, 120
    %v2504 = vpop.permute.xlu0 %2503
    %2505 = vrot.lane.b32.xlu0 %v2485, 120
    %v2506 = vpop.permute.xlu0 %2505
    %2507 = vrot.lane.b32.xlu0 %v2486, 120
    %v2508 = vpop.permute.xlu0 %2507
    %2509 = vrot.lane.b32.xlu0 %v2487, 120
    %v2510 = vpop.permute.xlu0 %2509
    %2511 = vrot.lane.b32.xlu0 %v2488, 120
    %v2512 = vpop.permute.xlu0 %2511
    %v2521 = vmax.f32 %v2481, %v2498
    %v2522 = vmax.f32 %v2482, %v2500
    %v2523 = vmax.f32 %v2483, %v2502
    %v2524 = vmax.f32 %v2484, %v2504
    %v2525 = vmax.f32 %v2485, %v2506
    %v2526 = vmax.f32 %v2486, %v2508
    %v2527 = vmax.f32 %v2487, %v2510
    %v2528 = vmax.f32 %v2488, %v2512
    %2529 = vst.msk [vmem:[#allocation4] sm:$0xff] %vm2168, %v2521
    %2530 = vst.msk [vmem:[#allocation4 + $0x8] sm:$0xff] %vm2168, %v2522
    %2531 = vst.msk [vmem:[#allocation4 + $0x10] sm:$0xff] %vm2168, %v2523
    %2532 = vst.msk [vmem:[#allocation4 + $0x18] sm:$0xff] %vm2168, %v2524
    %2533 = vst.msk [vmem:[#allocation4 + $0x20] sm:$0xff] %vm2168, %v2525
    %2534 = vst.msk [vmem:[#allocation4 + $0x28] sm:$0xff] %vm2168, %v2526
    %2535 = vst.msk [vmem:[#allocation4 + $0x30] sm:$0xff] %vm2168, %v2527
    %vm2536 = vcmask 58368
    %2537 = vst.msk [vmem:[#allocation4 + $0x38] sm:$0x3] %vm2536, %v2528
    %v2538 = vld [vmem:[#allocation3] sm:$0xff]
    %v2539 = vld [vmem:[#allocation3 + $0x10] sm:$0xff]
    %v2540 = vld [vmem:[#allocation3 + $0x20] sm:$0xff]
    %v2541 = vld [vmem:[#allocation3 + $0x30] sm:$0xff]
    %v2542 = vld [vmem:[#allocation3 + $0x40] sm:$0xff]
    %v2543 = vld [vmem:[#allocation3 + $0x50] sm:$0xff]
    %v2544 = vld [vmem:[#allocation3 + $0x60] sm:$0xff]
    %v2545 = vld [vmem:[#allocation3 + $0x70] sm:$0x3]
    %2554 = vrot.lane.b32.xlu0 %v2538, 120
    %v2555 = vpop.permute.xlu0 %2554
    %2556 = vrot.lane.b32.xlu0 %v2539, 120
    %v2557 = vpop.permute.xlu0 %2556
    %2558 = vrot.lane.b32.xlu0 %v2540, 120
    %v2559 = vpop.permute.xlu0 %2558
    %2560 = vrot.lane.b32.xlu0 %v2541, 120
    %v2561 = vpop.permute.xlu0 %2560
    %2562 = vrot.lane.b32.xlu0 %v2542, 120
    %v2563 = vpop.permute.xlu0 %2562
    %2564 = vrot.lane.b32.xlu0 %v2543, 120
    %v2565 = vpop.permute.xlu0 %2564
    %2566 = vrot.lane.b32.xlu0 %v2544, 120
    %v2567 = vpop.permute.xlu0 %2566
    %2568 = vrot.lane.b32.xlu0 %v2545, 120
    %v2569 = vpop.permute.xlu0 %2568
    %v2578 = vmax.f32 %v2538, %v2555
    %v2579 = vmax.f32 %v2539, %v2557
    %v2580 = vmax.f32 %v2540, %v2559
    %v2581 = vmax.f32 %v2541, %v2561
    %v2582 = vmax.f32 %v2542, %v2563
    %v2583 = vmax.f32 %v2543, %v2565
    %v2584 = vmax.f32 %v2544, %v2567
    %v2585 = vmax.f32 %v2545, %v2569
    %2594 = vrot.lane.b32.xlu0 %v2578, 120
    %v2595 = vpop.permute.xlu0 %2594
    %2596 = vrot.lane.b32.xlu0 %v2579, 120
    %v2597 = vpop.permute.xlu0 %2596
    %2598 = vrot.lane.b32.xlu0 %v2580, 120
    %v2599 = vpop.permute.xlu0 %2598
    %2600 = vrot.lane.b32.xlu0 %v2581, 120
    %v2601 = vpop.permute.xlu0 %2600
    %2602 = vrot.lane.b32.xlu0 %v2582, 120
    %v2603 = vpop.permute.xlu0 %2602
    %2604 = vrot.lane.b32.xlu0 %v2583, 120
    %v2605 = vpop.permute.xlu0 %2604
    %2606 = vrot.lane.b32.xlu0 %v2584, 120
    %v2607 = vpop.permute.xlu0 %2606
    %2608 = vrot.lane.b32.xlu0 %v2585, 120
    %v2609 = vpop.permute.xlu0 %2608
    %vm2618 = vcmask 130112
    %2619 = vst.msk [vmem:[#allocation4] sm:$0xff] %vm2618, %v2595
    %2620 = vst.msk [vmem:[#allocation4 + $0x8] sm:$0xff] %vm2618, %v2597
    %2621 = vst.msk [vmem:[#allocation4 + $0x10] sm:$0xff] %vm2618, %v2599
    %2622 = vst.msk [vmem:[#allocation4 + $0x18] sm:$0xff] %vm2618, %v2601
    %2623 = vst.msk [vmem:[#allocation4 + $0x20] sm:$0xff] %vm2618, %v2603
    %2624 = vst.msk [vmem:[#allocation4 + $0x28] sm:$0xff] %vm2618, %v2605
    %2625 = vst.msk [vmem:[#allocation4 + $0x30] sm:$0xff] %vm2618, %v2607
    %vm2626 = vcmask 123968
    %2627 = vst.msk [vmem:[#allocation4 + $0x38] sm:$0x3] %vm2626, %v2609
    %v2628 = vld [vmem:[#allocation3] sm:$0xff]
    %v2629 = vld [vmem:[#allocation3 + $0x10] sm:$0xff]
    %v2630 = vld [vmem:[#allocation3 + $0x20] sm:$0xff]
    %v2631 = vld [vmem:[#allocation3 + $0x30] sm:$0xff]
    %v2632 = vld [vmem:[#allocation3 + $0x40] sm:$0xff]
    %v2633 = vld [vmem:[#allocation3 + $0x50] sm:$0xff]
    %v2634 = vld [vmem:[#allocation3 + $0x60] sm:$0xff]
    %v2635 = vld [vmem:[#allocation3 + $0x70] sm:$0x3]
    %2644 = vrot.lane.b32.xlu0 %v2628, 120
    %v2645 = vpop.permute.xlu0 %2644
    %2646 = vrot.lane.b32.xlu0 %v2629, 120
    %v2647 = vpop.permute.xlu0 %2646
    %2648 = vrot.lane.b32.xlu0 %v2630, 120
    %v2649 = vpop.permute.xlu0 %2648
    %2650 = vrot.lane.b32.xlu0 %v2631, 120
    %v2651 = vpop.permute.xlu0 %2650
    %2652 = vrot.lane.b32.xlu0 %v2632, 120
    %v2653 = vpop.permute.xlu0 %2652
    %2654 = vrot.lane.b32.xlu0 %v2633, 120
    %v2655 = vpop.permute.xlu0 %2654
    %2656 = vrot.lane.b32.xlu0 %v2634, 120
    %v2657 = vpop.permute.xlu0 %2656
    %2658 = vrot.lane.b32.xlu0 %v2635, 120
    %v2659 = vpop.permute.xlu0 %2658
    %v2668 = vmax.f32 %v2628, %v2645
    %v2669 = vmax.f32 %v2629, %v2647
    %v2670 = vmax.f32 %v2630, %v2649
    %v2671 = vmax.f32 %v2631, %v2651
    %v2672 = vmax.f32 %v2632, %v2653
    %v2673 = vmax.f32 %v2633, %v2655
    %v2674 = vmax.f32 %v2634, %v2657
    %v2675 = vmax.f32 %v2635, %v2659
    %2684 = vrot.lane.b32.xlu0 %v2668, 112
    %v2685 = vpop.permute.xlu0 %2684
    %2686 = vrot.lane.b32.xlu0 %v2669, 112
    %v2687 = vpop.permute.xlu0 %2686
    %2688 = vrot.lane.b32.xlu0 %v2670, 112
    %v2689 = vpop.permute.xlu0 %2688
    %2690 = vrot.lane.b32.xlu0 %v2671, 112
    %v2691 = vpop.permute.xlu0 %2690
    %2692 = vrot.lane.b32.xlu0 %v2672, 112
    %v2693 = vpop.permute.xlu0 %2692
    %2694 = vrot.lane.b32.xlu0 %v2673, 112
    %v2695 = vpop.permute.xlu0 %2694
    %2696 = vrot.lane.b32.xlu0 %v2674, 112
    %v2697 = vpop.permute.xlu0 %2696
    %2698 = vrot.lane.b32.xlu0 %v2675, 112
    %v2699 = vpop.permute.xlu0 %2698
    %vm2708 = vcmask 195712
    %2709 = vst.msk [vmem:[#allocation4] sm:$0xff] %vm2708, %v2685
    %2710 = vst.msk [vmem:[#allocation4 + $0x8] sm:$0xff] %vm2708, %v2687
    %2711 = vst.msk [vmem:[#allocation4 + $0x10] sm:$0xff] %vm2708, %v2689
    %2712 = vst.msk [vmem:[#allocation4 + $0x18] sm:$0xff] %vm2708, %v2691
    %2713 = vst.msk [vmem:[#allocation4 + $0x20] sm:$0xff] %vm2708, %v2693
    %2714 = vst.msk [vmem:[#allocation4 + $0x28] sm:$0xff] %vm2708, %v2695
    %2715 = vst.msk [vmem:[#allocation4 + $0x30] sm:$0xff] %vm2708, %v2697
    %vm2716 = vcmask 189568
    %2717 = vst.msk [vmem:[#allocation4 + $0x38] sm:$0x3] %vm2716, %v2699
    %v2718 = vld [vmem:[#allocation3] sm:$0xff]
    %v2719 = vld [vmem:[#allocation3 + $0x10] sm:$0xff]
    %v2720 = vld [vmem:[#allocation3 + $0x20] sm:$0xff]
    %v2721 = vld [vmem:[#allocation3 + $0x30] sm:$0xff]
    %v2722 = vld [vmem:[#allocation3 + $0x40] sm:$0xff]
    %v2723 = vld [vmem:[#allocation3 + $0x50] sm:$0xff]
    %v2724 = vld [vmem:[#allocation3 + $0x60] sm:$0xff]
    %v2725 = vld [vmem:[#allocation3 + $0x70] sm:$0x3]
    %2734 = vrot.lane.b32.xlu0 %v2718, 120
    %v2735 = vpop.permute.xlu0 %2734
    %2736 = vrot.lane.b32.xlu0 %v2719, 120
    %v2737 = vpop.permute.xlu0 %2736
    %2738 = vrot.lane.b32.xlu0 %v2720, 120
    %v2739 = vpop.permute.xlu0 %2738
    %2740 = vrot.lane.b32.xlu0 %v2721, 120
    %v2741 = vpop.permute.xlu0 %2740
    %2742 = vrot.lane.b32.xlu0 %v2722, 120
    %v2743 = vpop.permute.xlu0 %2742
    %2744 = vrot.lane.b32.xlu0 %v2723, 120
    %v2745 = vpop.permute.xlu0 %2744
    %2746 = vrot.lane.b32.xlu0 %v2724, 120
    %v2747 = vpop.permute.xlu0 %2746
    %2748 = vrot.lane.b32.xlu0 %v2725, 120
    %v2749 = vpop.permute.xlu0 %2748
    %v2758 = vmax.f32 %v2718, %v2735
    %v2759 = vmax.f32 %v2719, %v2737
    %v2760 = vmax.f32 %v2720, %v2739
    %v2761 = vmax.f32 %v2721, %v2741
    %v2762 = vmax.f32 %v2722, %v2743
    %v2763 = vmax.f32 %v2723, %v2745
    %v2764 = vmax.f32 %v2724, %v2747
    %v2765 = vmax.f32 %v2725, %v2749
    %2774 = vrot.lane.b32.xlu0 %v2758, 104
    %v2775 = vpop.permute.xlu0 %2774
    %2776 = vrot.lane.b32.xlu0 %v2759, 104
    %v2777 = vpop.permute.xlu0 %2776
    %2778 = vrot.lane.b32.xlu0 %v2760, 104
    %v2779 = vpop.permute.xlu0 %2778
    %2780 = vrot.lane.b32.xlu0 %v2761, 104
    %v2781 = vpop.permute.xlu0 %2780
    %2782 = vrot.lane.b32.xlu0 %v2762, 104
    %v2783 = vpop.permute.xlu0 %2782
    %2784 = vrot.lane.b32.xlu0 %v2763, 104
    %v2785 = vpop.permute.xlu0 %2784
    %2786 = vrot.lane.b32.xlu0 %v2764, 104
    %v2787 = vpop.permute.xlu0 %2786
    %2788 = vrot.lane.b32.xlu0 %v2765, 104
    %v2789 = vpop.permute.xlu0 %2788
    %vm2798 = vcmask 261312
    %2799 = vst.msk [vmem:[#allocation4] sm:$0xff] %vm2798, %v2775
    %2800 = vst.msk [vmem:[#allocation4 + $0x8] sm:$0xff] %vm2798, %v2777
    %2801 = vst.msk [vmem:[#allocation4 + $0x10] sm:$0xff] %vm2798, %v2779
    %2802 = vst.msk [vmem:[#allocation4 + $0x18] sm:$0xff] %vm2798, %v2781
    %2803 = vst.msk [vmem:[#allocation4 + $0x20] sm:$0xff] %vm2798, %v2783
    %2804 = vst.msk [vmem:[#allocation4 + $0x28] sm:$0xff] %vm2798, %v2785
    %2805 = vst.msk [vmem:[#allocation4 + $0x30] sm:$0xff] %vm2798, %v2787
    %vm2806 = vcmask 255168
    %2807 = vst.msk [vmem:[#allocation4 + $0x38] sm:$0x3] %vm2806, %v2789
    %v2808 = vld [vmem:[#allocation3] sm:$0xff]
    %v2809 = vld [vmem:[#allocation3 + $0x10] sm:$0xff]
    %v2810 = vld [vmem:[#allocation3 + $0x20] sm:$0xff]
    %v2811 = vld [vmem:[#allocation3 + $0x30] sm:$0xff]
    %v2812 = vld [vmem:[#allocation3 + $0x40] sm:$0xff]
    %v2813 = vld [vmem:[#allocation3 + $0x50] sm:$0xff]
    %v2814 = vld [vmem:[#allocation3 + $0x60] sm:$0xff]
    %v2815 = vld [vmem:[#allocation3 + $0x70] sm:$0x3]
    %2824 = vrot.lane.b32.xlu0 %v2808, 120
    %v2825 = vpop.permute.xlu0 %2824
    %2826 = vrot.lane.b32.xlu0 %v2809, 120
    %v2827 = vpop.permute.xlu0 %2826
    %2828 = vrot.lane.b32.xlu0 %v2810, 120
    %v2829 = vpop.permute.xlu0 %2828
    %2830 = vrot.lane.b32.xlu0 %v2811, 120
    %v2831 = vpop.permute.xlu0 %2830
    %2832 = vrot.lane.b32.xlu0 %v2812, 120
    %v2833 = vpop.permute.xlu0 %2832
    %2834 = vrot.lane.b32.xlu0 %v2813, 120
    %v2835 = vpop.permute.xlu0 %2834
    %2836 = vrot.lane.b32.xlu0 %v2814, 120
    %v2837 = vpop.permute.xlu0 %2836
    %2838 = vrot.lane.b32.xlu0 %v2815, 120
    %v2839 = vpop.permute.xlu0 %2838
    %v2848 = vmax.f32 %v2808, %v2825
    %v2849 = vmax.f32 %v2809, %v2827
    %v2850 = vmax.f32 %v2810, %v2829
    %v2851 = vmax.f32 %v2811, %v2831
    %v2852 = vmax.f32 %v2812, %v2833
    %v2853 = vmax.f32 %v2813, %v2835
    %v2854 = vmax.f32 %v2814, %v2837
    %v2855 = vmax.f32 %v2815, %v2839
    %2864 = vrot.lane.b32.xlu0 %v2848, 96
    %v2865 = vpop.permute.xlu0 %2864
    %2866 = vrot.lane.b32.xlu0 %v2849, 96
    %v2867 = vpop.permute.xlu0 %2866
    %2868 = vrot.lane.b32.xlu0 %v2850, 96
    %v2869 = vpop.permute.xlu0 %2868
    %2870 = vrot.lane.b32.xlu0 %v2851, 96
    %v2871 = vpop.permute.xlu0 %2870
    %2872 = vrot.lane.b32.xlu0 %v2852, 96
    %v2873 = vpop.permute.xlu0 %2872
    %2874 = vrot.lane.b32.xlu0 %v2853, 96
    %v2875 = vpop.permute.xlu0 %2874
    %2876 = vrot.lane.b32.xlu0 %v2854, 96
    %v2877 = vpop.permute.xlu0 %2876
    %2878 = vrot.lane.b32.xlu0 %v2855, 96
    %v2879 = vpop.permute.xlu0 %2878
    %vm2888 = vcmask 326912
    %2889 = vst.msk [vmem:[#allocation4] sm:$0xff] %vm2888, %v2865
    %2890 = vst.msk [vmem:[#allocation4 + $0x8] sm:$0xff] %vm2888, %v2867
    %2891 = vst.msk [vmem:[#allocation4 + $0x10] sm:$0xff] %vm2888, %v2869
    %2892 = vst.msk [vmem:[#allocation4 + $0x18] sm:$0xff] %vm2888, %v2871
    %2893 = vst.msk [vmem:[#allocation4 + $0x20] sm:$0xff] %vm2888, %v2873
    %2894 = vst.msk [vmem:[#allocation4 + $0x28] sm:$0xff] %vm2888, %v2875
    %2895 = vst.msk [vmem:[#allocation4 + $0x30] sm:$0xff] %vm2888, %v2877
    %vm2896 = vcmask 320768
    %2897 = vst.msk [vmem:[#allocation4 + $0x38] sm:$0x3] %vm2896, %v2879
    %v2898 = vld [vmem:[#allocation3] sm:$0xff]
    %v2899 = vld [vmem:[#allocation3 + $0x10] sm:$0xff]
    %v2900 = vld [vmem:[#allocation3 + $0x20] sm:$0xff]
    %v2901 = vld [vmem:[#allocation3 + $0x30] sm:$0xff]
    %v2902 = vld [vmem:[#allocation3 + $0x40] sm:$0xff]
    %v2903 = vld [vmem:[#allocation3 + $0x50] sm:$0xff]
    %v2904 = vld [vmem:[#allocation3 + $0x60] sm:$0xff]
    %v2905 = vld [vmem:[#allocation3 + $0x70] sm:$0x3]
    %2914 = vrot.lane.b32.xlu0 %v2898, 120
    %v2915 = vpop.permute.xlu0 %2914
    %2916 = vrot.lane.b32.xlu0 %v2899, 120
    %v2917 = vpop.permute.xlu0 %2916
    %2918 = vrot.lane.b32.xlu0 %v2900, 120
    %v2919 = vpop.permute.xlu0 %2918
    %2920 = vrot.lane.b32.xlu0 %v2901, 120
    %v2921 = vpop.permute.xlu0 %2920
    %2922 = vrot.lane.b32.xlu0 %v2902, 120
    %v2923 = vpop.permute.xlu0 %2922
    %2924 = vrot.lane.b32.xlu0 %v2903, 120
    %v2925 = vpop.permute.xlu0 %2924
    %2926 = vrot.lane.b32.xlu0 %v2904, 120
    %v2927 = vpop.permute.xlu0 %2926
    %2928 = vrot.lane.b32.xlu0 %v2905, 120
    %v2929 = vpop.permute.xlu0 %2928
    %v2938 = vmax.f32 %v2898, %v2915
    %v2939 = vmax.f32 %v2899, %v2917
    %v2940 = vmax.f32 %v2900, %v2919
    %v2941 = vmax.f32 %v2901, %v2921
    %v2942 = vmax.f32 %v2902, %v2923
    %v2943 = vmax.f32 %v2903, %v2925
    %v2944 = vmax.f32 %v2904, %v2927
    %v2945 = vmax.f32 %v2905, %v2929
    %2954 = vrot.lane.b32.xlu0 %v2938, 88
    %v2955 = vpop.permute.xlu0 %2954
    %2956 = vrot.lane.b32.xlu0 %v2939, 88
    %v2957 = vpop.permute.xlu0 %2956
    %2958 = vrot.lane.b32.xlu0 %v2940, 88
    %v2959 = vpop.permute.xlu0 %2958
    %2960 = vrot.lane.b32.xlu0 %v2941, 88
    %v2961 = vpop.permute.xlu0 %2960
    %2962 = vrot.lane.b32.xlu0 %v2942, 88
    %v2963 = vpop.permute.xlu0 %2962
    %2964 = vrot.lane.b32.xlu0 %v2943, 88
    %v2965 = vpop.permute.xlu0 %2964
    %2966 = vrot.lane.b32.xlu0 %v2944, 88
    %v2967 = vpop.permute.xlu0 %2966
    %2968 = vrot.lane.b32.xlu0 %v2945, 88
    %v2969 = vpop.permute.xlu0 %2968
    %vm2978 = vcmask 392512
    %2979 = vst.msk [vmem:[#allocation4] sm:$0xff] %vm2978, %v2955
    %2980 = vst.msk [vmem:[#allocation4 + $0x8] sm:$0xff] %vm2978, %v2957
    %2981 = vst.msk [vmem:[#allocation4 + $0x10] sm:$0xff] %vm2978, %v2959
    %2982 = vst.msk [vmem:[#allocation4 + $0x18] sm:$0xff] %vm2978, %v2961
    %2983 = vst.msk [vmem:[#allocation4 + $0x20] sm:$0xff] %vm2978, %v2963
    %2984 = vst.msk [vmem:[#allocation4 + $0x28] sm:$0xff] %vm2978, %v2965
    %2985 = vst.msk [vmem:[#allocation4 + $0x30] sm:$0xff] %vm2978, %v2967
    %vm2986 = vcmask 386368
    %2987 = vst.msk [vmem:[#allocation4 + $0x38] sm:$0x3] %vm2986, %v2969
    %v2988 = vld [vmem:[#allocation3] sm:$0xff]
    %v2989 = vld [vmem:[#allocation3 + $0x10] sm:$0xff]
    %v2990 = vld [vmem:[#allocation3 + $0x20] sm:$0xff]
    %v2991 = vld [vmem:[#allocation3 + $0x30] sm:$0xff]
    %v2992 = vld [vmem:[#allocation3 + $0x40] sm:$0xff]
    %v2993 = vld [vmem:[#allocation3 + $0x50] sm:$0xff]
    %v2994 = vld [vmem:[#allocation3 + $0x60] sm:$0xff]
    %v2995 = vld [vmem:[#allocation3 + $0x70] sm:$0x3]
    %3004 = vrot.lane.b32.xlu0 %v2988, 120
    %v3005 = vpop.permute.xlu0 %3004
    %3006 = vrot.lane.b32.xlu0 %v2989, 120
    %v3007 = vpop.permute.xlu0 %3006
    %3008 = vrot.lane.b32.xlu0 %v2990, 120
    %v3009 = vpop.permute.xlu0 %3008
    %3010 = vrot.lane.b32.xlu0 %v2991, 120
    %v3011 = vpop.permute.xlu0 %3010
    %3012 = vrot.lane.b32.xlu0 %v2992, 120
    %v3013 = vpop.permute.xlu0 %3012
    %3014 = vrot.lane.b32.xlu0 %v2993, 120
    %v3015 = vpop.permute.xlu0 %3014
    %3016 = vrot.lane.b32.xlu0 %v2994, 120
    %v3017 = vpop.permute.xlu0 %3016
    %3018 = vrot.lane.b32.xlu0 %v2995, 120
    %v3019 = vpop.permute.xlu0 %3018
    %v3028 = vmax.f32 %v2988, %v3005
    %v3029 = vmax.f32 %v2989, %v3007
    %v3030 = vmax.f32 %v2990, %v3009
    %v3031 = vmax.f32 %v2991, %v3011
    %v3032 = vmax.f32 %v2992, %v3013
    %v3033 = vmax.f32 %v2993, %v3015
    %v3034 = vmax.f32 %v2994, %v3017
    %v3035 = vmax.f32 %v2995, %v3019
    %3044 = vrot.lane.b32.xlu0 %v3028, 80
    %v3045 = vpop.permute.xlu0 %3044
    %3046 = vrot.lane.b32.xlu0 %v3029, 80
    %v3047 = vpop.permute.xlu0 %3046
    %3048 = vrot.lane.b32.xlu0 %v3030, 80
    %v3049 = vpop.permute.xlu0 %3048
    %3050 = vrot.lane.b32.xlu0 %v3031, 80
    %v3051 = vpop.permute.xlu0 %3050
    %3052 = vrot.lane.b32.xlu0 %v3032, 80
    %v3053 = vpop.permute.xlu0 %3052
    %3054 = vrot.lane.b32.xlu0 %v3033, 80
    %v3055 = vpop.permute.xlu0 %3054
    %3056 = vrot.lane.b32.xlu0 %v3034, 80
    %v3057 = vpop.permute.xlu0 %3056
    %3058 = vrot.lane.b32.xlu0 %v3035, 80
    %v3059 = vpop.permute.xlu0 %3058
    %vm3068 = vcmask 458112
    %3069 = vst.msk [vmem:[#allocation4] sm:$0xff] %vm3068, %v3045
    %3070 = vst.msk [vmem:[#allocation4 + $0x8] sm:$0xff] %vm3068, %v3047
    %3071 = vst.msk [vmem:[#allocation4 + $0x10] sm:$0xff] %vm3068, %v3049
    %3072 = vst.msk [vmem:[#allocation4 + $0x18] sm:$0xff] %vm3068, %v3051
    %3073 = vst.msk [vmem:[#allocation4 + $0x20] sm:$0xff] %vm3068, %v3053
    %3074 = vst.msk [vmem:[#allocation4 + $0x28] sm:$0xff] %vm3068, %v3055
    %3075 = vst.msk [vmem:[#allocation4 + $0x30] sm:$0xff] %vm3068, %v3057
    %vm3076 = vcmask 451968
    %3077 = vst.msk [vmem:[#allocation4 + $0x38] sm:$0x3] %vm3076, %v3059
    %v3078 = vld [vmem:[#allocation3] sm:$0xff]
    %v3079 = vld [vmem:[#allocation3 + $0x10] sm:$0xff]
    %v3080 = vld [vmem:[#allocation3 + $0x20] sm:$0xff]
    %v3081 = vld [vmem:[#allocation3 + $0x30] sm:$0xff]
    %v3082 = vld [vmem:[#allocation3 + $0x40] sm:$0xff]
    %v3083 = vld [vmem:[#allocation3 + $0x50] sm:$0xff]
    %v3084 = vld [vmem:[#allocation3 + $0x60] sm:$0xff]
    %v3085 = vld [vmem:[#allocation3 + $0x70] sm:$0x3]
    %3094 = vrot.lane.b32.xlu0 %v3078, 120
    %v3095 = vpop.permute.xlu0 %3094
    %3096 = vrot.lane.b32.xlu0 %v3079, 120
    %v3097 = vpop.permute.xlu0 %3096
    %3098 = vrot.lane.b32.xlu0 %v3080, 120
    %v3099 = vpop.permute.xlu0 %3098
    %3100 = vrot.lane.b32.xlu0 %v3081, 120
    %v3101 = vpop.permute.xlu0 %3100
    %3102 = vrot.lane.b32.xlu0 %v3082, 120
    %v3103 = vpop.permute.xlu0 %3102
    %3104 = vrot.lane.b32.xlu0 %v3083, 120
    %v3105 = vpop.permute.xlu0 %3104
    %3106 = vrot.lane.b32.xlu0 %v3084, 120
    %v3107 = vpop.permute.xlu0 %3106
    %3108 = vrot.lane.b32.xlu0 %v3085, 120
    %v3109 = vpop.permute.xlu0 %3108
    %v3118 = vmax.f32 %v3078, %v3095
    %v3119 = vmax.f32 %v3079, %v3097
    %v3120 = vmax.f32 %v3080, %v3099
    %v3121 = vmax.f32 %v3081, %v3101
    %v3122 = vmax.f32 %v3082, %v3103
    %v3123 = vmax.f32 %v3083, %v3105
    %v3124 = vmax.f32 %v3084, %v3107
    %v3125 = vmax.f32 %v3085, %v3109
    %3134 = vrot.lane.b32.xlu0 %v3118, 72
    %v3135 = vpop.permute.xlu0 %3134
    %3136 = vrot.lane.b32.xlu0 %v3119, 72
    %v3137 = vpop.permute.xlu0 %3136
    %3138 = vrot.lane.b32.xlu0 %v3120, 72
    %v3139 = vpop.permute.xlu0 %3138
    %3140 = vrot.lane.b32.xlu0 %v3121, 72
    %v3141 = vpop.permute.xlu0 %3140
    %3142 = vrot.lane.b32.xlu0 %v3122, 72
    %v3143 = vpop.permute.xlu0 %3142
    %3144 = vrot.lane.b32.xlu0 %v3123, 72
    %v3145 = vpop.permute.xlu0 %3144
    %3146 = vrot.lane.b32.xlu0 %v3124, 72
    %v3147 = vpop.permute.xlu0 %3146
    %3148 = vrot.lane.b32.xlu0 %v3125, 72
    %v3149 = vpop.permute.xlu0 %3148
    %vm3158 = vcmask 523712
    %3159 = vst.msk [vmem:[#allocation4] sm:$0xff] %vm3158, %v3135
    %3160 = vst.msk [vmem:[#allocation4 + $0x8] sm:$0xff] %vm3158, %v3137
    %3161 = vst.msk [vmem:[#allocation4 + $0x10] sm:$0xff] %vm3158, %v3139
    %3162 = vst.msk [vmem:[#allocation4 + $0x18] sm:$0xff] %vm3158, %v3141
    %3163 = vst.msk [vmem:[#allocation4 + $0x20] sm:$0xff] %vm3158, %v3143
    %3164 = vst.msk [vmem:[#allocation4 + $0x28] sm:$0xff] %vm3158, %v3145
    %3165 = vst.msk [vmem:[#allocation4 + $0x30] sm:$0xff] %vm3158, %v3147
    %vm3166 = vcmask 517568
    %3167 = vst.msk [vmem:[#allocation4 + $0x38] sm:$0x3] %vm3166, %v3149
    %v3168 = vld [vmem:[#allocation3 + $0x8] sm:$0xff]
    %v3169 = vld [vmem:[#allocation3 + $0x18] sm:$0xff]
    %v3170 = vld [vmem:[#allocation3 + $0x28] sm:$0xff]
    %v3171 = vld [vmem:[#allocation3 + $0x38] sm:$0xff]
    %v3172 = vld [vmem:[#allocation3 + $0x48] sm:$0xff]
    %v3173 = vld [vmem:[#allocation3 + $0x58] sm:$0xff]
    %v3174 = vld [vmem:[#allocation3 + $0x68] sm:$0xff]
    %v3175 = vld [vmem:[#allocation3 + $0x78] sm:$0x3]
    %3184 = vrot.lane.b32.xlu0 %v3168, 120
    %v3185 = vpop.permute.xlu0 %3184
    %3186 = vrot.lane.b32.xlu0 %v3169, 120
    %v3187 = vpop.permute.xlu0 %3186
    %3188 = vrot.lane.b32.xlu0 %v3170, 120
    %v3189 = vpop.permute.xlu0 %3188
    %3190 = vrot.lane.b32.xlu0 %v3171, 120
    %v3191 = vpop.permute.xlu0 %3190
    %3192 = vrot.lane.b32.xlu0 %v3172, 120
    %v3193 = vpop.permute.xlu0 %3192
    %3194 = vrot.lane.b32.xlu0 %v3173, 120
    %v3195 = vpop.permute.xlu0 %3194
    %3196 = vrot.lane.b32.xlu0 %v3174, 120
    %v3197 = vpop.permute.xlu0 %3196
    %3198 = vrot.lane.b32.xlu0 %v3175, 120
    %v3199 = vpop.permute.xlu0 %3198
    %v3208 = vmax.f32 %v3168, %v3185
    %v3209 = vmax.f32 %v3169, %v3187
    %v3210 = vmax.f32 %v3170, %v3189
    %v3211 = vmax.f32 %v3171, %v3191
    %v3212 = vmax.f32 %v3172, %v3193
    %v3213 = vmax.f32 %v3173, %v3195
    %v3214 = vmax.f32 %v3174, %v3197
    %v3215 = vmax.f32 %v3175, %v3199
    %3224 = vrot.lane.b32.xlu0 %v3208, 64
    %v3225 = vpop.permute.xlu0 %3224
    %3226 = vrot.lane.b32.xlu0 %v3209, 64
    %v3227 = vpop.permute.xlu0 %3226
    %3228 = vrot.lane.b32.xlu0 %v3210, 64
    %v3229 = vpop.permute.xlu0 %3228
    %3230 = vrot.lane.b32.xlu0 %v3211, 64
    %v3231 = vpop.permute.xlu0 %3230
    %3232 = vrot.lane.b32.xlu0 %v3212, 64
    %v3233 = vpop.permute.xlu0 %3232
    %3234 = vrot.lane.b32.xlu0 %v3213, 64
    %v3235 = vpop.permute.xlu0 %3234
    %3236 = vrot.lane.b32.xlu0 %v3214, 64
    %v3237 = vpop.permute.xlu0 %3236
    %3238 = vrot.lane.b32.xlu0 %v3215, 64
    %v3239 = vpop.permute.xlu0 %3238
    %vm3248 = vcmask 589312
    %3249 = vst.msk [vmem:[#allocation4] sm:$0xff] %vm3248, %v3225
    %3250 = vst.msk [vmem:[#allocation4 + $0x8] sm:$0xff] %vm3248, %v3227
    %3251 = vst.msk [vmem:[#allocation4 + $0x10] sm:$0xff] %vm3248, %v3229
    %3252 = vst.msk [vmem:[#allocation4 + $0x18] sm:$0xff] %vm3248, %v3231
    %3253 = vst.msk [vmem:[#allocation4 + $0x20] sm:$0xff] %vm3248, %v3233
    %3254 = vst.msk [vmem:[#allocation4 + $0x28] sm:$0xff] %vm3248, %v3235
    %3255 = vst.msk [vmem:[#allocation4 + $0x30] sm:$0xff] %vm3248, %v3237
    %vm3256 = vcmask 583168
    %3257 = vst.msk [vmem:[#allocation4 + $0x38] sm:$0x3] %vm3256, %v3239
    %v3258 = vld [vmem:[#allocation3 + $0x8] sm:$0xff]
    %v3259 = vld [vmem:[#allocation3 + $0x18] sm:$0xff]
    %v3260 = vld [vmem:[#allocation3 + $0x28] sm:$0xff]
    %v3261 = vld [vmem:[#allocation3 + $0x38] sm:$0xff]
    %v3262 = vld [vmem:[#allocation3 + $0x48] sm:$0xff]
    %v3263 = vld [vmem:[#allocation3 + $0x58] sm:$0xff]
    %v3264 = vld [vmem:[#allocation3 + $0x68] sm:$0xff]
    %v3265 = vld [vmem:[#allocation3 + $0x78] sm:$0x3]
    %3274 = vrot.lane.b32.xlu0 %v3258, 120
    %v3275 = vpop.permute.xlu0 %3274
    %3276 = vrot.lane.b32.xlu0 %v3259, 120
    %v3277 = vpop.permute.xlu0 %3276
    %3278 = vrot.lane.b32.xlu0 %v3260, 120
    %v3279 = vpop.permute.xlu0 %3278
    %3280 = vrot.lane.b32.xlu0 %v3261, 120
    %v3281 = vpop.permute.xlu0 %3280
    %3282 = vrot.lane.b32.xlu0 %v3262, 120
    %v3283 = vpop.permute.xlu0 %3282
    %3284 = vrot.lane.b32.xlu0 %v3263, 120
    %v3285 = vpop.permute.xlu0 %3284
    %3286 = vrot.lane.b32.xlu0 %v3264, 120
    %v3287 = vpop.permute.xlu0 %3286
    %3288 = vrot.lane.b32.xlu0 %v3265, 120
    %v3289 = vpop.permute.xlu0 %3288
    %v3298 = vmax.f32 %v3258, %v3275
    %v3299 = vmax.f32 %v3259, %v3277
    %v3300 = vmax.f32 %v3260, %v3279
    %v3301 = vmax.f32 %v3261, %v3281
    %v3302 = vmax.f32 %v3262, %v3283
    %v3303 = vmax.f32 %v3263, %v3285
    %v3304 = vmax.f32 %v3264, %v3287
    %v3305 = vmax.f32 %v3265, %v3289
    %3314 = vrot.lane.b32.xlu0 %v3298, 56
    %v3315 = vpop.permute.xlu0 %3314
    %3316 = vrot.lane.b32.xlu0 %v3299, 56
    %v3317 = vpop.permute.xlu0 %3316
    %3318 = vrot.lane.b32.xlu0 %v3300, 56
    %v3319 = vpop.permute.xlu0 %3318
    %3320 = vrot.lane.b32.xlu0 %v3301, 56
    %v3321 = vpop.permute.xlu0 %3320
    %3322 = vrot.lane.b32.xlu0 %v3302, 56
    %v3323 = vpop.permute.xlu0 %3322
    %3324 = vrot.lane.b32.xlu0 %v3303, 56
    %v3325 = vpop.permute.xlu0 %3324
    %3326 = vrot.lane.b32.xlu0 %v3304, 56
    %v3327 = vpop.permute.xlu0 %3326
    %3328 = vrot.lane.b32.xlu0 %v3305, 56
    %v3329 = vpop.permute.xlu0 %3328
    %vm3338 = vcmask 654912
    %3339 = vst.msk [vmem:[#allocation4] sm:$0xff] %vm3338, %v3315
    %3340 = vst.msk [vmem:[#allocation4 + $0x8] sm:$0xff] %vm3338, %v3317
    %3341 = vst.msk [vmem:[#allocation4 + $0x10] sm:$0xff] %vm3338, %v3319
    %3342 = vst.msk [vmem:[#allocation4 + $0x18] sm:$0xff] %vm3338, %v3321
    %3343 = vst.msk [vmem:[#allocation4 + $0x20] sm:$0xff] %vm3338, %v3323
    %3344 = vst.msk [vmem:[#allocation4 + $0x28] sm:$0xff] %vm3338, %v3325
    %3345 = vst.msk [vmem:[#allocation4 + $0x30] sm:$0xff] %vm3338, %v3327
    %vm3346 = vcmask 648768
    %3347 = vst.msk [vmem:[#allocation4 + $0x38] sm:$0x3] %vm3346, %v3329
    %v3348 = vld [vmem:[#allocation3 + $0x8] sm:$0xff]
    %v3349 = vld [vmem:[#allocation3 + $0x18] sm:$0xff]
    %v3350 = vld [vmem:[#allocation3 + $0x28] sm:$0xff]
    %v3351 = vld [vmem:[#allocation3 + $0x38] sm:$0xff]
    %v3352 = vld [vmem:[#allocation3 + $0x48] sm:$0xff]
    %v3353 = vld [vmem:[#allocation3 + $0x58] sm:$0xff]
    %v3354 = vld [vmem:[#allocation3 + $0x68] sm:$0xff]
    %v3355 = vld [vmem:[#allocation3 + $0x78] sm:$0x3]
    %3364 = vrot.lane.b32.xlu0 %v3348, 120
    %v3365 = vpop.permute.xlu0 %3364
    %3366 = vrot.lane.b32.xlu0 %v3349, 120
    %v3367 = vpop.permute.xlu0 %3366
    %3368 = vrot.lane.b32.xlu0 %v3350, 120
    %v3369 = vpop.permute.xlu0 %3368
    %3370 = vrot.lane.b32.xlu0 %v3351, 120
    %v3371 = vpop.permute.xlu0 %3370
    %3372 = vrot.lane.b32.xlu0 %v3352, 120
    %v3373 = vpop.permute.xlu0 %3372
    %3374 = vrot.lane.b32.xlu0 %v3353, 120
    %v3375 = vpop.permute.xlu0 %3374
    %3376 = vrot.lane.b32.xlu0 %v3354, 120
    %v3377 = vpop.permute.xlu0 %3376
    %3378 = vrot.lane.b32.xlu0 %v3355, 120
    %v3379 = vpop.permute.xlu0 %3378
    %v3388 = vmax.f32 %v3348, %v3365
    %v3389 = vmax.f32 %v3349, %v3367
    %v3390 = vmax.f32 %v3350, %v3369
    %v3391 = vmax.f32 %v3351, %v3371
    %v3392 = vmax.f32 %v3352, %v3373
    %v3393 = vmax.f32 %v3353, %v3375
    %v3394 = vmax.f32 %v3354, %v3377
    %v3395 = vmax.f32 %v3355, %v3379
    %3404 = vrot.lane.b32.xlu0 %v3388, 48
    %v3405 = vpop.permute.xlu0 %3404
    %3406 = vrot.lane.b32.xlu0 %v3389, 48
    %v3407 = vpop.permute.xlu0 %3406
    %3408 = vrot.lane.b32.xlu0 %v3390, 48
    %v3409 = vpop.permute.xlu0 %3408
    %3410 = vrot.lane.b32.xlu0 %v3391, 48
    %v3411 = vpop.permute.xlu0 %3410
    %3412 = vrot.lane.b32.xlu0 %v3392, 48
    %v3413 = vpop.permute.xlu0 %3412
    %3414 = vrot.lane.b32.xlu0 %v3393, 48
    %v3415 = vpop.permute.xlu0 %3414
    %3416 = vrot.lane.b32.xlu0 %v3394, 48
    %v3417 = vpop.permute.xlu0 %3416
    %3418 = vrot.lane.b32.xlu0 %v3395, 48
    %v3419 = vpop.permute.xlu0 %3418
    %vm3428 = vcmask 720512
    %3429 = vst.msk [vmem:[#allocation4] sm:$0xff] %vm3428, %v3405
    %3430 = vst.msk [vmem:[#allocation4 + $0x8] sm:$0xff] %vm3428, %v3407
    %3431 = vst.msk [vmem:[#allocation4 + $0x10] sm:$0xff] %vm3428, %v3409
    %3432 = vst.msk [vmem:[#allocation4 + $0x18] sm:$0xff] %vm3428, %v3411
    %3433 = vst.msk [vmem:[#allocation4 + $0x20] sm:$0xff] %vm3428, %v3413
    %3434 = vst.msk [vmem:[#allocation4 + $0x28] sm:$0xff] %vm3428, %v3415
    %3435 = vst.msk [vmem:[#allocation4 + $0x30] sm:$0xff] %vm3428, %v3417
    %vm3436 = vcmask 714368
    %3437 = vst.msk [vmem:[#allocation4 + $0x38] sm:$0x3] %vm3436, %v3419
    %v3438 = vld [vmem:[#allocation3 + $0x8] sm:$0xff]
    %v3439 = vld [vmem:[#allocation3 + $0x18] sm:$0xff]
    %v3440 = vld [vmem:[#allocation3 + $0x28] sm:$0xff]
    %v3441 = vld [vmem:[#allocation3 + $0x38] sm:$0xff]
    %v3442 = vld [vmem:[#allocation3 + $0x48] sm:$0xff]
    %v3443 = vld [vmem:[#allocation3 + $0x58] sm:$0xff]
    %v3444 = vld [vmem:[#allocation3 + $0x68] sm:$0xff]
    %v3445 = vld [vmem:[#allocation3 + $0x78] sm:$0x3]
    %3454 = vrot.lane.b32.xlu0 %v3438, 120
    %v3455 = vpop.permute.xlu0 %3454
    %3456 = vrot.lane.b32.xlu0 %v3439, 120
    %v3457 = vpop.permute.xlu0 %3456
    %3458 = vrot.lane.b32.xlu0 %v3440, 120
    %v3459 = vpop.permute.xlu0 %3458
    %3460 = vrot.lane.b32.xlu0 %v3441, 120
    %v3461 = vpop.permute.xlu0 %3460
    %3462 = vrot.lane.b32.xlu0 %v3442, 120
    %v3463 = vpop.permute.xlu0 %3462
    %3464 = vrot.lane.b32.xlu0 %v3443, 120
    %v3465 = vpop.permute.xlu0 %3464
    %3466 = vrot.lane.b32.xlu0 %v3444, 120
    %v3467 = vpop.permute.xlu0 %3466
    %3468 = vrot.lane.b32.xlu0 %v3445, 120
    %v3469 = vpop.permute.xlu0 %3468
    %v3478 = vmax.f32 %v3438, %v3455
    %v3479 = vmax.f32 %v3439, %v3457
    %v3480 = vmax.f32 %v3440, %v3459
    %v3481 = vmax.f32 %v3441, %v3461
    %v3482 = vmax.f32 %v3442, %v3463
    %v3483 = vmax.f32 %v3443, %v3465
    %v3484 = vmax.f32 %v3444, %v3467
    %v3485 = vmax.f32 %v3445, %v3469
    %3494 = vrot.lane.b32.xlu0 %v3478, 40
    %v3495 = vpop.permute.xlu0 %3494
    %3496 = vrot.lane.b32.xlu0 %v3479, 40
    %v3497 = vpop.permute.xlu0 %3496
    %3498 = vrot.lane.b32.xlu0 %v3480, 40
    %v3499 = vpop.permute.xlu0 %3498
    %3500 = vrot.lane.b32.xlu0 %v3481, 40
    %v3501 = vpop.permute.xlu0 %3500
    %3502 = vrot.lane.b32.xlu0 %v3482, 40
    %v3503 = vpop.permute.xlu0 %3502
    %3504 = vrot.lane.b32.xlu0 %v3483, 40
    %v3505 = vpop.permute.xlu0 %3504
    %3506 = vrot.lane.b32.xlu0 %v3484, 40
    %v3507 = vpop.permute.xlu0 %3506
    %3508 = vrot.lane.b32.xlu0 %v3485, 40
    %v3509 = vpop.permute.xlu0 %3508
    %vm3518 = vcmask 786112
    %3519 = vst.msk [vmem:[#allocation4] sm:$0xff] %vm3518, %v3495
    %3520 = vst.msk [vmem:[#allocation4 + $0x8] sm:$0xff] %vm3518, %v3497
    %3521 = vst.msk [vmem:[#allocation4 + $0x10] sm:$0xff] %vm3518, %v3499
    %3522 = vst.msk [vmem:[#allocation4 + $0x18] sm:$0xff] %vm3518, %v3501
    %3523 = vst.msk [vmem:[#allocation4 + $0x20] sm:$0xff] %vm3518, %v3503
    %3524 = vst.msk [vmem:[#allocation4 + $0x28] sm:$0xff] %vm3518, %v3505
    %3525 = vst.msk [vmem:[#allocation4 + $0x30] sm:$0xff] %vm3518, %v3507
    %vm3526 = vcmask 779968
    %3527 = vst.msk [vmem:[#allocation4 + $0x38] sm:$0x3] %vm3526, %v3509
    %v3528 = vld [vmem:[#allocation3 + $0x8] sm:$0xff]
    %v3529 = vld [vmem:[#allocation3 + $0x18] sm:$0xff]
    %v3530 = vld [vmem:[#allocation3 + $0x28] sm:$0xff]
    %v3531 = vld [vmem:[#allocation3 + $0x38] sm:$0xff]
    %v3532 = vld [vmem:[#allocation3 + $0x48] sm:$0xff]
    %v3533 = vld [vmem:[#allocation3 + $0x58] sm:$0xff]
    %v3534 = vld [vmem:[#allocation3 + $0x68] sm:$0xff]
    %v3535 = vld [vmem:[#allocation3 + $0x78] sm:$0x3]
    %3544 = vrot.lane.b32.xlu0 %v3528, 120
    %v3545 = vpop.permute.xlu0 %3544
    %3546 = vrot.lane.b32.xlu0 %v3529, 120
    %v3547 = vpop.permute.xlu0 %3546
    %3548 = vrot.lane.b32.xlu0 %v3530, 120
    %v3549 = vpop.permute.xlu0 %3548
    %3550 = vrot.lane.b32.xlu0 %v3531, 120
    %v3551 = vpop.permute.xlu0 %3550
    %3552 = vrot.lane.b32.xlu0 %v3532, 120
    %v3553 = vpop.permute.xlu0 %3552
    %3554 = vrot.lane.b32.xlu0 %v3533, 120
    %v3555 = vpop.permute.xlu0 %3554
    %3556 = vrot.lane.b32.xlu0 %v3534, 120
    %v3557 = vpop.permute.xlu0 %3556
    %3558 = vrot.lane.b32.xlu0 %v3535, 120
    %v3559 = vpop.permute.xlu0 %3558
    %v3568 = vmax.f32 %v3528, %v3545
    %v3569 = vmax.f32 %v3529, %v3547
    %v3570 = vmax.f32 %v3530, %v3549
    %v3571 = vmax.f32 %v3531, %v3551
    %v3572 = vmax.f32 %v3532, %v3553
    %v3573 = vmax.f32 %v3533, %v3555
    %v3574 = vmax.f32 %v3534, %v3557
    %v3575 = vmax.f32 %v3535, %v3559
    %3584 = vrot.lane.b32.xlu0 %v3568, 32
    %v3585 = vpop.permute.xlu0 %3584
    %3586 = vrot.lane.b32.xlu0 %v3569, 32
    %v3587 = vpop.permute.xlu0 %3586
    %3588 = vrot.lane.b32.xlu0 %v3570, 32
    %v3589 = vpop.permute.xlu0 %3588
    %3590 = vrot.lane.b32.xlu0 %v3571, 32
    %v3591 = vpop.permute.xlu0 %3590
    %3592 = vrot.lane.b32.xlu0 %v3572, 32
    %v3593 = vpop.permute.xlu0 %3592
    %3594 = vrot.lane.b32.xlu0 %v3573, 32
    %v3595 = vpop.permute.xlu0 %3594
    %3596 = vrot.lane.b32.xlu0 %v3574, 32
    %v3597 = vpop.permute.xlu0 %3596
    %3598 = vrot.lane.b32.xlu0 %v3575, 32
    %v3599 = vpop.permute.xlu0 %3598
    %vm3608 = vcmask 851712
    %3609 = vst.msk [vmem:[#allocation4] sm:$0xff] %vm3608, %v3585
    %3610 = vst.msk [vmem:[#allocation4 + $0x8] sm:$0xff] %vm3608, %v3587
    %3611 = vst.msk [vmem:[#allocation4 + $0x10] sm:$0xff] %vm3608, %v3589
    %3612 = vst.msk [vmem:[#allocation4 + $0x18] sm:$0xff] %vm3608, %v3591
    %3613 = vst.msk [vmem:[#allocation4 + $0x20] sm:$0xff] %vm3608, %v3593
    %3614 = vst.msk [vmem:[#allocation4 + $0x28] sm:$0xff] %vm3608, %v3595
    %3615 = vst.msk [vmem:[#allocation4 + $0x30] sm:$0xff] %vm3608, %v3597
    %vm3616 = vcmask 845568
    %3617 = vst.msk [vmem:[#allocation4 + $0x38] sm:$0x3] %vm3616, %v3599
    %v3618 = vld [vmem:[#allocation3 + $0x8] sm:$0xff]
    %v3619 = vld [vmem:[#allocation3 + $0x18] sm:$0xff]
    %v3620 = vld [vmem:[#allocation3 + $0x28] sm:$0xff]
    %v3621 = vld [vmem:[#allocation3 + $0x38] sm:$0xff]
    %v3622 = vld [vmem:[#allocation3 + $0x48] sm:$0xff]
    %v3623 = vld [vmem:[#allocation3 + $0x58] sm:$0xff]
    %v3624 = vld [vmem:[#allocation3 + $0x68] sm:$0xff]
    %v3625 = vld [vmem:[#allocation3 + $0x78] sm:$0x3]
    %3634 = vrot.lane.b32.xlu0 %v3618, 120
    %v3635 = vpop.permute.xlu0 %3634
    %3636 = vrot.lane.b32.xlu0 %v3619, 120
    %v3637 = vpop.permute.xlu0 %3636
    %3638 = vrot.lane.b32.xlu0 %v3620, 120
    %v3639 = vpop.permute.xlu0 %3638
    %3640 = vrot.lane.b32.xlu0 %v3621, 120
    %v3641 = vpop.permute.xlu0 %3640
    %3642 = vrot.lane.b32.xlu0 %v3622, 120
    %v3643 = vpop.permute.xlu0 %3642
    %3644 = vrot.lane.b32.xlu0 %v3623, 120
    %v3645 = vpop.permute.xlu0 %3644
    %3646 = vrot.lane.b32.xlu0 %v3624, 120
    %v3647 = vpop.permute.xlu0 %3646
    %3648 = vrot.lane.b32.xlu0 %v3625, 120
    %v3649 = vpop.permute.xlu0 %3648
    %v3658 = vmax.f32 %v3618, %v3635
    %v3659 = vmax.f32 %v3619, %v3637
    %v3660 = vmax.f32 %v3620, %v3639
    %v3661 = vmax.f32 %v3621, %v3641
    %v3662 = vmax.f32 %v3622, %v3643
    %v3663 = vmax.f32 %v3623, %v3645
    %v3664 = vmax.f32 %v3624, %v3647
    %v3665 = vmax.f32 %v3625, %v3649
    %3674 = vrot.lane.b32.xlu0 %v3658, 24
    %v3675 = vpop.permute.xlu0 %3674
    %3676 = vrot.lane.b32.xlu0 %v3659, 24
    %v3677 = vpop.permute.xlu0 %3676
    %3678 = vrot.lane.b32.xlu0 %v3660, 24
    %v3679 = vpop.permute.xlu0 %3678
    %3680 = vrot.lane.b32.xlu0 %v3661, 24
    %v3681 = vpop.permute.xlu0 %3680
    %3682 = vrot.lane.b32.xlu0 %v3662, 24
    %v3683 = vpop.permute.xlu0 %3682
    %3684 = vrot.lane.b32.xlu0 %v3663, 24
    %v3685 = vpop.permute.xlu0 %3684
    %3686 = vrot.lane.b32.xlu0 %v3664, 24
    %v3687 = vpop.permute.xlu0 %3686
    %3688 = vrot.lane.b32.xlu0 %v3665, 24
    %v3689 = vpop.permute.xlu0 %3688
    %vm3698 = vcmask 917312
    %3699 = vst.msk [vmem:[#allocation4] sm:$0xff] %vm3698, %v3675
    %3700 = vst.msk [vmem:[#allocation4 + $0x8] sm:$0xff] %vm3698, %v3677
    %3701 = vst.msk [vmem:[#allocation4 + $0x10] sm:$0xff] %vm3698, %v3679
    %3702 = vst.msk [vmem:[#allocation4 + $0x18] sm:$0xff] %vm3698, %v3681
    %3703 = vst.msk [vmem:[#allocation4 + $0x20] sm:$0xff] %vm3698, %v3683
    %3704 = vst.msk [vmem:[#allocation4 + $0x28] sm:$0xff] %vm3698, %v3685
    %3705 = vst.msk [vmem:[#allocation4 + $0x30] sm:$0xff] %vm3698, %v3687
    %vm3706 = vcmask 911168
    %3707 = vst.msk [vmem:[#allocation4 + $0x38] sm:$0x3] %vm3706, %v3689
    %v3708 = vld [vmem:[#allocation4] sm:$0x1]
    %v3709 = vld [vmem:[#allocation4 + $0x1] sm:$0x1]
    %v3710 = vmax.f32 %v3708, %v3709
    %3712 = vrot.lane.b32.xlu0 %v3710, 8
    %v3713 = vpop.permute.xlu0 %3712
    %vm3715 = vcmask 974912
    %3716 = vst.msk [vmem:[#allocation5 + $0x1] sm:$0x1] %vm3715, %v3713
    %v3717 = vld [vmem:[#allocation4 + $0x2] sm:$0x1]
    %v3718 = vld [vmem:[#allocation4 + $0x3] sm:$0x1]
    %v3719 = vmax.f32 %v3717, %v3718
    %3721 = vrot.lane.b32.xlu0 %v3719, 8
    %v3722 = vpop.permute.xlu0 %3721
    %3724 = vst.msk [vmem:[#allocation5 + $0x2] sm:$0x1] %vm3715, %v3722
    %v3725 = vld [vmem:[#allocation4 + $0x4] sm:$0x1]
    %v3726 = vld [vmem:[#allocation4 + $0x5] sm:$0x1]
    %v3727 = vmax.f32 %v3725, %v3726
    %3729 = vrot.lane.b32.xlu0 %v3727, 8
    %v3730 = vpop.permute.xlu0 %3729
    %3732 = vst.msk [vmem:[#allocation5 + $0x3] sm:$0x1] %vm3715, %v3730
    %v3733 = vld [vmem:[#allocation4 + $0x6] sm:$0x1]
    %v3734 = vld [vmem:[#allocation4 + $0x7] sm:$0x1]
    %v3735 = vmax.f32 %v3733, %v3734
    %3737 = vrot.lane.b32.xlu0 %v3735, 8
    %v3738 = vpop.permute.xlu0 %3737
    %3740 = vst.msk [vmem:[#allocation5 + $0x4] sm:$0x1] %vm3715, %v3738
    %v3741 = vld [vmem:[#allocation4 + $0x8] sm:$0x1]
    %v3742 = vld [vmem:[#allocation4 + $0x9] sm:$0x1]
    %v3743 = vmax.f32 %v3741, %v3742
    %3745 = vrot.lane.b32.xlu0 %v3743, 8
    %v3746 = vpop.permute.xlu0 %3745
    %3748 = vst.msk [vmem:[#allocation5 + $0x5] sm:$0x1] %vm3715, %v3746
    %v3749 = vld [vmem:[#allocation4 + $0xa] sm:$0x1]
    %v3750 = vld [vmem:[#allocation4 + $0xb] sm:$0x1]
    %v3751 = vmax.f32 %v3749, %v3750
    %3753 = vrot.lane.b32.xlu0 %v3751, 8
    %v3754 = vpop.permute.xlu0 %3753
    %3756 = vst.msk [vmem:[#allocation5 + $0x6] sm:$0x1] %vm3715, %v3754
    %v3757 = vld [vmem:[#allocation4 + $0xc] sm:$0x1]
    %v3758 = vld [vmem:[#allocation4 + $0xd] sm:$0x1]
    %v3759 = vmax.f32 %v3757, %v3758
    %3761 = vrot.lane.b32.xlu0 %v3759, 8
    %v3762 = vpop.permute.xlu0 %3761
    %3764 = vst.msk [vmem:[#allocation5 + $0x7] sm:$0x1] %vm3715, %v3762
    %v3765 = vld [vmem:[#allocation4 + $0xe] sm:$0x1]
    %v3766 = vld [vmem:[#allocation4 + $0xf] sm:$0x1]
    %v3767 = vmax.f32 %v3765, %v3766
    %3769 = vrot.lane.b32.xlu0 %v3767, 8
    %v3770 = vpop.permute.xlu0 %3769
    %3772 = vst.msk [vmem:[#allocation5 + $0x8] sm:$0x1] %vm3715, %v3770
    %v3773 = vld [vmem:[#allocation4 + $0x10] sm:$0x1]
    %v3774 = vld [vmem:[#allocation4 + $0x11] sm:$0x1]
    %v3775 = vmax.f32 %v3773, %v3774
    %3777 = vrot.lane.b32.xlu0 %v3775, 8
    %v3778 = vpop.permute.xlu0 %3777
    %3780 = vst.msk [vmem:[#allocation5 + $0x9] sm:$0x1] %vm3715, %v3778
    %v3781 = vld [vmem:[#allocation4 + $0x12] sm:$0x1]
    %v3782 = vld [vmem:[#allocation4 + $0x13] sm:$0x1]
    %v3783 = vmax.f32 %v3781, %v3782
    %3785 = vrot.lane.b32.xlu0 %v3783, 8
    %v3786 = vpop.permute.xlu0 %3785
    %3788 = vst.msk [vmem:[#allocation5 + $0xa] sm:$0x1] %vm3715, %v3786
    %v3789 = vld [vmem:[#allocation4 + $0x14] sm:$0x1]
    %v3790 = vld [vmem:[#allocation4 + $0x15] sm:$0x1]
    %v3791 = vmax.f32 %v3789, %v3790
    %3793 = vrot.lane.b32.xlu0 %v3791, 8
    %v3794 = vpop.permute.xlu0 %3793
    %3796 = vst.msk [vmem:[#allocation5 + $0xb] sm:$0x1] %vm3715, %v3794
    %v3797 = vld [vmem:[#allocation4 + $0x16] sm:$0x1]
    %v3798 = vld [vmem:[#allocation4 + $0x17] sm:$0x1]
    %v3799 = vmax.f32 %v3797, %v3798
    %3801 = vrot.lane.b32.xlu0 %v3799, 8
    %v3802 = vpop.permute.xlu0 %3801
    %3804 = vst.msk [vmem:[#allocation5 + $0xc] sm:$0x1] %vm3715, %v3802
    %v3805 = vld [vmem:[#allocation4 + $0x18] sm:$0x1]
    %v3806 = vld [vmem:[#allocation4 + $0x19] sm:$0x1]
    %v3807 = vmax.f32 %v3805, %v3806
    %3809 = vrot.lane.b32.xlu0 %v3807, 8
    %v3810 = vpop.permute.xlu0 %3809
    %3812 = vst.msk [vmem:[#allocation5 + $0xd] sm:$0x1] %vm3715, %v3810
    %v3813 = vld [vmem:[#allocation4 + $0x1a] sm:$0x1]
    %v3814 = vld [vmem:[#allocation4 + $0x1b] sm:$0x1]
    %v3815 = vmax.f32 %v3813, %v3814
    %3817 = vrot.lane.b32.xlu0 %v3815, 8
    %v3818 = vpop.permute.xlu0 %3817
    %3820 = vst.msk [vmem:[#allocation5 + $0xe] sm:$0x1] %vm3715, %v3818
    %v3821 = vld [vmem:[#allocation4 + $0x1e] sm:$0x1]
    %v3822 = vld [vmem:[#allocation4 + $0x1f] sm:$0x1]
    %v3823 = vmax.f32 %v3821, %v3822
    %3825 = vrot.lane.b32.xlu0 %v3823, 8
    %v3826 = vpop.permute.xlu0 %3825
    %3828 = vst.msk [vmem:[#allocation5 + $0x11] sm:$0x1] %vm3715, %v3826
    %v3829 = vld [vmem:[#allocation4 + $0x20] sm:$0x1]
    %v3830 = vld [vmem:[#allocation4 + $0x21] sm:$0x1]
    %v3831 = vmax.f32 %v3829, %v3830
    %3833 = vrot.lane.b32.xlu0 %v3831, 8
    %v3834 = vpop.permute.xlu0 %3833
    %3836 = vst.msk [vmem:[#allocation5 + $0x12] sm:$0x1] %vm3715, %v3834
    %v3837 = vld [vmem:[#allocation4 + $0x22] sm:$0x1]
    %v3838 = vld [vmem:[#allocation4 + $0x23] sm:$0x1]
    %v3839 = vmax.f32 %v3837, %v3838
    %3841 = vrot.lane.b32.xlu0 %v3839, 8
    %v3842 = vpop.permute.xlu0 %3841
    %3844 = vst.msk [vmem:[#allocation5 + $0x13] sm:$0x1] %vm3715, %v3842
    %v3845 = vld [vmem:[#allocation4 + $0x24] sm:$0x1]
    %v3846 = vld [vmem:[#allocation4 + $0x25] sm:$0x1]
    %v3847 = vmax.f32 %v3845, %v3846
    %3849 = vrot.lane.b32.xlu0 %v3847, 8
    %v3850 = vpop.permute.xlu0 %3849
    %3852 = vst.msk [vmem:[#allocation5 + $0x14] sm:$0x1] %vm3715, %v3850
    %v3853 = vld [vmem:[#allocation4 + $0x26] sm:$0x1]
    %v3854 = vld [vmem:[#allocation4 + $0x27] sm:$0x1]
    %v3855 = vmax.f32 %v3853, %v3854
    %3857 = vrot.lane.b32.xlu0 %v3855, 8
    %v3858 = vpop.permute.xlu0 %3857
    %3860 = vst.msk [vmem:[#allocation5 + $0x15] sm:$0x1] %vm3715, %v3858
    %v3861 = vld [vmem:[#allocation4 + $0x28] sm:$0x1]
    %v3862 = vld [vmem:[#allocation4 + $0x29] sm:$0x1]
    %v3863 = vmax.f32 %v3861, %v3862
    %3865 = vrot.lane.b32.xlu0 %v3863, 8
    %v3866 = vpop.permute.xlu0 %3865
    %3868 = vst.msk [vmem:[#allocation5 + $0x16] sm:$0x1] %vm3715, %v3866
    %v3869 = vld [vmem:[#allocation4 + $0x2a] sm:$0x1]
    %v3870 = vld [vmem:[#allocation4 + $0x2b] sm:$0x1]
    %v3871 = vmax.f32 %v3869, %v3870
    %3873 = vrot.lane.b32.xlu0 %v3871, 8
    %v3874 = vpop.permute.xlu0 %3873
    %3876 = vst.msk [vmem:[#allocation5 + $0x17] sm:$0x1] %vm3715, %v3874
    %v3877 = vld [vmem:[#allocation4 + $0x2c] sm:$0x1]
    %v3878 = vld [vmem:[#allocation4 + $0x2d] sm:$0x1]
    %v3879 = vmax.f32 %v3877, %v3878
    %3881 = vrot.lane.b32.xlu0 %v3879, 8
    %v3882 = vpop.permute.xlu0 %3881
    %3884 = vst.msk [vmem:[#allocation5 + $0x18] sm:$0x1] %vm3715, %v3882
    %v3885 = vld [vmem:[#allocation4 + $0x2e] sm:$0x1]
    %v3886 = vld [vmem:[#allocation4 + $0x2f] sm:$0x1]
    %v3887 = vmax.f32 %v3885, %v3886
    %3889 = vrot.lane.b32.xlu0 %v3887, 8
    %v3890 = vpop.permute.xlu0 %3889
    %3892 = vst.msk [vmem:[#allocation5 + $0x19] sm:$0x1] %vm3715, %v3890
    %v3893 = vld [vmem:[#allocation4 + $0x30] sm:$0x1]
    %v3894 = vld [vmem:[#allocation4 + $0x31] sm:$0x1]
    %v3895 = vmax.f32 %v3893, %v3894
    %3897 = vrot.lane.b32.xlu0 %v3895, 8
    %v3898 = vpop.permute.xlu0 %3897
    %3900 = vst.msk [vmem:[#allocation5 + $0x1a] sm:$0x1] %vm3715, %v3898
    %v3901 = vld [vmem:[#allocation4 + $0x32] sm:$0x1]
    %v3902 = vld [vmem:[#allocation4 + $0x33] sm:$0x1]
    %v3903 = vmax.f32 %v3901, %v3902
    %3905 = vrot.lane.b32.xlu0 %v3903, 8
    %v3906 = vpop.permute.xlu0 %3905
    %3908 = vst.msk [vmem:[#allocation5 + $0x1b] sm:$0x1] %vm3715, %v3906
    %v3909 = vld [vmem:[#allocation4 + $0x34] sm:$0x1]
    %v3910 = vld [vmem:[#allocation4 + $0x35] sm:$0x1]
    %v3911 = vmax.f32 %v3909, %v3910
    %3913 = vrot.lane.b32.xlu0 %v3911, 8
    %v3914 = vpop.permute.xlu0 %3913
    %3916 = vst.msk [vmem:[#allocation5 + $0x1c] sm:$0x1] %vm3715, %v3914
    %v3917 = vld [vmem:[#allocation4 + $0x36] sm:$0x1]
    %v3918 = vld [vmem:[#allocation4 + $0x37] sm:$0x1]
    %v3919 = vmax.f32 %v3917, %v3918
    %3921 = vrot.lane.b32.xlu0 %v3919, 8
    %v3922 = vpop.permute.xlu0 %3921
    %3924 = vst.msk [vmem:[#allocation5 + $0x1d] sm:$0x1] %vm3715, %v3922
    %v3925 = vld [vmem:[#allocation4 + $0x38] sm:$0x1]
    %v3926 = vld [vmem:[#allocation4 + $0x39] sm:$0x1]
    %v3927 = vmax.f32 %v3925, %v3926
    %3929 = vrot.lane.b32.xlu0 %v3927, 8
    %v3930 = vpop.permute.xlu0 %3929
    %3932 = vst.msk [vmem:[#allocation5 + $0x1e] sm:$0x1] %vm3715, %v3930
    %v3933 = vld [vmem:[#allocation5] sm:$0xff]
    %v3934 = vld [vmem:[#allocation5 + $0x8] sm:$0xff]
    %v3935 = vld [vmem:[#allocation5 + $0x10] sm:$0xff]
    %v3936 = vld [vmem:[#allocation5 + $0x18] sm:$0x3f]
    %v3937 = vld [vmem:[#allocation11] sm:$0xff]
    %v3938 = vld [vmem:[#allocation11 + $0x8] sm:$0xff]
    %v3939 = vld [vmem:[#allocation11 + $0x10] sm:$0xff]
    %v3940 = vld [vmem:[#allocation11 + $0x18] sm:$0xff]
    %v3941 = vld [vmem:[#allocation11 + $0x20] sm:$0xff]
    %v3942 = vld [vmem:[#allocation11 + $0x28] sm:$0xff]
    %v3943 = vld [vmem:[#allocation11 + $0x30] sm:$0xff]
    %v3944 = vld [vmem:[#allocation11 + $0x38] sm:$0xff]
    %v3945 = vld [vmem:[#allocation11 + $0x40] sm:$0xff]
    %v3946 = vld [vmem:[#allocation11 + $0x48] sm:$0xff]
    %v3947 = vld [vmem:[#allocation11 + $0x50] sm:$0xff]
    %v3948 = vld [vmem:[#allocation11 + $0x58] sm:$0xff]
    %v3949 = vld [vmem:[#allocation11 + $0x60] sm:$0xff]
    %v3950 = vld [vmem:[#allocation11 + $0x68] sm:$0xff]
    %v3951 = vld [vmem:[#allocation11 + $0x70] sm:$0xff]
    %v3952 = vld [vmem:[#allocation11 + $0x78] sm:$0xff]
    %v3953 = vld [vmem:[#allocation11 + $0x80] sm:$0xff]
    %v3954 = vld [vmem:[#allocation11 + $0x88] sm:$0xff]
    %v3955 = vld [vmem:[#allocation11 + $0x90] sm:$0xff]
    %v3956 = vld [vmem:[#allocation11 + $0x98] sm:$0xff]
    %v3957 = vld [vmem:[#allocation11 + $0xa0] sm:$0xff]
    %v3958 = vld [vmem:[#allocation11 + $0xa8] sm:$0xff]
    %v3959 = vld [vmem:[#allocation11 + $0xb0] sm:$0xff]
    %v3960 = vld [vmem:[#allocation11 + $0xb8] sm:$0xff]
    %v3961 = vld [vmem:[#allocation11 + $0xc0] sm:$0xff]
    %v3962 = vld [vmem:[#allocation11 + $0xc8] sm:$0xff]
    %v3963 = vld [vmem:[#allocation11 + $0xd0] sm:$0xff]
    %v3964 = vld [vmem:[#allocation11 + $0xd8] sm:$0xff]
    %s3965 = scalar_lea.vmem [#allocation11], 224
    %v3966 = vld [vmem:[%s3965] sm:$0xff]
    %v3967 = vld [vmem:[%s3965 + $0x8] sm:$0xff]
    %v3968 = vld [vmem:[%s3965 + $0x10] sm:$0xff]
    %v3969 = vld [vmem:[%s3965 + $0x18] sm:$0xff]
    %v3970 = vld [vmem:[%s3965 + $0x20] sm:$0xff]
    %v3971 = vld [vmem:[%s3965 + $0x28] sm:$0xff]
    %v3972 = vld [vmem:[%s3965 + $0x30] sm:$0xff]
    %v3973 = vld [vmem:[%s3965 + $0x38] sm:$0xff]
    %v3974 = vld [vmem:[%s3965 + $0x40] sm:$0xff]
    %v3975 = vld [vmem:[%s3965 + $0x48] sm:$0xff]
    %v3976 = vld [vmem:[%s3965 + $0x50] sm:$0xff]
    %v3977 = vld [vmem:[%s3965 + $0x58] sm:$0xff]
    %v3978 = vld [vmem:[%s3965 + $0x60] sm:$0xff]
    %v3979 = vld [vmem:[%s3965 + $0x68] sm:$0xff]
    %v3980 = vld [vmem:[%s3965 + $0x70] sm:$0xff]
    %v3981 = vld [vmem:[%s3965 + $0x78] sm:$0xff]
    %v3982 = vld [vmem:[%s3965 + $0x80] sm:$0xff]
    %v3983 = vld [vmem:[%s3965 + $0x88] sm:$0xff]
    %v3984 = vld [vmem:[%s3965 + $0x90] sm:$0xff]
    %v3985 = vld [vmem:[%s3965 + $0x98] sm:$0xff]
    %v3986 = vld [vmem:[%s3965 + $0xa0] sm:$0xff]
    %v3987 = vld [vmem:[%s3965 + $0xa8] sm:$0xff]
    %v3988 = vld [vmem:[%s3965 + $0xb0] sm:$0xff]
    %v3989 = vld [vmem:[%s3965 + $0xb8] sm:$0xff]
    %v3990 = vld [vmem:[%s3965 + $0xc0] sm:$0xff]
    %v3991 = vld [vmem:[%s3965 + $0xc8] sm:$0xff]
    %v3992 = vld [vmem:[%s3965 + $0xd0] sm:$0xff]
    %v3993 = vld [vmem:[%s3965 + $0xd8] sm:$0xff]
    %3998 = vrot.lane.b32.xlu0 %v3933, 120
    %v3999 = vpop.permute.xlu0 %3998
    %4000 = vrot.lane.b32.xlu0 %v3934, 120
    %v4001 = vpop.permute.xlu0 %4000
    %4002 = vrot.lane.b32.xlu0 %v3935, 120
    %v4003 = vpop.permute.xlu0 %4002
    %4004 = vrot.lane.b32.xlu0 %v3936, 120
    %v4005 = vpop.permute.xlu0 %4004
    %vm4006 = vcmask 916480
    %v4007 = vsel %vm4006, %v3999, 0
    %v4009 = vsel %vm4006, %v4001, 0
    %v4011 = vsel %vm4006, %v4003, 0
    %v4013 = vsel %vm4006, %v4005, 0
    %4015 = vmatprep.subr.mxu0 0.0
    %4016 = vmatpush1.msra.mxu0 0.0
    %4017 = vmatprep.subr.mxu0 0.0
    %4018 = vmatpush1.msra.mxu0 0.0
    %4019 = vmatprep.subr.mxu0 %v3993
    %4020 = vmatpush1.msra.mxu0 %v3992
    %4021 = vmatprep.subr.mxu0 %v3991
    %4022 = vmatpush1.msra.mxu0 %v3990
    %4023 = vmatprep.subr.mxu0 %v3989
    %4024 = vmatpush1.msra.mxu0 %v3988
    %4025 = vmatprep.subr.mxu0 %v3987
    %4026 = vmatpush1.msra.mxu0 %v3986
    %4027 = vmatprep.subr.mxu0 %v3985
    %4028 = vmatpush1.msra.mxu0 %v3984
    %4029 = vmatprep.subr.mxu0 %v3983
    %4030 = vmatpush1.msra.mxu0 %v3982
    %4031 = vmatprep.subr.mxu0 %v3981
    %4032 = vmatpush1.msra.mxu0 %v3980
    %4033 = vmatprep.subr.mxu0 %v3979
    %4034 = vmatpush1.msra.mxu0 %v3978
    %4035 = vmatprep.subr.mxu0 %v3977
    %4036 = vmatpush1.msra.mxu0 %v3976
    %4037 = vmatprep.subr.mxu0 %v3975
    %4038 = vmatpush1.msra.mxu0 %v3974
    %4039 = vmatprep.subr.mxu0 %v3973
    %4040 = vmatpush1.msra.mxu0 %v3972
    %4041 = vmatprep.subr.mxu0 %v3971
    %4042 = vmatpush1.msra.mxu0 %v3970
    %4043 = vmatprep.subr.mxu0 %v3969
    %4044 = vmatpush1.msra.mxu0 %v3968
    %4045 = vmatprep.subr.mxu0 %v3967
    %4046 = vmatpush1.msra.mxu0 %v3966
    %4047 = vmatprep.subr.mxu0 0.0
    %4048 = vmatpush2.msra.mxu0 0.0
    %4049 = vmatprep.subr.mxu0 0.0
    %4050 = vmatpush2.msra.mxu0 0.0
    %4051 = vmatprep.subr.mxu0 0.0
    %4052 = vmatpush2.msra.mxu0 0.0
    %4053 = vmatprep.subr.mxu0 0.0
    %4054 = vmatpush2.msra.mxu0 0.0
    %4055 = vmatprep.subr.mxu0 0.0
    %4056 = vmatpush2.msra.mxu0 0.0
    %4057 = vmatprep.subr.mxu0 0.0
    %4058 = vmatpush2.msra.mxu0 0.0
    %4059 = vmatprep.subr.mxu0 0.0
    %4060 = vmatpush2.msra.mxu0 0.0
    %4061 = vmatprep.subr.mxu0 0.0
    %4062 = vmatpush2.msra.mxu0 0.0
    %4063 = vmatprep.subr.mxu0 0.0
    %4064 = vmatpush2.msra.mxu0 0.0
    %4065 = vmatprep.subr.mxu0 0.0
    %4066 = vmatpush2.msra.mxu0 0.0
    %4067 = vmatprep.subr.mxu0 0.0
    %4068 = vmatpush2.msra.mxu0 0.0
    %4069 = vmatprep.subr.mxu0 0.0
    %4070 = vmatpush2.msra.mxu0 0.0
    %4071 = vmatprep.subr.mxu0 0.0
    %4072 = vmatpush2.msra.mxu0 0.0
    %4073 = vmatprep.subr.mxu0 0.0
    %4074 = vmatpush2.msra.mxu0 0.0
    %4075 = vmatprep.subr.mxu0 0.0
    %4076 = vmatpush2.msra.mxu0 0.0
    %4077 = vmatprep.subr.mxu0 0.0
    %4078 = vmatpush2.msra.mxu0 0.0
    %4079 = vmatprep.mubr.f32.mxu0 0.0
    %4080 = vmatmul.mubr.f32.gmra.mxu0 %v4007
    %v4081 = vpop.f32.mrf.mxu0
    %v4082 = vadd.f32 0.0, %v4081
    %v4083 = vpop.f32.mrf.mxu0
    %v4084 = vadd.f32 0.0, %v4083
    %4085 = vmatprep.mubr.f32.mxu0 0.0
    %4086 = vmatmul.mubr.f32.gmra.mxu0 %v4009
    %v4087 = vpop.f32.mrf.mxu0
    %v4088 = vadd.f32 0.0, %v4087
    %v4089 = vpop.f32.mrf.mxu0
    %v4090 = vadd.f32 0.0, %v4089
    %4091 = vmatprep.mubr.f32.mxu0 0.0
    %4092 = vmatmul.mubr.f32.gmra.mxu0 %v4011
    %v4093 = vpop.f32.mrf.mxu0
    %v4094 = vadd.f32 0.0, %v4093
    %v4095 = vpop.f32.mrf.mxu0
    %v4096 = vadd.f32 0.0, %v4095
    %4097 = vmatprep.mubr.f32.mxu0 0.0
    %4098 = vmatmul.mubr.f32.gmra.mxu0 %v4013
    %v4099 = vpop.f32.mrf.mxu0
    %v4100 = vadd.f32 0.0, %v4099
    %v4101 = vpop.f32.mrf.mxu0
    %v4102 = vadd.f32 0.0, %v4101
    %4103 = vdwg.mxu0
    %v4104 = vsel %vm4006, %v3933, 0
    %v4106 = vsel %vm4006, %v3934, 0
    %v4108 = vsel %vm4006, %v3935, 0
    %v4110 = vsel %vm4006, %v3936, 0
    %4112 = vmatprep.subr.mxu0 0.0
    %4113 = vmatpush1.msra.mxu0 0.0
    %4114 = vmatprep.subr.mxu0 0.0
    %4115 = vmatpush1.msra.mxu0 0.0
    %4116 = vmatprep.subr.mxu0 %v3964
    %4117 = vmatpush1.msra.mxu0 %v3963
    %4118 = vmatprep.subr.mxu0 %v3962
    %4119 = vmatpush1.msra.mxu0 %v3961
    %4120 = vmatprep.subr.mxu0 %v3960
    %4121 = vmatpush1.msra.mxu0 %v3959
    %4122 = vmatprep.subr.mxu0 %v3958
    %4123 = vmatpush1.msra.mxu0 %v3957
    %4124 = vmatprep.subr.mxu0 %v3956
    %4125 = vmatpush1.msra.mxu0 %v3955
    %4126 = vmatprep.subr.mxu0 %v3954
    %4127 = vmatpush1.msra.mxu0 %v3953
    %4128 = vmatprep.subr.mxu0 %v3952
    %4129 = vmatpush1.msra.mxu0 %v3951
    %4130 = vmatprep.subr.mxu0 %v3950
    %4131 = vmatpush1.msra.mxu0 %v3949
    %4132 = vmatprep.subr.mxu0 %v3948
    %4133 = vmatpush1.msra.mxu0 %v3947
    %4134 = vmatprep.subr.mxu0 %v3946
    %4135 = vmatpush1.msra.mxu0 %v3945
    %4136 = vmatprep.subr.mxu0 %v3944
    %4137 = vmatpush1.msra.mxu0 %v3943
    %4138 = vmatprep.subr.mxu0 %v3942
    %4139 = vmatpush1.msra.mxu0 %v3941
    %4140 = vmatprep.subr.mxu0 %v3940
    %4141 = vmatpush1.msra.mxu0 %v3939
    %4142 = vmatprep.subr.mxu0 %v3938
    %4143 = vmatpush1.msra.mxu0 %v3937
    %4144 = vmatprep.subr.mxu0 0.0
    %4145 = vmatpush2.msra.mxu0 0.0
    %4146 = vmatprep.subr.mxu0 0.0
    %4147 = vmatpush2.msra.mxu0 0.0
    %4148 = vmatprep.subr.mxu0 0.0
    %4149 = vmatpush2.msra.mxu0 0.0
    %4150 = vmatprep.subr.mxu0 0.0
    %4151 = vmatpush2.msra.mxu0 0.0
    %4152 = vmatprep.subr.mxu0 0.0
    %4153 = vmatpush2.msra.mxu0 0.0
    %4154 = vmatprep.subr.mxu0 0.0
    %4155 = vmatpush2.msra.mxu0 0.0
    %4156 = vmatprep.subr.mxu0 0.0
    %4157 = vmatpush2.msra.mxu0 0.0
    %4158 = vmatprep.subr.mxu0 0.0
    %4159 = vmatpush2.msra.mxu0 0.0
    %4160 = vmatprep.subr.mxu0 0.0
    %4161 = vmatpush2.msra.mxu0 0.0
    %4162 = vmatprep.subr.mxu0 0.0
    %4163 = vmatpush2.msra.mxu0 0.0
    %4164 = vmatprep.subr.mxu0 0.0
    %4165 = vmatpush2.msra.mxu0 0.0
    %4166 = vmatprep.subr.mxu0 0.0
    %4167 = vmatpush2.msra.mxu0 0.0
    %4168 = vmatprep.subr.mxu0 0.0
    %4169 = vmatpush2.msra.mxu0 0.0
    %4170 = vmatprep.subr.mxu0 0.0
    %4171 = vmatpush2.msra.mxu0 0.0
    %4172 = vmatprep.subr.mxu0 0.0
    %4173 = vmatpush2.msra.mxu0 0.0
    %4174 = vmatprep.subr.mxu0 0.0
    %4175 = vmatpush2.msra.mxu0 0.0
    %4176 = vmatprep.mubr.f32.mxu0 0.0
    %4177 = vmatmul.mubr.f32.gmra.mxu0 %v4104
    %v4178 = vpop.f32.mrf.mxu0
    %v4179 = vadd.f32 %v4082, %v4178
    %v4180 = vpop.f32.mrf.mxu0
    %v4181 = vadd.f32 %v4084, %v4180
    %4182 = vmatprep.mubr.f32.mxu0 0.0
    %4183 = vmatmul.mubr.f32.gmra.mxu0 %v4106
    %v4184 = vpop.f32.mrf.mxu0
    %v4185 = vadd.f32 %v4088, %v4184
    %v4186 = vpop.f32.mrf.mxu0
    %v4187 = vadd.f32 %v4090, %v4186
    %4188 = vmatprep.mubr.f32.mxu0 0.0
    %4189 = vmatmul.mubr.f32.gmra.mxu0 %v4108
    %v4190 = vpop.f32.mrf.mxu0
    %v4191 = vadd.f32 %v4094, %v4190
    %v4192 = vpop.f32.mrf.mxu0
    %v4193 = vadd.f32 %v4096, %v4192
    %4194 = vmatprep.mubr.f32.mxu0 0.0
    %4195 = vmatmul.mubr.f32.gmra.mxu0 %v4110
    %v4196 = vpop.f32.mrf.mxu0
    %v4197 = vadd.f32 %v4100, %v4196
    %v4198 = vpop.f32.mrf.mxu0
    %v4199 = vadd.f32 %v4102, %v4198
    %4200 = vdwg.mxu0
    %s4201 = scalar_lea.vmem [#allocation11], 448
    %v4202 = vld [vmem:[%s4201] sm:$0xff]
    %v4203 = vld [vmem:[%s4201 + $0x8] sm:$0xff]
    %v4204 = vld [vmem:[%s4201 + $0x10] sm:$0xff]
    %v4205 = vld [vmem:[%s4201 + $0x18] sm:$0xff]
    %v4206 = vld [vmem:[%s4201 + $0x20] sm:$0xff]
    %v4207 = vld [vmem:[%s4201 + $0x28] sm:$0xff]
    %v4208 = vld [vmem:[%s4201 + $0x30] sm:$0xff]
    %v4209 = vld [vmem:[%s4201 + $0x38] sm:$0xff]
    %v4210 = vld [vmem:[%s4201 + $0x40] sm:$0xff]
    %v4211 = vld [vmem:[%s4201 + $0x48] sm:$0xff]
    %v4212 = vld [vmem:[%s4201 + $0x50] sm:$0xff]
    %v4213 = vld [vmem:[%s4201 + $0x58] sm:$0xff]
    %v4214 = vld [vmem:[%s4201 + $0x60] sm:$0xff]
    %v4215 = vld [vmem:[%s4201 + $0x68] sm:$0xff]
    %v4216 = vld [vmem:[%s4201 + $0x70] sm:$0xff]
    %v4217 = vld [vmem:[%s4201 + $0x78] sm:$0xff]
    %v4218 = vld [vmem:[%s4201 + $0x80] sm:$0xff]
    %v4219 = vld [vmem:[%s4201 + $0x88] sm:$0xff]
    %v4220 = vld [vmem:[%s4201 + $0x90] sm:$0xff]
    %v4221 = vld [vmem:[%s4201 + $0x98] sm:$0xff]
    %v4222 = vld [vmem:[%s4201 + $0xa0] sm:$0xff]
    %v4223 = vld [vmem:[%s4201 + $0xa8] sm:$0xff]
    %v4224 = vld [vmem:[%s4201 + $0xb0] sm:$0xff]
    %v4225 = vld [vmem:[%s4201 + $0xb8] sm:$0xff]
    %v4226 = vld [vmem:[%s4201 + $0xc0] sm:$0xff]
    %v4227 = vld [vmem:[%s4201 + $0xc8] sm:$0xff]
    %v4228 = vld [vmem:[%s4201 + $0xd0] sm:$0xff]
    %v4229 = vld [vmem:[%s4201 + $0xd8] sm:$0xff]
    %4230 = vrot.lane.b32.xlu0 %v3933, 112
    %v4231 = vpop.permute.xlu0 %4230
    %4232 = vrot.lane.b32.xlu0 %v3934, 112
    %v4233 = vpop.permute.xlu0 %4232
    %4234 = vrot.lane.b32.xlu0 %v3935, 112
    %v4235 = vpop.permute.xlu0 %4234
    %4236 = vrot.lane.b32.xlu0 %v3936, 112
    %v4237 = vpop.permute.xlu0 %4236
    %v4238 = vsel %vm4006, %v4231, 0
    %v4240 = vsel %vm4006, %v4233, 0
    %v4242 = vsel %vm4006, %v4235, 0
    %v4244 = vsel %vm4006, %v4237, 0
    %4246 = vmatprep.subr.mxu0 0.0
    %4247 = vmatpush1.msra.mxu0 0.0
    %4248 = vmatprep.subr.mxu0 0.0
    %4249 = vmatpush1.msra.mxu0 0.0
    %4250 = vmatprep.subr.mxu0 %v4229
    %4251 = vmatpush1.msra.mxu0 %v4228
    %4252 = vmatprep.subr.mxu0 %v4227
    %4253 = vmatpush1.msra.mxu0 %v4226
    %4254 = vmatprep.subr.mxu0 %v4225
    %4255 = vmatpush1.msra.mxu0 %v4224
    %4256 = vmatprep.subr.mxu0 %v4223
    %4257 = vmatpush1.msra.mxu0 %v4222
    %4258 = vmatprep.subr.mxu0 %v4221
    %4259 = vmatpush1.msra.mxu0 %v4220
    %4260 = vmatprep.subr.mxu0 %v4219
    %4261 = vmatpush1.msra.mxu0 %v4218
    %4262 = vmatprep.subr.mxu0 %v4217
    %4263 = vmatpush1.msra.mxu0 %v4216
    %4264 = vmatprep.subr.mxu0 %v4215
    %4265 = vmatpush1.msra.mxu0 %v4214
    %4266 = vmatprep.subr.mxu0 %v4213
    %4267 = vmatpush1.msra.mxu0 %v4212
    %4268 = vmatprep.subr.mxu0 %v4211
    %4269 = vmatpush1.msra.mxu0 %v4210
    %4270 = vmatprep.subr.mxu0 %v4209
    %4271 = vmatpush1.msra.mxu0 %v4208
    %4272 = vmatprep.subr.mxu0 %v4207
    %4273 = vmatpush1.msra.mxu0 %v4206
    %4274 = vmatprep.subr.mxu0 %v4205
    %4275 = vmatpush1.msra.mxu0 %v4204
    %4276 = vmatprep.subr.mxu0 %v4203
    %4277 = vmatpush1.msra.mxu0 %v4202
    %4278 = vmatprep.subr.mxu0 0.0
    %4279 = vmatpush2.msra.mxu0 0.0
    %4280 = vmatprep.subr.mxu0 0.0
    %4281 = vmatpush2.msra.mxu0 0.0
    %4282 = vmatprep.subr.mxu0 0.0
    %4283 = vmatpush2.msra.mxu0 0.0
    %4284 = vmatprep.subr.mxu0 0.0
    %4285 = vmatpush2.msra.mxu0 0.0
    %4286 = vmatprep.subr.mxu0 0.0
    %4287 = vmatpush2.msra.mxu0 0.0
    %4288 = vmatprep.subr.mxu0 0.0
    %4289 = vmatpush2.msra.mxu0 0.0
    %4290 = vmatprep.subr.mxu0 0.0
    %4291 = vmatpush2.msra.mxu0 0.0
    %4292 = vmatprep.subr.mxu0 0.0
    %4293 = vmatpush2.msra.mxu0 0.0
    %4294 = vmatprep.subr.mxu0 0.0
    %4295 = vmatpush2.msra.mxu0 0.0
    %4296 = vmatprep.subr.mxu0 0.0
    %4297 = vmatpush2.msra.mxu0 0.0
    %4298 = vmatprep.subr.mxu0 0.0
    %4299 = vmatpush2.msra.mxu0 0.0
    %4300 = vmatprep.subr.mxu0 0.0
    %4301 = vmatpush2.msra.mxu0 0.0
    %4302 = vmatprep.subr.mxu0 0.0
    %4303 = vmatpush2.msra.mxu0 0.0
    %4304 = vmatprep.subr.mxu0 0.0
    %4305 = vmatpush2.msra.mxu0 0.0
    %4306 = vmatprep.subr.mxu0 0.0
    %4307 = vmatpush2.msra.mxu0 0.0
    %4308 = vmatprep.subr.mxu0 0.0
    %4309 = vmatpush2.msra.mxu0 0.0
    %4310 = vmatprep.mubr.f32.mxu0 0.0
    %4311 = vmatmul.mubr.f32.gmra.mxu0 %v4238
    %v4312 = vpop.f32.mrf.mxu0
    %v4313 = vadd.f32 0.0, %v4312
    %v4314 = vpop.f32.mrf.mxu0
    %v4315 = vadd.f32 0.0, %v4314
    %4316 = vmatprep.mubr.f32.mxu0 0.0
    %4317 = vmatmul.mubr.f32.gmra.mxu0 %v4240
    %v4318 = vpop.f32.mrf.mxu0
    %v4319 = vadd.f32 0.0, %v4318
    %v4320 = vpop.f32.mrf.mxu0
    %v4321 = vadd.f32 0.0, %v4320
    %4322 = vmatprep.mubr.f32.mxu0 0.0
    %4323 = vmatmul.mubr.f32.gmra.mxu0 %v4242
    %v4324 = vpop.f32.mrf.mxu0
    %v4325 = vadd.f32 0.0, %v4324
    %v4326 = vpop.f32.mrf.mxu0
    %v4327 = vadd.f32 0.0, %v4326
    %4328 = vmatprep.mubr.f32.mxu0 0.0
    %4329 = vmatmul.mubr.f32.gmra.mxu0 %v4244
    %v4330 = vpop.f32.mrf.mxu0
    %v4331 = vadd.f32 0.0, %v4330
    %v4332 = vpop.f32.mrf.mxu0
    %v4333 = vadd.f32 0.0, %v4332
    %4334 = vdwg.mxu0
    %v4335 = vadd.f32 %v4179, %v4313
    %v4336 = vadd.f32 %v4181, %v4315
    %v4337 = vadd.f32 %v4185, %v4319
    %v4338 = vadd.f32 %v4187, %v4321
    %v4339 = vadd.f32 %v4191, %v4325
    %v4340 = vadd.f32 %v4193, %v4327
    %v4341 = vadd.f32 %v4197, %v4331
    %v4342 = vadd.f32 %v4199, %v4333
    %v4343 = vld [vmem:[#allocation5 + $0x1] sm:$0xff]
    %v4344 = vld [vmem:[#allocation5 + $0x9] sm:$0xff]
    %v4345 = vld [vmem:[#allocation5 + $0x11] sm:$0xff]
    %v4346 = vld [vmem:[#allocation5 + $0x19] sm:$0x3f]
    %s4347 = scalar_lea.vmem [#allocation11], 672
    %v4348 = vld [vmem:[%s4347] sm:$0xff]
    %v4349 = vld [vmem:[%s4347 + $0x8] sm:$0xff]
    %v4350 = vld [vmem:[%s4347 + $0x10] sm:$0xff]
    %v4351 = vld [vmem:[%s4347 + $0x18] sm:$0xff]
    %v4352 = vld [vmem:[%s4347 + $0x20] sm:$0xff]
    %v4353 = vld [vmem:[%s4347 + $0x28] sm:$0xff]
    %v4354 = vld [vmem:[%s4347 + $0x30] sm:$0xff]
    %v4355 = vld [vmem:[%s4347 + $0x38] sm:$0xff]
    %v4356 = vld [vmem:[%s4347 + $0x40] sm:$0xff]
    %v4357 = vld [vmem:[%s4347 + $0x48] sm:$0xff]
    %v4358 = vld [vmem:[%s4347 + $0x50] sm:$0xff]
    %v4359 = vld [vmem:[%s4347 + $0x58] sm:$0xff]
    %v4360 = vld [vmem:[%s4347 + $0x60] sm:$0xff]
    %v4361 = vld [vmem:[%s4347 + $0x68] sm:$0xff]
    %v4362 = vld [vmem:[%s4347 + $0x70] sm:$0xff]
    %v4363 = vld [vmem:[%s4347 + $0x78] sm:$0xff]
    %v4364 = vld [vmem:[%s4347 + $0x80] sm:$0xff]
    %v4365 = vld [vmem:[%s4347 + $0x88] sm:$0xff]
    %v4366 = vld [vmem:[%s4347 + $0x90] sm:$0xff]
    %v4367 = vld [vmem:[%s4347 + $0x98] sm:$0xff]
    %v4368 = vld [vmem:[%s4347 + $0xa0] sm:$0xff]
    %v4369 = vld [vmem:[%s4347 + $0xa8] sm:$0xff]
    %v4370 = vld [vmem:[%s4347 + $0xb0] sm:$0xff]
    %v4371 = vld [vmem:[%s4347 + $0xb8] sm:$0xff]
    %v4372 = vld [vmem:[%s4347 + $0xc0] sm:$0xff]
    %v4373 = vld [vmem:[%s4347 + $0xc8] sm:$0xff]
    %v4374 = vld [vmem:[%s4347 + $0xd0] sm:$0xff]
    %v4375 = vld [vmem:[%s4347 + $0xd8] sm:$0xff]
    %v4377 = vsel %vm4006, %v4343, 0
    %v4380 = vsel %vm4006, %v4344, 0
    %v4383 = vsel %vm4006, %v4345, 0
    %v4386 = vsel %vm4006, %v4346, 0
    %4388 = vmatprep.subr.mxu0 0.0
    %4389 = vmatpush1.msra.mxu0 0.0
    %4390 = vmatprep.subr.mxu0 0.0
    %4391 = vmatpush1.msra.mxu0 0.0
    %4392 = vmatprep.subr.mxu0 %v4375
    %4393 = vmatpush1.msra.mxu0 %v4374
    %4394 = vmatprep.subr.mxu0 %v4373
    %4395 = vmatpush1.msra.mxu0 %v4372
    %4396 = vmatprep.subr.mxu0 %v4371
    %4397 = vmatpush1.msra.mxu0 %v4370
    %4398 = vmatprep.subr.mxu0 %v4369
    %4399 = vmatpush1.msra.mxu0 %v4368
    %4400 = vmatprep.subr.mxu0 %v4367
    %4401 = vmatpush1.msra.mxu0 %v4366
    %4402 = vmatprep.subr.mxu0 %v4365
    %4403 = vmatpush1.msra.mxu0 %v4364
    %4404 = vmatprep.subr.mxu0 %v4363
    %4405 = vmatpush1.msra.mxu0 %v4362
    %4406 = vmatprep.subr.mxu0 %v4361
    %4407 = vmatpush1.msra.mxu0 %v4360
    %4408 = vmatprep.subr.mxu0 %v4359
    %4409 = vmatpush1.msra.mxu0 %v4358
    %4410 = vmatprep.subr.mxu0 %v4357
    %4411 = vmatpush1.msra.mxu0 %v4356
    %4412 = vmatprep.subr.mxu0 %v4355
    %4413 = vmatpush1.msra.mxu0 %v4354
    %4414 = vmatprep.subr.mxu0 %v4353
    %4415 = vmatpush1.msra.mxu0 %v4352
    %4416 = vmatprep.subr.mxu0 %v4351
    %4417 = vmatpush1.msra.mxu0 %v4350
    %4418 = vmatprep.subr.mxu0 %v4349
    %4419 = vmatpush1.msra.mxu0 %v4348
    %4420 = vmatprep.subr.mxu0 0.0
    %4421 = vmatpush2.msra.mxu0 0.0
    %4422 = vmatprep.subr.mxu0 0.0
    %4423 = vmatpush2.msra.mxu0 0.0
    %4424 = vmatprep.subr.mxu0 0.0
    %4425 = vmatpush2.msra.mxu0 0.0
    %4426 = vmatprep.subr.mxu0 0.0
    %4427 = vmatpush2.msra.mxu0 0.0
    %4428 = vmatprep.subr.mxu0 0.0
    %4429 = vmatpush2.msra.mxu0 0.0
    %4430 = vmatprep.subr.mxu0 0.0
    %4431 = vmatpush2.msra.mxu0 0.0
    %4432 = vmatprep.subr.mxu0 0.0
    %4433 = vmatpush2.msra.mxu0 0.0
    %4434 = vmatprep.subr.mxu0 0.0
    %4435 = vmatpush2.msra.mxu0 0.0
    %4436 = vmatprep.subr.mxu0 0.0
    %4437 = vmatpush2.msra.mxu0 0.0
    %4438 = vmatprep.subr.mxu0 0.0
    %4439 = vmatpush2.msra.mxu0 0.0
    %4440 = vmatprep.subr.mxu0 0.0
    %4441 = vmatpush2.msra.mxu0 0.0
    %4442 = vmatprep.subr.mxu0 0.0
    %4443 = vmatpush2.msra.mxu0 0.0
    %4444 = vmatprep.subr.mxu0 0.0
    %4445 = vmatpush2.msra.mxu0 0.0
    %4446 = vmatprep.subr.mxu0 0.0
    %4447 = vmatpush2.msra.mxu0 0.0
    %4448 = vmatprep.subr.mxu0 0.0
    %4449 = vmatpush2.msra.mxu0 0.0
    %4450 = vmatprep.subr.mxu0 0.0
    %4451 = vmatpush2.msra.mxu0 0.0
    %4452 = vmatprep.mubr.f32.mxu0 0.0
    %4453 = vmatmul.mubr.f32.gmra.mxu0 %v4377
    %v4454 = vpop.f32.mrf.mxu0
    %v4455 = vadd.f32 0.0, %v4454
    %v4456 = vpop.f32.mrf.mxu0
    %v4457 = vadd.f32 0.0, %v4456
    %4458 = vmatprep.mubr.f32.mxu0 0.0
    %4459 = vmatmul.mubr.f32.gmra.mxu0 %v4380
    %v4460 = vpop.f32.mrf.mxu0
    %v4461 = vadd.f32 0.0, %v4460
    %v4462 = vpop.f32.mrf.mxu0
    %v4463 = vadd.f32 0.0, %v4462
    %4464 = vmatprep.mubr.f32.mxu0 0.0
    %4465 = vmatmul.mubr.f32.gmra.mxu0 %v4383
    %v4466 = vpop.f32.mrf.mxu0
    %v4467 = vadd.f32 0.0, %v4466
    %v4468 = vpop.f32.mrf.mxu0
    %v4469 = vadd.f32 0.0, %v4468
    %4470 = vmatprep.mubr.f32.mxu0 0.0
    %4471 = vmatmul.mubr.f32.gmra.mxu0 %v4386
    %v4472 = vpop.f32.mrf.mxu0
    %v4473 = vadd.f32 0.0, %v4472
    %v4474 = vpop.f32.mrf.mxu0
    %v4475 = vadd.f32 0.0, %v4474
    %4476 = vdwg.mxu0
    %v4477 = vadd.f32 %v4335, %v4455
    %v4478 = vadd.f32 %v4336, %v4457
    %v4479 = vadd.f32 %v4337, %v4461
    %v4480 = vadd.f32 %v4338, %v4463
    %v4481 = vadd.f32 %v4339, %v4467
    %v4482 = vadd.f32 %v4340, %v4469
    %v4483 = vadd.f32 %v4341, %v4473
    %v4484 = vadd.f32 %v4342, %v4475
    %s4485 = scalar_lea.vmem [#allocation11], 896
    %v4486 = vld [vmem:[%s4485] sm:$0xff]
    %v4487 = vld [vmem:[%s4485 + $0x8] sm:$0xff]
    %v4488 = vld [vmem:[%s4485 + $0x10] sm:$0xff]
    %v4489 = vld [vmem:[%s4485 + $0x18] sm:$0xff]
    %v4490 = vld [vmem:[%s4485 + $0x20] sm:$0xff]
    %v4491 = vld [vmem:[%s4485 + $0x28] sm:$0xff]
    %v4492 = vld [vmem:[%s4485 + $0x30] sm:$0xff]
    %v4493 = vld [vmem:[%s4485 + $0x38] sm:$0xff]
    %v4494 = vld [vmem:[%s4485 + $0x40] sm:$0xff]
    %v4495 = vld [vmem:[%s4485 + $0x48] sm:$0xff]
    %v4496 = vld [vmem:[%s4485 + $0x50] sm:$0xff]
    %v4497 = vld [vmem:[%s4485 + $0x58] sm:$0xff]
    %v4498 = vld [vmem:[%s4485 + $0x60] sm:$0xff]
    %v4499 = vld [vmem:[%s4485 + $0x68] sm:$0xff]
    %v4500 = vld [vmem:[%s4485 + $0x70] sm:$0xff]
    %v4501 = vld [vmem:[%s4485 + $0x78] sm:$0xff]
    %v4502 = vld [vmem:[%s4485 + $0x80] sm:$0xff]
    %v4503 = vld [vmem:[%s4485 + $0x88] sm:$0xff]
    %v4504 = vld [vmem:[%s4485 + $0x90] sm:$0xff]
    %v4505 = vld [vmem:[%s4485 + $0x98] sm:$0xff]
    %v4506 = vld [vmem:[%s4485 + $0xa0] sm:$0xff]
    %v4507 = vld [vmem:[%s4485 + $0xa8] sm:$0xff]
    %v4508 = vld [vmem:[%s4485 + $0xb0] sm:$0xff]
    %v4509 = vld [vmem:[%s4485 + $0xb8] sm:$0xff]
    %v4510 = vld [vmem:[%s4485 + $0xc0] sm:$0xff]
    %v4511 = vld [vmem:[%s4485 + $0xc8] sm:$0xff]
    %v4512 = vld [vmem:[%s4485 + $0xd0] sm:$0xff]
    %v4513 = vld [vmem:[%s4485 + $0xd8] sm:$0xff]
    %4514 = vrot.lane.b32.xlu0 %v4343, 120
    %v4515 = vpop.permute.xlu0 %4514
    %4516 = vrot.lane.b32.xlu0 %v4344, 120
    %v4517 = vpop.permute.xlu0 %4516
    %4518 = vrot.lane.b32.xlu0 %v4345, 120
    %v4519 = vpop.permute.xlu0 %4518
    %4520 = vrot.lane.b32.xlu0 %v4346, 120
    %v4521 = vpop.permute.xlu0 %4520
    %v4522 = vsel %vm4006, %v4515, 0
    %v4524 = vsel %vm4006, %v4517, 0
    %v4526 = vsel %vm4006, %v4519, 0
    %v4528 = vsel %vm4006, %v4521, 0
    %4530 = vmatprep.subr.mxu0 0.0
    %4531 = vmatpush1.msra.mxu0 0.0
    %4532 = vmatprep.subr.mxu0 0.0
    %4533 = vmatpush1.msra.mxu0 0.0
    %4534 = vmatprep.subr.mxu0 %v4513
    %4535 = vmatpush1.msra.mxu0 %v4512
    %4536 = vmatprep.subr.mxu0 %v4511
    %4537 = vmatpush1.msra.mxu0 %v4510
    %4538 = vmatprep.subr.mxu0 %v4509
    %4539 = vmatpush1.msra.mxu0 %v4508
    %4540 = vmatprep.subr.mxu0 %v4507
    %4541 = vmatpush1.msra.mxu0 %v4506
    %4542 = vmatprep.subr.mxu0 %v4505
    %4543 = vmatpush1.msra.mxu0 %v4504
    %4544 = vmatprep.subr.mxu0 %v4503
    %4545 = vmatpush1.msra.mxu0 %v4502
    %4546 = vmatprep.subr.mxu0 %v4501
    %4547 = vmatpush1.msra.mxu0 %v4500
    %4548 = vmatprep.subr.mxu0 %v4499
    %4549 = vmatpush1.msra.mxu0 %v4498
    %4550 = vmatprep.subr.mxu0 %v4497
    %4551 = vmatpush1.msra.mxu0 %v4496
    %4552 = vmatprep.subr.mxu0 %v4495
    %4553 = vmatpush1.msra.mxu0 %v4494
    %4554 = vmatprep.subr.mxu0 %v4493
    %4555 = vmatpush1.msra.mxu0 %v4492
    %4556 = vmatprep.subr.mxu0 %v4491
    %4557 = vmatpush1.msra.mxu0 %v4490
    %4558 = vmatprep.subr.mxu0 %v4489
    %4559 = vmatpush1.msra.mxu0 %v4488
    %4560 = vmatprep.subr.mxu0 %v4487
    %4561 = vmatpush1.msra.mxu0 %v4486
    %4562 = vmatprep.subr.mxu0 0.0
    %4563 = vmatpush2.msra.mxu0 0.0
    %4564 = vmatprep.subr.mxu0 0.0
    %4565 = vmatpush2.msra.mxu0 0.0
    %4566 = vmatprep.subr.mxu0 0.0
    %4567 = vmatpush2.msra.mxu0 0.0
    %4568 = vmatprep.subr.mxu0 0.0
    %4569 = vmatpush2.msra.mxu0 0.0
    %4570 = vmatprep.subr.mxu0 0.0
    %4571 = vmatpush2.msra.mxu0 0.0
    %4572 = vmatprep.subr.mxu0 0.0
    %4573 = vmatpush2.msra.mxu0 0.0
    %4574 = vmatprep.subr.mxu0 0.0
    %4575 = vmatpush2.msra.mxu0 0.0
    %4576 = vmatprep.subr.mxu0 0.0
    %4577 = vmatpush2.msra.mxu0 0.0
    %4578 = vmatprep.subr.mxu0 0.0
    %4579 = vmatpush2.msra.mxu0 0.0
    %4580 = vmatprep.subr.mxu0 0.0
    %4581 = vmatpush2.msra.mxu0 0.0
    %4582 = vmatprep.subr.mxu0 0.0
    %4583 = vmatpush2.msra.mxu0 0.0
    %4584 = vmatprep.subr.mxu0 0.0
    %4585 = vmatpush2.msra.mxu0 0.0
    %4586 = vmatprep.subr.mxu0 0.0
    %4587 = vmatpush2.msra.mxu0 0.0
    %4588 = vmatprep.subr.mxu0 0.0
    %4589 = vmatpush2.msra.mxu0 0.0
    %4590 = vmatprep.subr.mxu0 0.0
    %4591 = vmatpush2.msra.mxu0 0.0
    %4592 = vmatprep.subr.mxu0 0.0
    %4593 = vmatpush2.msra.mxu0 0.0
    %4594 = vmatprep.mubr.f32.mxu0 0.0
    %4595 = vmatmul.mubr.f32.gmra.mxu0 %v4522
    %v4596 = vpop.f32.mrf.mxu0
    %v4597 = vadd.f32 0.0, %v4596
    %v4598 = vpop.f32.mrf.mxu0
    %v4599 = vadd.f32 0.0, %v4598
    %4600 = vmatprep.mubr.f32.mxu0 0.0
    %4601 = vmatmul.mubr.f32.gmra.mxu0 %v4524
    %v4602 = vpop.f32.mrf.mxu0
    %v4603 = vadd.f32 0.0, %v4602
    %v4604 = vpop.f32.mrf.mxu0
    %v4605 = vadd.f32 0.0, %v4604
    %4606 = vmatprep.mubr.f32.mxu0 0.0
    %4607 = vmatmul.mubr.f32.gmra.mxu0 %v4526
    %v4608 = vpop.f32.mrf.mxu0
    %v4609 = vadd.f32 0.0, %v4608
    %v4610 = vpop.f32.mrf.mxu0
    %v4611 = vadd.f32 0.0, %v4610
    %4612 = vmatprep.mubr.f32.mxu0 0.0
    %4613 = vmatmul.mubr.f32.gmra.mxu0 %v4528
    %v4614 = vpop.f32.mrf.mxu0
    %v4615 = vadd.f32 0.0, %v4614
    %v4616 = vpop.f32.mrf.mxu0
    %v4617 = vadd.f32 0.0, %v4616
    %4618 = vdwg.mxu0
    %v4619 = vadd.f32 %v4477, %v4597
    %v4620 = vadd.f32 %v4478, %v4599
    %v4621 = vadd.f32 %v4479, %v4603
    %v4622 = vadd.f32 %v4480, %v4605
    %v4623 = vadd.f32 %v4481, %v4609
    %v4624 = vadd.f32 %v4482, %v4611
    %v4625 = vadd.f32 %v4483, %v4615
    %v4626 = vadd.f32 %v4484, %v4617
    %s4627 = scalar_lea.vmem [#allocation11], 1120
    %v4628 = vld [vmem:[%s4627] sm:$0xff]
    %v4629 = vld [vmem:[%s4627 + $0x8] sm:$0xff]
    %v4630 = vld [vmem:[%s4627 + $0x10] sm:$0xff]
    %v4631 = vld [vmem:[%s4627 + $0x18] sm:$0xff]
    %v4632 = vld [vmem:[%s4627 + $0x20] sm:$0xff]
    %v4633 = vld [vmem:[%s4627 + $0x28] sm:$0xff]
    %v4634 = vld [vmem:[%s4627 + $0x30] sm:$0xff]
    %v4635 = vld [vmem:[%s4627 + $0x38] sm:$0xff]
    %v4636 = vld [vmem:[%s4627 + $0x40] sm:$0xff]
    %v4637 = vld [vmem:[%s4627 + $0x48] sm:$0xff]
    %v4638 = vld [vmem:[%s4627 + $0x50] sm:$0xff]
    %v4639 = vld [vmem:[%s4627 + $0x58] sm:$0xff]
    %v4640 = vld [vmem:[%s4627 + $0x60] sm:$0xff]
    %v4641 = vld [vmem:[%s4627 + $0x68] sm:$0xff]
    %v4642 = vld [vmem:[%s4627 + $0x70] sm:$0xff]
    %v4643 = vld [vmem:[%s4627 + $0x78] sm:$0xff]
    %v4644 = vld [vmem:[%s4627 + $0x80] sm:$0xff]
    %v4645 = vld [vmem:[%s4627 + $0x88] sm:$0xff]
    %v4646 = vld [vmem:[%s4627 + $0x90] sm:$0xff]
    %v4647 = vld [vmem:[%s4627 + $0x98] sm:$0xff]
    %v4648 = vld [vmem:[%s4627 + $0xa0] sm:$0xff]
    %v4649 = vld [vmem:[%s4627 + $0xa8] sm:$0xff]
    %v4650 = vld [vmem:[%s4627 + $0xb0] sm:$0xff]
    %v4651 = vld [vmem:[%s4627 + $0xb8] sm:$0xff]
    %v4652 = vld [vmem:[%s4627 + $0xc0] sm:$0xff]
    %v4653 = vld [vmem:[%s4627 + $0xc8] sm:$0xff]
    %v4654 = vld [vmem:[%s4627 + $0xd0] sm:$0xff]
    %v4655 = vld [vmem:[%s4627 + $0xd8] sm:$0xff]
    %4656 = vrot.lane.b32.xlu0 %v4343, 112
    %v4657 = vpop.permute.xlu0 %4656
    %4658 = vrot.lane.b32.xlu0 %v4344, 112
    %v4659 = vpop.permute.xlu0 %4658
    %4660 = vrot.lane.b32.xlu0 %v4345, 112
    %v4661 = vpop.permute.xlu0 %4660
    %4662 = vrot.lane.b32.xlu0 %v4346, 112
    %v4663 = vpop.permute.xlu0 %4662
    %v4664 = vsel %vm4006, %v4657, 0
    %v4666 = vsel %vm4006, %v4659, 0
    %v4668 = vsel %vm4006, %v4661, 0
    %v4670 = vsel %vm4006, %v4663, 0
    %4672 = vmatprep.subr.mxu0 0.0
    %4673 = vmatpush1.msra.mxu0 0.0
    %4674 = vmatprep.subr.mxu0 0.0
    %4675 = vmatpush1.msra.mxu0 0.0
    %4676 = vmatprep.subr.mxu0 %v4655
    %4677 = vmatpush1.msra.mxu0 %v4654
    %4678 = vmatprep.subr.mxu0 %v4653
    %4679 = vmatpush1.msra.mxu0 %v4652
    %4680 = vmatprep.subr.mxu0 %v4651
    %4681 = vmatpush1.msra.mxu0 %v4650
    %4682 = vmatprep.subr.mxu0 %v4649
    %4683 = vmatpush1.msra.mxu0 %v4648
    %4684 = vmatprep.subr.mxu0 %v4647
    %4685 = vmatpush1.msra.mxu0 %v4646
    %4686 = vmatprep.subr.mxu0 %v4645
    %4687 = vmatpush1.msra.mxu0 %v4644
    %4688 = vmatprep.subr.mxu0 %v4643
    %4689 = vmatpush1.msra.mxu0 %v4642
    %4690 = vmatprep.subr.mxu0 %v4641
    %4691 = vmatpush1.msra.mxu0 %v4640
    %4692 = vmatprep.subr.mxu0 %v4639
    %4693 = vmatpush1.msra.mxu0 %v4638
    %4694 = vmatprep.subr.mxu0 %v4637
    %4695 = vmatpush1.msra.mxu0 %v4636
    %4696 = vmatprep.subr.mxu0 %v4635
    %4697 = vmatpush1.msra.mxu0 %v4634
    %4698 = vmatprep.subr.mxu0 %v4633
    %4699 = vmatpush1.msra.mxu0 %v4632
    %4700 = vmatprep.subr.mxu0 %v4631
    %4701 = vmatpush1.msra.mxu0 %v4630
    %4702 = vmatprep.subr.mxu0 %v4629
    %4703 = vmatpush1.msra.mxu0 %v4628
    %4704 = vmatprep.subr.mxu0 0.0
    %4705 = vmatpush2.msra.mxu0 0.0
    %4706 = vmatprep.subr.mxu0 0.0
    %4707 = vmatpush2.msra.mxu0 0.0
    %4708 = vmatprep.subr.mxu0 0.0
    %4709 = vmatpush2.msra.mxu0 0.0
    %4710 = vmatprep.subr.mxu0 0.0
    %4711 = vmatpush2.msra.mxu0 0.0
    %4712 = vmatprep.subr.mxu0 0.0
    %4713 = vmatpush2.msra.mxu0 0.0
    %4714 = vmatprep.subr.mxu0 0.0
    %4715 = vmatpush2.msra.mxu0 0.0
    %4716 = vmatprep.subr.mxu0 0.0
    %4717 = vmatpush2.msra.mxu0 0.0
    %4718 = vmatprep.subr.mxu0 0.0
    %4719 = vmatpush2.msra.mxu0 0.0
    %4720 = vmatprep.subr.mxu0 0.0
    %4721 = vmatpush2.msra.mxu0 0.0
    %4722 = vmatprep.subr.mxu0 0.0
    %4723 = vmatpush2.msra.mxu0 0.0
    %4724 = vmatprep.subr.mxu0 0.0
    %4725 = vmatpush2.msra.mxu0 0.0
    %4726 = vmatprep.subr.mxu0 0.0
    %4727 = vmatpush2.msra.mxu0 0.0
    %4728 = vmatprep.subr.mxu0 0.0
    %4729 = vmatpush2.msra.mxu0 0.0
    %4730 = vmatprep.subr.mxu0 0.0
    %4731 = vmatpush2.msra.mxu0 0.0
    %4732 = vmatprep.subr.mxu0 0.0
    %4733 = vmatpush2.msra.mxu0 0.0
    %4734 = vmatprep.subr.mxu0 0.0
    %4735 = vmatpush2.msra.mxu0 0.0
    %4736 = vmatprep.mubr.f32.mxu0 0.0
    %4737 = vmatmul.mubr.f32.gmra.mxu0 %v4664
    %v4738 = vpop.f32.mrf.mxu0
    %v4739 = vadd.f32 0.0, %v4738
    %v4740 = vpop.f32.mrf.mxu0
    %v4741 = vadd.f32 0.0, %v4740
    %4742 = vmatprep.mubr.f32.mxu0 0.0
    %4743 = vmatmul.mubr.f32.gmra.mxu0 %v4666
    %v4744 = vpop.f32.mrf.mxu0
    %v4745 = vadd.f32 0.0, %v4744
    %v4746 = vpop.f32.mrf.mxu0
    %v4747 = vadd.f32 0.0, %v4746
    %4748 = vmatprep.mubr.f32.mxu0 0.0
    %4749 = vmatmul.mubr.f32.gmra.mxu0 %v4668
    %v4750 = vpop.f32.mrf.mxu0
    %v4751 = vadd.f32 0.0, %v4750
    %v4752 = vpop.f32.mrf.mxu0
    %v4753 = vadd.f32 0.0, %v4752
    %4754 = vmatprep.mubr.f32.mxu0 0.0
    %4755 = vmatmul.mubr.f32.gmra.mxu0 %v4670
    %v4756 = vpop.f32.mrf.mxu0
    %v4757 = vadd.f32 0.0, %v4756
    %v4758 = vpop.f32.mrf.mxu0
    %v4759 = vadd.f32 0.0, %v4758
    %4760 = vdwg.mxu0
    %v4761 = vadd.f32 %v4619, %v4739
    %v4762 = vadd.f32 %v4620, %v4741
    %v4763 = vadd.f32 %v4621, %v4745
    %v4764 = vadd.f32 %v4622, %v4747
    %v4765 = vadd.f32 %v4623, %v4751
    %v4766 = vadd.f32 %v4624, %v4753
    %v4767 = vadd.f32 %v4625, %v4757
    %v4768 = vadd.f32 %v4626, %v4759
    %v4769 = vld [vmem:[#allocation5 + $0x2] sm:$0xff]
    %v4770 = vld [vmem:[#allocation5 + $0xa] sm:$0xff]
    %v4771 = vld [vmem:[#allocation5 + $0x12] sm:$0xff]
    %v4772 = vld [vmem:[#allocation5 + $0x1a] sm:$0x3f]
    %s4773 = scalar_lea.vmem [#allocation11], 1344
    %v4774 = vld [vmem:[%s4773] sm:$0xff]
    %v4775 = vld [vmem:[%s4773 + $0x8] sm:$0xff]
    %v4776 = vld [vmem:[%s4773 + $0x10] sm:$0xff]
    %v4777 = vld [vmem:[%s4773 + $0x18] sm:$0xff]
    %v4778 = vld [vmem:[%s4773 + $0x20] sm:$0xff]
    %v4779 = vld [vmem:[%s4773 + $0x28] sm:$0xff]
    %v4780 = vld [vmem:[%s4773 + $0x30] sm:$0xff]
    %v4781 = vld [vmem:[%s4773 + $0x38] sm:$0xff]
    %v4782 = vld [vmem:[%s4773 + $0x40] sm:$0xff]
    %v4783 = vld [vmem:[%s4773 + $0x48] sm:$0xff]
    %v4784 = vld [vmem:[%s4773 + $0x50] sm:$0xff]
    %v4785 = vld [vmem:[%s4773 + $0x58] sm:$0xff]
    %v4786 = vld [vmem:[%s4773 + $0x60] sm:$0xff]
    %v4787 = vld [vmem:[%s4773 + $0x68] sm:$0xff]
    %v4788 = vld [vmem:[%s4773 + $0x70] sm:$0xff]
    %v4789 = vld [vmem:[%s4773 + $0x78] sm:$0xff]
    %v4790 = vld [vmem:[%s4773 + $0x80] sm:$0xff]
    %v4791 = vld [vmem:[%s4773 + $0x88] sm:$0xff]
    %v4792 = vld [vmem:[%s4773 + $0x90] sm:$0xff]
    %v4793 = vld [vmem:[%s4773 + $0x98] sm:$0xff]
    %v4794 = vld [vmem:[%s4773 + $0xa0] sm:$0xff]
    %v4795 = vld [vmem:[%s4773 + $0xa8] sm:$0xff]
    %v4796 = vld [vmem:[%s4773 + $0xb0] sm:$0xff]
    %v4797 = vld [vmem:[%s4773 + $0xb8] sm:$0xff]
    %v4798 = vld [vmem:[%s4773 + $0xc0] sm:$0xff]
    %v4799 = vld [vmem:[%s4773 + $0xc8] sm:$0xff]
    %v4800 = vld [vmem:[%s4773 + $0xd0] sm:$0xff]
    %v4801 = vld [vmem:[%s4773 + $0xd8] sm:$0xff]
    %v4803 = vsel %vm4006, %v4769, 0
    %v4806 = vsel %vm4006, %v4770, 0
    %v4809 = vsel %vm4006, %v4771, 0
    %v4812 = vsel %vm4006, %v4772, 0
    %4814 = vmatprep.subr.mxu0 0.0
    %4815 = vmatpush1.msra.mxu0 0.0
    %4816 = vmatprep.subr.mxu0 0.0
    %4817 = vmatpush1.msra.mxu0 0.0
    %4818 = vmatprep.subr.mxu0 %v4801
    %4819 = vmatpush1.msra.mxu0 %v4800
    %4820 = vmatprep.subr.mxu0 %v4799
    %4821 = vmatpush1.msra.mxu0 %v4798
    %4822 = vmatprep.subr.mxu0 %v4797
    %4823 = vmatpush1.msra.mxu0 %v4796
    %4824 = vmatprep.subr.mxu0 %v4795
    %4825 = vmatpush1.msra.mxu0 %v4794
    %4826 = vmatprep.subr.mxu0 %v4793
    %4827 = vmatpush1.msra.mxu0 %v4792
    %4828 = vmatprep.subr.mxu0 %v4791
    %4829 = vmatpush1.msra.mxu0 %v4790
    %4830 = vmatprep.subr.mxu0 %v4789
    %4831 = vmatpush1.msra.mxu0 %v4788
    %4832 = vmatprep.subr.mxu0 %v4787
    %4833 = vmatpush1.msra.mxu0 %v4786
    %4834 = vmatprep.subr.mxu0 %v4785
    %4835 = vmatpush1.msra.mxu0 %v4784
    %4836 = vmatprep.subr.mxu0 %v4783
    %4837 = vmatpush1.msra.mxu0 %v4782
    %4838 = vmatprep.subr.mxu0 %v4781
    %4839 = vmatpush1.msra.mxu0 %v4780
    %4840 = vmatprep.subr.mxu0 %v4779
    %4841 = vmatpush1.msra.mxu0 %v4778
    %4842 = vmatprep.subr.mxu0 %v4777
    %4843 = vmatpush1.msra.mxu0 %v4776
    %4844 = vmatprep.subr.mxu0 %v4775
    %4845 = vmatpush1.msra.mxu0 %v4774
    %4846 = vmatprep.subr.mxu0 0.0
    %4847 = vmatpush2.msra.mxu0 0.0
    %4848 = vmatprep.subr.mxu0 0.0
    %4849 = vmatpush2.msra.mxu0 0.0
    %4850 = vmatprep.subr.mxu0 0.0
    %4851 = vmatpush2.msra.mxu0 0.0
    %4852 = vmatprep.subr.mxu0 0.0
    %4853 = vmatpush2.msra.mxu0 0.0
    %4854 = vmatprep.subr.mxu0 0.0
    %4855 = vmatpush2.msra.mxu0 0.0
    %4856 = vmatprep.subr.mxu0 0.0
    %4857 = vmatpush2.msra.mxu0 0.0
    %4858 = vmatprep.subr.mxu0 0.0
    %4859 = vmatpush2.msra.mxu0 0.0
    %4860 = vmatprep.subr.mxu0 0.0
    %4861 = vmatpush2.msra.mxu0 0.0
    %4862 = vmatprep.subr.mxu0 0.0
    %4863 = vmatpush2.msra.mxu0 0.0
    %4864 = vmatprep.subr.mxu0 0.0
    %4865 = vmatpush2.msra.mxu0 0.0
    %4866 = vmatprep.subr.mxu0 0.0
    %4867 = vmatpush2.msra.mxu0 0.0
    %4868 = vmatprep.subr.mxu0 0.0
    %4869 = vmatpush2.msra.mxu0 0.0
    %4870 = vmatprep.subr.mxu0 0.0
    %4871 = vmatpush2.msra.mxu0 0.0
    %4872 = vmatprep.subr.mxu0 0.0
    %4873 = vmatpush2.msra.mxu0 0.0
    %4874 = vmatprep.subr.mxu0 0.0
    %4875 = vmatpush2.msra.mxu0 0.0
    %4876 = vmatprep.subr.mxu0 0.0
    %4877 = vmatpush2.msra.mxu0 0.0
    %4878 = vmatprep.mubr.f32.mxu0 0.0
    %4879 = vmatmul.mubr.f32.gmra.mxu0 %v4803
    %v4880 = vpop.f32.mrf.mxu0
    %v4881 = vadd.f32 0.0, %v4880
    %v4882 = vpop.f32.mrf.mxu0
    %v4883 = vadd.f32 0.0, %v4882
    %4884 = vmatprep.mubr.f32.mxu0 0.0
    %4885 = vmatmul.mubr.f32.gmra.mxu0 %v4806
    %v4886 = vpop.f32.mrf.mxu0
    %v4887 = vadd.f32 0.0, %v4886
    %v4888 = vpop.f32.mrf.mxu0
    %v4889 = vadd.f32 0.0, %v4888
    %4890 = vmatprep.mubr.f32.mxu0 0.0
    %4891 = vmatmul.mubr.f32.gmra.mxu0 %v4809
    %v4892 = vpop.f32.mrf.mxu0
    %v4893 = vadd.f32 0.0, %v4892
    %v4894 = vpop.f32.mrf.mxu0
    %v4895 = vadd.f32 0.0, %v4894
    %4896 = vmatprep.mubr.f32.mxu0 0.0
    %4897 = vmatmul.mubr.f32.gmra.mxu0 %v4812
    %v4898 = vpop.f32.mrf.mxu0
    %v4899 = vadd.f32 0.0, %v4898
    %v4900 = vpop.f32.mrf.mxu0
    %v4901 = vadd.f32 0.0, %v4900
    %4902 = vdwg.mxu0
    %v4903 = vadd.f32 %v4761, %v4881
    %v4904 = vadd.f32 %v4762, %v4883
    %v4905 = vadd.f32 %v4763, %v4887
    %v4906 = vadd.f32 %v4764, %v4889
    %v4907 = vadd.f32 %v4765, %v4893
    %v4908 = vadd.f32 %v4766, %v4895
    %v4909 = vadd.f32 %v4767, %v4899
    %v4910 = vadd.f32 %v4768, %v4901
    %s4911 = scalar_lea.vmem [#allocation11], 1568
    %v4912 = vld [vmem:[%s4911] sm:$0xff]
    %v4913 = vld [vmem:[%s4911 + $0x8] sm:$0xff]
    %v4914 = vld [vmem:[%s4911 + $0x10] sm:$0xff]
    %v4915 = vld [vmem:[%s4911 + $0x18] sm:$0xff]
    %v4916 = vld [vmem:[%s4911 + $0x20] sm:$0xff]
    %v4917 = vld [vmem:[%s4911 + $0x28] sm:$0xff]
    %v4918 = vld [vmem:[%s4911 + $0x30] sm:$0xff]
    %v4919 = vld [vmem:[%s4911 + $0x38] sm:$0xff]
    %v4920 = vld [vmem:[%s4911 + $0x40] sm:$0xff]
    %v4921 = vld [vmem:[%s4911 + $0x48] sm:$0xff]
    %v4922 = vld [vmem:[%s4911 + $0x50] sm:$0xff]
    %v4923 = vld [vmem:[%s4911 + $0x58] sm:$0xff]
    %v4924 = vld [vmem:[%s4911 + $0x60] sm:$0xff]
    %v4925 = vld [vmem:[%s4911 + $0x68] sm:$0xff]
    %v4926 = vld [vmem:[%s4911 + $0x70] sm:$0xff]
    %v4927 = vld [vmem:[%s4911 + $0x78] sm:$0xff]
    %v4928 = vld [vmem:[%s4911 + $0x80] sm:$0xff]
    %v4929 = vld [vmem:[%s4911 + $0x88] sm:$0xff]
    %v4930 = vld [vmem:[%s4911 + $0x90] sm:$0xff]
    %v4931 = vld [vmem:[%s4911 + $0x98] sm:$0xff]
    %v4932 = vld [vmem:[%s4911 + $0xa0] sm:$0xff]
    %v4933 = vld [vmem:[%s4911 + $0xa8] sm:$0xff]
    %v4934 = vld [vmem:[%s4911 + $0xb0] sm:$0xff]
    %v4935 = vld [vmem:[%s4911 + $0xb8] sm:$0xff]
    %v4936 = vld [vmem:[%s4911 + $0xc0] sm:$0xff]
    %v4937 = vld [vmem:[%s4911 + $0xc8] sm:$0xff]
    %v4938 = vld [vmem:[%s4911 + $0xd0] sm:$0xff]
    %v4939 = vld [vmem:[%s4911 + $0xd8] sm:$0xff]
    %4940 = vrot.lane.b32.xlu0 %v4769, 120
    %v4941 = vpop.permute.xlu0 %4940
    %4942 = vrot.lane.b32.xlu0 %v4770, 120
    %v4943 = vpop.permute.xlu0 %4942
    %4944 = vrot.lane.b32.xlu0 %v4771, 120
    %v4945 = vpop.permute.xlu0 %4944
    %4946 = vrot.lane.b32.xlu0 %v4772, 120
    %v4947 = vpop.permute.xlu0 %4946
    %v4948 = vsel %vm4006, %v4941, 0
    %v4950 = vsel %vm4006, %v4943, 0
    %v4952 = vsel %vm4006, %v4945, 0
    %v4954 = vsel %vm4006, %v4947, 0
    %4956 = vmatprep.subr.mxu0 0.0
    %4957 = vmatpush1.msra.mxu0 0.0
    %4958 = vmatprep.subr.mxu0 0.0
    %4959 = vmatpush1.msra.mxu0 0.0
    %4960 = vmatprep.subr.mxu0 %v4939
    %4961 = vmatpush1.msra.mxu0 %v4938
    %4962 = vmatprep.subr.mxu0 %v4937
    %4963 = vmatpush1.msra.mxu0 %v4936
    %4964 = vmatprep.subr.mxu0 %v4935
    %4965 = vmatpush1.msra.mxu0 %v4934
    %4966 = vmatprep.subr.mxu0 %v4933
    %4967 = vmatpush1.msra.mxu0 %v4932
    %4968 = vmatprep.subr.mxu0 %v4931
    %4969 = vmatpush1.msra.mxu0 %v4930
    %4970 = vmatprep.subr.mxu0 %v4929
    %4971 = vmatpush1.msra.mxu0 %v4928
    %4972 = vmatprep.subr.mxu0 %v4927
    %4973 = vmatpush1.msra.mxu0 %v4926
    %4974 = vmatprep.subr.mxu0 %v4925
    %4975 = vmatpush1.msra.mxu0 %v4924
    %4976 = vmatprep.subr.mxu0 %v4923
    %4977 = vmatpush1.msra.mxu0 %v4922
    %4978 = vmatprep.subr.mxu0 %v4921
    %4979 = vmatpush1.msra.mxu0 %v4920
    %4980 = vmatprep.subr.mxu0 %v4919
    %4981 = vmatpush1.msra.mxu0 %v4918
    %4982 = vmatprep.subr.mxu0 %v4917
    %4983 = vmatpush1.msra.mxu0 %v4916
    %4984 = vmatprep.subr.mxu0 %v4915
    %4985 = vmatpush1.msra.mxu0 %v4914
    %4986 = vmatprep.subr.mxu0 %v4913
    %4987 = vmatpush1.msra.mxu0 %v4912
    %4988 = vmatprep.subr.mxu0 0.0
    %4989 = vmatpush2.msra.mxu0 0.0
    %4990 = vmatprep.subr.mxu0 0.0
    %4991 = vmatpush2.msra.mxu0 0.0
    %4992 = vmatprep.subr.mxu0 0.0
    %4993 = vmatpush2.msra.mxu0 0.0
    %4994 = vmatprep.subr.mxu0 0.0
    %4995 = vmatpush2.msra.mxu0 0.0
    %4996 = vmatprep.subr.mxu0 0.0
    %4997 = vmatpush2.msra.mxu0 0.0
    %4998 = vmatprep.subr.mxu0 0.0
    %4999 = vmatpush2.msra.mxu0 0.0
    %5000 = vmatprep.subr.mxu0 0.0
    %5001 = vmatpush2.msra.mxu0 0.0
    %5002 = vmatprep.subr.mxu0 0.0
    %5003 = vmatpush2.msra.mxu0 0.0
    %5004 = vmatprep.subr.mxu0 0.0
    %5005 = vmatpush2.msra.mxu0 0.0
    %5006 = vmatprep.subr.mxu0 0.0
    %5007 = vmatpush2.msra.mxu0 0.0
    %5008 = vmatprep.subr.mxu0 0.0
    %5009 = vmatpush2.msra.mxu0 0.0
    %5010 = vmatprep.subr.mxu0 0.0
    %5011 = vmatpush2.msra.mxu0 0.0
    %5012 = vmatprep.subr.mxu0 0.0
    %5013 = vmatpush2.msra.mxu0 0.0
    %5014 = vmatprep.subr.mxu0 0.0
    %5015 = vmatpush2.msra.mxu0 0.0
    %5016 = vmatprep.subr.mxu0 0.0
    %5017 = vmatpush2.msra.mxu0 0.0
    %5018 = vmatprep.subr.mxu0 0.0
    %5019 = vmatpush2.msra.mxu0 0.0
    %5020 = vmatprep.mubr.f32.mxu0 0.0
    %5021 = vmatmul.mubr.f32.gmra.mxu0 %v4948
    %v5022 = vpop.f32.mrf.mxu0
    %v5023 = vadd.f32 0.0, %v5022
    %v5024 = vpop.f32.mrf.mxu0
    %v5025 = vadd.f32 0.0, %v5024
    %5026 = vmatprep.mubr.f32.mxu0 0.0
    %5027 = vmatmul.mubr.f32.gmra.mxu0 %v4950
    %v5028 = vpop.f32.mrf.mxu0
    %v5029 = vadd.f32 0.0, %v5028
    %v5030 = vpop.f32.mrf.mxu0
    %v5031 = vadd.f32 0.0, %v5030
    %5032 = vmatprep.mubr.f32.mxu0 0.0
    %5033 = vmatmul.mubr.f32.gmra.mxu0 %v4952
    %v5034 = vpop.f32.mrf.mxu0
    %v5035 = vadd.f32 0.0, %v5034
    %v5036 = vpop.f32.mrf.mxu0
    %v5037 = vadd.f32 0.0, %v5036
    %5038 = vmatprep.mubr.f32.mxu0 0.0
    %5039 = vmatmul.mubr.f32.gmra.mxu0 %v4954
    %v5040 = vpop.f32.mrf.mxu0
    %v5041 = vadd.f32 0.0, %v5040
    %v5042 = vpop.f32.mrf.mxu0
    %v5043 = vadd.f32 0.0, %v5042
    %5044 = vdwg.mxu0
    %v5045 = vadd.f32 %v4903, %v5023
    %v5046 = vadd.f32 %v4904, %v5025
    %v5047 = vadd.f32 %v4905, %v5029
    %v5048 = vadd.f32 %v4906, %v5031
    %v5049 = vadd.f32 %v4907, %v5035
    %v5050 = vadd.f32 %v4908, %v5037
    %v5051 = vadd.f32 %v4909, %v5041
    %v5052 = vadd.f32 %v4910, %v5043
    %s5053 = scalar_lea.vmem [#allocation11], 1792
    %v5054 = vld [vmem:[%s5053] sm:$0xff]
    %v5055 = vld [vmem:[%s5053 + $0x8] sm:$0xff]
    %v5056 = vld [vmem:[%s5053 + $0x10] sm:$0xff]
    %v5057 = vld [vmem:[%s5053 + $0x18] sm:$0xff]
    %v5058 = vld [vmem:[%s5053 + $0x20] sm:$0xff]
    %v5059 = vld [vmem:[%s5053 + $0x28] sm:$0xff]
    %v5060 = vld [vmem:[%s5053 + $0x30] sm:$0xff]
    %v5061 = vld [vmem:[%s5053 + $0x38] sm:$0xff]
    %v5062 = vld [vmem:[%s5053 + $0x40] sm:$0xff]
    %v5063 = vld [vmem:[%s5053 + $0x48] sm:$0xff]
    %v5064 = vld [vmem:[%s5053 + $0x50] sm:$0xff]
    %v5065 = vld [vmem:[%s5053 + $0x58] sm:$0xff]
    %v5066 = vld [vmem:[%s5053 + $0x60] sm:$0xff]
    %v5067 = vld [vmem:[%s5053 + $0x68] sm:$0xff]
    %v5068 = vld [vmem:[%s5053 + $0x70] sm:$0xff]
    %v5069 = vld [vmem:[%s5053 + $0x78] sm:$0xff]
    %v5070 = vld [vmem:[%s5053 + $0x80] sm:$0xff]
    %v5071 = vld [vmem:[%s5053 + $0x88] sm:$0xff]
    %v5072 = vld [vmem:[%s5053 + $0x90] sm:$0xff]
    %v5073 = vld [vmem:[%s5053 + $0x98] sm:$0xff]
    %v5074 = vld [vmem:[%s5053 + $0xa0] sm:$0xff]
    %v5075 = vld [vmem:[%s5053 + $0xa8] sm:$0xff]
    %v5076 = vld [vmem:[%s5053 + $0xb0] sm:$0xff]
    %v5077 = vld [vmem:[%s5053 + $0xb8] sm:$0xff]
    %v5078 = vld [vmem:[%s5053 + $0xc0] sm:$0xff]
    %v5079 = vld [vmem:[%s5053 + $0xc8] sm:$0xff]
    %v5080 = vld [vmem:[%s5053 + $0xd0] sm:$0xff]
    %v5081 = vld [vmem:[%s5053 + $0xd8] sm:$0xff]
    %5082 = vrot.lane.b32.xlu0 %v4769, 112
    %v5083 = vpop.permute.xlu0 %5082
    %5084 = vrot.lane.b32.xlu0 %v4770, 112
    %v5085 = vpop.permute.xlu0 %5084
    %5086 = vrot.lane.b32.xlu0 %v4771, 112
    %v5087 = vpop.permute.xlu0 %5086
    %5088 = vrot.lane.b32.xlu0 %v4772, 112
    %v5089 = vpop.permute.xlu0 %5088
    %v5090 = vsel %vm4006, %v5083, 0
    %v5092 = vsel %vm4006, %v5085, 0
    %v5094 = vsel %vm4006, %v5087, 0
    %v5096 = vsel %vm4006, %v5089, 0
    %5098 = vmatprep.subr.mxu0 0.0
    %5099 = vmatpush1.msra.mxu0 0.0
    %5100 = vmatprep.subr.mxu0 0.0
    %5101 = vmatpush1.msra.mxu0 0.0
    %5102 = vmatprep.subr.mxu0 %v5081
    %5103 = vmatpush1.msra.mxu0 %v5080
    %5104 = vmatprep.subr.mxu0 %v5079
    %5105 = vmatpush1.msra.mxu0 %v5078
    %5106 = vmatprep.subr.mxu0 %v5077
    %5107 = vmatpush1.msra.mxu0 %v5076
    %5108 = vmatprep.subr.mxu0 %v5075
    %5109 = vmatpush1.msra.mxu0 %v5074
    %5110 = vmatprep.subr.mxu0 %v5073
    %5111 = vmatpush1.msra.mxu0 %v5072
    %5112 = vmatprep.subr.mxu0 %v5071
    %5113 = vmatpush1.msra.mxu0 %v5070
    %5114 = vmatprep.subr.mxu0 %v5069
    %5115 = vmatpush1.msra.mxu0 %v5068
    %5116 = vmatprep.subr.mxu0 %v5067
    %5117 = vmatpush1.msra.mxu0 %v5066
    %5118 = vmatprep.subr.mxu0 %v5065
    %5119 = vmatpush1.msra.mxu0 %v5064
    %5120 = vmatprep.subr.mxu0 %v5063
    %5121 = vmatpush1.msra.mxu0 %v5062
    %5122 = vmatprep.subr.mxu0 %v5061
    %5123 = vmatpush1.msra.mxu0 %v5060
    %5124 = vmatprep.subr.mxu0 %v5059
    %5125 = vmatpush1.msra.mxu0 %v5058
    %5126 = vmatprep.subr.mxu0 %v5057
    %5127 = vmatpush1.msra.mxu0 %v5056
    %5128 = vmatprep.subr.mxu0 %v5055
    %5129 = vmatpush1.msra.mxu0 %v5054
    %5130 = vmatprep.subr.mxu0 0.0
    %5131 = vmatpush2.msra.mxu0 0.0
    %5132 = vmatprep.subr.mxu0 0.0
    %5133 = vmatpush2.msra.mxu0 0.0
    %5134 = vmatprep.subr.mxu0 0.0
    %5135 = vmatpush2.msra.mxu0 0.0
    %5136 = vmatprep.subr.mxu0 0.0
    %5137 = vmatpush2.msra.mxu0 0.0
    %5138 = vmatprep.subr.mxu0 0.0
    %5139 = vmatpush2.msra.mxu0 0.0
    %5140 = vmatprep.subr.mxu0 0.0
    %5141 = vmatpush2.msra.mxu0 0.0
    %5142 = vmatprep.subr.mxu0 0.0
    %5143 = vmatpush2.msra.mxu0 0.0
    %5144 = vmatprep.subr.mxu0 0.0
    %5145 = vmatpush2.msra.mxu0 0.0
    %5146 = vmatprep.subr.mxu0 0.0
    %5147 = vmatpush2.msra.mxu0 0.0
    %5148 = vmatprep.subr.mxu0 0.0
    %5149 = vmatpush2.msra.mxu0 0.0
    %5150 = vmatprep.subr.mxu0 0.0
    %5151 = vmatpush2.msra.mxu0 0.0
    %5152 = vmatprep.subr.mxu0 0.0
    %5153 = vmatpush2.msra.mxu0 0.0
    %5154 = vmatprep.subr.mxu0 0.0
    %5155 = vmatpush2.msra.mxu0 0.0
    %5156 = vmatprep.subr.mxu0 0.0
    %5157 = vmatpush2.msra.mxu0 0.0
    %5158 = vmatprep.subr.mxu0 0.0
    %5159 = vmatpush2.msra.mxu0 0.0
    %5160 = vmatprep.subr.mxu0 0.0
    %5161 = vmatpush2.msra.mxu0 0.0
    %5162 = vmatprep.mubr.f32.mxu0 0.0
    %5163 = vmatmul.mubr.f32.gmra.mxu0 %v5090
    %v5164 = vpop.f32.mrf.mxu0
    %v5165 = vadd.f32 0.0, %v5164
    %v5166 = vpop.f32.mrf.mxu0
    %v5167 = vadd.f32 0.0, %v5166
    %5168 = vmatprep.mubr.f32.mxu0 0.0
    %5169 = vmatmul.mubr.f32.gmra.mxu0 %v5092
    %v5170 = vpop.f32.mrf.mxu0
    %v5171 = vadd.f32 0.0, %v5170
    %v5172 = vpop.f32.mrf.mxu0
    %v5173 = vadd.f32 0.0, %v5172
    %5174 = vmatprep.mubr.f32.mxu0 0.0
    %5175 = vmatmul.mubr.f32.gmra.mxu0 %v5094
    %v5176 = vpop.f32.mrf.mxu0
    %v5177 = vadd.f32 0.0, %v5176
    %v5178 = vpop.f32.mrf.mxu0
    %v5179 = vadd.f32 0.0, %v5178
    %5180 = vmatprep.mubr.f32.mxu0 0.0
    %5181 = vmatmul.mubr.f32.gmra.mxu0 %v5096
    %v5182 = vpop.f32.mrf.mxu0
    %v5183 = vadd.f32 0.0, %v5182
    %v5184 = vpop.f32.mrf.mxu0
    %v5185 = vadd.f32 0.0, %v5184
    %5186 = vdwg.mxu0
    %v5187 = vadd.f32 %v5045, %v5165
    %v5188 = vadd.f32 %v5046, %v5167
    %v5189 = vadd.f32 %v5047, %v5171
    %v5190 = vadd.f32 %v5048, %v5173
    %v5191 = vadd.f32 %v5049, %v5177
    %v5192 = vadd.f32 %v5050, %v5179
    %v5193 = vadd.f32 %v5051, %v5183
    %v5194 = vadd.f32 %v5052, %v5185
    %vm5195 = vcmp.lt.s32.totalorder %v1715, 0
    %v5196 = vsub.s32 0, %v1715
    %v5197 = vsel %vm5195, %v5196, %v1715
    %v5198 = vshrl.u32 %v5197, 4
    %v5199 = vand.u32 %v5197, 15
    %v5200 = vsub.s32 0, %v5199
    %v5201 = vsel %vm5195, %v5200, %v5199
    %vm5202 = vcmp.lt.s32.totalorder %v1716, 0
    %v5203 = vsub.s32 0, %v1716
    %v5204 = vsel %vm5202, %v5203, %v1716
    %v5205 = vshrl.u32 %v5204, 4
    %v5206 = vand.u32 %v5204, 15
    %v5207 = vsub.s32 0, %v5206
    %v5208 = vsel %vm5202, %v5207, %v5206
    %vm5209 = vcmp.lt.s32.totalorder %v1717, 0
    %v5210 = vsub.s32 0, %v1717
    %v5211 = vsel %vm5209, %v5210, %v1717
    %v5212 = vshrl.u32 %v5211, 4
    %v5213 = vand.u32 %v5211, 15
    %v5214 = vsub.s32 0, %v5213
    %v5215 = vsel %vm5209, %v5214, %v5213
    %vm5216 = vcmp.lt.s32.totalorder %v1718, 0
    %v5217 = vsub.s32 0, %v1718
    %v5218 = vsel %vm5216, %v5217, %v1718
    %v5219 = vshrl.u32 %v5218, 4
    %v5220 = vand.u32 %v5218, 15
    %v5221 = vsub.s32 0, %v5220
    %v5222 = vsel %vm5216, %v5221, %v5220
    %vm5223 = vcmp.ne.s32.totalorder %v5201, 0
    %vm5224 = vcmp.ne.s32.totalorder %v5208, 0
    %vm5225 = vcmp.ne.s32.totalorder %v5215, 0
    %vm5226 = vcmp.ne.s32.totalorder %v5222, 0
    %vm5227 = vcmp.lt.s32.totalorder %v5201, 0
    %vm5228 = vcmp.lt.s32.totalorder %v5208, 0
    %vm5229 = vcmp.lt.s32.totalorder %v5215, 0
    %vm5230 = vcmp.lt.s32.totalorder %v5222, 0
    %vm5231 = vmand %vm5227, %vm5223
    %vm5232 = vmand %vm5228, %vm5224
    %vm5233 = vmand %vm5229, %vm5225
    %vm5234 = vmand %vm5230, %vm5226
    %v5235 = vadd.s32 %v5201, 16
    %v5236 = vadd.s32 %v5208, 16
    %v5237 = vadd.s32 %v5215, 16
    %v5238 = vadd.s32 %v5222, 16
    %v5239 = vsel %vm5231, %v5235, %v5201
    %v5240 = vsel %vm5232, %v5236, %v5208
    %v5241 = vsel %vm5233, %v5237, %v5215
    %v5242 = vsel %vm5234, %v5238, %v5222
    %vm5243 = vcmp.lt.s32.totalorder %v5239, 14
    %vm5244 = vcmp.lt.s32.totalorder %v5240, 14
    %vm5245 = vcmp.lt.s32.totalorder %v5241, 14
    %vm5246 = vcmp.lt.s32.totalorder %v5242, 14
    %v5247 = vsel %vm5243, 1, 0
    %v5248 = vsel %vm5244, 1, 0
    %v5249 = vsel %vm5245, 1, 0
    %v5250 = vsel %vm5246, 1, 0
    %vm5251 = vcmp.eq.s32.totalorder %v5247, 1
    %vm5252 = vcmp.eq.s32.totalorder %v5248, 1
    %vm5253 = vcmp.eq.s32.totalorder %v5249, 1
    %vm5254 = vcmp.eq.s32.totalorder %v5250, 1
    %v5255 = vsel %vm5251, %v5187, 0.0
    %v5256 = vsel %vm5251, %v5188, 0.0
    %v5257 = vsel %vm5252, %v5189, 0.0
    %v5258 = vsel %vm5252, %v5190, 0.0
    %v5259 = vsel %vm5253, %v5191, 0.0
    %v5260 = vsel %vm5253, %v5192, 0.0
    %v5261 = vsel %vm5254, %v5193, 0.0
    %v5262 = vsel %vm5254, %v5194, 0.0
    %v5263 = vadd.f32 %v5255, %v5257
    %v5264 = vadd.f32 %v5263, %v5259
    %vm5265 = vcmask 1045504
    %v5266 = vsel %vm5265, %v5261, 0.0
    %v5267 = vadd.f32 %v5264, %v5266
    %v5268 = vrot.slane %v5267, 4
    %v5269 = vadd.f32 %v5267, %v5268
    %v5270 = vrot.slane %v5269, 2
    %v5271 = vadd.f32 %v5269, %v5270
    %v5272 = vrot.slane %v5271, 1
    %v5273 = vadd.f32 %v5271, %v5272
    %v5274 = vsel %vm1906, %v5256, 0.0
    %v5275 = vsel %vm1906, %v5258, 0.0
    %v5276 = vadd.f32 %v5274, %v5275
    %v5277 = vsel %vm1906, %v5260, 0.0
    %v5278 = vadd.f32 %v5276, %v5277
    %vm5279 = vcmask 783360
    %v5280 = vsel %vm5279, %v5262, 0.0
    %v5281 = vadd.f32 %v5278, %v5280
    %v5282 = vrot.slane %v5281, 4
    %v5283 = vadd.f32 %v5281, %v5282
    %v5284 = vrot.slane %v5283, 2
    %v5285 = vadd.f32 %v5283, %v5284
    %v5286 = vrot.slane %v5285, 1
    %v5287 = vadd.f32 %v5285, %v5286
    %v5288 = vmul.f32 %v5255, %v5255
    %v5289 = vmul.f32 %v5256, %v5256
    %v5290 = vmul.f32 %v5257, %v5257
    %v5291 = vmul.f32 %v5258, %v5258
    %v5292 = vmul.f32 %v5259, %v5259
    %v5293 = vmul.f32 %v5260, %v5260
    %v5294 = vmul.f32 %v5261, %v5261
    %v5295 = vmul.f32 %v5262, %v5262
    %v5296 = vadd.f32 %v5288, %v5290
    %v5297 = vadd.f32 %v5296, %v5292
    %v5298 = vsel %vm5265, %v5294, 0.0
    %v5299 = vadd.f32 %v5297, %v5298
    %v5300 = vrot.slane %v5299, 4
    %v5301 = vadd.f32 %v5299, %v5300
    %v5302 = vrot.slane %v5301, 2
    %v5303 = vadd.f32 %v5301, %v5302
    %v5304 = vrot.slane %v5303, 1
    %v5305 = vadd.f32 %v5303, %v5304
    %v5306 = vsel %vm1906, %v5289, 0.0
    %v5307 = vsel %vm1906, %v5291, 0.0
    %v5308 = vadd.f32 %v5306, %v5307
    %v5309 = vsel %vm1906, %v5293, 0.0
    %v5310 = vadd.f32 %v5308, %v5309
    %v5311 = vsel %vm5279, %v5295, 0.0
    %v5312 = vadd.f32 %v5310, %v5311
    %v5313 = vrot.slane %v5312, 4
    %v5314 = vadd.f32 %v5312, %v5313
    %v5315 = vrot.slane %v5314, 2
    %v5316 = vadd.f32 %v5314, %v5315
    %v5317 = vrot.slane %v5316, 1
    %v5318 = vadd.f32 %v5316, %v5317
    %v5319 = vld [vmem:[%s8] sm:$0xff]
    %v5320 = vld [vmem:[%s8 + $0x8] sm:$0xff]
    %v5321 = vld [vmem:[%s8 + $0x10] sm:$0xff]
    %v5322 = vld [vmem:[%s8 + $0x18] sm:$0xff]
    %v5323 = vld [vmem:[%s8 + $0x20] sm:$0xff]
    %v5324 = vld [vmem:[%s8 + $0x28] sm:$0xff]
    %v5325 = vld [vmem:[%s8 + $0x30] sm:$0xff]
    %v5326 = vld [vmem:[%s8 + $0x38] sm:$0xff]
    %v5327 = vld [vmem:[%s8 + $0x40] sm:$0xff]
    %v5328 = vld [vmem:[%s8 + $0x48] sm:$0xff]
    %v5329 = vld [vmem:[%s8 + $0x50] sm:$0xff]
    %v5330 = vld [vmem:[%s8 + $0x58] sm:$0xff]
    %v5331 = vld [vmem:[%s8 + $0x60] sm:$0xff]
    %v5332 = vld [vmem:[%s8 + $0x68] sm:$0xff]
    %v5333 = vld [vmem:[%s8 + $0x70] sm:$0xff]
    %v5334 = vld [vmem:[%s8 + $0x78] sm:$0xff]
    %v5335 = vld [vmem:[%s8 + $0x80] sm:$0xff]
    %v5336 = vld [vmem:[%s8 + $0x88] sm:$0xff]
    %v5337 = vld [vmem:[%s8 + $0x90] sm:$0xff]
    %v5338 = vld [vmem:[%s8 + $0x98] sm:$0xff]
    %v5339 = vld [vmem:[%s8 + $0xa0] sm:$0xff]
    %v5340 = vld [vmem:[%s8 + $0xa8] sm:$0xff]
    %v5341 = vld [vmem:[%s8 + $0xb0] sm:$0xff]
    %v5342 = vld [vmem:[%s8 + $0xb8] sm:$0xff]
    %v5343 = vld [vmem:[%s8 + $0xc0] sm:$0xff]
    %v5344 = vld [vmem:[%s8 + $0xc8] sm:$0xff]
    %v5345 = vld [vmem:[%s8 + $0xd0] sm:$0xff]
    %v5346 = vld [vmem:[%s8 + $0xd8] sm:$0xff]
    %v5348 = vsel %vm1906, %v5287, 0
    %5350 = vmatprep.subr.mxu0 0.0
    %5351 = vmatpush1.msra.mxu0 %v5334
    %5352 = vmatprep.subr.mxu0 0.0
    %5353 = vmatpush1.msra.mxu0 %v5333
    %5354 = vmatprep.subr.mxu0 0.0
    %5355 = vmatpush1.msra.mxu0 %v5332
    %5356 = vmatprep.subr.mxu0 0.0
    %5357 = vmatpush1.msra.mxu0 %v5331
    %5358 = vmatprep.subr.mxu0 0.0
    %5359 = vmatpush1.msra.mxu0 %v5330
    %5360 = vmatprep.subr.mxu0 0.0
    %5361 = vmatpush1.msra.mxu0 %v5329
    %5362 = vmatprep.subr.mxu0 0.0
    %5363 = vmatpush1.msra.mxu0 %v5328
    %5364 = vmatprep.subr.mxu0 0.0
    %5365 = vmatpush1.msra.mxu0 %v5327
    %5366 = vmatprep.subr.mxu0 0.0
    %5367 = vmatpush1.msra.mxu0 %v5326
    %5368 = vmatprep.subr.mxu0 0.0
    %5369 = vmatpush1.msra.mxu0 %v5325
    %5370 = vmatprep.subr.mxu0 0.0
    %5371 = vmatpush1.msra.mxu0 %v5324
    %5372 = vmatprep.subr.mxu0 0.0
    %5373 = vmatpush1.msra.mxu0 %v5323
    %5374 = vmatprep.subr.mxu0 0.0
    %5375 = vmatpush1.msra.mxu0 %v5322
    %5376 = vmatprep.subr.mxu0 0.0
    %5377 = vmatpush1.msra.mxu0 %v5321
    %5378 = vmatprep.subr.mxu0 0.0
    %5379 = vmatpush1.msra.mxu0 %v5320
    %5380 = vmatprep.subr.mxu0 0.0
    %5381 = vmatpush1.msra.mxu0 %v5319
    %5382 = vmatprep.subr.mxu0 0.0
    %5383 = vmatpush2.msra.mxu0 0.0
    %5384 = vmatprep.subr.mxu0 0.0
    %5385 = vmatpush2.msra.mxu0 0.0
    %5386 = vmatprep.subr.mxu0 0.0
    %5387 = vmatpush2.msra.mxu0 0.0
    %5388 = vmatprep.subr.mxu0 0.0
    %5389 = vmatpush2.msra.mxu0 0.0
    %5390 = vmatprep.subr.mxu0 0.0
    %5391 = vmatpush2.msra.mxu0 %v5346
    %5392 = vmatprep.subr.mxu0 0.0
    %5393 = vmatpush2.msra.mxu0 %v5345
    %5394 = vmatprep.subr.mxu0 0.0
    %5395 = vmatpush2.msra.mxu0 %v5344
    %5396 = vmatprep.subr.mxu0 0.0
    %5397 = vmatpush2.msra.mxu0 %v5343
    %5398 = vmatprep.subr.mxu0 0.0
    %5399 = vmatpush2.msra.mxu0 %v5342
    %5400 = vmatprep.subr.mxu0 0.0
    %5401 = vmatpush2.msra.mxu0 %v5341
    %5402 = vmatprep.subr.mxu0 0.0
    %5403 = vmatpush2.msra.mxu0 %v5340
    %5404 = vmatprep.subr.mxu0 0.0
    %5405 = vmatpush2.msra.mxu0 %v5339
    %5406 = vmatprep.subr.mxu0 0.0
    %5407 = vmatpush2.msra.mxu0 %v5338
    %5408 = vmatprep.subr.mxu0 0.0
    %5409 = vmatpush2.msra.mxu0 %v5337
    %5410 = vmatprep.subr.mxu0 0.0
    %5411 = vmatpush2.msra.mxu0 %v5336
    %5412 = vmatprep.subr.mxu0 0.0
    %5413 = vmatpush2.msra.mxu0 %v5335
    %5414 = vmatprep.mubr.f32.mxu0 %v5348
    %5415 = vmatmul.mubr.f32.gmra.mxu0 %v5273
    %v5416 = vpop.f32.mrf.mxu0
    %v5417 = vadd.f32 0.0, %v5416
    %v5418 = vpop.f32.mrf.mxu0
    %5419 = vdwg.mxu0
    %v5421 = vsel %vm1906, %v5318, 0
    %5423 = vmatprep.subr.mxu0 0.0
    %5424 = vmatpush1.msra.mxu0 %v5334
    %5425 = vmatprep.subr.mxu0 0.0
    %5426 = vmatpush1.msra.mxu0 %v5333
    %5427 = vmatprep.subr.mxu0 0.0
    %5428 = vmatpush1.msra.mxu0 %v5332
    %5429 = vmatprep.subr.mxu0 0.0
    %5430 = vmatpush1.msra.mxu0 %v5331
    %5431 = vmatprep.subr.mxu0 0.0
    %5432 = vmatpush1.msra.mxu0 %v5330
    %5433 = vmatprep.subr.mxu0 0.0
    %5434 = vmatpush1.msra.mxu0 %v5329
    %5435 = vmatprep.subr.mxu0 0.0
    %5436 = vmatpush1.msra.mxu0 %v5328
    %5437 = vmatprep.subr.mxu0 0.0
    %5438 = vmatpush1.msra.mxu0 %v5327
    %5439 = vmatprep.subr.mxu0 0.0
    %5440 = vmatpush1.msra.mxu0 %v5326
    %5441 = vmatprep.subr.mxu0 0.0
    %5442 = vmatpush1.msra.mxu0 %v5325
    %5443 = vmatprep.subr.mxu0 0.0
    %5444 = vmatpush1.msra.mxu0 %v5324
    %5445 = vmatprep.subr.mxu0 0.0
    %5446 = vmatpush1.msra.mxu0 %v5323
    %5447 = vmatprep.subr.mxu0 0.0
    %5448 = vmatpush1.msra.mxu0 %v5322
    %5449 = vmatprep.subr.mxu0 0.0
    %5450 = vmatpush1.msra.mxu0 %v5321
    %5451 = vmatprep.subr.mxu0 0.0
    %5452 = vmatpush1.msra.mxu0 %v5320
    %5453 = vmatprep.subr.mxu0 0.0
    %5454 = vmatpush1.msra.mxu0 %v5319
    %5455 = vmatprep.subr.mxu0 0.0
    %5456 = vmatpush2.msra.mxu0 0.0
    %5457 = vmatprep.subr.mxu0 0.0
    %5458 = vmatpush2.msra.mxu0 0.0
    %5459 = vmatprep.subr.mxu0 0.0
    %5460 = vmatpush2.msra.mxu0 0.0
    %5461 = vmatprep.subr.mxu0 0.0
    %5462 = vmatpush2.msra.mxu0 0.0
    %5463 = vmatprep.subr.mxu0 0.0
    %5464 = vmatpush2.msra.mxu0 %v5346
    %5465 = vmatprep.subr.mxu0 0.0
    %5466 = vmatpush2.msra.mxu0 %v5345
    %5467 = vmatprep.subr.mxu0 0.0
    %5468 = vmatpush2.msra.mxu0 %v5344
    %5469 = vmatprep.subr.mxu0 0.0
    %5470 = vmatpush2.msra.mxu0 %v5343
    %5471 = vmatprep.subr.mxu0 0.0
    %5472 = vmatpush2.msra.mxu0 %v5342
    %5473 = vmatprep.subr.mxu0 0.0
    %5474 = vmatpush2.msra.mxu0 %v5341
    %5475 = vmatprep.subr.mxu0 0.0
    %5476 = vmatpush2.msra.mxu0 %v5340
    %5477 = vmatprep.subr.mxu0 0.0
    %5478 = vmatpush2.msra.mxu0 %v5339
    %5479 = vmatprep.subr.mxu0 0.0
    %5480 = vmatpush2.msra.mxu0 %v5338
    %5481 = vmatprep.subr.mxu0 0.0
    %5482 = vmatpush2.msra.mxu0 %v5337
    %5483 = vmatprep.subr.mxu0 0.0
    %5484 = vmatpush2.msra.mxu0 %v5336
    %5485 = vmatprep.subr.mxu0 0.0
    %5486 = vmatpush2.msra.mxu0 %v5335
    %5487 = vmatprep.mubr.f32.mxu0 %v5421
    %5488 = vmatmul.mubr.f32.gmra.mxu0 %v5305
    %v5489 = vpop.f32.mrf.mxu0
    %v5490 = vadd.f32 0.0, %v5489
    %v5491 = vpop.f32.mrf.mxu0
    %5492 = vdwg.mxu0
    %v5493 = vmul.f32 %v5417, 0.0025510204
    %v5494 = vmul.f32 %v5490, 0.0025510204
    %v5495 = vmul.f32 %v5493, %v5493
    %v5496 = vsub.f32 %v5494, %v5495
    %v5497 = vmax.f32 %v5496, 0.0
    %v5498 = vld [vmem:[%s10] sm:$0x1]
    %v5499 = vadd.f32 %v5497, 1e-05
    %v5500 = vrsqrt.pop %v5499
    %v5501 = vmul.f32 %v5498, %v5500
    %v5502 = vld [vmem:[%s11] sm:$0x1]
    %v5503 = vmul.f32 %v5501, %v5493
    %v5504 = vsub.f32 %v5502, %v5503
    %v5505 = vld [vmem:[%s9] sm:$0xff]
    %v5506 = vld [vmem:[%s9 + $0x8] sm:$0xff]
    %v5507 = vld [vmem:[%s9 + $0x10] sm:$0xff]
    %v5508 = vld [vmem:[%s9 + $0x18] sm:$0xff]
    %vm5509 = vcmask 130048
    %v5511 = vsel %vm5509, %v5501, 0
    %5513 = vmatprep.subr.mxu0 0.0
    %5514 = vmatpush1.msra.mxu0 0.0
    %5515 = vmatprep.subr.mxu0 0.0
    %5516 = vmatpush1.msra.mxu0 0.0
    %5517 = vmatprep.subr.mxu0 0.0
    %5518 = vmatpush1.msra.mxu0 0.0
    %5519 = vmatprep.subr.mxu0 0.0
    %5520 = vmatpush1.msra.mxu0 0.0
    %5521 = vmatprep.subr.mxu0 0.0
    %5522 = vmatpush1.msra.mxu0 0.0
    %5523 = vmatprep.subr.mxu0 0.0
    %5524 = vmatpush1.msra.mxu0 0.0
    %5525 = vmatprep.subr.mxu0 0.0
    %5526 = vmatpush1.msra.mxu0 0.0
    %5527 = vmatprep.subr.mxu0 0.0
    %5528 = vmatpush1.msra.mxu0 0.0
    %5529 = vmatprep.subr.mxu0 0.0
    %5530 = vmatpush1.msra.mxu0 0.0
    %5531 = vmatprep.subr.mxu0 0.0
    %5532 = vmatpush1.msra.mxu0 0.0
    %5533 = vmatprep.subr.mxu0 0.0
    %5534 = vmatpush1.msra.mxu0 0.0
    %5535 = vmatprep.subr.mxu0 0.0
    %5536 = vmatpush1.msra.mxu0 0.0
    %5537 = vmatprep.subr.mxu0 0.0
    %5538 = vmatpush1.msra.mxu0 0.0
    %5539 = vmatprep.subr.mxu0 0.0
    %5540 = vmatpush1.msra.mxu0 0.0
    %5541 = vmatprep.subr.mxu0 %v5508
    %5542 = vmatpush1.msra.mxu0 %v5507
    %5543 = vmatprep.subr.mxu0 %v5506
    %5544 = vmatpush1.msra.mxu0 %v5505
    %5545 = vmatprep.subr.mxu0 0.0
    %5546 = vmatpush2.msra.mxu0 0.0
    %5547 = vmatprep.subr.mxu0 0.0
    %5548 = vmatpush2.msra.mxu0 0.0
    %5549 = vmatprep.subr.mxu0 0.0
    %5550 = vmatpush2.msra.mxu0 0.0
    %5551 = vmatprep.subr.mxu0 0.0
    %5552 = vmatpush2.msra.mxu0 0.0
    %5553 = vmatprep.subr.mxu0 0.0
    %5554 = vmatpush2.msra.mxu0 0.0
    %5555 = vmatprep.subr.mxu0 0.0
    %5556 = vmatpush2.msra.mxu0 0.0
    %5557 = vmatprep.subr.mxu0 0.0
    %5558 = vmatpush2.msra.mxu0 0.0
    %5559 = vmatprep.subr.mxu0 0.0
    %5560 = vmatpush2.msra.mxu0 0.0
    %5561 = vmatprep.subr.mxu0 0.0
    %5562 = vmatpush2.msra.mxu0 0.0
    %5563 = vmatprep.subr.mxu0 0.0
    %5564 = vmatpush2.msra.mxu0 0.0
    %5565 = vmatprep.subr.mxu0 0.0
    %5566 = vmatpush2.msra.mxu0 0.0
    %5567 = vmatprep.subr.mxu0 0.0
    %5568 = vmatpush2.msra.mxu0 0.0
    %5569 = vmatprep.subr.mxu0 0.0
    %5570 = vmatpush2.msra.mxu0 0.0
    %5571 = vmatprep.subr.mxu0 0.0
    %5572 = vmatpush2.msra.mxu0 0.0
    %5573 = vmatprep.subr.mxu0 0.0
    %5574 = vmatpush2.msra.mxu0 0.0
    %5575 = vmatprep.subr.mxu0 0.0
    %5576 = vmatpush2.msra.mxu0 0.0
    %5577 = vmatprep.mubr.f32.mxu0 0.0
    %5578 = vmatmul.mubr.f32.gmra.mxu0 %v5511
    %v5579 = vpop.f32.mrf.mxu0
    %v5580 = vadd.f32 0.0, %v5579
    %v5581 = vpop.f32.mrf.mxu0
    %v5582 = vadd.f32 0.0, %v5581
    %5583 = vdwg.mxu0
    %v5585 = vsel %vm5509, %v5504, 0
    %5587 = vmatprep.subr.mxu0 0.0
    %5588 = vmatpush1.msra.mxu0 0.0
    %5589 = vmatprep.subr.mxu0 0.0
    %5590 = vmatpush1.msra.mxu0 0.0
    %5591 = vmatprep.subr.mxu0 0.0
    %5592 = vmatpush1.msra.mxu0 0.0
    %5593 = vmatprep.subr.mxu0 0.0
    %5594 = vmatpush1.msra.mxu0 0.0
    %5595 = vmatprep.subr.mxu0 0.0
    %5596 = vmatpush1.msra.mxu0 0.0
    %5597 = vmatprep.subr.mxu0 0.0
    %5598 = vmatpush1.msra.mxu0 0.0
    %5599 = vmatprep.subr.mxu0 0.0
    %5600 = vmatpush1.msra.mxu0 0.0
    %5601 = vmatprep.subr.mxu0 0.0
    %5602 = vmatpush1.msra.mxu0 0.0
    %5603 = vmatprep.subr.mxu0 0.0
    %5604 = vmatpush1.msra.mxu0 0.0
    %5605 = vmatprep.subr.mxu0 0.0
    %5606 = vmatpush1.msra.mxu0 0.0
    %5607 = vmatprep.subr.mxu0 0.0
    %5608 = vmatpush1.msra.mxu0 0.0
    %5609 = vmatprep.subr.mxu0 0.0
    %5610 = vmatpush1.msra.mxu0 0.0
    %5611 = vmatprep.subr.mxu0 0.0
    %5612 = vmatpush1.msra.mxu0 0.0
    %5613 = vmatprep.subr.mxu0 0.0
    %5614 = vmatpush1.msra.mxu0 0.0
    %5615 = vmatprep.subr.mxu0 %v5508
    %5616 = vmatpush1.msra.mxu0 %v5507
    %5617 = vmatprep.subr.mxu0 %v5506
    %5618 = vmatpush1.msra.mxu0 %v5505
    %5619 = vmatprep.subr.mxu0 0.0
    %5620 = vmatpush2.msra.mxu0 0.0
    %5621 = vmatprep.subr.mxu0 0.0
    %5622 = vmatpush2.msra.mxu0 0.0
    %5623 = vmatprep.subr.mxu0 0.0
    %5624 = vmatpush2.msra.mxu0 0.0
    %5625 = vmatprep.subr.mxu0 0.0
    %5626 = vmatpush2.msra.mxu0 0.0
    %5627 = vmatprep.subr.mxu0 0.0
    %5628 = vmatpush2.msra.mxu0 0.0
    %5629 = vmatprep.subr.mxu0 0.0
    %5630 = vmatpush2.msra.mxu0 0.0
    %5631 = vmatprep.subr.mxu0 0.0
    %5632 = vmatpush2.msra.mxu0 0.0
    %5633 = vmatprep.subr.mxu0 0.0
    %5634 = vmatpush2.msra.mxu0 0.0
    %5635 = vmatprep.subr.mxu0 0.0
    %5636 = vmatpush2.msra.mxu0 0.0
    %5637 = vmatprep.subr.mxu0 0.0
    %5638 = vmatpush2.msra.mxu0 0.0
    %5639 = vmatprep.subr.mxu0 0.0
    %5640 = vmatpush2.msra.mxu0 0.0
    %5641 = vmatprep.subr.mxu0 0.0
    %5642 = vmatpush2.msra.mxu0 0.0
    %5643 = vmatprep.subr.mxu0 0.0
    %5644 = vmatpush2.msra.mxu0 0.0
    %5645 = vmatprep.subr.mxu0 0.0
    %5646 = vmatpush2.msra.mxu0 0.0
    %5647 = vmatprep.subr.mxu0 0.0
    %5648 = vmatpush2.msra.mxu0 0.0
    %5649 = vmatprep.subr.mxu0 0.0
    %5650 = vmatpush2.msra.mxu0 0.0
    %5651 = vmatprep.mubr.f32.mxu0 0.0
    %5652 = vmatmul.mubr.f32.gmra.mxu0 %v5585
    %v5653 = vpop.f32.mrf.mxu0
    %v5654 = vadd.f32 0.0, %v5653
    %v5655 = vpop.f32.mrf.mxu0
    %v5656 = vadd.f32 0.0, %v5655
    %5657 = vdwg.mxu0
    %v5658 = vlaneseq
    %v5659 = vshrl.u32 %v5658, 7
    %v5660 = vsub.s32 0, %v5659
    %v5661 = vrot.slane %v5580, %v5660
    %v5662 = vlaneseq
    %v5663 = vshrl.u32 %v5662, 7
    %v5664 = vsub.s32 0, %v5663
    %v5665 = vrot.slane %v5582, %v5664
    %v5666 = vmul.f32 %v5255, %v5661
    %v5667 = vmul.f32 %v5256, %v5665
    %v5668 = vmul.f32 %v5257, %v5661
    %v5669 = vmul.f32 %v5258, %v5665
    %v5670 = vmul.f32 %v5259, %v5661
    %v5671 = vmul.f32 %v5260, %v5665
    %v5672 = vmul.f32 %v5261, %v5661
    %v5673 = vmul.f32 %v5262, %v5665
    %v5674 = vlaneseq
    %v5675 = vshrl.u32 %v5674, 7
    %v5676 = vsub.s32 0, %v5675
    %v5677 = vrot.slane %v5654, %v5676
    %v5678 = vlaneseq
    %v5679 = vshrl.u32 %v5678, 7
    %v5680 = vsub.s32 0, %v5679
    %v5681 = vrot.slane %v5656, %v5680
    %v5682 = vadd.f32 %v5666, %v5677
    %v5683 = vadd.f32 %v5667, %v5681
    %v5684 = vadd.f32 %v5668, %v5677
    %v5685 = vadd.f32 %v5669, %v5681
    %v5686 = vadd.f32 %v5670, %v5677
    %v5687 = vadd.f32 %v5671, %v5681
    %v5688 = vadd.f32 %v5672, %v5677
    %v5689 = vadd.f32 %v5673, %v5681
    %vm5690 = vcmp.gt.f32.partialorder %v5682, 0.0
    %vm5691 = vcmp.gt.f32.partialorder %v5683, 0.0
    %vm5692 = vcmp.gt.f32.partialorder %v5684, 0.0
    %vm5693 = vcmp.gt.f32.partialorder %v5685, 0.0
    %vm5694 = vcmp.gt.f32.partialorder %v5686, 0.0
    %vm5695 = vcmp.gt.f32.partialorder %v5687, 0.0
    %vm5696 = vcmp.gt.f32.partialorder %v5688, 0.0
    %vm5697 = vcmp.gt.f32.partialorder %v5689, 0.0
    %v5698 = vmin.f32 %v5682, 0.0
    %v5699 = vmin.f32 %v5683, 0.0
    %v5700 = vmin.f32 %v5684, 0.0
    %v5701 = vmin.f32 %v5685, 0.0
    %v5702 = vmin.f32 %v5686, 0.0
    %v5703 = vmin.f32 %v5687, 0.0
    %v5704 = vmin.f32 %v5688, 0.0
    %v5705 = vmin.f32 %v5689, 0.0
    %v5706 = vmul.f32 %v5698, 1.442695
    %v5707 = vpow.pop %v5706
    %v5708 = vmul.f32 %v5699, 1.442695
    %v5709 = vpow.pop %v5708
    %v5710 = vmul.f32 %v5700, 1.442695
    %v5711 = vpow.pop %v5710
    %v5712 = vmul.f32 %v5701, 1.442695
    %v5713 = vpow.pop %v5712
    %v5714 = vmul.f32 %v5702, 1.442695
    %v5715 = vpow.pop %v5714
    %v5716 = vmul.f32 %v5703, 1.442695
    %v5717 = vpow.pop %v5716
    %v5718 = vmul.f32 %v5704, 1.442695
    %v5719 = vpow.pop %v5718
    %v5720 = vmul.f32 %v5705, 1.442695
    %v5721 = vpow.pop %v5720
    %v5722 = vsub.f32 %v5707, 1.0
    %v5723 = vsub.f32 %v5709, 1.0
    %v5724 = vsub.f32 %v5711, 1.0
    %v5725 = vsub.f32 %v5713, 1.0
    %v5726 = vsub.f32 %v5715, 1.0
    %v5727 = vsub.f32 %v5717, 1.0
    %v5728 = vsub.f32 %v5719, 1.0
    %v5729 = vsub.f32 %v5721, 1.0
    %v5730 = vsel %vm5690, %v5682, %v5722
    %v5731 = vsel %vm5691, %v5683, %v5723
    %v5732 = vsel %vm5692, %v5684, %v5724
    %v5733 = vsel %vm5693, %v5685, %v5725
    %v5734 = vsel %vm5694, %v5686, %v5726
    %v5735 = vsel %vm5695, %v5687, %v5727
    %v5736 = vsel %vm5696, %v5688, %v5728
    %v5737 = vsel %vm5697, %v5689, %v5729
    %5738 = vst [vmem:[#allocation6] sm:$0xff] %v5730
    %5739 = vst.msk [vmem:[#allocation6 + $0x8] sm:$0xff] %vm1906, %v5731
    %5740 = vst [vmem:[#allocation6 + $0x10] sm:$0xff] %v5732
    %5741 = vst.msk [vmem:[#allocation6 + $0x18] sm:$0xff] %vm1906, %v5733
    %5742 = vst [vmem:[#allocation6 + $0x20] sm:$0xff] %v5734
    %5743 = vst.msk [vmem:[#allocation6 + $0x28] sm:$0xff] %vm1906, %v5735
    %5744 = vst [vmem:[#allocation6 + $0x30] sm:$0x3f] %v5736
    %5745 = vst.msk [vmem:[#allocation6 + $0x38] sm:$0x3f] %vm5279, %v5737
    %5746 = vst [vmem:[#allocation8] sm:$0xff] 0.0
    %5747 = vst.msk [vmem:[#allocation8 + $0x8] sm:$0xff] %vm5509, 0.0
    %5748 = vst [vmem:[#allocation8 + $0x10] sm:$0xff] 0.0
    %5749 = vst.msk [vmem:[#allocation8 + $0x18] sm:$0xff] %vm5509, 0.0
    %5750 = vst [vmem:[#allocation8 + $0x20] sm:$0x3] 0.0
    %vm5751 = vcmask 123904
    %5752 = vst.msk [vmem:[#allocation8 + $0x28] sm:$0x3] %vm5751, 0.0
    %v5753 = vld [vmem:[#allocation6] sm:$0xff]
    %v5754 = vld [vmem:[#allocation6 + $0x10] sm:$0xff]
    %v5755 = vld [vmem:[#allocation6 + $0x20] sm:$0xff]
    %v5756 = vld [vmem:[#allocation6 + $0x30] sm:$0x3f]
    %5761 = vrot.lane.b32.xlu0 %v5753, 112
    %v5762 = vpop.permute.xlu0 %5761
    %5763 = vrot.lane.b32.xlu0 %v5754, 112
    %v5764 = vpop.permute.xlu0 %5763
    %5765 = vrot.lane.b32.xlu0 %v5755, 112
    %v5766 = vpop.permute.xlu0 %5765
    %5767 = vrot.lane.b32.xlu0 %v5756, 112
    %v5768 = vpop.permute.xlu0 %5767
    %v5773 = vmax.f32 %v5753, %v5762
    %v5774 = vmax.f32 %v5754, %v5764
    %v5775 = vmax.f32 %v5755, %v5766
    %v5776 = vmax.f32 %v5756, %v5768
    %5777 = vst.msk [vmem:[#allocation7] sm:$0xff] %vm5509, %v5773
    %5778 = vst.msk [vmem:[#allocation7 + $0x8] sm:$0xff] %vm5509, %v5774
    %5779 = vst.msk [vmem:[#allocation7 + $0x10] sm:$0xff] %vm5509, %v5775
    %vm5780 = vcmask 128000
    %5781 = vst.msk [vmem:[#allocation7 + $0x18] sm:$0x3f] %vm5780, %v5776
    %v5782 = vld [vmem:[#allocation6] sm:$0xff]
    %v5783 = vld [vmem:[#allocation6 + $0x10] sm:$0xff]
    %v5784 = vld [vmem:[#allocation6 + $0x20] sm:$0xff]
    %v5785 = vld [vmem:[#allocation6 + $0x30] sm:$0x3f]
    %5790 = vrot.lane.b32.xlu0 %v5782, 112
    %v5791 = vpop.permute.xlu0 %5790
    %5792 = vrot.lane.b32.xlu0 %v5783, 112
    %v5793 = vpop.permute.xlu0 %5792
    %5794 = vrot.lane.b32.xlu0 %v5784, 112
    %v5795 = vpop.permute.xlu0 %5794
    %5796 = vrot.lane.b32.xlu0 %v5785, 112
    %v5797 = vpop.permute.xlu0 %5796
    %v5802 = vmax.f32 %v5782, %v5791
    %v5803 = vmax.f32 %v5783, %v5793
    %v5804 = vmax.f32 %v5784, %v5795
    %v5805 = vmax.f32 %v5785, %v5797
    %5810 = vrot.lane.b32.xlu0 %v5802, 112
    %v5811 = vpop.permute.xlu0 %5810
    %5812 = vrot.lane.b32.xlu0 %v5803, 112
    %v5813 = vpop.permute.xlu0 %5812
    %5814 = vrot.lane.b32.xlu0 %v5804, 112
    %v5815 = vpop.permute.xlu0 %5814
    %5816 = vrot.lane.b32.xlu0 %v5805, 112
    %v5817 = vpop.permute.xlu0 %5816
    %vm5822 = vcmask 261248
    %5823 = vst.msk [vmem:[#allocation7] sm:$0xff] %vm5822, %v5811
    %5824 = vst.msk [vmem:[#allocation7 + $0x8] sm:$0xff] %vm5822, %v5813
    %5825 = vst.msk [vmem:[#allocation7 + $0x10] sm:$0xff] %vm5822, %v5815
    %vm5826 = vcmask 259200
    %5827 = vst.msk [vmem:[#allocation7 + $0x18] sm:$0x3f] %vm5826, %v5817
    %v5828 = vld [vmem:[#allocation6] sm:$0xff]
    %v5829 = vld [vmem:[#allocation6 + $0x10] sm:$0xff]
    %v5830 = vld [vmem:[#allocation6 + $0x20] sm:$0xff]
    %v5831 = vld [vmem:[#allocation6 + $0x30] sm:$0x3f]
    %5836 = vrot.lane.b32.xlu0 %v5828, 112
    %v5837 = vpop.permute.xlu0 %5836
    %5838 = vrot.lane.b32.xlu0 %v5829, 112
    %v5839 = vpop.permute.xlu0 %5838
    %5840 = vrot.lane.b32.xlu0 %v5830, 112
    %v5841 = vpop.permute.xlu0 %5840
    %5842 = vrot.lane.b32.xlu0 %v5831, 112
    %v5843 = vpop.permute.xlu0 %5842
    %v5848 = vmax.f32 %v5828, %v5837
    %v5849 = vmax.f32 %v5829, %v5839
    %v5850 = vmax.f32 %v5830, %v5841
    %v5851 = vmax.f32 %v5831, %v5843
    %5856 = vrot.lane.b32.xlu0 %v5848, 96
    %v5857 = vpop.permute.xlu0 %5856
    %5858 = vrot.lane.b32.xlu0 %v5849, 96
    %v5859 = vpop.permute.xlu0 %5858
    %5860 = vrot.lane.b32.xlu0 %v5850, 96
    %v5861 = vpop.permute.xlu0 %5860
    %5862 = vrot.lane.b32.xlu0 %v5851, 96
    %v5863 = vpop.permute.xlu0 %5862
    %vm5868 = vcmask 392448
    %5869 = vst.msk [vmem:[#allocation7] sm:$0xff] %vm5868, %v5857
    %5870 = vst.msk [vmem:[#allocation7 + $0x8] sm:$0xff] %vm5868, %v5859
    %5871 = vst.msk [vmem:[#allocation7 + $0x10] sm:$0xff] %vm5868, %v5861
    %vm5872 = vcmask 390400
    %5873 = vst.msk [vmem:[#allocation7 + $0x18] sm:$0x3f] %vm5872, %v5863
    %v5874 = vld [vmem:[#allocation6] sm:$0xff]
    %v5875 = vld [vmem:[#allocation6 + $0x10] sm:$0xff]
    %v5876 = vld [vmem:[#allocation6 + $0x20] sm:$0xff]
    %v5877 = vld [vmem:[#allocation6 + $0x30] sm:$0x3f]
    %5882 = vrot.lane.b32.xlu0 %v5874, 112
    %v5883 = vpop.permute.xlu0 %5882
    %5884 = vrot.lane.b32.xlu0 %v5875, 112
    %v5885 = vpop.permute.xlu0 %5884
    %5886 = vrot.lane.b32.xlu0 %v5876, 112
    %v5887 = vpop.permute.xlu0 %5886
    %5888 = vrot.lane.b32.xlu0 %v5877, 112
    %v5889 = vpop.permute.xlu0 %5888
    %v5894 = vmax.f32 %v5874, %v5883
    %v5895 = vmax.f32 %v5875, %v5885
    %v5896 = vmax.f32 %v5876, %v5887
    %v5897 = vmax.f32 %v5877, %v5889
    %5902 = vrot.lane.b32.xlu0 %v5894, 80
    %v5903 = vpop.permute.xlu0 %5902
    %5904 = vrot.lane.b32.xlu0 %v5895, 80
    %v5905 = vpop.permute.xlu0 %5904
    %5906 = vrot.lane.b32.xlu0 %v5896, 80
    %v5907 = vpop.permute.xlu0 %5906
    %5908 = vrot.lane.b32.xlu0 %v5897, 80
    %v5909 = vpop.permute.xlu0 %5908
    %vm5914 = vcmask 523648
    %5915 = vst.msk [vmem:[#allocation7] sm:$0xff] %vm5914, %v5903
    %5916 = vst.msk [vmem:[#allocation7 + $0x8] sm:$0xff] %vm5914, %v5905
    %5917 = vst.msk [vmem:[#allocation7 + $0x10] sm:$0xff] %vm5914, %v5907
    %vm5918 = vcmask 521600
    %5919 = vst.msk [vmem:[#allocation7 + $0x18] sm:$0x3f] %vm5918, %v5909
    %v5920 = vld [vmem:[#allocation6 + $0x8] sm:$0xff]
    %v5921 = vld [vmem:[#allocation6 + $0x18] sm:$0xff]
    %v5922 = vld [vmem:[#allocation6 + $0x28] sm:$0xff]
    %v5923 = vld [vmem:[#allocation6 + $0x38] sm:$0x3f]
    %5928 = vrot.lane.b32.xlu0 %v5920, 112
    %v5929 = vpop.permute.xlu0 %5928
    %5930 = vrot.lane.b32.xlu0 %v5921, 112
    %v5931 = vpop.permute.xlu0 %5930
    %5932 = vrot.lane.b32.xlu0 %v5922, 112
    %v5933 = vpop.permute.xlu0 %5932
    %5934 = vrot.lane.b32.xlu0 %v5923, 112
    %v5935 = vpop.permute.xlu0 %5934
    %v5940 = vmax.f32 %v5920, %v5929
    %v5941 = vmax.f32 %v5921, %v5931
    %v5942 = vmax.f32 %v5922, %v5933
    %v5943 = vmax.f32 %v5923, %v5935
    %5948 = vrot.lane.b32.xlu0 %v5940, 64
    %v5949 = vpop.permute.xlu0 %5948
    %5950 = vrot.lane.b32.xlu0 %v5941, 64
    %v5951 = vpop.permute.xlu0 %5950
    %5952 = vrot.lane.b32.xlu0 %v5942, 64
    %v5953 = vpop.permute.xlu0 %5952
    %5954 = vrot.lane.b32.xlu0 %v5943, 64
    %v5955 = vpop.permute.xlu0 %5954
    %vm5960 = vcmask 654848
    %5961 = vst.msk [vmem:[#allocation7] sm:$0xff] %vm5960, %v5949
    %5962 = vst.msk [vmem:[#allocation7 + $0x8] sm:$0xff] %vm5960, %v5951
    %5963 = vst.msk [vmem:[#allocation7 + $0x10] sm:$0xff] %vm5960, %v5953
    %vm5964 = vcmask 652800
    %5965 = vst.msk [vmem:[#allocation7 + $0x18] sm:$0x3f] %vm5964, %v5955
    %v5966 = vld [vmem:[#allocation6 + $0x8] sm:$0xff]
    %v5967 = vld [vmem:[#allocation6 + $0x18] sm:$0xff]
    %v5968 = vld [vmem:[#allocation6 + $0x28] sm:$0xff]
    %v5969 = vld [vmem:[#allocation6 + $0x38] sm:$0x3f]
    %5974 = vrot.lane.b32.xlu0 %v5966, 112
    %v5975 = vpop.permute.xlu0 %5974
    %5976 = vrot.lane.b32.xlu0 %v5967, 112
    %v5977 = vpop.permute.xlu0 %5976
    %5978 = vrot.lane.b32.xlu0 %v5968, 112
    %v5979 = vpop.permute.xlu0 %5978
    %5980 = vrot.lane.b32.xlu0 %v5969, 112
    %v5981 = vpop.permute.xlu0 %5980
    %v5986 = vmax.f32 %v5966, %v5975
    %v5987 = vmax.f32 %v5967, %v5977
    %v5988 = vmax.f32 %v5968, %v5979
    %v5989 = vmax.f32 %v5969, %v5981
    %5994 = vrot.lane.b32.xlu0 %v5986, 48
    %v5995 = vpop.permute.xlu0 %5994
    %5996 = vrot.lane.b32.xlu0 %v5987, 48
    %v5997 = vpop.permute.xlu0 %5996
    %5998 = vrot.lane.b32.xlu0 %v5988, 48
    %v5999 = vpop.permute.xlu0 %5998
    %6000 = vrot.lane.b32.xlu0 %v5989, 48
    %v6001 = vpop.permute.xlu0 %6000
    %vm6006 = vcmask 786048
    %6007 = vst.msk [vmem:[#allocation7] sm:$0xff] %vm6006, %v5995
    %6008 = vst.msk [vmem:[#allocation7 + $0x8] sm:$0xff] %vm6006, %v5997
    %6009 = vst.msk [vmem:[#allocation7 + $0x10] sm:$0xff] %vm6006, %v5999
    %vm6010 = vcmask 784000
    %6011 = vst.msk [vmem:[#allocation7 + $0x18] sm:$0x3f] %vm6010, %v6001
    %v6012 = vld [vmem:[#allocation6 + $0x8] sm:$0xff]
    %v6013 = vld [vmem:[#allocation6 + $0x18] sm:$0xff]
    %v6014 = vld [vmem:[#allocation6 + $0x28] sm:$0xff]
    %v6015 = vld [vmem:[#allocation6 + $0x38] sm:$0x3f]
    %6020 = vrot.lane.b32.xlu0 %v6012, 112
    %v6021 = vpop.permute.xlu0 %6020
    %6022 = vrot.lane.b32.xlu0 %v6013, 112
    %v6023 = vpop.permute.xlu0 %6022
    %6024 = vrot.lane.b32.xlu0 %v6014, 112
    %v6025 = vpop.permute.xlu0 %6024
    %6026 = vrot.lane.b32.xlu0 %v6015, 112
    %v6027 = vpop.permute.xlu0 %6026
    %v6032 = vmax.f32 %v6012, %v6021
    %v6033 = vmax.f32 %v6013, %v6023
    %v6034 = vmax.f32 %v6014, %v6025
    %v6035 = vmax.f32 %v6015, %v6027
    %6040 = vrot.lane.b32.xlu0 %v6032, 32
    %v6041 = vpop.permute.xlu0 %6040
    %6042 = vrot.lane.b32.xlu0 %v6033, 32
    %v6043 = vpop.permute.xlu0 %6042
    %6044 = vrot.lane.b32.xlu0 %v6034, 32
    %v6045 = vpop.permute.xlu0 %6044
    %6046 = vrot.lane.b32.xlu0 %v6035, 32
    %v6047 = vpop.permute.xlu0 %6046
    %vm6052 = vcmask 917248
    %6053 = vst.msk [vmem:[#allocation7] sm:$0xff] %vm6052, %v6041
    %6054 = vst.msk [vmem:[#allocation7 + $0x8] sm:$0xff] %vm6052, %v6043
    %6055 = vst.msk [vmem:[#allocation7 + $0x10] sm:$0xff] %vm6052, %v6045
    %vm6056 = vcmask 915200
    %6057 = vst.msk [vmem:[#allocation7 + $0x18] sm:$0x3f] %vm6056, %v6047
    %v6058 = vld [vmem:[#allocation7] sm:$0x1]
    %v6059 = vld [vmem:[#allocation7 + $0x1] sm:$0x1]
    %v6060 = vmax.f32 %v6058, %v6059
    %6062 = vrot.lane.b32.xlu0 %v6060, 16
    %v6063 = vpop.permute.xlu0 %6062
    %vm6065 = vcmask 1040512
    %6066 = vst.msk [vmem:[#allocation8 + $0x1] sm:$0x1] %vm6065, %v6063
    %v6067 = vld [vmem:[#allocation7 + $0x2] sm:$0x1]
    %v6068 = vld [vmem:[#allocation7 + $0x3] sm:$0x1]
    %v6069 = vmax.f32 %v6067, %v6068
    %6071 = vrot.lane.b32.xlu0 %v6069, 16
    %v6072 = vpop.permute.xlu0 %6071
    %6074 = vst.msk [vmem:[#allocation8 + $0x2] sm:$0x1] %vm6065, %v6072
    %v6075 = vld [vmem:[#allocation7 + $0x4] sm:$0x1]
    %v6076 = vld [vmem:[#allocation7 + $0x5] sm:$0x1]
    %v6077 = vmax.f32 %v6075, %v6076
    %6079 = vrot.lane.b32.xlu0 %v6077, 16
    %v6080 = vpop.permute.xlu0 %6079
    %6082 = vst.msk [vmem:[#allocation8 + $0x3] sm:$0x1] %vm6065, %v6080
    %v6083 = vld [vmem:[#allocation7 + $0x6] sm:$0x1]
    %v6084 = vld [vmem:[#allocation7 + $0x7] sm:$0x1]
    %v6085 = vmax.f32 %v6083, %v6084
    %6087 = vrot.lane.b32.xlu0 %v6085, 16
    %v6088 = vpop.permute.xlu0 %6087
    %6090 = vst.msk [vmem:[#allocation8 + $0x4] sm:$0x1] %vm6065, %v6088
    %v6091 = vld [vmem:[#allocation7 + $0x8] sm:$0x1]
    %v6092 = vld [vmem:[#allocation7 + $0x9] sm:$0x1]
    %v6093 = vmax.f32 %v6091, %v6092
    %6095 = vrot.lane.b32.xlu0 %v6093, 16
    %v6096 = vpop.permute.xlu0 %6095
    %6098 = vst.msk [vmem:[#allocation8 + $0x5] sm:$0x1] %vm6065, %v6096
    %v6099 = vld [vmem:[#allocation7 + $0xa] sm:$0x1]
    %v6100 = vld [vmem:[#allocation7 + $0xb] sm:$0x1]
    %v6101 = vmax.f32 %v6099, %v6100
    %6103 = vrot.lane.b32.xlu0 %v6101, 16
    %v6104 = vpop.permute.xlu0 %6103
    %6106 = vst.msk [vmem:[#allocation8 + $0x6] sm:$0x1] %vm6065, %v6104
    %v6107 = vld [vmem:[#allocation7 + $0xc] sm:$0x1]
    %v6108 = vld [vmem:[#allocation7 + $0xd] sm:$0x1]
    %v6109 = vmax.f32 %v6107, %v6108
    %6111 = vrot.lane.b32.xlu0 %v6109, 16
    %v6112 = vpop.permute.xlu0 %6111
    %6114 = vst.msk [vmem:[#allocation8 + $0x7] sm:$0x1] %vm6065, %v6112
    %v6115 = vld [vmem:[#allocation7 + $0x10] sm:$0x1]
    %v6116 = vld [vmem:[#allocation7 + $0x11] sm:$0x1]
    %v6117 = vmax.f32 %v6115, %v6116
    %6119 = vrot.lane.b32.xlu0 %v6117, 16
    %v6120 = vpop.permute.xlu0 %6119
    %6122 = vst.msk [vmem:[#allocation8 + $0x12] sm:$0x1] %vm6065, %v6120
    %v6123 = vld [vmem:[#allocation7 + $0x12] sm:$0x1]
    %v6124 = vld [vmem:[#allocation7 + $0x13] sm:$0x1]
    %v6125 = vmax.f32 %v6123, %v6124
    %6127 = vrot.lane.b32.xlu0 %v6125, 16
    %v6128 = vpop.permute.xlu0 %6127
    %6130 = vst.msk [vmem:[#allocation8 + $0x13] sm:$0x1] %vm6065, %v6128
    %v6131 = vld [vmem:[#allocation7 + $0x14] sm:$0x1]
    %v6132 = vld [vmem:[#allocation7 + $0x15] sm:$0x1]
    %v6133 = vmax.f32 %v6131, %v6132
    %6135 = vrot.lane.b32.xlu0 %v6133, 16
    %v6136 = vpop.permute.xlu0 %6135
    %6138 = vst.msk [vmem:[#allocation8 + $0x14] sm:$0x1] %vm6065, %v6136
    %v6139 = vld [vmem:[#allocation7 + $0x16] sm:$0x1]
    %v6140 = vld [vmem:[#allocation7 + $0x17] sm:$0x1]
    %v6141 = vmax.f32 %v6139, %v6140
    %6143 = vrot.lane.b32.xlu0 %v6141, 16
    %v6144 = vpop.permute.xlu0 %6143
    %6146 = vst.msk [vmem:[#allocation8 + $0x15] sm:$0x1] %vm6065, %v6144
    %v6147 = vld [vmem:[#allocation7 + $0x18] sm:$0x1]
    %v6148 = vld [vmem:[#allocation7 + $0x19] sm:$0x1]
    %v6149 = vmax.f32 %v6147, %v6148
    %6151 = vrot.lane.b32.xlu0 %v6149, 16
    %v6152 = vpop.permute.xlu0 %6151
    %6154 = vst.msk [vmem:[#allocation8 + $0x16] sm:$0x1] %vm6065, %v6152
    %v6155 = vld [vmem:[#allocation7 + $0x1a] sm:$0x1]
    %v6156 = vld [vmem:[#allocation7 + $0x1b] sm:$0x1]
    %v6157 = vmax.f32 %v6155, %v6156
    %6159 = vrot.lane.b32.xlu0 %v6157, 16
    %v6160 = vpop.permute.xlu0 %6159
    %6162 = vst.msk [vmem:[#allocation8 + $0x17] sm:$0x1] %vm6065, %v6160
    %v6163 = vld [vmem:[#allocation7 + $0x1c] sm:$0x1]
    %v6164 = vld [vmem:[#allocation7 + $0x1d] sm:$0x1]
    %v6165 = vmax.f32 %v6163, %v6164
    %6167 = vrot.lane.b32.xlu0 %v6165, 16
    %v6168 = vpop.permute.xlu0 %6167
    %6170 = vst.msk [vmem:[#allocation8 + $0x20] sm:$0x1] %vm6065, %v6168
    %v6171 = vld [vmem:[#allocation8] sm:$0xff]
    %v6172 = vld [vmem:[#allocation8 + $0x10] sm:$0xff]
    %v6173 = vld [vmem:[#allocation14] sm:$0xff]
    %v6174 = vld [vmem:[#allocation14 + $0x8] sm:$0xff]
    %v6175 = vld [vmem:[#allocation14 + $0x10] sm:$0xff]
    %v6176 = vld [vmem:[#allocation14 + $0x18] sm:$0xff]
    %v6177 = vld [vmem:[#allocation14 + $0x20] sm:$0xff]
    %v6178 = vld [vmem:[#allocation14 + $0x28] sm:$0xff]
    %v6179 = vld [vmem:[#allocation14 + $0x30] sm:$0xff]
    %v6180 = vld [vmem:[#allocation14 + $0x38] sm:$0xff]
    %v6181 = vld [vmem:[#allocation14 + $0x40] sm:$0xff]
    %v6182 = vld [vmem:[#allocation14 + $0x48] sm:$0xff]
    %v6183 = vld [vmem:[#allocation14 + $0x50] sm:$0xff]
    %v6184 = vld [vmem:[#allocation14 + $0x58] sm:$0xff]
    %v6185 = vld [vmem:[#allocation14 + $0x60] sm:$0xff]
    %v6186 = vld [vmem:[#allocation14 + $0x68] sm:$0xff]
    %v6187 = vld [vmem:[#allocation14 + $0x70] sm:$0xff]
    %v6188 = vld [vmem:[#allocation14 + $0x78] sm:$0xff]
    %v6189 = vld [vmem:[#allocation14 + $0x80] sm:$0xff]
    %v6190 = vld [vmem:[#allocation14 + $0x88] sm:$0xff]
    %v6191 = vld [vmem:[#allocation14 + $0x90] sm:$0xff]
    %v6192 = vld [vmem:[#allocation14 + $0x98] sm:$0xff]
    %v6193 = vld [vmem:[#allocation14 + $0xa0] sm:$0xff]
    %v6194 = vld [vmem:[#allocation14 + $0xa8] sm:$0xff]
    %v6195 = vld [vmem:[#allocation14 + $0xb0] sm:$0xff]
    %v6196 = vld [vmem:[#allocation14 + $0xb8] sm:$0xff]
    %v6197 = vld [vmem:[#allocation14 + $0xc0] sm:$0xff]
    %v6198 = vld [vmem:[#allocation14 + $0xc8] sm:$0xff]
    %v6199 = vld [vmem:[#allocation14 + $0xd0] sm:$0xff]
    %v6200 = vld [vmem:[#allocation14 + $0xd8] sm:$0xff]
    %s6201 = scalar_lea.vmem [#allocation14], 224
    %v6202 = vld [vmem:[%s6201] sm:$0xff]
    %v6203 = vld [vmem:[%s6201 + $0x8] sm:$0xff]
    %v6204 = vld [vmem:[%s6201 + $0x10] sm:$0xff]
    %v6205 = vld [vmem:[%s6201 + $0x18] sm:$0xff]
    %v6206 = vld [vmem:[%s6201 + $0x20] sm:$0xff]
    %v6207 = vld [vmem:[%s6201 + $0x28] sm:$0xff]
    %v6208 = vld [vmem:[%s6201 + $0x30] sm:$0xff]
    %v6209 = vld [vmem:[%s6201 + $0x38] sm:$0xff]
    %v6210 = vld [vmem:[%s6201 + $0x40] sm:$0xff]
    %v6211 = vld [vmem:[%s6201 + $0x48] sm:$0xff]
    %v6212 = vld [vmem:[%s6201 + $0x50] sm:$0xff]
    %v6213 = vld [vmem:[%s6201 + $0x58] sm:$0xff]
    %v6214 = vld [vmem:[%s6201 + $0x60] sm:$0xff]
    %v6215 = vld [vmem:[%s6201 + $0x68] sm:$0xff]
    %v6216 = vld [vmem:[%s6201 + $0x70] sm:$0xff]
    %v6217 = vld [vmem:[%s6201 + $0x78] sm:$0xff]
    %v6218 = vld [vmem:[%s6201 + $0x80] sm:$0xff]
    %v6219 = vld [vmem:[%s6201 + $0x88] sm:$0xff]
    %v6220 = vld [vmem:[%s6201 + $0x90] sm:$0xff]
    %v6221 = vld [vmem:[%s6201 + $0x98] sm:$0xff]
    %v6222 = vld [vmem:[%s6201 + $0xa0] sm:$0xff]
    %v6223 = vld [vmem:[%s6201 + $0xa8] sm:$0xff]
    %v6224 = vld [vmem:[%s6201 + $0xb0] sm:$0xff]
    %v6225 = vld [vmem:[%s6201 + $0xb8] sm:$0xff]
    %v6226 = vld [vmem:[%s6201 + $0xc0] sm:$0xff]
    %v6227 = vld [vmem:[%s6201 + $0xc8] sm:$0xff]
    %v6228 = vld [vmem:[%s6201 + $0xd0] sm:$0xff]
    %v6229 = vld [vmem:[%s6201 + $0xd8] sm:$0xff]
    %6232 = vrot.lane.b32.xlu0 %v6171, 112
    %v6233 = vpop.permute.xlu0 %6232
    %6234 = vrot.lane.b32.xlu0 %v6172, 112
    %v6235 = vpop.permute.xlu0 %6234
    %v6236 = vsel %vm4006, %v6233, 0
    %v6238 = vsel %vm4006, %v6235, 0
    %6240 = vmatprep.subr.mxu0 0.0
    %6241 = vmatpush1.msra.mxu0 0.0
    %6242 = vmatprep.subr.mxu0 0.0
    %6243 = vmatpush1.msra.mxu0 0.0
    %6244 = vmatprep.subr.mxu0 %v6229
    %6245 = vmatpush1.msra.mxu0 %v6228
    %6246 = vmatprep.subr.mxu0 %v6227
    %6247 = vmatpush1.msra.mxu0 %v6226
    %6248 = vmatprep.subr.mxu0 %v6225
    %6249 = vmatpush1.msra.mxu0 %v6224
    %6250 = vmatprep.subr.mxu0 %v6223
    %6251 = vmatpush1.msra.mxu0 %v6222
    %6252 = vmatprep.subr.mxu0 %v6221
    %6253 = vmatpush1.msra.mxu0 %v6220
    %6254 = vmatprep.subr.mxu0 %v6219
    %6255 = vmatpush1.msra.mxu0 %v6218
    %6256 = vmatprep.subr.mxu0 %v6217
    %6257 = vmatpush1.msra.mxu0 %v6216
    %6258 = vmatprep.subr.mxu0 %v6215
    %6259 = vmatpush1.msra.mxu0 %v6214
    %6260 = vmatprep.subr.mxu0 %v6213
    %6261 = vmatpush1.msra.mxu0 %v6212
    %6262 = vmatprep.subr.mxu0 %v6211
    %6263 = vmatpush1.msra.mxu0 %v6210
    %6264 = vmatprep.subr.mxu0 %v6209
    %6265 = vmatpush1.msra.mxu0 %v6208
    %6266 = vmatprep.subr.mxu0 %v6207
    %6267 = vmatpush1.msra.mxu0 %v6206
    %6268 = vmatprep.subr.mxu0 %v6205
    %6269 = vmatpush1.msra.mxu0 %v6204
    %6270 = vmatprep.subr.mxu0 %v6203
    %6271 = vmatpush1.msra.mxu0 %v6202
    %6272 = vmatprep.subr.mxu0 0.0
    %6273 = vmatpush2.msra.mxu0 0.0
    %6274 = vmatprep.subr.mxu0 0.0
    %6275 = vmatpush2.msra.mxu0 0.0
    %6276 = vmatprep.subr.mxu0 0.0
    %6277 = vmatpush2.msra.mxu0 0.0
    %6278 = vmatprep.subr.mxu0 0.0
    %6279 = vmatpush2.msra.mxu0 0.0
    %6280 = vmatprep.subr.mxu0 0.0
    %6281 = vmatpush2.msra.mxu0 0.0
    %6282 = vmatprep.subr.mxu0 0.0
    %6283 = vmatpush2.msra.mxu0 0.0
    %6284 = vmatprep.subr.mxu0 0.0
    %6285 = vmatpush2.msra.mxu0 0.0
    %6286 = vmatprep.subr.mxu0 0.0
    %6287 = vmatpush2.msra.mxu0 0.0
    %6288 = vmatprep.subr.mxu0 0.0
    %6289 = vmatpush2.msra.mxu0 0.0
    %6290 = vmatprep.subr.mxu0 0.0
    %6291 = vmatpush2.msra.mxu0 0.0
    %6292 = vmatprep.subr.mxu0 0.0
    %6293 = vmatpush2.msra.mxu0 0.0
    %6294 = vmatprep.subr.mxu0 0.0
    %6295 = vmatpush2.msra.mxu0 0.0
    %6296 = vmatprep.subr.mxu0 0.0
    %6297 = vmatpush2.msra.mxu0 0.0
    %6298 = vmatprep.subr.mxu0 0.0
    %6299 = vmatpush2.msra.mxu0 0.0
    %6300 = vmatprep.subr.mxu0 0.0
    %6301 = vmatpush2.msra.mxu0 0.0
    %6302 = vmatprep.subr.mxu0 0.0
    %6303 = vmatpush2.msra.mxu0 0.0
    %6304 = vmatprep.mubr.f32.mxu0 0.0
    %6305 = vmatmul.mubr.f32.gmra.mxu0 %v6236
    %v6306 = vpop.f32.mrf.mxu0
    %v6307 = vadd.f32 0.0, %v6306
    %v6308 = vpop.f32.mrf.mxu0
    %v6309 = vadd.f32 0.0, %v6308
    %6310 = vmatprep.mubr.f32.mxu0 0.0
    %6311 = vmatmul.mubr.f32.gmra.mxu0 %v6238
    %v6312 = vpop.f32.mrf.mxu0
    %v6313 = vadd.f32 0.0, %v6312
    %v6314 = vpop.f32.mrf.mxu0
    %v6315 = vadd.f32 0.0, %v6314
    %6316 = vdwg.mxu0
    %v6317 = vsel %vm4006, %v6171, 0
    %v6319 = vsel %vm4006, %v6172, 0
    %6321 = vmatprep.subr.mxu0 0.0
    %6322 = vmatpush1.msra.mxu0 0.0
    %6323 = vmatprep.subr.mxu0 0.0
    %6324 = vmatpush1.msra.mxu0 0.0
    %6325 = vmatprep.subr.mxu0 %v6200
    %6326 = vmatpush1.msra.mxu0 %v6199
    %6327 = vmatprep.subr.mxu0 %v6198
    %6328 = vmatpush1.msra.mxu0 %v6197
    %6329 = vmatprep.subr.mxu0 %v6196
    %6330 = vmatpush1.msra.mxu0 %v6195
    %6331 = vmatprep.subr.mxu0 %v6194
    %6332 = vmatpush1.msra.mxu0 %v6193
    %6333 = vmatprep.subr.mxu0 %v6192
    %6334 = vmatpush1.msra.mxu0 %v6191
    %6335 = vmatprep.subr.mxu0 %v6190
    %6336 = vmatpush1.msra.mxu0 %v6189
    %6337 = vmatprep.subr.mxu0 %v6188
    %6338 = vmatpush1.msra.mxu0 %v6187
    %6339 = vmatprep.subr.mxu0 %v6186
    %6340 = vmatpush1.msra.mxu0 %v6185
    %6341 = vmatprep.subr.mxu0 %v6184
    %6342 = vmatpush1.msra.mxu0 %v6183
    %6343 = vmatprep.subr.mxu0 %v6182
    %6344 = vmatpush1.msra.mxu0 %v6181
    %6345 = vmatprep.subr.mxu0 %v6180
    %6346 = vmatpush1.msra.mxu0 %v6179
    %6347 = vmatprep.subr.mxu0 %v6178
    %6348 = vmatpush1.msra.mxu0 %v6177
    %6349 = vmatprep.subr.mxu0 %v6176
    %6350 = vmatpush1.msra.mxu0 %v6175
    %6351 = vmatprep.subr.mxu0 %v6174
    %6352 = vmatpush1.msra.mxu0 %v6173
    %6353 = vmatprep.subr.mxu0 0.0
    %6354 = vmatpush2.msra.mxu0 0.0
    %6355 = vmatprep.subr.mxu0 0.0
    %6356 = vmatpush2.msra.mxu0 0.0
    %6357 = vmatprep.subr.mxu0 0.0
    %6358 = vmatpush2.msra.mxu0 0.0
    %6359 = vmatprep.subr.mxu0 0.0
    %6360 = vmatpush2.msra.mxu0 0.0
    %6361 = vmatprep.subr.mxu0 0.0
    %6362 = vmatpush2.msra.mxu0 0.0
    %6363 = vmatprep.subr.mxu0 0.0
    %6364 = vmatpush2.msra.mxu0 0.0
    %6365 = vmatprep.subr.mxu0 0.0
    %6366 = vmatpush2.msra.mxu0 0.0
    %6367 = vmatprep.subr.mxu0 0.0
    %6368 = vmatpush2.msra.mxu0 0.0
    %6369 = vmatprep.subr.mxu0 0.0
    %6370 = vmatpush2.msra.mxu0 0.0
    %6371 = vmatprep.subr.mxu0 0.0
    %6372 = vmatpush2.msra.mxu0 0.0
    %6373 = vmatprep.subr.mxu0 0.0
    %6374 = vmatpush2.msra.mxu0 0.0
    %6375 = vmatprep.subr.mxu0 0.0
    %6376 = vmatpush2.msra.mxu0 0.0
    %6377 = vmatprep.subr.mxu0 0.0
    %6378 = vmatpush2.msra.mxu0 0.0
    %6379 = vmatprep.subr.mxu0 0.0
    %6380 = vmatpush2.msra.mxu0 0.0
    %6381 = vmatprep.subr.mxu0 0.0
    %6382 = vmatpush2.msra.mxu0 0.0
    %6383 = vmatprep.subr.mxu0 0.0
    %6384 = vmatpush2.msra.mxu0 0.0
    %6385 = vmatprep.mubr.f32.mxu0 0.0
    %6386 = vmatmul.mubr.f32.gmra.mxu0 %v6317
    %v6387 = vpop.f32.mrf.mxu0
    %v6388 = vadd.f32 %v6307, %v6387
    %v6389 = vpop.f32.mrf.mxu0
    %v6390 = vadd.f32 %v6309, %v6389
    %6391 = vmatprep.mubr.f32.mxu0 0.0
    %6392 = vmatmul.mubr.f32.gmra.mxu0 %v6319
    %v6393 = vpop.f32.mrf.mxu0
    %v6394 = vadd.f32 %v6313, %v6393
    %v6395 = vpop.f32.mrf.mxu0
    %v6396 = vadd.f32 %v6315, %v6395
    %6397 = vdwg.mxu0
    %v6398 = vld [vmem:[#allocation8] sm:$0xff]
    %v6399 = vld [vmem:[#allocation8 + $0x8] sm:$0xff]
    %v6400 = vld [vmem:[#allocation8 + $0x10] sm:$0xff]
    %v6401 = vld [vmem:[#allocation8 + $0x18] sm:$0xff]
    %s6402 = scalar_lea.vmem [#allocation14], 448
    %v6403 = vld [vmem:[%s6402] sm:$0xff]
    %v6404 = vld [vmem:[%s6402 + $0x8] sm:$0xff]
    %v6405 = vld [vmem:[%s6402 + $0x10] sm:$0xff]
    %v6406 = vld [vmem:[%s6402 + $0x18] sm:$0xff]
    %v6407 = vld [vmem:[%s6402 + $0x20] sm:$0xff]
    %v6408 = vld [vmem:[%s6402 + $0x28] sm:$0xff]
    %v6409 = vld [vmem:[%s6402 + $0x30] sm:$0xff]
    %v6410 = vld [vmem:[%s6402 + $0x38] sm:$0xff]
    %v6411 = vld [vmem:[%s6402 + $0x40] sm:$0xff]
    %v6412 = vld [vmem:[%s6402 + $0x48] sm:$0xff]
    %v6413 = vld [vmem:[%s6402 + $0x50] sm:$0xff]
    %v6414 = vld [vmem:[%s6402 + $0x58] sm:$0xff]
    %v6415 = vld [vmem:[%s6402 + $0x60] sm:$0xff]
    %v6416 = vld [vmem:[%s6402 + $0x68] sm:$0xff]
    %v6417 = vld [vmem:[%s6402 + $0x70] sm:$0xff]
    %v6418 = vld [vmem:[%s6402 + $0x78] sm:$0xff]
    %v6419 = vld [vmem:[%s6402 + $0x80] sm:$0xff]
    %v6420 = vld [vmem:[%s6402 + $0x88] sm:$0xff]
    %v6421 = vld [vmem:[%s6402 + $0x90] sm:$0xff]
    %v6422 = vld [vmem:[%s6402 + $0x98] sm:$0xff]
    %v6423 = vld [vmem:[%s6402 + $0xa0] sm:$0xff]
    %v6424 = vld [vmem:[%s6402 + $0xa8] sm:$0xff]
    %v6425 = vld [vmem:[%s6402 + $0xb0] sm:$0xff]
    %v6426 = vld [vmem:[%s6402 + $0xb8] sm:$0xff]
    %v6427 = vld [vmem:[%s6402 + $0xc0] sm:$0xff]
    %v6428 = vld [vmem:[%s6402 + $0xc8] sm:$0xff]
    %v6429 = vld [vmem:[%s6402 + $0xd0] sm:$0xff]
    %v6430 = vld [vmem:[%s6402 + $0xd8] sm:$0xff]
    %6435 = vrot.lane.b32.xlu0 %v6398, 96
    %v6436 = vpop.permute.xlu0 %6435
    %6437 = vrot.lane.b32.xlu0 %v6399, 96
    %v6438 = vpop.permute.xlu0 %6437
    %6439 = vrot.lane.b32.xlu0 %v6400, 96
    %v6440 = vpop.permute.xlu0 %6439
    %6441 = vrot.lane.b32.xlu0 %v6401, 96
    %v6442 = vpop.permute.xlu0 %6441
    %v6443 = vsel %vm1906, %v6436, %v6438
    %v6444 = vsel %vm1906, %v6440, %v6442
    %v6445 = vsel %vm4006, %v6443, 0
    %v6447 = vsel %vm4006, %v6444, 0
    %6449 = vmatprep.subr.mxu0 0.0
    %6450 = vmatpush1.msra.mxu0 0.0
    %6451 = vmatprep.subr.mxu0 0.0
    %6452 = vmatpush1.msra.mxu0 0.0
    %6453 = vmatprep.subr.mxu0 %v6430
    %6454 = vmatpush1.msra.mxu0 %v6429
    %6455 = vmatprep.subr.mxu0 %v6428
    %6456 = vmatpush1.msra.mxu0 %v6427
    %6457 = vmatprep.subr.mxu0 %v6426
    %6458 = vmatpush1.msra.mxu0 %v6425
    %6459 = vmatprep.subr.mxu0 %v6424
    %6460 = vmatpush1.msra.mxu0 %v6423
    %6461 = vmatprep.subr.mxu0 %v6422
    %6462 = vmatpush1.msra.mxu0 %v6421
    %6463 = vmatprep.subr.mxu0 %v6420
    %6464 = vmatpush1.msra.mxu0 %v6419
    %6465 = vmatprep.subr.mxu0 %v6418
    %6466 = vmatpush1.msra.mxu0 %v6417
    %6467 = vmatprep.subr.mxu0 %v6416
    %6468 = vmatpush1.msra.mxu0 %v6415
    %6469 = vmatprep.subr.mxu0 %v6414
    %6470 = vmatpush1.msra.mxu0 %v6413
    %6471 = vmatprep.subr.mxu0 %v6412
    %6472 = vmatpush1.msra.mxu0 %v6411
    %6473 = vmatprep.subr.mxu0 %v6410
    %6474 = vmatpush1.msra.mxu0 %v6409
    %6475 = vmatprep.subr.mxu0 %v6408
    %6476 = vmatpush1.msra.mxu0 %v6407
    %6477 = vmatprep.subr.mxu0 %v6406
    %6478 = vmatpush1.msra.mxu0 %v6405
    %6479 = vmatprep.subr.mxu0 %v6404
    %6480 = vmatpush1.msra.mxu0 %v6403
    %6481 = vmatprep.subr.mxu0 0.0
    %6482 = vmatpush2.msra.mxu0 0.0
    %6483 = vmatprep.subr.mxu0 0.0
    %6484 = vmatpush2.msra.mxu0 0.0
    %6485 = vmatprep.subr.mxu0 0.0
    %6486 = vmatpush2.msra.mxu0 0.0
    %6487 = vmatprep.subr.mxu0 0.0
    %6488 = vmatpush2.msra.mxu0 0.0
    %6489 = vmatprep.subr.mxu0 0.0
    %6490 = vmatpush2.msra.mxu0 0.0
    %6491 = vmatprep.subr.mxu0 0.0
    %6492 = vmatpush2.msra.mxu0 0.0
    %6493 = vmatprep.subr.mxu0 0.0
    %6494 = vmatpush2.msra.mxu0 0.0
    %6495 = vmatprep.subr.mxu0 0.0
    %6496 = vmatpush2.msra.mxu0 0.0
    %6497 = vmatprep.subr.mxu0 0.0
    %6498 = vmatpush2.msra.mxu0 0.0
    %6499 = vmatprep.subr.mxu0 0.0
    %6500 = vmatpush2.msra.mxu0 0.0
    %6501 = vmatprep.subr.mxu0 0.0
    %6502 = vmatpush2.msra.mxu0 0.0
    %6503 = vmatprep.subr.mxu0 0.0
    %6504 = vmatpush2.msra.mxu0 0.0
    %6505 = vmatprep.subr.mxu0 0.0
    %6506 = vmatpush2.msra.mxu0 0.0
    %6507 = vmatprep.subr.mxu0 0.0
    %6508 = vmatpush2.msra.mxu0 0.0
    %6509 = vmatprep.subr.mxu0 0.0
    %6510 = vmatpush2.msra.mxu0 0.0
    %6511 = vmatprep.subr.mxu0 0.0
    %6512 = vmatpush2.msra.mxu0 0.0
    %6513 = vmatprep.mubr.f32.mxu0 0.0
    %6514 = vmatmul.mubr.f32.gmra.mxu0 %v6445
    %v6515 = vpop.f32.mrf.mxu0
    %v6516 = vadd.f32 0.0, %v6515
    %v6517 = vpop.f32.mrf.mxu0
    %v6518 = vadd.f32 0.0, %v6517
    %6519 = vmatprep.mubr.f32.mxu0 0.0
    %6520 = vmatmul.mubr.f32.gmra.mxu0 %v6447
    %v6521 = vpop.f32.mrf.mxu0
    %v6522 = vadd.f32 0.0, %v6521
    %v6523 = vpop.f32.mrf.mxu0
    %v6524 = vadd.f32 0.0, %v6523
    %6525 = vdwg.mxu0
    %v6526 = vadd.f32 %v6388, %v6516
    %v6527 = vadd.f32 %v6390, %v6518
    %v6528 = vadd.f32 %v6394, %v6522
    %v6529 = vadd.f32 %v6396, %v6524
    %v6530 = vld [vmem:[#allocation8] sm:$0xfe]
    %v6531 = vld [vmem:[#allocation8 + $0x10] sm:$0xff]
    %v6532 = vld [vmem:[#allocation8 + $0x20] sm:$0x1]
    %s6533 = scalar_lea.vmem [#allocation14], 672
    %v6534 = vld [vmem:[%s6533] sm:$0xff]
    %v6535 = vld [vmem:[%s6533 + $0x8] sm:$0xff]
    %v6536 = vld [vmem:[%s6533 + $0x10] sm:$0xff]
    %v6537 = vld [vmem:[%s6533 + $0x18] sm:$0xff]
    %v6538 = vld [vmem:[%s6533 + $0x20] sm:$0xff]
    %v6539 = vld [vmem:[%s6533 + $0x28] sm:$0xff]
    %v6540 = vld [vmem:[%s6533 + $0x30] sm:$0xff]
    %v6541 = vld [vmem:[%s6533 + $0x38] sm:$0xff]
    %v6542 = vld [vmem:[%s6533 + $0x40] sm:$0xff]
    %v6543 = vld [vmem:[%s6533 + $0x48] sm:$0xff]
    %v6544 = vld [vmem:[%s6533 + $0x50] sm:$0xff]
    %v6545 = vld [vmem:[%s6533 + $0x58] sm:$0xff]
    %v6546 = vld [vmem:[%s6533 + $0x60] sm:$0xff]
    %v6547 = vld [vmem:[%s6533 + $0x68] sm:$0xff]
    %v6548 = vld [vmem:[%s6533 + $0x70] sm:$0xff]
    %v6549 = vld [vmem:[%s6533 + $0x78] sm:$0xff]
    %v6550 = vld [vmem:[%s6533 + $0x80] sm:$0xff]
    %v6551 = vld [vmem:[%s6533 + $0x88] sm:$0xff]
    %v6552 = vld [vmem:[%s6533 + $0x90] sm:$0xff]
    %v6553 = vld [vmem:[%s6533 + $0x98] sm:$0xff]
    %v6554 = vld [vmem:[%s6533 + $0xa0] sm:$0xff]
    %v6555 = vld [vmem:[%s6533 + $0xa8] sm:$0xff]
    %v6556 = vld [vmem:[%s6533 + $0xb0] sm:$0xff]
    %v6557 = vld [vmem:[%s6533 + $0xb8] sm:$0xff]
    %v6558 = vld [vmem:[%s6533 + $0xc0] sm:$0xff]
    %v6559 = vld [vmem:[%s6533 + $0xc8] sm:$0xff]
    %v6560 = vld [vmem:[%s6533 + $0xd0] sm:$0xff]
    %v6561 = vld [vmem:[%s6533 + $0xd8] sm:$0xff]
    %vm6565 = vcmask 1046528
    %v6566 = vrot.slane %v6530, 1
    %v6567 = vrot.slane %v6531, 1
    %v6568 = vsel %vm6565, %v6566, %v6567
    %v6569 = vrot.slane %v6532, 1
    %v6570 = vsel %vm6565, %v6567, %v6569
    %v6571 = vsel %vm4006, %v6568, 0
    %v6573 = vsel %vm4006, %v6570, 0
    %6575 = vmatprep.subr.mxu0 0.0
    %6576 = vmatpush1.msra.mxu0 0.0
    %6577 = vmatprep.subr.mxu0 0.0
    %6578 = vmatpush1.msra.mxu0 0.0
    %6579 = vmatprep.subr.mxu0 %v6561
    %6580 = vmatpush1.msra.mxu0 %v6560
    %6581 = vmatprep.subr.mxu0 %v6559
    %6582 = vmatpush1.msra.mxu0 %v6558
    %6583 = vmatprep.subr.mxu0 %v6557
    %6584 = vmatpush1.msra.mxu0 %v6556
    %6585 = vmatprep.subr.mxu0 %v6555
    %6586 = vmatpush1.msra.mxu0 %v6554
    %6587 = vmatprep.subr.mxu0 %v6553
    %6588 = vmatpush1.msra.mxu0 %v6552
    %6589 = vmatprep.subr.mxu0 %v6551
    %6590 = vmatpush1.msra.mxu0 %v6550
    %6591 = vmatprep.subr.mxu0 %v6549
    %6592 = vmatpush1.msra.mxu0 %v6548
    %6593 = vmatprep.subr.mxu0 %v6547
    %6594 = vmatpush1.msra.mxu0 %v6546
    %6595 = vmatprep.subr.mxu0 %v6545
    %6596 = vmatpush1.msra.mxu0 %v6544
    %6597 = vmatprep.subr.mxu0 %v6543
    %6598 = vmatpush1.msra.mxu0 %v6542
    %6599 = vmatprep.subr.mxu0 %v6541
    %6600 = vmatpush1.msra.mxu0 %v6540
    %6601 = vmatprep.subr.mxu0 %v6539
    %6602 = vmatpush1.msra.mxu0 %v6538
    %6603 = vmatprep.subr.mxu0 %v6537
    %6604 = vmatpush1.msra.mxu0 %v6536
    %6605 = vmatprep.subr.mxu0 %v6535
    %6606 = vmatpush1.msra.mxu0 %v6534
    %6607 = vmatprep.subr.mxu0 0.0
    %6608 = vmatpush2.msra.mxu0 0.0
    %6609 = vmatprep.subr.mxu0 0.0
    %6610 = vmatpush2.msra.mxu0 0.0
    %6611 = vmatprep.subr.mxu0 0.0
    %6612 = vmatpush2.msra.mxu0 0.0
    %6613 = vmatprep.subr.mxu0 0.0
    %6614 = vmatpush2.msra.mxu0 0.0
    %6615 = vmatprep.subr.mxu0 0.0
    %6616 = vmatpush2.msra.mxu0 0.0
    %6617 = vmatprep.subr.mxu0 0.0
    %6618 = vmatpush2.msra.mxu0 0.0
    %6619 = vmatprep.subr.mxu0 0.0
    %6620 = vmatpush2.msra.mxu0 0.0
    %6621 = vmatprep.subr.mxu0 0.0
    %6622 = vmatpush2.msra.mxu0 0.0
    %6623 = vmatprep.subr.mxu0 0.0
    %6624 = vmatpush2.msra.mxu0 0.0
    %6625 = vmatprep.subr.mxu0 0.0
    %6626 = vmatpush2.msra.mxu0 0.0
    %6627 = vmatprep.subr.mxu0 0.0
    %6628 = vmatpush2.msra.mxu0 0.0
    %6629 = vmatprep.subr.mxu0 0.0
    %6630 = vmatpush2.msra.mxu0 0.0
    %6631 = vmatprep.subr.mxu0 0.0
    %6632 = vmatpush2.msra.mxu0 0.0
    %6633 = vmatprep.subr.mxu0 0.0
    %6634 = vmatpush2.msra.mxu0 0.0
    %6635 = vmatprep.subr.mxu0 0.0
    %6636 = vmatpush2.msra.mxu0 0.0
    %6637 = vmatprep.subr.mxu0 0.0
    %6638 = vmatpush2.msra.mxu0 0.0
    %6639 = vmatprep.mubr.f32.mxu0 0.0
    %6640 = vmatmul.mubr.f32.gmra.mxu0 %v6571
    %v6641 = vpop.f32.mrf.mxu0
    %v6642 = vadd.f32 0.0, %v6641
    %v6643 = vpop.f32.mrf.mxu0
    %v6644 = vadd.f32 0.0, %v6643
    %6645 = vmatprep.mubr.f32.mxu0 0.0
    %6646 = vmatmul.mubr.f32.gmra.mxu0 %v6573
    %v6647 = vpop.f32.mrf.mxu0
    %v6648 = vadd.f32 0.0, %v6647
    %v6649 = vpop.f32.mrf.mxu0
    %v6650 = vadd.f32 0.0, %v6649
    %6651 = vdwg.mxu0
    %v6652 = vadd.f32 %v6526, %v6642
    %v6653 = vadd.f32 %v6527, %v6644
    %v6654 = vadd.f32 %v6528, %v6648
    %v6655 = vadd.f32 %v6529, %v6650
    %s6656 = scalar_lea.vmem [#allocation14], 896
    %v6657 = vld [vmem:[%s6656] sm:$0xff]
    %v6658 = vld [vmem:[%s6656 + $0x8] sm:$0xff]
    %v6659 = vld [vmem:[%s6656 + $0x10] sm:$0xff]
    %v6660 = vld [vmem:[%s6656 + $0x18] sm:$0xff]
    %v6661 = vld [vmem:[%s6656 + $0x20] sm:$0xff]
    %v6662 = vld [vmem:[%s6656 + $0x28] sm:$0xff]
    %v6663 = vld [vmem:[%s6656 + $0x30] sm:$0xff]
    %v6664 = vld [vmem:[%s6656 + $0x38] sm:$0xff]
    %v6665 = vld [vmem:[%s6656 + $0x40] sm:$0xff]
    %v6666 = vld [vmem:[%s6656 + $0x48] sm:$0xff]
    %v6667 = vld [vmem:[%s6656 + $0x50] sm:$0xff]
    %v6668 = vld [vmem:[%s6656 + $0x58] sm:$0xff]
    %v6669 = vld [vmem:[%s6656 + $0x60] sm:$0xff]
    %v6670 = vld [vmem:[%s6656 + $0x68] sm:$0xff]
    %v6671 = vld [vmem:[%s6656 + $0x70] sm:$0xff]
    %v6672 = vld [vmem:[%s6656 + $0x78] sm:$0xff]
    %v6673 = vld [vmem:[%s6656 + $0x80] sm:$0xff]
    %v6674 = vld [vmem:[%s6656 + $0x88] sm:$0xff]
    %v6675 = vld [vmem:[%s6656 + $0x90] sm:$0xff]
    %v6676 = vld [vmem:[%s6656 + $0x98] sm:$0xff]
    %v6677 = vld [vmem:[%s6656 + $0xa0] sm:$0xff]
    %v6678 = vld [vmem:[%s6656 + $0xa8] sm:$0xff]
    %v6679 = vld [vmem:[%s6656 + $0xb0] sm:$0xff]
    %v6680 = vld [vmem:[%s6656 + $0xb8] sm:$0xff]
    %v6681 = vld [vmem:[%s6656 + $0xc0] sm:$0xff]
    %v6682 = vld [vmem:[%s6656 + $0xc8] sm:$0xff]
    %v6683 = vld [vmem:[%s6656 + $0xd0] sm:$0xff]
    %v6684 = vld [vmem:[%s6656 + $0xd8] sm:$0xff]
    %6685 = vrot.lane.b32.xlu0 %v6568, 112
    %v6686 = vpop.permute.xlu0 %6685
    %6687 = vrot.lane.b32.xlu0 %v6570, 112
    %v6688 = vpop.permute.xlu0 %6687
    %v6689 = vsel %vm4006, %v6686, 0
    %v6691 = vsel %vm4006, %v6688, 0
    %6693 = vmatprep.subr.mxu0 0.0
    %6694 = vmatpush1.msra.mxu0 0.0
    %6695 = vmatprep.subr.mxu0 0.0
    %6696 = vmatpush1.msra.mxu0 0.0
    %6697 = vmatprep.subr.mxu0 %v6684
    %6698 = vmatpush1.msra.mxu0 %v6683
    %6699 = vmatprep.subr.mxu0 %v6682
    %6700 = vmatpush1.msra.mxu0 %v6681
    %6701 = vmatprep.subr.mxu0 %v6680
    %6702 = vmatpush1.msra.mxu0 %v6679
    %6703 = vmatprep.subr.mxu0 %v6678
    %6704 = vmatpush1.msra.mxu0 %v6677
    %6705 = vmatprep.subr.mxu0 %v6676
    %6706 = vmatpush1.msra.mxu0 %v6675
    %6707 = vmatprep.subr.mxu0 %v6674
    %6708 = vmatpush1.msra.mxu0 %v6673
    %6709 = vmatprep.subr.mxu0 %v6672
    %6710 = vmatpush1.msra.mxu0 %v6671
    %6711 = vmatprep.subr.mxu0 %v6670
    %6712 = vmatpush1.msra.mxu0 %v6669
    %6713 = vmatprep.subr.mxu0 %v6668
    %6714 = vmatpush1.msra.mxu0 %v6667
    %6715 = vmatprep.subr.mxu0 %v6666
    %6716 = vmatpush1.msra.mxu0 %v6665
    %6717 = vmatprep.subr.mxu0 %v6664
    %6718 = vmatpush1.msra.mxu0 %v6663
    %6719 = vmatprep.subr.mxu0 %v6662
    %6720 = vmatpush1.msra.mxu0 %v6661
    %6721 = vmatprep.subr.mxu0 %v6660
    %6722 = vmatpush1.msra.mxu0 %v6659
    %6723 = vmatprep.subr.mxu0 %v6658
    %6724 = vmatpush1.msra.mxu0 %v6657
    %6725 = vmatprep.subr.mxu0 0.0
    %6726 = vmatpush2.msra.mxu0 0.0
    %6727 = vmatprep.subr.mxu0 0.0
    %6728 = vmatpush2.msra.mxu0 0.0
    %6729 = vmatprep.subr.mxu0 0.0
    %6730 = vmatpush2.msra.mxu0 0.0
    %6731 = vmatprep.subr.mxu0 0.0
    %6732 = vmatpush2.msra.mxu0 0.0
    %6733 = vmatprep.subr.mxu0 0.0
    %6734 = vmatpush2.msra.mxu0 0.0
    %6735 = vmatprep.subr.mxu0 0.0
    %6736 = vmatpush2.msra.mxu0 0.0
    %6737 = vmatprep.subr.mxu0 0.0
    %6738 = vmatpush2.msra.mxu0 0.0
    %6739 = vmatprep.subr.mxu0 0.0
    %6740 = vmatpush2.msra.mxu0 0.0
    %6741 = vmatprep.subr.mxu0 0.0
    %6742 = vmatpush2.msra.mxu0 0.0
    %6743 = vmatprep.subr.mxu0 0.0
    %6744 = vmatpush2.msra.mxu0 0.0
    %6745 = vmatprep.subr.mxu0 0.0
    %6746 = vmatpush2.msra.mxu0 0.0
    %6747 = vmatprep.subr.mxu0 0.0
    %6748 = vmatpush2.msra.mxu0 0.0
    %6749 = vmatprep.subr.mxu0 0.0
    %6750 = vmatpush2.msra.mxu0 0.0
    %6751 = vmatprep.subr.mxu0 0.0
    %6752 = vmatpush2.msra.mxu0 0.0
    %6753 = vmatprep.subr.mxu0 0.0
    %6754 = vmatpush2.msra.mxu0 0.0
    %6755 = vmatprep.subr.mxu0 0.0
    %6756 = vmatpush2.msra.mxu0 0.0
    %6757 = vmatprep.mubr.f32.mxu0 0.0
    %6758 = vmatmul.mubr.f32.gmra.mxu0 %v6689
    %v6759 = vpop.f32.mrf.mxu0
    %v6760 = vadd.f32 0.0, %v6759
    %v6761 = vpop.f32.mrf.mxu0
    %v6762 = vadd.f32 0.0, %v6761
    %6763 = vmatprep.mubr.f32.mxu0 0.0
    %6764 = vmatmul.mubr.f32.gmra.mxu0 %v6691
    %v6765 = vpop.f32.mrf.mxu0
    %v6766 = vadd.f32 0.0, %v6765
    %v6767 = vpop.f32.mrf.mxu0
    %v6768 = vadd.f32 0.0, %v6767
    %6769 = vdwg.mxu0
    %v6770 = vadd.f32 %v6652, %v6760
    %v6771 = vadd.f32 %v6653, %v6762
    %v6772 = vadd.f32 %v6654, %v6766
    %v6773 = vadd.f32 %v6655, %v6768
    %v6774 = vld [vmem:[#allocation8] sm:$0xfe]
    %v6775 = vld [vmem:[#allocation8 + $0x8] sm:$0xfe]
    %v6776 = vld [vmem:[#allocation8 + $0x10] sm:$0xff]
    %v6777 = vld [vmem:[#allocation8 + $0x18] sm:$0xff]
    %v6778 = vld [vmem:[#allocation8 + $0x20] sm:$0x1]
    %v6779 = vld [vmem:[#allocation8 + $0x28] sm:$0x1]
    %s6780 = scalar_lea.vmem [#allocation14], 1120
    %v6781 = vld [vmem:[%s6780] sm:$0xff]
    %v6782 = vld [vmem:[%s6780 + $0x8] sm:$0xff]
    %v6783 = vld [vmem:[%s6780 + $0x10] sm:$0xff]
    %v6784 = vld [vmem:[%s6780 + $0x18] sm:$0xff]
    %v6785 = vld [vmem:[%s6780 + $0x20] sm:$0xff]
    %v6786 = vld [vmem:[%s6780 + $0x28] sm:$0xff]
    %v6787 = vld [vmem:[%s6780 + $0x30] sm:$0xff]
    %v6788 = vld [vmem:[%s6780 + $0x38] sm:$0xff]
    %v6789 = vld [vmem:[%s6780 + $0x40] sm:$0xff]
    %v6790 = vld [vmem:[%s6780 + $0x48] sm:$0xff]
    %v6791 = vld [vmem:[%s6780 + $0x50] sm:$0xff]
    %v6792 = vld [vmem:[%s6780 + $0x58] sm:$0xff]
    %v6793 = vld [vmem:[%s6780 + $0x60] sm:$0xff]
    %v6794 = vld [vmem:[%s6780 + $0x68] sm:$0xff]
    %v6795 = vld [vmem:[%s6780 + $0x70] sm:$0xff]
    %v6796 = vld [vmem:[%s6780 + $0x78] sm:$0xff]
    %v6797 = vld [vmem:[%s6780 + $0x80] sm:$0xff]
    %v6798 = vld [vmem:[%s6780 + $0x88] sm:$0xff]
    %v6799 = vld [vmem:[%s6780 + $0x90] sm:$0xff]
    %v6800 = vld [vmem:[%s6780 + $0x98] sm:$0xff]
    %v6801 = vld [vmem:[%s6780 + $0xa0] sm:$0xff]
    %v6802 = vld [vmem:[%s6780 + $0xa8] sm:$0xff]
    %v6803 = vld [vmem:[%s6780 + $0xb0] sm:$0xff]
    %v6804 = vld [vmem:[%s6780 + $0xb8] sm:$0xff]
    %v6805 = vld [vmem:[%s6780 + $0xc0] sm:$0xff]
    %v6806 = vld [vmem:[%s6780 + $0xc8] sm:$0xff]
    %v6807 = vld [vmem:[%s6780 + $0xd0] sm:$0xff]
    %v6808 = vld [vmem:[%s6780 + $0xd8] sm:$0xff]
    %v6815 = vrot.slane %v6774, 1
    %v6816 = vrot.slane %v6776, 1
    %v6817 = vsel %vm6565, %v6815, %v6816
    %v6818 = vrot.slane %v6775, 1
    %v6819 = vrot.slane %v6777, 1
    %v6820 = vsel %vm6565, %v6818, %v6819
    %v6821 = vrot.slane %v6778, 1
    %v6822 = vsel %vm6565, %v6816, %v6821
    %v6823 = vrot.slane %v6779, 1
    %v6824 = vsel %vm6565, %v6819, %v6823
    %6825 = vrot.lane.b32.xlu0 %v6817, 96
    %v6826 = vpop.permute.xlu0 %6825
    %6827 = vrot.lane.b32.xlu0 %v6820, 96
    %v6828 = vpop.permute.xlu0 %6827
    %6829 = vrot.lane.b32.xlu0 %v6822, 96
    %v6830 = vpop.permute.xlu0 %6829
    %6831 = vrot.lane.b32.xlu0 %v6824, 96
    %v6832 = vpop.permute.xlu0 %6831
    %v6833 = vsel %vm1906, %v6826, %v6828
    %v6834 = vsel %vm1906, %v6830, %v6832
    %v6835 = vsel %vm4006, %v6833, 0
    %v6837 = vsel %vm4006, %v6834, 0
    %6839 = vmatprep.subr.mxu0 0.0
    %6840 = vmatpush1.msra.mxu0 0.0
    %6841 = vmatprep.subr.mxu0 0.0
    %6842 = vmatpush1.msra.mxu0 0.0
    %6843 = vmatprep.subr.mxu0 %v6808
    %6844 = vmatpush1.msra.mxu0 %v6807
    %6845 = vmatprep.subr.mxu0 %v6806
    %6846 = vmatpush1.msra.mxu0 %v6805
    %6847 = vmatprep.subr.mxu0 %v6804
    %6848 = vmatpush1.msra.mxu0 %v6803
    %6849 = vmatprep.subr.mxu0 %v6802
    %6850 = vmatpush1.msra.mxu0 %v6801
    %6851 = vmatprep.subr.mxu0 %v6800
    %6852 = vmatpush1.msra.mxu0 %v6799
    %6853 = vmatprep.subr.mxu0 %v6798
    %6854 = vmatpush1.msra.mxu0 %v6797
    %6855 = vmatprep.subr.mxu0 %v6796
    %6856 = vmatpush1.msra.mxu0 %v6795
    %6857 = vmatprep.subr.mxu0 %v6794
    %6858 = vmatpush1.msra.mxu0 %v6793
    %6859 = vmatprep.subr.mxu0 %v6792
    %6860 = vmatpush1.msra.mxu0 %v6791
    %6861 = vmatprep.subr.mxu0 %v6790
    %6862 = vmatpush1.msra.mxu0 %v6789
    %6863 = vmatprep.subr.mxu0 %v6788
    %6864 = vmatpush1.msra.mxu0 %v6787
    %6865 = vmatprep.subr.mxu0 %v6786
    %6866 = vmatpush1.msra.mxu0 %v6785
    %6867 = vmatprep.subr.mxu0 %v6784
    %6868 = vmatpush1.msra.mxu0 %v6783
    %6869 = vmatprep.subr.mxu0 %v6782
    %6870 = vmatpush1.msra.mxu0 %v6781
    %6871 = vmatprep.subr.mxu0 0.0
    %6872 = vmatpush2.msra.mxu0 0.0
    %6873 = vmatprep.subr.mxu0 0.0
    %6874 = vmatpush2.msra.mxu0 0.0
    %6875 = vmatprep.subr.mxu0 0.0
    %6876 = vmatpush2.msra.mxu0 0.0
    %6877 = vmatprep.subr.mxu0 0.0
    %6878 = vmatpush2.msra.mxu0 0.0
    %6879 = vmatprep.subr.mxu0 0.0
    %6880 = vmatpush2.msra.mxu0 0.0
    %6881 = vmatprep.subr.mxu0 0.0
    %6882 = vmatpush2.msra.mxu0 0.0
    %6883 = vmatprep.subr.mxu0 0.0
    %6884 = vmatpush2.msra.mxu0 0.0
    %6885 = vmatprep.subr.mxu0 0.0
    %6886 = vmatpush2.msra.mxu0 0.0
    %6887 = vmatprep.subr.mxu0 0.0
    %6888 = vmatpush2.msra.mxu0 0.0
    %6889 = vmatprep.subr.mxu0 0.0
    %6890 = vmatpush2.msra.mxu0 0.0
    %6891 = vmatprep.subr.mxu0 0.0
    %6892 = vmatpush2.msra.mxu0 0.0
    %6893 = vmatprep.subr.mxu0 0.0
    %6894 = vmatpush2.msra.mxu0 0.0
    %6895 = vmatprep.subr.mxu0 0.0
    %6896 = vmatpush2.msra.mxu0 0.0
    %6897 = vmatprep.subr.mxu0 0.0
    %6898 = vmatpush2.msra.mxu0 0.0
    %6899 = vmatprep.subr.mxu0 0.0
    %6900 = vmatpush2.msra.mxu0 0.0
    %6901 = vmatprep.subr.mxu0 0.0
    %6902 = vmatpush2.msra.mxu0 0.0
    %6903 = vmatprep.mubr.f32.mxu0 0.0
    %6904 = vmatmul.mubr.f32.gmra.mxu0 %v6835
    %v6905 = vpop.f32.mrf.mxu0
    %v6906 = vadd.f32 0.0, %v6905
    %v6907 = vpop.f32.mrf.mxu0
    %v6908 = vadd.f32 0.0, %v6907
    %6909 = vmatprep.mubr.f32.mxu0 0.0
    %6910 = vmatmul.mubr.f32.gmra.mxu0 %v6837
    %v6911 = vpop.f32.mrf.mxu0
    %v6912 = vadd.f32 0.0, %v6911
    %v6913 = vpop.f32.mrf.mxu0
    %v6914 = vadd.f32 0.0, %v6913
    %6915 = vdwg.mxu0
    %v6916 = vadd.f32 %v6770, %v6906
    %v6917 = vadd.f32 %v6771, %v6908
    %v6918 = vadd.f32 %v6772, %v6912
    %v6919 = vadd.f32 %v6773, %v6914
    %v6920 = vld [vmem:[#allocation8] sm:$0xfc]
    %v6921 = vld [vmem:[#allocation8 + $0x20] sm:$0x3]
    %s6922 = scalar_lea.vmem [#allocation14], 1344
    %v6923 = vld [vmem:[%s6922] sm:$0xff]
    %v6924 = vld [vmem:[%s6922 + $0x8] sm:$0xff]
    %v6925 = vld [vmem:[%s6922 + $0x10] sm:$0xff]
    %v6926 = vld [vmem:[%s6922 + $0x18] sm:$0xff]
    %v6927 = vld [vmem:[%s6922 + $0x20] sm:$0xff]
    %v6928 = vld [vmem:[%s6922 + $0x28] sm:$0xff]
    %v6929 = vld [vmem:[%s6922 + $0x30] sm:$0xff]
    %v6930 = vld [vmem:[%s6922 + $0x38] sm:$0xff]
    %v6931 = vld [vmem:[%s6922 + $0x40] sm:$0xff]
    %v6932 = vld [vmem:[%s6922 + $0x48] sm:$0xff]
    %v6933 = vld [vmem:[%s6922 + $0x50] sm:$0xff]
    %v6934 = vld [vmem:[%s6922 + $0x58] sm:$0xff]
    %v6935 = vld [vmem:[%s6922 + $0x60] sm:$0xff]
    %v6936 = vld [vmem:[%s6922 + $0x68] sm:$0xff]
    %v6937 = vld [vmem:[%s6922 + $0x70] sm:$0xff]
    %v6938 = vld [vmem:[%s6922 + $0x78] sm:$0xff]
    %v6939 = vld [vmem:[%s6922 + $0x80] sm:$0xff]
    %v6940 = vld [vmem:[%s6922 + $0x88] sm:$0xff]
    %v6941 = vld [vmem:[%s6922 + $0x90] sm:$0xff]
    %v6942 = vld [vmem:[%s6922 + $0x98] sm:$0xff]
    %v6943 = vld [vmem:[%s6922 + $0xa0] sm:$0xff]
    %v6944 = vld [vmem:[%s6922 + $0xa8] sm:$0xff]
    %v6945 = vld [vmem:[%s6922 + $0xb0] sm:$0xff]
    %v6946 = vld [vmem:[%s6922 + $0xb8] sm:$0xff]
    %v6947 = vld [vmem:[%s6922 + $0xc0] sm:$0xff]
    %v6948 = vld [vmem:[%s6922 + $0xc8] sm:$0xff]
    %v6949 = vld [vmem:[%s6922 + $0xd0] sm:$0xff]
    %v6950 = vld [vmem:[%s6922 + $0xd8] sm:$0xff]
    %v6953 = vrot.slane %v6920, 2
    %v6954 = vrot.slane %v6531, 2
    %v6955 = vsel %vm5265, %v6953, %v6954
    %v6956 = vrot.slane %v6921, 2
    %v6957 = vsel %vm5265, %v6954, %v6956
    %v6958 = vsel %vm4006, %v6955, 0
    %v6960 = vsel %vm4006, %v6957, 0
    %6962 = vmatprep.subr.mxu0 0.0
    %6963 = vmatpush1.msra.mxu0 0.0
    %6964 = vmatprep.subr.mxu0 0.0
    %6965 = vmatpush1.msra.mxu0 0.0
    %6966 = vmatprep.subr.mxu0 %v6950
    %6967 = vmatpush1.msra.mxu0 %v6949
    %6968 = vmatprep.subr.mxu0 %v6948
    %6969 = vmatpush1.msra.mxu0 %v6947
    %6970 = vmatprep.subr.mxu0 %v6946
    %6971 = vmatpush1.msra.mxu0 %v6945
    %6972 = vmatprep.subr.mxu0 %v6944
    %6973 = vmatpush1.msra.mxu0 %v6943
    %6974 = vmatprep.subr.mxu0 %v6942
    %6975 = vmatpush1.msra.mxu0 %v6941
    %6976 = vmatprep.subr.mxu0 %v6940
    %6977 = vmatpush1.msra.mxu0 %v6939
    %6978 = vmatprep.subr.mxu0 %v6938
    %6979 = vmatpush1.msra.mxu0 %v6937
    %6980 = vmatprep.subr.mxu0 %v6936
    %6981 = vmatpush1.msra.mxu0 %v6935
    %6982 = vmatprep.subr.mxu0 %v6934
    %6983 = vmatpush1.msra.mxu0 %v6933
    %6984 = vmatprep.subr.mxu0 %v6932
    %6985 = vmatpush1.msra.mxu0 %v6931
    %6986 = vmatprep.subr.mxu0 %v6930
    %6987 = vmatpush1.msra.mxu0 %v6929
    %6988 = vmatprep.subr.mxu0 %v6928
    %6989 = vmatpush1.msra.mxu0 %v6927
    %6990 = vmatprep.subr.mxu0 %v6926
    %6991 = vmatpush1.msra.mxu0 %v6925
    %6992 = vmatprep.subr.mxu0 %v6924
    %6993 = vmatpush1.msra.mxu0 %v6923
    %6994 = vmatprep.subr.mxu0 0.0
    %6995 = vmatpush2.msra.mxu0 0.0
    %6996 = vmatprep.subr.mxu0 0.0
    %6997 = vmatpush2.msra.mxu0 0.0
    %6998 = vmatprep.subr.mxu0 0.0
    %6999 = vmatpush2.msra.mxu0 0.0
    %7000 = vmatprep.subr.mxu0 0.0
    %7001 = vmatpush2.msra.mxu0 0.0
    %7002 = vmatprep.subr.mxu0 0.0
    %7003 = vmatpush2.msra.mxu0 0.0
    %7004 = vmatprep.subr.mxu0 0.0
    %7005 = vmatpush2.msra.mxu0 0.0
    %7006 = vmatprep.subr.mxu0 0.0
    %7007 = vmatpush2.msra.mxu0 0.0
    %7008 = vmatprep.subr.mxu0 0.0
    %7009 = vmatpush2.msra.mxu0 0.0
    %7010 = vmatprep.subr.mxu0 0.0
    %7011 = vmatpush2.msra.mxu0 0.0
    %7012 = vmatprep.subr.mxu0 0.0
    %7013 = vmatpush2.msra.mxu0 0.0
    %7014 = vmatprep.subr.mxu0 0.0
    %7015 = vmatpush2.msra.mxu0 0.0
    %7016 = vmatprep.subr.mxu0 0.0
    %7017 = vmatpush2.msra.mxu0 0.0
    %7018 = vmatprep.subr.mxu0 0.0
    %7019 = vmatpush2.msra.mxu0 0.0
    %7020 = vmatprep.subr.mxu0 0.0
    %7021 = vmatpush2.msra.mxu0 0.0
    %7022 = vmatprep.subr.mxu0 0.0
    %7023 = vmatpush2.msra.mxu0 0.0
    %7024 = vmatprep.subr.mxu0 0.0
    %7025 = vmatpush2.msra.mxu0 0.0
    %7026 = vmatprep.mubr.f32.mxu0 0.0
    %7027 = vmatmul.mubr.f32.gmra.mxu0 %v6958
    %v7028 = vpop.f32.mrf.mxu0
    %v7029 = vadd.f32 0.0, %v7028
    %v7030 = vpop.f32.mrf.mxu0
    %v7031 = vadd.f32 0.0, %v7030
    %7032 = vmatprep.mubr.f32.mxu0 0.0
    %7033 = vmatmul.mubr.f32.gmra.mxu0 %v6960
    %v7034 = vpop.f32.mrf.mxu0
    %v7035 = vadd.f32 0.0, %v7034
    %v7036 = vpop.f32.mrf.mxu0
    %v7037 = vadd.f32 0.0, %v7036
    %7038 = vdwg.mxu0
    %v7039 = vadd.f32 %v6916, %v7029
    %v7040 = vadd.f32 %v6917, %v7031
    %v7041 = vadd.f32 %v6918, %v7035
    %v7042 = vadd.f32 %v6919, %v7037
    %s7043 = scalar_lea.vmem [#allocation14], 1568
    %v7044 = vld [vmem:[%s7043] sm:$0xff]
    %v7045 = vld [vmem:[%s7043 + $0x8] sm:$0xff]
    %v7046 = vld [vmem:[%s7043 + $0x10] sm:$0xff]
    %v7047 = vld [vmem:[%s7043 + $0x18] sm:$0xff]
    %v7048 = vld [vmem:[%s7043 + $0x20] sm:$0xff]
    %v7049 = vld [vmem:[%s7043 + $0x28] sm:$0xff]
    %v7050 = vld [vmem:[%s7043 + $0x30] sm:$0xff]
    %v7051 = vld [vmem:[%s7043 + $0x38] sm:$0xff]
    %v7052 = vld [vmem:[%s7043 + $0x40] sm:$0xff]
    %v7053 = vld [vmem:[%s7043 + $0x48] sm:$0xff]
    %v7054 = vld [vmem:[%s7043 + $0x50] sm:$0xff]
    %v7055 = vld [vmem:[%s7043 + $0x58] sm:$0xff]
    %v7056 = vld [vmem:[%s7043 + $0x60] sm:$0xff]
    %v7057 = vld [vmem:[%s7043 + $0x68] sm:$0xff]
    %v7058 = vld [vmem:[%s7043 + $0x70] sm:$0xff]
    %v7059 = vld [vmem:[%s7043 + $0x78] sm:$0xff]
    %v7060 = vld [vmem:[%s7043 + $0x80] sm:$0xff]
    %v7061 = vld [vmem:[%s7043 + $0x88] sm:$0xff]
    %v7062 = vld [vmem:[%s7043 + $0x90] sm:$0xff]
    %v7063 = vld [vmem:[%s7043 + $0x98] sm:$0xff]
    %v7064 = vld [vmem:[%s7043 + $0xa0] sm:$0xff]
    %v7065 = vld [vmem:[%s7043 + $0xa8] sm:$0xff]
    %v7066 = vld [vmem:[%s7043 + $0xb0] sm:$0xff]
    %v7067 = vld [vmem:[%s7043 + $0xb8] sm:$0xff]
    %v7068 = vld [vmem:[%s7043 + $0xc0] sm:$0xff]
    %v7069 = vld [vmem:[%s7043 + $0xc8] sm:$0xff]
    %v7070 = vld [vmem:[%s7043 + $0xd0] sm:$0xff]
    %v7071 = vld [vmem:[%s7043 + $0xd8] sm:$0xff]
    %7072 = vrot.lane.b32.xlu0 %v6955, 112
    %v7073 = vpop.permute.xlu0 %7072
    %7074 = vrot.lane.b32.xlu0 %v6957, 112
    %v7075 = vpop.permute.xlu0 %7074
    %v7076 = vsel %vm4006, %v7073, 0
    %v7078 = vsel %vm4006, %v7075, 0
    %7080 = vmatprep.subr.mxu0 0.0
    %7081 = vmatpush1.msra.mxu0 0.0
    %7082 = vmatprep.subr.mxu0 0.0
    %7083 = vmatpush1.msra.mxu0 0.0
    %7084 = vmatprep.subr.mxu0 %v7071
    %7085 = vmatpush1.msra.mxu0 %v7070
    %7086 = vmatprep.subr.mxu0 %v7069
    %7087 = vmatpush1.msra.mxu0 %v7068
    %7088 = vmatprep.subr.mxu0 %v7067
    %7089 = vmatpush1.msra.mxu0 %v7066
    %7090 = vmatprep.subr.mxu0 %v7065
    %7091 = vmatpush1.msra.mxu0 %v7064
    %7092 = vmatprep.subr.mxu0 %v7063
    %7093 = vmatpush1.msra.mxu0 %v7062
    %7094 = vmatprep.subr.mxu0 %v7061
    %7095 = vmatpush1.msra.mxu0 %v7060
    %7096 = vmatprep.subr.mxu0 %v7059
    %7097 = vmatpush1.msra.mxu0 %v7058
    %7098 = vmatprep.subr.mxu0 %v7057
    %7099 = vmatpush1.msra.mxu0 %v7056
    %7100 = vmatprep.subr.mxu0 %v7055
    %7101 = vmatpush1.msra.mxu0 %v7054
    %7102 = vmatprep.subr.mxu0 %v7053
    %7103 = vmatpush1.msra.mxu0 %v7052
    %7104 = vmatprep.subr.mxu0 %v7051
    %7105 = vmatpush1.msra.mxu0 %v7050
    %7106 = vmatprep.subr.mxu0 %v7049
    %7107 = vmatpush1.msra.mxu0 %v7048
    %7108 = vmatprep.subr.mxu0 %v7047
    %7109 = vmatpush1.msra.mxu0 %v7046
    %7110 = vmatprep.subr.mxu0 %v7045
    %7111 = vmatpush1.msra.mxu0 %v7044
    %7112 = vmatprep.subr.mxu0 0.0
    %7113 = vmatpush2.msra.mxu0 0.0
    %7114 = vmatprep.subr.mxu0 0.0
    %7115 = vmatpush2.msra.mxu0 0.0
    %7116 = vmatprep.subr.mxu0 0.0
    %7117 = vmatpush2.msra.mxu0 0.0
    %7118 = vmatprep.subr.mxu0 0.0
    %7119 = vmatpush2.msra.mxu0 0.0
    %7120 = vmatprep.subr.mxu0 0.0
    %7121 = vmatpush2.msra.mxu0 0.0
    %7122 = vmatprep.subr.mxu0 0.0
    %7123 = vmatpush2.msra.mxu0 0.0
    %7124 = vmatprep.subr.mxu0 0.0
    %7125 = vmatpush2.msra.mxu0 0.0
    %7126 = vmatprep.subr.mxu0 0.0
    %7127 = vmatpush2.msra.mxu0 0.0
    %7128 = vmatprep.subr.mxu0 0.0
    %7129 = vmatpush2.msra.mxu0 0.0
    %7130 = vmatprep.subr.mxu0 0.0
    %7131 = vmatpush2.msra.mxu0 0.0
    %7132 = vmatprep.subr.mxu0 0.0
    %7133 = vmatpush2.msra.mxu0 0.0
    %7134 = vmatprep.subr.mxu0 0.0
    %7135 = vmatpush2.msra.mxu0 0.0
    %7136 = vmatprep.subr.mxu0 0.0
    %7137 = vmatpush2.msra.mxu0 0.0
    %7138 = vmatprep.subr.mxu0 0.0
    %7139 = vmatpush2.msra.mxu0 0.0
    %7140 = vmatprep.subr.mxu0 0.0
    %7141 = vmatpush2.msra.mxu0 0.0
    %7142 = vmatprep.subr.mxu0 0.0
    %7143 = vmatpush2.msra.mxu0 0.0
    %7144 = vmatprep.mubr.f32.mxu0 0.0
    %7145 = vmatmul.mubr.f32.gmra.mxu0 %v7076
    %v7146 = vpop.f32.mrf.mxu0
    %v7147 = vadd.f32 0.0, %v7146
    %v7148 = vpop.f32.mrf.mxu0
    %v7149 = vadd.f32 0.0, %v7148
    %7150 = vmatprep.mubr.f32.mxu0 0.0
    %7151 = vmatmul.mubr.f32.gmra.mxu0 %v7078
    %v7152 = vpop.f32.mrf.mxu0
    %v7153 = vadd.f32 0.0, %v7152
    %v7154 = vpop.f32.mrf.mxu0
    %v7155 = vadd.f32 0.0, %v7154
    %7156 = vdwg.mxu0
    %v7157 = vadd.f32 %v7039, %v7147
    %v7158 = vadd.f32 %v7040, %v7149
    %v7159 = vadd.f32 %v7041, %v7153
    %v7160 = vadd.f32 %v7042, %v7155
    %v7161 = vld [vmem:[#allocation8] sm:$0xfc]
    %v7162 = vld [vmem:[#allocation8 + $0x8] sm:$0xfc]
    %v7163 = vld [vmem:[#allocation8 + $0x20] sm:$0x3]
    %v7164 = vld [vmem:[#allocation8 + $0x28] sm:$0x3]
    %s7165 = scalar_lea.vmem [#allocation14], 1792
    %v7166 = vld [vmem:[%s7165] sm:$0xff]
    %v7167 = vld [vmem:[%s7165 + $0x8] sm:$0xff]
    %v7168 = vld [vmem:[%s7165 + $0x10] sm:$0xff]
    %v7169 = vld [vmem:[%s7165 + $0x18] sm:$0xff]
    %v7170 = vld [vmem:[%s7165 + $0x20] sm:$0xff]
    %v7171 = vld [vmem:[%s7165 + $0x28] sm:$0xff]
    %v7172 = vld [vmem:[%s7165 + $0x30] sm:$0xff]
    %v7173 = vld [vmem:[%s7165 + $0x38] sm:$0xff]
    %v7174 = vld [vmem:[%s7165 + $0x40] sm:$0xff]
    %v7175 = vld [vmem:[%s7165 + $0x48] sm:$0xff]
    %v7176 = vld [vmem:[%s7165 + $0x50] sm:$0xff]
    %v7177 = vld [vmem:[%s7165 + $0x58] sm:$0xff]
    %v7178 = vld [vmem:[%s7165 + $0x60] sm:$0xff]
    %v7179 = vld [vmem:[%s7165 + $0x68] sm:$0xff]
    %v7180 = vld [vmem:[%s7165 + $0x70] sm:$0xff]
    %v7181 = vld [vmem:[%s7165 + $0x78] sm:$0xff]
    %v7182 = vld [vmem:[%s7165 + $0x80] sm:$0xff]
    %v7183 = vld [vmem:[%s7165 + $0x88] sm:$0xff]
    %v7184 = vld [vmem:[%s7165 + $0x90] sm:$0xff]
    %v7185 = vld [vmem:[%s7165 + $0x98] sm:$0xff]
    %v7186 = vld [vmem:[%s7165 + $0xa0] sm:$0xff]
    %v7187 = vld [vmem:[%s7165 + $0xa8] sm:$0xff]
    %v7188 = vld [vmem:[%s7165 + $0xb0] sm:$0xff]
    %v7189 = vld [vmem:[%s7165 + $0xb8] sm:$0xff]
    %v7190 = vld [vmem:[%s7165 + $0xc0] sm:$0xff]
    %v7191 = vld [vmem:[%s7165 + $0xc8] sm:$0xff]
    %v7192 = vld [vmem:[%s7165 + $0xd0] sm:$0xff]
    %v7193 = vld [vmem:[%s7165 + $0xd8] sm:$0xff]
    %v7198 = vrot.slane %v7161, 2
    %v7199 = vrot.slane %v6776, 2
    %v7200 = vsel %vm5265, %v7198, %v7199
    %v7201 = vrot.slane %v7162, 2
    %v7202 = vrot.slane %v6777, 2
    %v7203 = vsel %vm5265, %v7201, %v7202
    %v7204 = vrot.slane %v7163, 2
    %v7205 = vsel %vm5265, %v7199, %v7204
    %v7206 = vrot.slane %v7164, 2
    %v7207 = vsel %vm5265, %v7202, %v7206
    %7208 = vrot.lane.b32.xlu0 %v7200, 96
    %v7209 = vpop.permute.xlu0 %7208
    %7210 = vrot.lane.b32.xlu0 %v7203, 96
    %v7211 = vpop.permute.xlu0 %7210
    %7212 = vrot.lane.b32.xlu0 %v7205, 96
    %v7213 = vpop.permute.xlu0 %7212
    %7214 = vrot.lane.b32.xlu0 %v7207, 96
    %v7215 = vpop.permute.xlu0 %7214
    %v7216 = vsel %vm1906, %v7209, %v7211
    %v7217 = vsel %vm1906, %v7213, %v7215
    %v7218 = vsel %vm4006, %v7216, 0
    %v7220 = vsel %vm4006, %v7217, 0
    %7222 = vmatprep.subr.mxu0 0.0
    %7223 = vmatpush1.msra.mxu0 0.0
    %7224 = vmatprep.subr.mxu0 0.0
    %7225 = vmatpush1.msra.mxu0 0.0
    %7226 = vmatprep.subr.mxu0 %v7193
    %7227 = vmatpush1.msra.mxu0 %v7192
    %7228 = vmatprep.subr.mxu0 %v7191
    %7229 = vmatpush1.msra.mxu0 %v7190
    %7230 = vmatprep.subr.mxu0 %v7189
    %7231 = vmatpush1.msra.mxu0 %v7188
    %7232 = vmatprep.subr.mxu0 %v7187
    %7233 = vmatpush1.msra.mxu0 %v7186
    %7234 = vmatprep.subr.mxu0 %v7185
    %7235 = vmatpush1.msra.mxu0 %v7184
    %7236 = vmatprep.subr.mxu0 %v7183
    %7237 = vmatpush1.msra.mxu0 %v7182
    %7238 = vmatprep.subr.mxu0 %v7181
    %7239 = vmatpush1.msra.mxu0 %v7180
    %7240 = vmatprep.subr.mxu0 %v7179
    %7241 = vmatpush1.msra.mxu0 %v7178
    %7242 = vmatprep.subr.mxu0 %v7177
    %7243 = vmatpush1.msra.mxu0 %v7176
    %7244 = vmatprep.subr.mxu0 %v7175
    %7245 = vmatpush1.msra.mxu0 %v7174
    %7246 = vmatprep.subr.mxu0 %v7173
    %7247 = vmatpush1.msra.mxu0 %v7172
    %7248 = vmatprep.subr.mxu0 %v7171
    %7249 = vmatpush1.msra.mxu0 %v7170
    %7250 = vmatprep.subr.mxu0 %v7169
    %7251 = vmatpush1.msra.mxu0 %v7168
    %7252 = vmatprep.subr.mxu0 %v7167
    %7253 = vmatpush1.msra.mxu0 %v7166
    %7254 = vmatprep.subr.mxu0 0.0
    %7255 = vmatpush2.msra.mxu0 0.0
    %7256 = vmatprep.subr.mxu0 0.0
    %7257 = vmatpush2.msra.mxu0 0.0
    %7258 = vmatprep.subr.mxu0 0.0
    %7259 = vmatpush2.msra.mxu0 0.0
    %7260 = vmatprep.subr.mxu0 0.0
    %7261 = vmatpush2.msra.mxu0 0.0
    %7262 = vmatprep.subr.mxu0 0.0
    %7263 = vmatpush2.msra.mxu0 0.0
    %7264 = vmatprep.subr.mxu0 0.0
    %7265 = vmatpush2.msra.mxu0 0.0
    %7266 = vmatprep.subr.mxu0 0.0
    %7267 = vmatpush2.msra.mxu0 0.0
    %7268 = vmatprep.subr.mxu0 0.0
    %7269 = vmatpush2.msra.mxu0 0.0
    %7270 = vmatprep.subr.mxu0 0.0
    %7271 = vmatpush2.msra.mxu0 0.0
    %7272 = vmatprep.subr.mxu0 0.0
    %7273 = vmatpush2.msra.mxu0 0.0
    %7274 = vmatprep.subr.mxu0 0.0
    %7275 = vmatpush2.msra.mxu0 0.0
    %7276 = vmatprep.subr.mxu0 0.0
    %7277 = vmatpush2.msra.mxu0 0.0
    %7278 = vmatprep.subr.mxu0 0.0
    %7279 = vmatpush2.msra.mxu0 0.0
    %7280 = vmatprep.subr.mxu0 0.0
    %7281 = vmatpush2.msra.mxu0 0.0
    %7282 = vmatprep.subr.mxu0 0.0
    %7283 = vmatpush2.msra.mxu0 0.0
    %7284 = vmatprep.subr.mxu0 0.0
    %7285 = vmatpush2.msra.mxu0 0.0
    %7286 = vmatprep.mubr.f32.mxu0 0.0
    %7287 = vmatmul.mubr.f32.gmra.mxu0 %v7218
    %v7288 = vpop.f32.mrf.mxu0
    %v7289 = vadd.f32 0.0, %v7288
    %v7290 = vpop.f32.mrf.mxu0
    %v7291 = vadd.f32 0.0, %v7290
    %7292 = vmatprep.mubr.f32.mxu0 0.0
    %7293 = vmatmul.mubr.f32.gmra.mxu0 %v7220
    %v7294 = vpop.f32.mrf.mxu0
    %v7295 = vadd.f32 0.0, %v7294
    %v7296 = vpop.f32.mrf.mxu0
    %v7297 = vadd.f32 0.0, %v7296
    %7298 = vdwg.mxu0
    %v7299 = vadd.f32 %v7157, %v7289
    %v7300 = vadd.f32 %v7158, %v7291
    %v7301 = vadd.f32 %v7159, %v7295
    %v7302 = vadd.f32 %v7160, %v7297
    %vm7303 = vcmp.lt.s32.totalorder %v1715, 0
    %v7304 = vsub.s32 0, %v1715
    %v7305 = vsel %vm7303, %v7304, %v1715
    %v7306 = vmul.u32.u64.compose %v7305, 3817748708
    %v7307 = vextract.low.u32 %v7306
    %v7308 = vextract.high.u32 %v7306
    %v7309 = vshrl.u32 %v7308, 3
    %v7310 = vmul.u32 %v7309, 9
    %v7311 = vsub.s32 %v7305, %v7310
    %v7312 = vsub.s32 0, %v7311
    %v7313 = vsel %vm7303, %v7312, %v7311
    %vm7314 = vcmp.lt.s32.totalorder %v1716, 0
    %v7315 = vsub.s32 0, %v1716
    %v7316 = vsel %vm7314, %v7315, %v1716
    %v7317 = vmul.u32.u64.compose %v7316, 3817748708
    %v7318 = vextract.low.u32 %v7317
    %v7319 = vextract.high.u32 %v7317
    %v7320 = vshrl.u32 %v7319, 3
    %v7321 = vmul.u32 %v7320, 9
    %v7322 = vsub.s32 %v7316, %v7321
    %v7323 = vsub.s32 0, %v7322
    %v7324 = vsel %vm7314, %v7323, %v7322
    %vm7325 = vcmp.ne.s32.totalorder %v7313, 0
    %vm7326 = vcmp.ne.s32.totalorder %v7324, 0
    %vm7327 = vcmp.lt.s32.totalorder %v7313, 0
    %vm7328 = vcmp.lt.s32.totalorder %v7324, 0
    %vm7329 = vmand %vm7327, %vm7325
    %vm7330 = vmand %vm7328, %vm7326
    %v7331 = vadd.s32 %v7313, 9
    %v7332 = vadd.s32 %v7324, 9
    %v7333 = vsel %vm7329, %v7331, %v7313
    %v7334 = vsel %vm7330, %v7332, %v7324
    %vm7335 = vcmp.lt.s32.totalorder %v7333, 7
    %vm7336 = vcmp.lt.s32.totalorder %v7334, 7
    %v7337 = vsel %vm7335, 1, 0
    %v7338 = vsel %vm7336, 1, 0
    %vm7339 = vcmp.eq.s32.totalorder %v7337, 1
    %vm7340 = vcmp.eq.s32.totalorder %v7338, 1
    %v7341 = vsel %vm7339, %v7299, 0.0
    %v7342 = vsel %vm7339, %v7300, 0.0
    %v7343 = vsel %vm7340, %v7301, 0.0
    %v7344 = vsel %vm7340, %v7302, 0.0
    %v7345 = vadd.f32 %v7341, %v7343
    %v7346 = vrot.slane %v7345, 4
    %v7347 = vadd.f32 %v7345, %v7346
    %v7348 = vrot.slane %v7347, 2
    %v7349 = vadd.f32 %v7347, %v7348
    %v7350 = vrot.slane %v7349, 1
    %v7351 = vadd.f32 %v7349, %v7350
    %v7352 = vsel %vm1906, %v7342, 0.0
    %v7353 = vsel %vm1906, %v7344, 0.0
    %v7354 = vadd.f32 %v7352, %v7353
    %v7355 = vrot.slane %v7354, 4
    %v7356 = vadd.f32 %v7354, %v7355
    %v7357 = vrot.slane %v7356, 2
    %v7358 = vadd.f32 %v7356, %v7357
    %v7359 = vrot.slane %v7358, 1
    %v7360 = vadd.f32 %v7358, %v7359
    %v7361 = vmul.f32 %v7341, %v7341
    %v7362 = vmul.f32 %v7342, %v7342
    %v7363 = vmul.f32 %v7343, %v7343
    %v7364 = vmul.f32 %v7344, %v7344
    %v7365 = vadd.f32 %v7361, %v7363
    %v7366 = vrot.slane %v7365, 4
    %v7367 = vadd.f32 %v7365, %v7366
    %v7368 = vrot.slane %v7367, 2
    %v7369 = vadd.f32 %v7367, %v7368
    %v7370 = vrot.slane %v7369, 1
    %v7371 = vadd.f32 %v7369, %v7370
    %v7372 = vsel %vm1906, %v7362, 0.0
    %v7373 = vsel %vm1906, %v7364, 0.0
    %v7374 = vadd.f32 %v7372, %v7373
    %v7375 = vrot.slane %v7374, 4
    %v7376 = vadd.f32 %v7374, %v7375
    %v7377 = vrot.slane %v7376, 2
    %v7378 = vadd.f32 %v7376, %v7377
    %v7379 = vrot.slane %v7378, 1
    %v7380 = vadd.f32 %v7378, %v7379
    %v7381 = vld [vmem:[%s12] sm:$0xff]
    %v7382 = vld [vmem:[%s12 + $0x8] sm:$0xff]
    %v7383 = vld [vmem:[%s12 + $0x10] sm:$0xff]
    %v7384 = vld [vmem:[%s12 + $0x18] sm:$0xff]
    %v7385 = vld [vmem:[%s12 + $0x20] sm:$0xff]
    %v7386 = vld [vmem:[%s12 + $0x28] sm:$0xff]
    %v7387 = vld [vmem:[%s12 + $0x30] sm:$0xff]
    %v7388 = vld [vmem:[%s12 + $0x38] sm:$0xff]
    %v7389 = vld [vmem:[%s12 + $0x40] sm:$0xff]
    %v7390 = vld [vmem:[%s12 + $0x48] sm:$0xff]
    %v7391 = vld [vmem:[%s12 + $0x50] sm:$0xff]
    %v7392 = vld [vmem:[%s12 + $0x58] sm:$0xff]
    %v7393 = vld [vmem:[%s12 + $0x60] sm:$0xff]
    %v7394 = vld [vmem:[%s12 + $0x68] sm:$0xff]
    %v7395 = vld [vmem:[%s12 + $0x70] sm:$0xff]
    %v7396 = vld [vmem:[%s12 + $0x78] sm:$0xff]
    %v7397 = vld [vmem:[%s12 + $0x80] sm:$0xff]
    %v7398 = vld [vmem:[%s12 + $0x88] sm:$0xff]
    %v7399 = vld [vmem:[%s12 + $0x90] sm:$0xff]
    %v7400 = vld [vmem:[%s12 + $0x98] sm:$0xff]
    %v7401 = vld [vmem:[%s12 + $0xa0] sm:$0xff]
    %v7402 = vld [vmem:[%s12 + $0xa8] sm:$0xff]
    %v7403 = vld [vmem:[%s12 + $0xb0] sm:$0xff]
    %v7404 = vld [vmem:[%s12 + $0xb8] sm:$0xff]
    %v7405 = vld [vmem:[%s12 + $0xc0] sm:$0xff]
    %v7406 = vld [vmem:[%s12 + $0xc8] sm:$0xff]
    %v7407 = vld [vmem:[%s12 + $0xd0] sm:$0xff]
    %v7408 = vld [vmem:[%s12 + $0xd8] sm:$0xff]
    %v7410 = vsel %vm1906, %v7360, 0
    %7412 = vmatprep.subr.mxu0 0.0
    %7413 = vmatpush1.msra.mxu0 %v7396
    %7414 = vmatprep.subr.mxu0 0.0
    %7415 = vmatpush1.msra.mxu0 %v7395
    %7416 = vmatprep.subr.mxu0 0.0
    %7417 = vmatpush1.msra.mxu0 %v7394
    %7418 = vmatprep.subr.mxu0 0.0
    %7419 = vmatpush1.msra.mxu0 %v7393
    %7420 = vmatprep.subr.mxu0 0.0
    %7421 = vmatpush1.msra.mxu0 %v7392
    %7422 = vmatprep.subr.mxu0 0.0
    %7423 = vmatpush1.msra.mxu0 %v7391
    %7424 = vmatprep.subr.mxu0 0.0
    %7425 = vmatpush1.msra.mxu0 %v7390
    %7426 = vmatprep.subr.mxu0 0.0
    %7427 = vmatpush1.msra.mxu0 %v7389
    %7428 = vmatprep.subr.mxu0 0.0
    %7429 = vmatpush1.msra.mxu0 %v7388
    %7430 = vmatprep.subr.mxu0 0.0
    %7431 = vmatpush1.msra.mxu0 %v7387
    %7432 = vmatprep.subr.mxu0 0.0
    %7433 = vmatpush1.msra.mxu0 %v7386
    %7434 = vmatprep.subr.mxu0 0.0
    %7435 = vmatpush1.msra.mxu0 %v7385
    %7436 = vmatprep.subr.mxu0 0.0
    %7437 = vmatpush1.msra.mxu0 %v7384
    %7438 = vmatprep.subr.mxu0 0.0
    %7439 = vmatpush1.msra.mxu0 %v7383
    %7440 = vmatprep.subr.mxu0 0.0
    %7441 = vmatpush1.msra.mxu0 %v7382
    %7442 = vmatprep.subr.mxu0 0.0
    %7443 = vmatpush1.msra.mxu0 %v7381
    %7444 = vmatprep.subr.mxu0 0.0
    %7445 = vmatpush2.msra.mxu0 0.0
    %7446 = vmatprep.subr.mxu0 0.0
    %7447 = vmatpush2.msra.mxu0 0.0
    %7448 = vmatprep.subr.mxu0 0.0
    %7449 = vmatpush2.msra.mxu0 0.0
    %7450 = vmatprep.subr.mxu0 0.0
    %7451 = vmatpush2.msra.mxu0 0.0
    %7452 = vmatprep.subr.mxu0 0.0
    %7453 = vmatpush2.msra.mxu0 %v7408
    %7454 = vmatprep.subr.mxu0 0.0
    %7455 = vmatpush2.msra.mxu0 %v7407
    %7456 = vmatprep.subr.mxu0 0.0
    %7457 = vmatpush2.msra.mxu0 %v7406
    %7458 = vmatprep.subr.mxu0 0.0
    %7459 = vmatpush2.msra.mxu0 %v7405
    %7460 = vmatprep.subr.mxu0 0.0
    %7461 = vmatpush2.msra.mxu0 %v7404
    %7462 = vmatprep.subr.mxu0 0.0
    %7463 = vmatpush2.msra.mxu0 %v7403
    %7464 = vmatprep.subr.mxu0 0.0
    %7465 = vmatpush2.msra.mxu0 %v7402
    %7466 = vmatprep.subr.mxu0 0.0
    %7467 = vmatpush2.msra.mxu0 %v7401
    %7468 = vmatprep.subr.mxu0 0.0
    %7469 = vmatpush2.msra.mxu0 %v7400
    %7470 = vmatprep.subr.mxu0 0.0
    %7471 = vmatpush2.msra.mxu0 %v7399
    %7472 = vmatprep.subr.mxu0 0.0
    %7473 = vmatpush2.msra.mxu0 %v7398
    %7474 = vmatprep.subr.mxu0 0.0
    %7475 = vmatpush2.msra.mxu0 %v7397
    %7476 = vmatprep.mubr.f32.mxu0 %v7410
    %7477 = vmatmul.mubr.f32.gmra.mxu0 %v7351
    %v7478 = vpop.f32.mrf.mxu0
    %v7479 = vadd.f32 0.0, %v7478
    %v7480 = vpop.f32.mrf.mxu0
    %7481 = vdwg.mxu0
    %v7483 = vsel %vm1906, %v7380, 0
    %7485 = vmatprep.subr.mxu0 0.0
    %7486 = vmatpush1.msra.mxu0 %v7396
    %7487 = vmatprep.subr.mxu0 0.0
    %7488 = vmatpush1.msra.mxu0 %v7395
    %7489 = vmatprep.subr.mxu0 0.0
    %7490 = vmatpush1.msra.mxu0 %v7394
    %7491 = vmatprep.subr.mxu0 0.0
    %7492 = vmatpush1.msra.mxu0 %v7393
    %7493 = vmatprep.subr.mxu0 0.0
    %7494 = vmatpush1.msra.mxu0 %v7392
    %7495 = vmatprep.subr.mxu0 0.0
    %7496 = vmatpush1.msra.mxu0 %v7391
    %7497 = vmatprep.subr.mxu0 0.0
    %7498 = vmatpush1.msra.mxu0 %v7390
    %7499 = vmatprep.subr.mxu0 0.0
    %7500 = vmatpush1.msra.mxu0 %v7389
    %7501 = vmatprep.subr.mxu0 0.0
    %7502 = vmatpush1.msra.mxu0 %v7388
    %7503 = vmatprep.subr.mxu0 0.0
    %7504 = vmatpush1.msra.mxu0 %v7387
    %7505 = vmatprep.subr.mxu0 0.0
    %7506 = vmatpush1.msra.mxu0 %v7386
    %7507 = vmatprep.subr.mxu0 0.0
    %7508 = vmatpush1.msra.mxu0 %v7385
    %7509 = vmatprep.subr.mxu0 0.0
    %7510 = vmatpush1.msra.mxu0 %v7384
    %7511 = vmatprep.subr.mxu0 0.0
    %7512 = vmatpush1.msra.mxu0 %v7383
    %7513 = vmatprep.subr.mxu0 0.0
    %7514 = vmatpush1.msra.mxu0 %v7382
    %7515 = vmatprep.subr.mxu0 0.0
    %7516 = vmatpush1.msra.mxu0 %v7381
    %7517 = vmatprep.subr.mxu0 0.0
    %7518 = vmatpush2.msra.mxu0 0.0
    %7519 = vmatprep.subr.mxu0 0.0
    %7520 = vmatpush2.msra.mxu0 0.0
    %7521 = vmatprep.subr.mxu0 0.0
    %7522 = vmatpush2.msra.mxu0 0.0
    %7523 = vmatprep.subr.mxu0 0.0
    %7524 = vmatpush2.msra.mxu0 0.0
    %7525 = vmatprep.subr.mxu0 0.0
    %7526 = vmatpush2.msra.mxu0 %v7408
    %7527 = vmatprep.subr.mxu0 0.0
    %7528 = vmatpush2.msra.mxu0 %v7407
    %7529 = vmatprep.subr.mxu0 0.0
    %7530 = vmatpush2.msra.mxu0 %v7406
    %7531 = vmatprep.subr.mxu0 0.0
    %7532 = vmatpush2.msra.mxu0 %v7405
    %7533 = vmatprep.subr.mxu0 0.0
    %7534 = vmatpush2.msra.mxu0 %v7404
    %7535 = vmatprep.subr.mxu0 0.0
    %7536 = vmatpush2.msra.mxu0 %v7403
    %7537 = vmatprep.subr.mxu0 0.0
    %7538 = vmatpush2.msra.mxu0 %v7402
    %7539 = vmatprep.subr.mxu0 0.0
    %7540 = vmatpush2.msra.mxu0 %v7401
    %7541 = vmatprep.subr.mxu0 0.0
    %7542 = vmatpush2.msra.mxu0 %v7400
    %7543 = vmatprep.subr.mxu0 0.0
    %7544 = vmatpush2.msra.mxu0 %v7399
    %7545 = vmatprep.subr.mxu0 0.0
    %7546 = vmatpush2.msra.mxu0 %v7398
    %7547 = vmatprep.subr.mxu0 0.0
    %7548 = vmatpush2.msra.mxu0 %v7397
    %7549 = vmatprep.mubr.f32.mxu0 %v7483
    %7550 = vmatmul.mubr.f32.gmra.mxu0 %v7371
    %v7551 = vpop.f32.mrf.mxu0
    %v7552 = vadd.f32 0.0, %v7551
    %v7553 = vpop.f32.mrf.mxu0
    %7554 = vdwg.mxu0
    %v7555 = vmul.f32 %v7479, 0.010204081
    %v7556 = vmul.f32 %v7552, 0.010204081
    %v7557 = vmul.f32 %v7555, %v7555
    %v7558 = vsub.f32 %v7556, %v7557
    %v7559 = vmax.f32 %v7558, 0.0
    %v7560 = vld [vmem:[%s14] sm:$0x1]
    %v7561 = vadd.f32 %v7559, 1e-05
    %v7562 = vrsqrt.pop %v7561
    %v7563 = vmul.f32 %v7560, %v7562
    %v7564 = vld [vmem:[%s15] sm:$0x1]
    %v7565 = vmul.f32 %v7563, %v7555
    %v7566 = vsub.f32 %v7564, %v7565
    %v7567 = vld [vmem:[%s13] sm:$0xff]
    %v7568 = vld [vmem:[%s13 + $0x8] sm:$0xff]
    %v7569 = vld [vmem:[%s13 + $0x10] sm:$0xff]
    %v7570 = vld [vmem:[%s13 + $0x18] sm:$0xff]
    %v7571 = vld [vmem:[%s13 + $0x20] sm:$0xff]
    %v7572 = vld [vmem:[%s13 + $0x28] sm:$0xff]
    %v7573 = vld [vmem:[%s13 + $0x30] sm:$0xff]
    %v7574 = vld [vmem:[%s13 + $0x38] sm:$0xff]
    %vm7575 = vcmask 261120
    %v7577 = vsel %vm7575, %v7563, 0
    %7579 = vmatprep.subr.mxu0 0.0
    %7580 = vmatpush1.msra.mxu0 0.0
    %7581 = vmatprep.subr.mxu0 0.0
    %7582 = vmatpush1.msra.mxu0 0.0
    %7583 = vmatprep.subr.mxu0 0.0
    %7584 = vmatpush1.msra.mxu0 0.0
    %7585 = vmatprep.subr.mxu0 0.0
    %7586 = vmatpush1.msra.mxu0 0.0
    %7587 = vmatprep.subr.mxu0 0.0
    %7588 = vmatpush1.msra.mxu0 0.0
    %7589 = vmatprep.subr.mxu0 0.0
    %7590 = vmatpush1.msra.mxu0 0.0
    %7591 = vmatprep.subr.mxu0 0.0
    %7592 = vmatpush1.msra.mxu0 0.0
    %7593 = vmatprep.subr.mxu0 0.0
    %7594 = vmatpush1.msra.mxu0 0.0
    %7595 = vmatprep.subr.mxu0 0.0
    %7596 = vmatpush1.msra.mxu0 0.0
    %7597 = vmatprep.subr.mxu0 0.0
    %7598 = vmatpush1.msra.mxu0 0.0
    %7599 = vmatprep.subr.mxu0 0.0
    %7600 = vmatpush1.msra.mxu0 0.0
    %7601 = vmatprep.subr.mxu0 0.0
    %7602 = vmatpush1.msra.mxu0 0.0
    %7603 = vmatprep.subr.mxu0 %v7574
    %7604 = vmatpush1.msra.mxu0 %v7573
    %7605 = vmatprep.subr.mxu0 %v7572
    %7606 = vmatpush1.msra.mxu0 %v7571
    %7607 = vmatprep.subr.mxu0 %v7570
    %7608 = vmatpush1.msra.mxu0 %v7569
    %7609 = vmatprep.subr.mxu0 %v7568
    %7610 = vmatpush1.msra.mxu0 %v7567
    %7611 = vmatprep.subr.mxu0 0.0
    %7612 = vmatpush2.msra.mxu0 0.0
    %7613 = vmatprep.subr.mxu0 0.0
    %7614 = vmatpush2.msra.mxu0 0.0
    %7615 = vmatprep.subr.mxu0 0.0
    %7616 = vmatpush2.msra.mxu0 0.0
    %7617 = vmatprep.subr.mxu0 0.0
    %7618 = vmatpush2.msra.mxu0 0.0
    %7619 = vmatprep.subr.mxu0 0.0
    %7620 = vmatpush2.msra.mxu0 0.0
    %7621 = vmatprep.subr.mxu0 0.0
    %7622 = vmatpush2.msra.mxu0 0.0
    %7623 = vmatprep.subr.mxu0 0.0
    %7624 = vmatpush2.msra.mxu0 0.0
    %7625 = vmatprep.subr.mxu0 0.0
    %7626 = vmatpush2.msra.mxu0 0.0
    %7627 = vmatprep.subr.mxu0 0.0
    %7628 = vmatpush2.msra.mxu0 0.0
    %7629 = vmatprep.subr.mxu0 0.0
    %7630 = vmatpush2.msra.mxu0 0.0
    %7631 = vmatprep.subr.mxu0 0.0
    %7632 = vmatpush2.msra.mxu0 0.0
    %7633 = vmatprep.subr.mxu0 0.0
    %7634 = vmatpush2.msra.mxu0 0.0
    %7635 = vmatprep.subr.mxu0 0.0
    %7636 = vmatpush2.msra.mxu0 0.0
    %7637 = vmatprep.subr.mxu0 0.0
    %7638 = vmatpush2.msra.mxu0 0.0
    %7639 = vmatprep.subr.mxu0 0.0
    %7640 = vmatpush2.msra.mxu0 0.0
    %7641 = vmatprep.subr.mxu0 0.0
    %7642 = vmatpush2.msra.mxu0 0.0
    %7643 = vmatprep.mubr.f32.mxu0 0.0
    %7644 = vmatmul.mubr.f32.gmra.mxu0 %v7577
    %v7645 = vpop.f32.mrf.mxu0
    %v7646 = vadd.f32 0.0, %v7645
    %v7647 = vpop.f32.mrf.mxu0
    %v7648 = vadd.f32 0.0, %v7647
    %7649 = vdwg.mxu0
    %v7651 = vsel %vm7575, %v7566, 0
    %7653 = vmatprep.subr.mxu0 0.0
    %7654 = vmatpush1.msra.mxu0 0.0
    %7655 = vmatprep.subr.mxu0 0.0
    %7656 = vmatpush1.msra.mxu0 0.0
    %7657 = vmatprep.subr.mxu0 0.0
    %7658 = vmatpush1.msra.mxu0 0.0
    %7659 = vmatprep.subr.mxu0 0.0
    %7660 = vmatpush1.msra.mxu0 0.0
    %7661 = vmatprep.subr.mxu0 0.0
    %7662 = vmatpush1.msra.mxu0 0.0
    %7663 = vmatprep.subr.mxu0 0.0
    %7664 = vmatpush1.msra.mxu0 0.0
    %7665 = vmatprep.subr.mxu0 0.0
    %7666 = vmatpush1.msra.mxu0 0.0
    %7667 = vmatprep.subr.mxu0 0.0
    %7668 = vmatpush1.msra.mxu0 0.0
    %7669 = vmatprep.subr.mxu0 0.0
    %7670 = vmatpush1.msra.mxu0 0.0
    %7671 = vmatprep.subr.mxu0 0.0
    %7672 = vmatpush1.msra.mxu0 0.0
    %7673 = vmatprep.subr.mxu0 0.0
    %7674 = vmatpush1.msra.mxu0 0.0
    %7675 = vmatprep.subr.mxu0 0.0
    %7676 = vmatpush1.msra.mxu0 0.0
    %7677 = vmatprep.subr.mxu0 %v7574
    %7678 = vmatpush1.msra.mxu0 %v7573
    %7679 = vmatprep.subr.mxu0 %v7572
    %7680 = vmatpush1.msra.mxu0 %v7571
    %7681 = vmatprep.subr.mxu0 %v7570
    %7682 = vmatpush1.msra.mxu0 %v7569
    %7683 = vmatprep.subr.mxu0 %v7568
    %7684 = vmatpush1.msra.mxu0 %v7567
    %7685 = vmatprep.subr.mxu0 0.0
    %7686 = vmatpush2.msra.mxu0 0.0
    %7687 = vmatprep.subr.mxu0 0.0
    %7688 = vmatpush2.msra.mxu0 0.0
    %7689 = vmatprep.subr.mxu0 0.0
    %7690 = vmatpush2.msra.mxu0 0.0
    %7691 = vmatprep.subr.mxu0 0.0
    %7692 = vmatpush2.msra.mxu0 0.0
    %7693 = vmatprep.subr.mxu0 0.0
    %7694 = vmatpush2.msra.mxu0 0.0
    %7695 = vmatprep.subr.mxu0 0.0
    %7696 = vmatpush2.msra.mxu0 0.0
    %7697 = vmatprep.subr.mxu0 0.0
    %7698 = vmatpush2.msra.mxu0 0.0
    %7699 = vmatprep.subr.mxu0 0.0
    %7700 = vmatpush2.msra.mxu0 0.0
    %7701 = vmatprep.subr.mxu0 0.0
    %7702 = vmatpush2.msra.mxu0 0.0
    %7703 = vmatprep.subr.mxu0 0.0
    %7704 = vmatpush2.msra.mxu0 0.0
    %7705 = vmatprep.subr.mxu0 0.0
    %7706 = vmatpush2.msra.mxu0 0.0
    %7707 = vmatprep.subr.mxu0 0.0
    %7708 = vmatpush2.msra.mxu0 0.0
    %7709 = vmatprep.subr.mxu0 0.0
    %7710 = vmatpush2.msra.mxu0 0.0
    %7711 = vmatprep.subr.mxu0 0.0
    %7712 = vmatpush2.msra.mxu0 0.0
    %7713 = vmatprep.subr.mxu0 0.0
    %7714 = vmatpush2.msra.mxu0 0.0
    %7715 = vmatprep.subr.mxu0 0.0
    %7716 = vmatpush2.msra.mxu0 0.0
    %7717 = vmatprep.mubr.f32.mxu0 0.0
    %7718 = vmatmul.mubr.f32.gmra.mxu0 %v7651
    %v7719 = vpop.f32.mrf.mxu0
    %v7720 = vadd.f32 0.0, %v7719
    %v7721 = vpop.f32.mrf.mxu0
    %v7722 = vadd.f32 0.0, %v7721
    %7723 = vdwg.mxu0
    %v7724 = vlaneseq
    %v7725 = vshrl.u32 %v7724, 7
    %v7726 = vsub.s32 0, %v7725
    %v7727 = vrot.slane %v7646, %v7726
    %v7728 = vlaneseq
    %v7729 = vshrl.u32 %v7728, 7
    %v7730 = vsub.s32 0, %v7729
    %v7731 = vrot.slane %v7648, %v7730
    %v7732 = vmul.f32 %v7341, %v7727
    %v7733 = vmul.f32 %v7342, %v7731
    %v7734 = vmul.f32 %v7343, %v7727
    %v7735 = vmul.f32 %v7344, %v7731
    %v7736 = vlaneseq
    %v7737 = vshrl.u32 %v7736, 7
    %v7738 = vsub.s32 0, %v7737
    %v7739 = vrot.slane %v7720, %v7738
    %v7740 = vlaneseq
    %v7741 = vshrl.u32 %v7740, 7
    %v7742 = vsub.s32 0, %v7741
    %v7743 = vrot.slane %v7722, %v7742
    %v7744 = vadd.f32 %v7732, %v7739
    %v7745 = vadd.f32 %v7733, %v7743
    %v7746 = vadd.f32 %v7734, %v7739
    %v7747 = vadd.f32 %v7735, %v7743
    %vm7748 = vcmp.gt.f32.partialorder %v7744, 0.0
    %vm7749 = vcmp.gt.f32.partialorder %v7745, 0.0
    %vm7750 = vcmp.gt.f32.partialorder %v7746, 0.0
    %vm7751 = vcmp.gt.f32.partialorder %v7747, 0.0
    %v7752 = vmin.f32 %v7744, 0.0
    %v7753 = vmin.f32 %v7745, 0.0
    %v7754 = vmin.f32 %v7746, 0.0
    %v7755 = vmin.f32 %v7747, 0.0
    %v7756 = vmul.f32 %v7752, 1.442695
    %v7757 = vpow.pop %v7756
    %v7758 = vmul.f32 %v7753, 1.442695
    %v7759 = vpow.pop %v7758
    %v7760 = vmul.f32 %v7754, 1.442695
    %v7761 = vpow.pop %v7760
    %v7762 = vmul.f32 %v7755, 1.442695
    %v7763 = vpow.pop %v7762
    %v7764 = vsub.f32 %v7757, 1.0
    %v7765 = vsub.f32 %v7759, 1.0
    %v7766 = vsub.f32 %v7761, 1.0
    %v7767 = vsub.f32 %v7763, 1.0
    %v7768 = vsel %vm7748, %v7744, %v7764
    %v7769 = vsel %vm7749, %v7745, %v7765
    %v7770 = vsel %vm7750, %v7746, %v7766
    %v7771 = vsel %vm7751, %v7747, %v7767
    %7772 = vst [vmem:[#allocation9] sm:$0xff] %v7768
    %7773 = vst.msk [vmem:[#allocation9 + $0x8] sm:$0xff] %vm1906, %v7769
    %7774 = vst [vmem:[#allocation9 + $0x10] sm:$0xff] %v7770
    %7775 = vst.msk [vmem:[#allocation9 + $0x18] sm:$0xff] %vm1906, %v7771
    %v7776 = vld [vmem:[#allocation9] ss:$8 sm:$0x3]
    %v7777 = vlaneseq
    %vm7778 = vcmp.ge.s32.totalorder %v7777, 0
    %vm7779 = vcmp.lt.s32.totalorder %v7777, 224
    %vm7780 = vmand %vm7778, %vm7779
    %7781 = vst.msk [vmem:[#allocation10] ss:$2 sm:$0x3] %vm7780, %v7776
    %s7782 = scalar_lea.vmem [#allocation9], 1
    %v7783 = vld [vmem:[%s7782] ss:$8 sm:$0x3]
    %7785 = vrot.lane.b32.xlu0 %v7783, 96
    %v7786 = vpop.permute.xlu0 %7785
    %v7787 = vrot.slane %v7786, 7
    %v7788 = vsel %vm1906, %v7787, %v7786
    %vm7790 = vcmp.ge.s32.totalorder %v7777, 96
    %vm7791 = vcmp.lt.s32.totalorder %v7777, 320
    %vm7792 = vmand %vm7790, %vm7791
    %s7793 = scalar_lea.vmem [#allocation10], 2
    %7794 = vst.msk [vmem:[%s7793] ss:$2 sm:$0x7] %vm7792, %v7788
    %s7795 = scalar_lea.vmem [#allocation9], 2
    %v7796 = vld [vmem:[%s7795] ss:$8 sm:$0x3]
    %7798 = vrot.lane.b32.xlu0 %v7796, 64
    %v7799 = vpop.permute.xlu0 %7798
    %v7800 = vrot.slane %v7799, 7
    %vm7801 = vcmask 523264
    %v7802 = vsel %vm7801, %v7800, %v7799
    %vm7804 = vcmp.ge.s32.totalorder %v7777, 64
    %vm7805 = vcmp.lt.s32.totalorder %v7777, 288
    %vm7806 = vmand %vm7804, %vm7805
    %s7807 = scalar_lea.vmem [#allocation10], 6
    %7808 = vst.msk [vmem:[%s7807] ss:$2 sm:$0x7] %vm7806, %v7802
    %s7809 = scalar_lea.vmem [#allocation9], 3
    %v7810 = vld [vmem:[%s7809] ss:$8 sm:$0x3]
    %7812 = vrot.lane.b32.xlu0 %v7810, 32
    %v7813 = vpop.permute.xlu0 %7812
    %v7814 = vrot.slane %v7813, 7
    %v7815 = vsel %vm7575, %v7814, %v7813
    %vm7817 = vcmp.ge.s32.totalorder %v7777, 32
    %vm7818 = vcmp.lt.s32.totalorder %v7777, 256
    %vm7819 = vmand %vm7817, %vm7818
    %s7820 = scalar_lea.vmem [#allocation10], 10
    %7821 = vst.msk [vmem:[%s7820] ss:$2 sm:$0x3] %vm7819, %v7815
    %s7822 = scalar_lea.vmem [#allocation9], 4
    %v7823 = vld [vmem:[%s7822] ss:$8 sm:$0x3]
    %s7824 = scalar_lea.vmem [#allocation10], 14
    %7825 = vst.msk [vmem:[%s7824] ss:$2 sm:$0x3] %vm7780, %v7823
    %s7826 = scalar_lea.vmem [#allocation9], 5
    %v7827 = vld [vmem:[%s7826] ss:$8 sm:$0x3]
    %7829 = vrot.lane.b32.xlu0 %v7827, 96
    %v7830 = vpop.permute.xlu0 %7829
    %v7831 = vrot.slane %v7830, 7
    %v7832 = vsel %vm1906, %v7831, %v7830
    %s7834 = scalar_lea.vmem [#allocation10], 16
    %7835 = vst.msk [vmem:[%s7834] ss:$2 sm:$0x7] %vm7792, %v7832
    %s7836 = scalar_lea.vmem [#allocation9], 6
    %v7837 = vld [vmem:[%s7836] ss:$8 sm:$0x3]
    %7839 = vrot.lane.b32.xlu0 %v7837, 64
    %v7840 = vpop.permute.xlu0 %7839
    %v7841 = vrot.slane %v7840, 7
    %v7842 = vsel %vm7801, %v7841, %v7840
    %s7844 = scalar_lea.vmem [#allocation10], 20
    %7845 = vst.msk [vmem:[%s7844] ss:$2 sm:$0x7] %vm7806, %v7842
    %s7846 = scalar_lea.vmem [#allocation9], 17
    %v7847 = vld [vmem:[%s7846] ss:$8 sm:$0x3]
    %s7848 = scalar_lea.vmem [#allocation10], 1
    %7849 = vst.msk [vmem:[%s7848] ss:$2 sm:$0x3] %vm7780, %v7847
    %s7850 = scalar_lea.vmem [#allocation9], 18
    %v7851 = vld [vmem:[%s7850] ss:$8 sm:$0x3]
    %7853 = vrot.lane.b32.xlu0 %v7851, 96
    %v7854 = vpop.permute.xlu0 %7853
    %v7855 = vrot.slane %v7854, 7
    %v7856 = vsel %vm1906, %v7855, %v7854
    %s7858 = scalar_lea.vmem [#allocation10], 3
    %7859 = vst.msk [vmem:[%s7858] ss:$2 sm:$0x7] %vm7792, %v7856
    %s7860 = scalar_lea.vmem [#allocation9], 19
    %v7861 = vld [vmem:[%s7860] ss:$8 sm:$0x3]
    %7863 = vrot.lane.b32.xlu0 %v7861, 64
    %v7864 = vpop.permute.xlu0 %7863
    %v7865 = vrot.slane %v7864, 7
    %v7866 = vsel %vm7801, %v7865, %v7864
    %s7868 = scalar_lea.vmem [#allocation10], 7
    %7869 = vst.msk [vmem:[%s7868] ss:$2 sm:$0x7] %vm7806, %v7866
    %s7870 = scalar_lea.vmem [#allocation9], 20
    %v7871 = vld [vmem:[%s7870] ss:$8 sm:$0x3]
    %7873 = vrot.lane.b32.xlu0 %v7871, 32
    %v7874 = vpop.permute.xlu0 %7873
    %v7875 = vrot.slane %v7874, 7
    %v7876 = vsel %vm7575, %v7875, %v7874
    %s7878 = scalar_lea.vmem [#allocation10], 11
    %7879 = vst.msk [vmem:[%s7878] ss:$2 sm:$0x3] %vm7819, %v7876
    %s7880 = scalar_lea.vmem [#allocation9], 21
    %v7881 = vld [vmem:[%s7880] ss:$8 sm:$0x3]
    %s7882 = scalar_lea.vmem [#allocation10], 15
    %7883 = vst.msk [vmem:[%s7882] ss:$2 sm:$0x3] %vm7780, %v7881
    %s7884 = scalar_lea.vmem [#allocation9], 22
    %v7885 = vld [vmem:[%s7884] ss:$8 sm:$0x3]
    %7887 = vrot.lane.b32.xlu0 %v7885, 96
    %v7888 = vpop.permute.xlu0 %7887
    %v7889 = vrot.slane %v7888, 7
    %v7890 = vsel %vm1906, %v7889, %v7888
    %s7892 = scalar_lea.vmem [#allocation10], 17
    %7893 = vst.msk [vmem:[%s7892] ss:$2 sm:$0x7] %vm7792, %v7890
    %s7894 = scalar_lea.vmem [#allocation9], 23
    %v7895 = vld [vmem:[%s7894] ss:$8 sm:$0x3]
    %7897 = vrot.lane.b32.xlu0 %v7895, 64
    %v7898 = vpop.permute.xlu0 %7897
    %v7899 = vrot.slane %v7898, 7
    %v7900 = vsel %vm7801, %v7899, %v7898
    %s7902 = scalar_lea.vmem [#allocation10], 21
    %7903 = vst.msk [vmem:[%s7902] ss:$2 sm:$0x7] %vm7806, %v7900
    %v7904 = vld [vmem:[#allocation10] sm:$0xff]
    %v7905 = vld [vmem:[#allocation10 + $0x8] sm:$0xff]
    %v7906 = vld [vmem:[#allocation10 + $0x10] sm:$0xff]
    %v7907 = vld [vmem:[#allocation10 + $0x18] sm:$0x3]
    %v7908 = vld [vmem:[#allocation16] sm:$0xff]
    %v7909 = vld [vmem:[#allocation16 + $0x8] sm:$0xff]
    %v7910 = vld [vmem:[#allocation16 + $0x10] sm:$0xff]
    %v7911 = vld [vmem:[#allocation16 + $0x18] sm:$0xff]
    %v7912 = vld [vmem:[#allocation16 + $0x20] sm:$0xff]
    %v7913 = vld [vmem:[#allocation16 + $0x28] sm:$0xff]
    %v7914 = vld [vmem:[#allocation16 + $0x30] sm:$0xff]
    %v7915 = vld [vmem:[#allocation16 + $0x38] sm:$0xff]
    %v7916 = vld [vmem:[#allocation16 + $0x40] sm:$0xff]
    %v7917 = vld [vmem:[#allocation16 + $0x48] sm:$0xff]
    %v7918 = vld [vmem:[#allocation16 + $0x50] sm:$0xff]
    %v7919 = vld [vmem:[#allocation16 + $0x58] sm:$0xff]
    %v7920 = vld [vmem:[#allocation16 + $0x60] sm:$0xff]
    %v7921 = vld [vmem:[#allocation16 + $0x68] sm:$0xff]
    %v7922 = vld [vmem:[#allocation16 + $0x70] sm:$0xff]
    %v7923 = vld [vmem:[#allocation16 + $0x78] sm:$0xff]
    %v7924 = vld [vmem:[#allocation16 + $0x80] sm:$0xff]
    %v7925 = vld [vmem:[#allocation16 + $0x88] sm:$0xff]
    %v7926 = vld [vmem:[#allocation16 + $0x90] sm:$0xff]
    %v7927 = vld [vmem:[#allocation16 + $0x98] sm:$0xff]
    %v7928 = vld [vmem:[#allocation16 + $0xa0] sm:$0xff]
    %v7929 = vld [vmem:[#allocation16 + $0xa8] sm:$0xff]
    %v7930 = vld [vmem:[#allocation16 + $0xb0] sm:$0xff]
    %v7931 = vld [vmem:[#allocation16 + $0xb8] sm:$0xff]
    %v7932 = vld [vmem:[#allocation16 + $0xc0] sm:$0xff]
    %v7933 = vld [vmem:[#allocation16 + $0xc8] sm:$0xff]
    %v7934 = vld [vmem:[#allocation16 + $0xd0] sm:$0xff]
    %v7935 = vld [vmem:[#allocation16 + $0xd8] sm:$0xff]
    %v7936 = vld [vmem:[#allocation16 + $0xe0] sm:$0xff]
    %v7937 = vld [vmem:[#allocation16 + $0xe8] sm:$0xff]
    %v7938 = vld [vmem:[#allocation16 + $0xf0] sm:$0xff]
    %v7939 = vld [vmem:[#allocation16 + $0xf8] sm:$0xff]
    %v7940 = vld [vmem:[#allocation16 + $0x100] sm:$0xff]
    %v7941 = vld [vmem:[#allocation16 + $0x108] sm:$0xff]
    %v7942 = vld [vmem:[#allocation16 + $0x110] sm:$0xff]
    %v7943 = vld [vmem:[#allocation16 + $0x118] sm:$0xff]
    %v7944 = vld [vmem:[#allocation16 + $0x120] sm:$0xff]
    %v7945 = vld [vmem:[#allocation16 + $0x128] sm:$0xff]
    %v7946 = vld [vmem:[#allocation16 + $0x130] sm:$0xff]
    %v7947 = vld [vmem:[#allocation16 + $0x138] sm:$0xff]
    %v7948 = vld [vmem:[#allocation16 + $0x140] sm:$0xff]
    %v7949 = vld [vmem:[#allocation16 + $0x148] sm:$0xff]
    %v7950 = vld [vmem:[#allocation16 + $0x150] sm:$0xff]
    %v7951 = vld [vmem:[#allocation16 + $0x158] sm:$0xff]
    %v7952 = vld [vmem:[#allocation16 + $0x160] sm:$0xff]
    %v7953 = vld [vmem:[#allocation16 + $0x168] sm:$0xff]
    %v7954 = vld [vmem:[#allocation16 + $0x170] sm:$0xff]
    %v7955 = vld [vmem:[#allocation16 + $0x178] sm:$0xff]
    %v7956 = vld [vmem:[#allocation16 + $0x180] sm:$0xff]
    %v7957 = vld [vmem:[#allocation16 + $0x188] sm:$0xff]
    %v7958 = vld [vmem:[#allocation16 + $0x190] sm:$0xff]
    %v7959 = vld [vmem:[#allocation16 + $0x198] sm:$0xff]
    %v7960 = vld [vmem:[#allocation16 + $0x1a0] sm:$0xff]
    %v7961 = vld [vmem:[#allocation16 + $0x1a8] sm:$0xff]
    %v7962 = vld [vmem:[#allocation16 + $0x1b0] sm:$0xff]
    %v7963 = vld [vmem:[#allocation16 + $0x1b8] sm:$0xff]
    %v7964 = vld [vmem:[#allocation16 + $0x1c0] sm:$0xff]
    %v7965 = vld [vmem:[#allocation16 + $0x1c8] sm:$0xff]
    %v7966 = vld [vmem:[#allocation16 + $0x1d0] sm:$0xff]
    %v7967 = vld [vmem:[#allocation16 + $0x1d8] sm:$0xff]
    %v7968 = vld [vmem:[#allocation16 + $0x1e0] sm:$0xff]
    %v7969 = vld [vmem:[#allocation16 + $0x1e8] sm:$0xff]
    %v7970 = vld [vmem:[#allocation16 + $0x1f0] sm:$0xff]
    %v7971 = vld [vmem:[#allocation16 + $0x1f8] sm:$0xff]
    %v7972 = vld [vmem:[#allocation16 + $0x200] sm:$0xff]
    %v7973 = vld [vmem:[#allocation16 + $0x208] sm:$0xff]
    %v7974 = vld [vmem:[#allocation16 + $0x210] sm:$0xff]
    %v7975 = vld [vmem:[#allocation16 + $0x218] sm:$0xff]
    %v7976 = vld [vmem:[#allocation16 + $0x220] sm:$0xff]
    %v7977 = vld [vmem:[#allocation16 + $0x228] sm:$0xff]
    %v7978 = vld [vmem:[#allocation16 + $0x230] sm:$0xff]
    %v7979 = vld [vmem:[#allocation16 + $0x238] sm:$0xff]
    %v7980 = vld [vmem:[#allocation16 + $0x240] sm:$0xff]
    %v7981 = vld [vmem:[#allocation16 + $0x248] sm:$0xff]
    %v7982 = vld [vmem:[#allocation16 + $0x250] sm:$0xff]
    %v7983 = vld [vmem:[#allocation16 + $0x258] sm:$0xff]
    %v7984 = vld [vmem:[#allocation16 + $0x260] sm:$0xff]
    %v7985 = vld [vmem:[#allocation16 + $0x268] sm:$0xff]
    %v7986 = vld [vmem:[#allocation16 + $0x270] sm:$0xff]
    %v7987 = vld [vmem:[#allocation16 + $0x278] sm:$0xff]
    %v7988 = vld [vmem:[#allocation16 + $0x280] sm:$0xff]
    %v7989 = vld [vmem:[#allocation16 + $0x288] sm:$0xff]
    %v7990 = vld [vmem:[#allocation16 + $0x290] sm:$0xff]
    %v7991 = vld [vmem:[#allocation16 + $0x298] sm:$0xff]
    %v7992 = vld [vmem:[#allocation16 + $0x2a0] sm:$0xff]
    %v7993 = vld [vmem:[#allocation16 + $0x2a8] sm:$0xff]
    %v7994 = vld [vmem:[#allocation16 + $0x2b0] sm:$0xff]
    %v7995 = vld [vmem:[#allocation16 + $0x2b8] sm:$0xff]
    %v7996 = vld [vmem:[#allocation16 + $0x2c0] sm:$0xff]
    %v7997 = vld [vmem:[#allocation16 + $0x2c8] sm:$0xff]
    %v7998 = vld [vmem:[#allocation16 + $0x2d0] sm:$0xff]
    %v7999 = vld [vmem:[#allocation16 + $0x2d8] sm:$0xff]
    %v8000 = vld [vmem:[#allocation16 + $0x2e0] sm:$0xff]
    %v8001 = vld [vmem:[#allocation16 + $0x2e8] sm:$0xff]
    %v8002 = vld [vmem:[#allocation16 + $0x2f0] sm:$0xff]
    %v8003 = vld [vmem:[#allocation16 + $0x2f8] sm:$0xff]
    %v8004 = vld [vmem:[#allocation16 + $0x300] sm:$0xff]
    %v8005 = vld [vmem:[#allocation16 + $0x308] sm:$0xff]
    %v8006 = vld [vmem:[#allocation16 + $0x310] sm:$0xff]
    %v8007 = vld [vmem:[#allocation16 + $0x318] sm:$0xff]
    %v8008 = vld [vmem:[#allocation16 + $0x320] sm:$0xff]
    %v8009 = vld [vmem:[#allocation16 + $0x328] sm:$0xff]
    %v8010 = vld [vmem:[#allocation16 + $0x330] sm:$0xff]
    %v8011 = vld [vmem:[#allocation16 + $0x338] sm:$0xff]
    %v8012 = vld [vmem:[#allocation16 + $0x340] sm:$0xff]
    %v8013 = vld [vmem:[#allocation16 + $0x348] sm:$0xff]
    %v8014 = vld [vmem:[#allocation16 + $0x350] sm:$0xff]
    %v8015 = vld [vmem:[#allocation16 + $0x358] sm:$0xff]
    %v8016 = vld [vmem:[#allocation16 + $0x360] sm:$0xff]
    %v8017 = vld [vmem:[#allocation16 + $0x368] sm:$0xff]
    %v8018 = vld [vmem:[#allocation16 + $0x370] sm:$0xff]
    %v8019 = vld [vmem:[#allocation16 + $0x378] sm:$0xff]
    %v8020 = vld [vmem:[#allocation16 + $0x380] sm:$0xff]
    %v8021 = vld [vmem:[#allocation16 + $0x388] sm:$0xff]
    %v8022 = vld [vmem:[#allocation16 + $0x390] sm:$0xff]
    %v8023 = vld [vmem:[#allocation16 + $0x398] sm:$0xff]
    %v8024 = vld [vmem:[#allocation16 + $0x3a0] sm:$0xff]
    %v8025 = vld [vmem:[#allocation16 + $0x3a8] sm:$0xff]
    %v8026 = vld [vmem:[#allocation16 + $0x3b0] sm:$0xff]
    %v8027 = vld [vmem:[#allocation16 + $0x3b8] sm:$0xff]
    %v8028 = vld [vmem:[#allocation16 + $0x3c0] sm:$0xff]
    %v8029 = vld [vmem:[#allocation16 + $0x3c8] sm:$0xff]
    %v8030 = vld [vmem:[#allocation16 + $0x3d0] sm:$0xff]
    %v8031 = vld [vmem:[#allocation16 + $0x3d8] sm:$0xff]
    %v8032 = vld [vmem:[#allocation16 + $0x3e0] sm:$0xff]
    %v8033 = vld [vmem:[#allocation16 + $0x3e8] sm:$0xff]
    %v8034 = vld [vmem:[#allocation16 + $0x3f0] sm:$0xff]
    %v8035 = vld [vmem:[#allocation16 + $0x3f8] sm:$0xff]
    %v8036 = vld [vmem:[#allocation16 + $0x400] sm:$0xff]
    %v8037 = vld [vmem:[#allocation16 + $0x408] sm:$0xff]
    %v8038 = vld [vmem:[#allocation16 + $0x410] sm:$0xff]
    %v8039 = vld [vmem:[#allocation16 + $0x418] sm:$0xff]
    %v8040 = vld [vmem:[#allocation16 + $0x420] sm:$0xff]
    %v8041 = vld [vmem:[#allocation16 + $0x428] sm:$0xff]
    %v8042 = vld [vmem:[#allocation16 + $0x430] sm:$0xff]
    %v8043 = vld [vmem:[#allocation16 + $0x438] sm:$0xff]
    %v8044 = vld [vmem:[#allocation16 + $0x440] sm:$0xff]
    %v8045 = vld [vmem:[#allocation16 + $0x448] sm:$0xff]
    %v8046 = vld [vmem:[#allocation16 + $0x450] sm:$0xff]
    %v8047 = vld [vmem:[#allocation16 + $0x458] sm:$0xff]
    %v8048 = vld [vmem:[#allocation16 + $0x460] sm:$0xff]
    %v8049 = vld [vmem:[#allocation16 + $0x468] sm:$0xff]
    %v8050 = vld [vmem:[#allocation16 + $0x470] sm:$0xff]
    %v8051 = vld [vmem:[#allocation16 + $0x478] sm:$0xff]
    %v8052 = vld [vmem:[#allocation16 + $0x480] sm:$0xff]
    %v8053 = vld [vmem:[#allocation16 + $0x488] sm:$0xff]
    %v8054 = vld [vmem:[#allocation16 + $0x490] sm:$0xff]
    %v8055 = vld [vmem:[#allocation16 + $0x498] sm:$0xff]
    %v8056 = vld [vmem:[#allocation16 + $0x4a0] sm:$0xff]
    %v8057 = vld [vmem:[#allocation16 + $0x4a8] sm:$0xff]
    %v8058 = vld [vmem:[#allocation16 + $0x4b0] sm:$0xff]
    %v8059 = vld [vmem:[#allocation16 + $0x4b8] sm:$0xff]
    %v8060 = vld [vmem:[#allocation16 + $0x4c0] sm:$0xff]
    %v8061 = vld [vmem:[#allocation16 + $0x4c8] sm:$0xff]
    %v8062 = vld [vmem:[#allocation16 + $0x4d0] sm:$0xff]
    %v8063 = vld [vmem:[#allocation16 + $0x4d8] sm:$0xff]
    %v8064 = vld [vmem:[#allocation16 + $0x4e0] sm:$0xff]
    %v8065 = vld [vmem:[#allocation16 + $0x4e8] sm:$0xff]
    %v8066 = vld [vmem:[#allocation16 + $0x4f0] sm:$0xff]
    %v8067 = vld [vmem:[#allocation16 + $0x4f8] sm:$0xff]
    %v8068 = vld [vmem:[#allocation16 + $0x500] sm:$0xff]
    %v8069 = vld [vmem:[#allocation16 + $0x508] sm:$0xff]
    %v8070 = vld [vmem:[#allocation16 + $0x510] sm:$0xff]
    %v8071 = vld [vmem:[#allocation16 + $0x518] sm:$0xff]
    %v8072 = vld [vmem:[#allocation16 + $0x520] sm:$0xff]
    %v8073 = vld [vmem:[#allocation16 + $0x528] sm:$0xff]
    %v8074 = vld [vmem:[#allocation16 + $0x530] sm:$0xff]
    %v8075 = vld [vmem:[#allocation16 + $0x538] sm:$0xff]
    %v8076 = vld [vmem:[#allocation16 + $0x540] sm:$0xff]
    %v8077 = vld [vmem:[#allocation16 + $0x548] sm:$0xff]
    %v8078 = vld [vmem:[#allocation16 + $0x550] sm:$0xff]
    %v8079 = vld [vmem:[#allocation16 + $0x558] sm:$0xff]
    %v8080 = vld [vmem:[#allocation16 + $0x560] sm:$0xff]
    %v8081 = vld [vmem:[#allocation16 + $0x568] sm:$0xff]
    %v8082 = vld [vmem:[#allocation16 + $0x570] sm:$0xff]
    %v8083 = vld [vmem:[#allocation16 + $0x578] sm:$0xff]
    %v8084 = vld [vmem:[#allocation16 + $0x580] sm:$0xff]
    %v8085 = vld [vmem:[#allocation16 + $0x588] sm:$0xff]
    %v8086 = vld [vmem:[#allocation16 + $0x590] sm:$0xff]
    %v8087 = vld [vmem:[#allocation16 + $0x598] sm:$0xff]
    %v8088 = vld [vmem:[#allocation16 + $0x5a0] sm:$0xff]
    %v8089 = vld [vmem:[#allocation16 + $0x5a8] sm:$0xff]
    %v8090 = vld [vmem:[#allocation16 + $0x5b0] sm:$0xff]
    %v8091 = vld [vmem:[#allocation16 + $0x5b8] sm:$0xff]
    %v8092 = vld [vmem:[#allocation16 + $0x5c0] sm:$0xff]
    %v8093 = vld [vmem:[#allocation16 + $0x5c8] sm:$0xff]
    %v8094 = vld [vmem:[#allocation16 + $0x5d0] sm:$0xff]
    %v8095 = vld [vmem:[#allocation16 + $0x5d8] sm:$0xff]
    %v8096 = vld [vmem:[#allocation16 + $0x5e0] sm:$0xff]
    %v8097 = vld [vmem:[#allocation16 + $0x5e8] sm:$0xff]
    %v8098 = vld [vmem:[#allocation16 + $0x5f0] sm:$0xff]
    %v8099 = vld [vmem:[#allocation16 + $0x5f8] sm:$0xff]
    %v8100 = vld [vmem:[#allocation16 + $0x600] sm:$0xff]
    %v8101 = vld [vmem:[#allocation16 + $0x608] sm:$0xff]
    %v8102 = vld [vmem:[#allocation16 + $0x610] sm:$0xff]
    %v8103 = vld [vmem:[#allocation16 + $0x618] sm:$0xff]
    %v8104 = vld [vmem:[%s17] sm:$0x1]
    %v8106 = vlaneseq
    %v8107 = vshrl.u32 %v8106, 7
    %v8108 = vsub.s32 0, %v8107
    %v8109 = vrot.slane %v8104, %v8108
    %v8115 = vcombine.high %v7904, %v7904
    %v8117 = vunpack.c.l.s4 1983009808
    %v8118 = vunpack.c.0.s8 %v8117
    %v8119 = vlaneseq
    %v8120 = vshrl.u32 %v8119, 7
    %v8121 = vsub.s32 %v8118, %v8120
    %v8122 = vrot.slane %v7904, %v8121
    %v8124 = vunpack.c.l.s4 1983009808
    %v8125 = vunpack.c.0.s8 %v8124
    %v8126 = vlaneseq
    %v8127 = vshrl.u32 %v8126, 7
    %v8128 = vsub.s32 %v8125, %v8127
    %v8129 = vrot.slane %v8115, %v8128
    %v8130 = vcombine.high %v8122, %v8122
    %v8131 = vcombine.high %v8129, %v8129
    %v8132 = vcombine.high %v7905, %v7905
    %v8134 = vunpack.c.l.s4 1983009808
    %v8135 = vunpack.c.0.s8 %v8134
    %v8136 = vlaneseq
    %v8137 = vshrl.u32 %v8136, 7
    %v8138 = vsub.s32 %v8135, %v8137
    %v8139 = vrot.slane %v7905, %v8138
    %v8141 = vunpack.c.l.s4 1983009808
    %v8142 = vunpack.c.0.s8 %v8141
    %v8143 = vlaneseq
    %v8144 = vshrl.u32 %v8143, 7
    %v8145 = vsub.s32 %v8142, %v8144
    %v8146 = vrot.slane %v8132, %v8145
    %v8147 = vcombine.high %v8139, %v8139
    %v8148 = vcombine.high %v8146, %v8146
    %v8149 = vcombine.high %v7906, %v7906
    %v8151 = vunpack.c.l.s4 1983009808
    %v8152 = vunpack.c.0.s8 %v8151
    %v8153 = vlaneseq
    %v8154 = vshrl.u32 %v8153, 7
    %v8155 = vsub.s32 %v8152, %v8154
    %v8156 = vrot.slane %v7906, %v8155
    %v8158 = vunpack.c.l.s4 1983009808
    %v8159 = vunpack.c.0.s8 %v8158
    %v8160 = vlaneseq
    %v8161 = vshrl.u32 %v8160, 7
    %v8162 = vsub.s32 %v8159, %v8161
    %v8163 = vrot.slane %v8149, %v8162
    %v8164 = vcombine.high %v8156, %v8156
    %v8165 = vcombine.high %v8163, %v8163
    %v8167 = vunpack.c.l.s4 1983009808
    %v8168 = vunpack.c.0.s8 %v8167
    %v8169 = vlaneseq
    %v8170 = vshrl.u32 %v8169, 7
    %v8171 = vsub.s32 %v8168, %v8170
    %v8172 = vrot.slane %v7907, %v8171
    %v8185 = vsel %vm7575, %v8172, 0
    %8187 = vmatprep.subr.mxu0 0.0
    %8188 = vmatpush1.msra.mxu0 %v7923
    %8189 = vmatprep.subr.mxu0 0.0
    %8190 = vmatpush1.msra.mxu0 %v7922
    %8191 = vmatprep.subr.mxu0 0.0
    %8192 = vmatpush1.msra.mxu0 %v7921
    %8193 = vmatprep.subr.mxu0 0.0
    %8194 = vmatpush1.msra.mxu0 %v7920
    %8195 = vmatprep.subr.mxu0 0.0
    %8196 = vmatpush1.msra.mxu0 %v7919
    %8197 = vmatprep.subr.mxu0 0.0
    %8198 = vmatpush1.msra.mxu0 %v7918
    %8199 = vmatprep.subr.mxu0 0.0
    %8200 = vmatpush1.msra.mxu0 %v7917
    %8201 = vmatprep.subr.mxu0 0.0
    %8202 = vmatpush1.msra.mxu0 %v7916
    %8203 = vmatprep.subr.mxu0 0.0
    %8204 = vmatpush1.msra.mxu0 %v7915
    %8205 = vmatprep.subr.mxu0 0.0
    %8206 = vmatpush1.msra.mxu0 %v7914
    %8207 = vmatprep.subr.mxu0 0.0
    %8208 = vmatpush1.msra.mxu0 %v7913
    %8209 = vmatprep.subr.mxu0 0.0
    %8210 = vmatpush1.msra.mxu0 %v7912
    %8211 = vmatprep.subr.mxu0 0.0
    %8212 = vmatpush1.msra.mxu0 %v7911
    %8213 = vmatprep.subr.mxu0 0.0
    %8214 = vmatpush1.msra.mxu0 %v7910
    %8215 = vmatprep.subr.mxu0 0.0
    %8216 = vmatpush1.msra.mxu0 %v7909
    %8217 = vmatprep.subr.mxu0 0.0
    %8218 = vmatpush1.msra.mxu0 %v7908
    %8219 = vmatprep.subr.mxu0 0.0
    %8220 = vmatpush2.msra.mxu0 %v7939
    %8221 = vmatprep.subr.mxu0 0.0
    %8222 = vmatpush2.msra.mxu0 %v7938
    %8223 = vmatprep.subr.mxu0 0.0
    %8224 = vmatpush2.msra.mxu0 %v7937
    %8225 = vmatprep.subr.mxu0 0.0
    %8226 = vmatpush2.msra.mxu0 %v7936
    %8227 = vmatprep.subr.mxu0 0.0
    %8228 = vmatpush2.msra.mxu0 %v7935
    %8229 = vmatprep.subr.mxu0 0.0
    %8230 = vmatpush2.msra.mxu0 %v7934
    %8231 = vmatprep.subr.mxu0 0.0
    %8232 = vmatpush2.msra.mxu0 %v7933
    %8233 = vmatprep.subr.mxu0 0.0
    %8234 = vmatpush2.msra.mxu0 %v7932
    %8235 = vmatprep.subr.mxu0 0.0
    %8236 = vmatpush2.msra.mxu0 %v7931
    %8237 = vmatprep.subr.mxu0 0.0
    %8238 = vmatpush2.msra.mxu0 %v7930
    %8239 = vmatprep.subr.mxu0 0.0
    %8240 = vmatpush2.msra.mxu0 %v7929
    %8241 = vmatprep.subr.mxu0 0.0
    %8242 = vmatpush2.msra.mxu0 %v7928
    %8243 = vmatprep.subr.mxu0 0.0
    %8244 = vmatpush2.msra.mxu0 %v7927
    %8245 = vmatprep.subr.mxu0 0.0
    %8246 = vmatpush2.msra.mxu0 %v7926
    %8247 = vmatprep.subr.mxu0 0.0
    %8248 = vmatpush2.msra.mxu0 %v7925
    %8249 = vmatprep.subr.mxu0 0.0
    %8250 = vmatpush2.msra.mxu0 %v7924
    %8251 = vmatprep.mubr.f32.mxu0 %v8130
    %8252 = vmatmul.mubr.f32.gmra.mxu0 %v8122
    %v8253 = vpop.f32.mrf.mxu0
    %v8254 = vadd.f32 %v8109, %v8253
    %v8255 = vpop.f32.mrf.mxu0
    %8256 = vdwg.mxu0
    %8257 = vmatprep.subr.mxu0 0.0
    %8258 = vmatpush1.msra.mxu0 %v7955
    %8259 = vmatprep.subr.mxu0 0.0
    %8260 = vmatpush1.msra.mxu0 %v7954
    %8261 = vmatprep.subr.mxu0 0.0
    %8262 = vmatpush1.msra.mxu0 %v7953
    %8263 = vmatprep.subr.mxu0 0.0
    %8264 = vmatpush1.msra.mxu0 %v7952
    %8265 = vmatprep.subr.mxu0 0.0
    %8266 = vmatpush1.msra.mxu0 %v7951
    %8267 = vmatprep.subr.mxu0 0.0
    %8268 = vmatpush1.msra.mxu0 %v7950
    %8269 = vmatprep.subr.mxu0 0.0
    %8270 = vmatpush1.msra.mxu0 %v7949
    %8271 = vmatprep.subr.mxu0 0.0
    %8272 = vmatpush1.msra.mxu0 %v7948
    %8273 = vmatprep.subr.mxu0 0.0
    %8274 = vmatpush1.msra.mxu0 %v7947
    %8275 = vmatprep.subr.mxu0 0.0
    %8276 = vmatpush1.msra.mxu0 %v7946
    %8277 = vmatprep.subr.mxu0 0.0
    %8278 = vmatpush1.msra.mxu0 %v7945
    %8279 = vmatprep.subr.mxu0 0.0
    %8280 = vmatpush1.msra.mxu0 %v7944
    %8281 = vmatprep.subr.mxu0 0.0
    %8282 = vmatpush1.msra.mxu0 %v7943
    %8283 = vmatprep.subr.mxu0 0.0
    %8284 = vmatpush1.msra.mxu0 %v7942
    %8285 = vmatprep.subr.mxu0 0.0
    %8286 = vmatpush1.msra.mxu0 %v7941
    %8287 = vmatprep.subr.mxu0 0.0
    %8288 = vmatpush1.msra.mxu0 %v7940
    %8289 = vmatprep.subr.mxu0 0.0
    %8290 = vmatpush2.msra.mxu0 %v7971
    %8291 = vmatprep.subr.mxu0 0.0
    %8292 = vmatpush2.msra.mxu0 %v7970
    %8293 = vmatprep.subr.mxu0 0.0
    %8294 = vmatpush2.msra.mxu0 %v7969
    %8295 = vmatprep.subr.mxu0 0.0
    %8296 = vmatpush2.msra.mxu0 %v7968
    %8297 = vmatprep.subr.mxu0 0.0
    %8298 = vmatpush2.msra.mxu0 %v7967
    %8299 = vmatprep.subr.mxu0 0.0
    %8300 = vmatpush2.msra.mxu0 %v7966
    %8301 = vmatprep.subr.mxu0 0.0
    %8302 = vmatpush2.msra.mxu0 %v7965
    %8303 = vmatprep.subr.mxu0 0.0
    %8304 = vmatpush2.msra.mxu0 %v7964
    %8305 = vmatprep.subr.mxu0 0.0
    %8306 = vmatpush2.msra.mxu0 %v7963
    %8307 = vmatprep.subr.mxu0 0.0
    %8308 = vmatpush2.msra.mxu0 %v7962
    %8309 = vmatprep.subr.mxu0 0.0
    %8310 = vmatpush2.msra.mxu0 %v7961
    %8311 = vmatprep.subr.mxu0 0.0
    %8312 = vmatpush2.msra.mxu0 %v7960
    %8313 = vmatprep.subr.mxu0 0.0
    %8314 = vmatpush2.msra.mxu0 %v7959
    %8315 = vmatprep.subr.mxu0 0.0
    %8316 = vmatpush2.msra.mxu0 %v7958
    %8317 = vmatprep.subr.mxu0 0.0
    %8318 = vmatpush2.msra.mxu0 %v7957
    %8319 = vmatprep.subr.mxu0 0.0
    %8320 = vmatpush2.msra.mxu0 %v7956
    %8321 = vmatprep.mubr.f32.mxu0 %v8131
    %8322 = vmatmul.mubr.f32.gmra.mxu0 %v8129
    %v8323 = vpop.f32.mrf.mxu0
    %v8324 = vadd.f32 %v8254, %v8323
    %v8325 = vpop.f32.mrf.mxu0
    %8326 = vdwg.mxu0
    %8327 = vmatprep.subr.mxu0 0.0
    %8328 = vmatpush1.msra.mxu0 %v7987
    %8329 = vmatprep.subr.mxu0 0.0
    %8330 = vmatpush1.msra.mxu0 %v7986
    %8331 = vmatprep.subr.mxu0 0.0
    %8332 = vmatpush1.msra.mxu0 %v7985
    %8333 = vmatprep.subr.mxu0 0.0
    %8334 = vmatpush1.msra.mxu0 %v7984
    %8335 = vmatprep.subr.mxu0 0.0
    %8336 = vmatpush1.msra.mxu0 %v7983
    %8337 = vmatprep.subr.mxu0 0.0
    %8338 = vmatpush1.msra.mxu0 %v7982
    %8339 = vmatprep.subr.mxu0 0.0
    %8340 = vmatpush1.msra.mxu0 %v7981
    %8341 = vmatprep.subr.mxu0 0.0
    %8342 = vmatpush1.msra.mxu0 %v7980
    %8343 = vmatprep.subr.mxu0 0.0
    %8344 = vmatpush1.msra.mxu0 %v7979
    %8345 = vmatprep.subr.mxu0 0.0
    %8346 = vmatpush1.msra.mxu0 %v7978
    %8347 = vmatprep.subr.mxu0 0.0
    %8348 = vmatpush1.msra.mxu0 %v7977
    %8349 = vmatprep.subr.mxu0 0.0
    %8350 = vmatpush1.msra.mxu0 %v7976
    %8351 = vmatprep.subr.mxu0 0.0
    %8352 = vmatpush1.msra.mxu0 %v7975
    %8353 = vmatprep.subr.mxu0 0.0
    %8354 = vmatpush1.msra.mxu0 %v7974
    %8355 = vmatprep.subr.mxu0 0.0
    %8356 = vmatpush1.msra.mxu0 %v7973
    %8357 = vmatprep.subr.mxu0 0.0
    %8358 = vmatpush1.msra.mxu0 %v7972
    %8359 = vmatprep.subr.mxu0 0.0
    %8360 = vmatpush2.msra.mxu0 %v8003
    %8361 = vmatprep.subr.mxu0 0.0
    %8362 = vmatpush2.msra.mxu0 %v8002
    %8363 = vmatprep.subr.mxu0 0.0
    %8364 = vmatpush2.msra.mxu0 %v8001
    %8365 = vmatprep.subr.mxu0 0.0
    %8366 = vmatpush2.msra.mxu0 %v8000
    %8367 = vmatprep.subr.mxu0 0.0
    %8368 = vmatpush2.msra.mxu0 %v7999
    %8369 = vmatprep.subr.mxu0 0.0
    %8370 = vmatpush2.msra.mxu0 %v7998
    %8371 = vmatprep.subr.mxu0 0.0
    %8372 = vmatpush2.msra.mxu0 %v7997
    %8373 = vmatprep.subr.mxu0 0.0
    %8374 = vmatpush2.msra.mxu0 %v7996
    %8375 = vmatprep.subr.mxu0 0.0
    %8376 = vmatpush2.msra.mxu0 %v7995
    %8377 = vmatprep.subr.mxu0 0.0
    %8378 = vmatpush2.msra.mxu0 %v7994
    %8379 = vmatprep.subr.mxu0 0.0
    %8380 = vmatpush2.msra.mxu0 %v7993
    %8381 = vmatprep.subr.mxu0 0.0
    %8382 = vmatpush2.msra.mxu0 %v7992
    %8383 = vmatprep.subr.mxu0 0.0
    %8384 = vmatpush2.msra.mxu0 %v7991
    %8385 = vmatprep.subr.mxu0 0.0
    %8386 = vmatpush2.msra.mxu0 %v7990
    %8387 = vmatprep.subr.mxu0 0.0
    %8388 = vmatpush2.msra.mxu0 %v7989
    %8389 = vmatprep.subr.mxu0 0.0
    %8390 = vmatpush2.msra.mxu0 %v7988
    %8391 = vmatprep.mubr.f32.mxu0 %v8147
    %8392 = vmatmul.mubr.f32.gmra.mxu0 %v8139
    %v8393 = vpop.f32.mrf.mxu0
    %v8394 = vadd.f32 %v8324, %v8393
    %v8395 = vpop.f32.mrf.mxu0
    %8396 = vdwg.mxu0
    %8397 = vmatprep.subr.mxu0 0.0
    %8398 = vmatpush1.msra.mxu0 %v8019
    %8399 = vmatprep.subr.mxu0 0.0
    %8400 = vmatpush1.msra.mxu0 %v8018
    %8401 = vmatprep.subr.mxu0 0.0
    %8402 = vmatpush1.msra.mxu0 %v8017
    %8403 = vmatprep.subr.mxu0 0.0
    %8404 = vmatpush1.msra.mxu0 %v8016
    %8405 = vmatprep.subr.mxu0 0.0
    %8406 = vmatpush1.msra.mxu0 %v8015
    %8407 = vmatprep.subr.mxu0 0.0
    %8408 = vmatpush1.msra.mxu0 %v8014
    %8409 = vmatprep.subr.mxu0 0.0
    %8410 = vmatpush1.msra.mxu0 %v8013
    %8411 = vmatprep.subr.mxu0 0.0
    %8412 = vmatpush1.msra.mxu0 %v8012
    %8413 = vmatprep.subr.mxu0 0.0
    %8414 = vmatpush1.msra.mxu0 %v8011
    %8415 = vmatprep.subr.mxu0 0.0
    %8416 = vmatpush1.msra.mxu0 %v8010
    %8417 = vmatprep.subr.mxu0 0.0
    %8418 = vmatpush1.msra.mxu0 %v8009
    %8419 = vmatprep.subr.mxu0 0.0
    %8420 = vmatpush1.msra.mxu0 %v8008
    %8421 = vmatprep.subr.mxu0 0.0
    %8422 = vmatpush1.msra.mxu0 %v8007
    %8423 = vmatprep.subr.mxu0 0.0
    %8424 = vmatpush1.msra.mxu0 %v8006
    %8425 = vmatprep.subr.mxu0 0.0
    %8426 = vmatpush1.msra.mxu0 %v8005
    %8427 = vmatprep.subr.mxu0 0.0
    %8428 = vmatpush1.msra.mxu0 %v8004
    %8429 = vmatprep.subr.mxu0 0.0
    %8430 = vmatpush2.msra.mxu0 %v8035
    %8431 = vmatprep.subr.mxu0 0.0
    %8432 = vmatpush2.msra.mxu0 %v8034
    %8433 = vmatprep.subr.mxu0 0.0
    %8434 = vmatpush2.msra.mxu0 %v8033
    %8435 = vmatprep.subr.mxu0 0.0
    %8436 = vmatpush2.msra.mxu0 %v8032
    %8437 = vmatprep.subr.mxu0 0.0
    %8438 = vmatpush2.msra.mxu0 %v8031
    %8439 = vmatprep.subr.mxu0 0.0
    %8440 = vmatpush2.msra.mxu0 %v8030
    %8441 = vmatprep.subr.mxu0 0.0
    %8442 = vmatpush2.msra.mxu0 %v8029
    %8443 = vmatprep.subr.mxu0 0.0
    %8444 = vmatpush2.msra.mxu0 %v8028
    %8445 = vmatprep.subr.mxu0 0.0
    %8446 = vmatpush2.msra.mxu0 %v8027
    %8447 = vmatprep.subr.mxu0 0.0
    %8448 = vmatpush2.msra.mxu0 %v8026
    %8449 = vmatprep.subr.mxu0 0.0
    %8450 = vmatpush2.msra.mxu0 %v8025
    %8451 = vmatprep.subr.mxu0 0.0
    %8452 = vmatpush2.msra.mxu0 %v8024
    %8453 = vmatprep.subr.mxu0 0.0
    %8454 = vmatpush2.msra.mxu0 %v8023
    %8455 = vmatprep.subr.mxu0 0.0
    %8456 = vmatpush2.msra.mxu0 %v8022
    %8457 = vmatprep.subr.mxu0 0.0
    %8458 = vmatpush2.msra.mxu0 %v8021
    %8459 = vmatprep.subr.mxu0 0.0
    %8460 = vmatpush2.msra.mxu0 %v8020
    %8461 = vmatprep.mubr.f32.mxu0 %v8148
    %8462 = vmatmul.mubr.f32.gmra.mxu0 %v8146
    %v8463 = vpop.f32.mrf.mxu0
    %v8464 = vadd.f32 %v8394, %v8463
    %v8465 = vpop.f32.mrf.mxu0
    %8466 = vdwg.mxu0
    %8467 = vmatprep.subr.mxu0 0.0
    %8468 = vmatpush1.msra.mxu0 %v8051
    %8469 = vmatprep.subr.mxu0 0.0
    %8470 = vmatpush1.msra.mxu0 %v8050
    %8471 = vmatprep.subr.mxu0 0.0
    %8472 = vmatpush1.msra.mxu0 %v8049
    %8473 = vmatprep.subr.mxu0 0.0
    %8474 = vmatpush1.msra.mxu0 %v8048
    %8475 = vmatprep.subr.mxu0 0.0
    %8476 = vmatpush1.msra.mxu0 %v8047
    %8477 = vmatprep.subr.mxu0 0.0
    %8478 = vmatpush1.msra.mxu0 %v8046
    %8479 = vmatprep.subr.mxu0 0.0
    %8480 = vmatpush1.msra.mxu0 %v8045
    %8481 = vmatprep.subr.mxu0 0.0
    %8482 = vmatpush1.msra.mxu0 %v8044
    %8483 = vmatprep.subr.mxu0 0.0
    %8484 = vmatpush1.msra.mxu0 %v8043
    %8485 = vmatprep.subr.mxu0 0.0
    %8486 = vmatpush1.msra.mxu0 %v8042
    %8487 = vmatprep.subr.mxu0 0.0
    %8488 = vmatpush1.msra.mxu0 %v8041
    %8489 = vmatprep.subr.mxu0 0.0
    %8490 = vmatpush1.msra.mxu0 %v8040
    %8491 = vmatprep.subr.mxu0 0.0
    %8492 = vmatpush1.msra.mxu0 %v8039
    %8493 = vmatprep.subr.mxu0 0.0
    %8494 = vmatpush1.msra.mxu0 %v8038
    %8495 = vmatprep.subr.mxu0 0.0
    %8496 = vmatpush1.msra.mxu0 %v8037
    %8497 = vmatprep.subr.mxu0 0.0
    %8498 = vmatpush1.msra.mxu0 %v8036
    %8499 = vmatprep.subr.mxu0 0.0
    %8500 = vmatpush2.msra.mxu0 %v8067
    %8501 = vmatprep.subr.mxu0 0.0
    %8502 = vmatpush2.msra.mxu0 %v8066
    %8503 = vmatprep.subr.mxu0 0.0
    %8504 = vmatpush2.msra.mxu0 %v8065
    %8505 = vmatprep.subr.mxu0 0.0
    %8506 = vmatpush2.msra.mxu0 %v8064
    %8507 = vmatprep.subr.mxu0 0.0
    %8508 = vmatpush2.msra.mxu0 %v8063
    %8509 = vmatprep.subr.mxu0 0.0
    %8510 = vmatpush2.msra.mxu0 %v8062
    %8511 = vmatprep.subr.mxu0 0.0
    %8512 = vmatpush2.msra.mxu0 %v8061
    %8513 = vmatprep.subr.mxu0 0.0
    %8514 = vmatpush2.msra.mxu0 %v8060
    %8515 = vmatprep.subr.mxu0 0.0
    %8516 = vmatpush2.msra.mxu0 %v8059
    %8517 = vmatprep.subr.mxu0 0.0
    %8518 = vmatpush2.msra.mxu0 %v8058
    %8519 = vmatprep.subr.mxu0 0.0
    %8520 = vmatpush2.msra.mxu0 %v8057
    %8521 = vmatprep.subr.mxu0 0.0
    %8522 = vmatpush2.msra.mxu0 %v8056
    %8523 = vmatprep.subr.mxu0 0.0
    %8524 = vmatpush2.msra.mxu0 %v8055
    %8525 = vmatprep.subr.mxu0 0.0
    %8526 = vmatpush2.msra.mxu0 %v8054
    %8527 = vmatprep.subr.mxu0 0.0
    %8528 = vmatpush2.msra.mxu0 %v8053
    %8529 = vmatprep.subr.mxu0 0.0
    %8530 = vmatpush2.msra.mxu0 %v8052
    %8531 = vmatprep.mubr.f32.mxu0 %v8164
    %8532 = vmatmul.mubr.f32.gmra.mxu0 %v8156
    %v8533 = vpop.f32.mrf.mxu0
    %v8534 = vadd.f32 %v8464, %v8533
    %v8535 = vpop.f32.mrf.mxu0
    %8536 = vdwg.mxu0
    %8537 = vmatprep.subr.mxu0 0.0
    %8538 = vmatpush1.msra.mxu0 %v8083
    %8539 = vmatprep.subr.mxu0 0.0
    %8540 = vmatpush1.msra.mxu0 %v8082
    %8541 = vmatprep.subr.mxu0 0.0
    %8542 = vmatpush1.msra.mxu0 %v8081
    %8543 = vmatprep.subr.mxu0 0.0
    %8544 = vmatpush1.msra.mxu0 %v8080
    %8545 = vmatprep.subr.mxu0 0.0
    %8546 = vmatpush1.msra.mxu0 %v8079
    %8547 = vmatprep.subr.mxu0 0.0
    %8548 = vmatpush1.msra.mxu0 %v8078
    %8549 = vmatprep.subr.mxu0 0.0
    %8550 = vmatpush1.msra.mxu0 %v8077
    %8551 = vmatprep.subr.mxu0 0.0
    %8552 = vmatpush1.msra.mxu0 %v8076
    %8553 = vmatprep.subr.mxu0 0.0
    %8554 = vmatpush1.msra.mxu0 %v8075
    %8555 = vmatprep.subr.mxu0 0.0
    %8556 = vmatpush1.msra.mxu0 %v8074
    %8557 = vmatprep.subr.mxu0 0.0
    %8558 = vmatpush1.msra.mxu0 %v8073
    %8559 = vmatprep.subr.mxu0 0.0
    %8560 = vmatpush1.msra.mxu0 %v8072
    %8561 = vmatprep.subr.mxu0 0.0
    %8562 = vmatpush1.msra.mxu0 %v8071
    %8563 = vmatprep.subr.mxu0 0.0
    %8564 = vmatpush1.msra.mxu0 %v8070
    %8565 = vmatprep.subr.mxu0 0.0
    %8566 = vmatpush1.msra.mxu0 %v8069
    %8567 = vmatprep.subr.mxu0 0.0
    %8568 = vmatpush1.msra.mxu0 %v8068
    %8569 = vmatprep.subr.mxu0 0.0
    %8570 = vmatpush2.msra.mxu0 %v8099
    %8571 = vmatprep.subr.mxu0 0.0
    %8572 = vmatpush2.msra.mxu0 %v8098
    %8573 = vmatprep.subr.mxu0 0.0
    %8574 = vmatpush2.msra.mxu0 %v8097
    %8575 = vmatprep.subr.mxu0 0.0
    %8576 = vmatpush2.msra.mxu0 %v8096
    %8577 = vmatprep.subr.mxu0 0.0
    %8578 = vmatpush2.msra.mxu0 %v8095
    %8579 = vmatprep.subr.mxu0 0.0
    %8580 = vmatpush2.msra.mxu0 %v8094
    %8581 = vmatprep.subr.mxu0 0.0
    %8582 = vmatpush2.msra.mxu0 %v8093
    %8583 = vmatprep.subr.mxu0 0.0
    %8584 = vmatpush2.msra.mxu0 %v8092
    %8585 = vmatprep.subr.mxu0 0.0
    %8586 = vmatpush2.msra.mxu0 %v8091
    %8587 = vmatprep.subr.mxu0 0.0
    %8588 = vmatpush2.msra.mxu0 %v8090
    %8589 = vmatprep.subr.mxu0 0.0
    %8590 = vmatpush2.msra.mxu0 %v8089
    %8591 = vmatprep.subr.mxu0 0.0
    %8592 = vmatpush2.msra.mxu0 %v8088
    %8593 = vmatprep.subr.mxu0 0.0
    %8594 = vmatpush2.msra.mxu0 %v8087
    %8595 = vmatprep.subr.mxu0 0.0
    %8596 = vmatpush2.msra.mxu0 %v8086
    %8597 = vmatprep.subr.mxu0 0.0
    %8598 = vmatpush2.msra.mxu0 %v8085
    %8599 = vmatprep.subr.mxu0 0.0
    %8600 = vmatpush2.msra.mxu0 %v8084
    %8601 = vmatprep.mubr.f32.mxu0 %v8165
    %8602 = vmatmul.mubr.f32.gmra.mxu0 %v8163
    %v8603 = vpop.f32.mrf.mxu0
    %v8604 = vadd.f32 %v8534, %v8603
    %v8605 = vpop.f32.mrf.mxu0
    %8606 = vdwg.mxu0
    %8607 = vmatprep.subr.mxu0 0.0
    %8608 = vmatpush1.msra.mxu0 0.0
    %8609 = vmatprep.subr.mxu0 0.0
    %8610 = vmatpush1.msra.mxu0 0.0
    %8611 = vmatprep.subr.mxu0 0.0
    %8612 = vmatpush1.msra.mxu0 0.0
    %8613 = vmatprep.subr.mxu0 0.0
    %8614 = vmatpush1.msra.mxu0 0.0
    %8615 = vmatprep.subr.mxu0 0.0
    %8616 = vmatpush1.msra.mxu0 0.0
    %8617 = vmatprep.subr.mxu0 0.0
    %8618 = vmatpush1.msra.mxu0 0.0
    %8619 = vmatprep.subr.mxu0 0.0
    %8620 = vmatpush1.msra.mxu0 0.0
    %8621 = vmatprep.subr.mxu0 0.0
    %8622 = vmatpush1.msra.mxu0 0.0
    %8623 = vmatprep.subr.mxu0 0.0
    %8624 = vmatpush1.msra.mxu0 0.0
    %8625 = vmatprep.subr.mxu0 0.0
    %8626 = vmatpush1.msra.mxu0 0.0
    %8627 = vmatprep.subr.mxu0 0.0
    %8628 = vmatpush1.msra.mxu0 0.0
    %8629 = vmatprep.subr.mxu0 0.0
    %8630 = vmatpush1.msra.mxu0 0.0
    %8631 = vmatprep.subr.mxu0 0.0
    %8632 = vmatpush1.msra.mxu0 %v8103
    %8633 = vmatprep.subr.mxu0 0.0
    %8634 = vmatpush1.msra.mxu0 %v8102
    %8635 = vmatprep.subr.mxu0 0.0
    %8636 = vmatpush1.msra.mxu0 %v8101
    %8637 = vmatprep.subr.mxu0 0.0
    %8638 = vmatpush1.msra.mxu0 %v8100
    %8639 = vmatprep.subr.mxu0 0.0
    %8640 = vmatpush2.msra.mxu0 0.0
    %8641 = vmatprep.subr.mxu0 0.0
    %8642 = vmatpush2.msra.mxu0 0.0
    %8643 = vmatprep.subr.mxu0 0.0
    %8644 = vmatpush2.msra.mxu0 0.0
    %8645 = vmatprep.subr.mxu0 0.0
    %8646 = vmatpush2.msra.mxu0 0.0
    %8647 = vmatprep.subr.mxu0 0.0
    %8648 = vmatpush2.msra.mxu0 0.0
    %8649 = vmatprep.subr.mxu0 0.0
    %8650 = vmatpush2.msra.mxu0 0.0
    %8651 = vmatprep.subr.mxu0 0.0
    %8652 = vmatpush2.msra.mxu0 0.0
    %8653 = vmatprep.subr.mxu0 0.0
    %8654 = vmatpush2.msra.mxu0 0.0
    %8655 = vmatprep.subr.mxu0 0.0
    %8656 = vmatpush2.msra.mxu0 0.0
    %8657 = vmatprep.subr.mxu0 0.0
    %8658 = vmatpush2.msra.mxu0 0.0
    %8659 = vmatprep.subr.mxu0 0.0
    %8660 = vmatpush2.msra.mxu0 0.0
    %8661 = vmatprep.subr.mxu0 0.0
    %8662 = vmatpush2.msra.mxu0 0.0
    %8663 = vmatprep.subr.mxu0 0.0
    %8664 = vmatpush2.msra.mxu0 0.0
    %8665 = vmatprep.subr.mxu0 0.0
    %8666 = vmatpush2.msra.mxu0 0.0
    %8667 = vmatprep.subr.mxu0 0.0
    %8668 = vmatpush2.msra.mxu0 0.0
    %8669 = vmatprep.subr.mxu0 0.0
    %8670 = vmatpush2.msra.mxu0 0.0
    %8671 = vmatprep.mubr.f32.mxu0 0.0
    %8672 = vmatmul.mubr.f32.gmra.mxu0 %v8185
    %v8673 = vpop.f32.mrf.mxu0
    %v8674 = vadd.f32 %v8604, %v8673
    %v8675 = vpop.f32.mrf.mxu0
    %8676 = vdwg.mxu0
    %vm8677 = vcmp.gt.f32.partialorder %v8674, 0.0
    %v8678 = vmin.f32 %v8674, 0.0
    %v8679 = vmul.f32 %v8678, 1.442695
    %v8680 = vpow.pop %v8679
    %v8681 = vsub.f32 %v8680, 1.0
    %v8682 = vsel %vm8677, %v8674, %v8681
    %8683 = vst [vmem:[#allocation17] sm:$0x3] %v8682
    // Predicated region
    $region86: #{encoder_forward.1} parent=1 // pred_check
      _
    $region87: #{encoder_forward.1} parent=1 // pred_check_branch
      %8685 = sbr.rel (0) target = $region89
    $region88: #{encoder_forward.1} parent=1 // pred_region
      %s8687 = ssub.s32 32, 32
      %8688 = vsyncadd [#allocation13], %s8687
      %s8690 = sshll.u32 [#allocation17], 4
      %s8691 = int_to_ptr.vmem [resolvable:$true] %s8690
      %8693 = dma.vmem_to_hbm [thread:$0]  %s8691, 32, %s18, [#allocation13]
    $region89: #{encoder_forward.1} parent=1 // pred_fallthru
      _
    // Predicated region
    $region90: #{encoder_forward.1} parent=1 // pred_check
      _
    $region91: #{encoder_forward.1} parent=1 // pred_check_branch
      %8695 = sbr.rel (0) target = $region93
    $region92: #{encoder_forward.1} parent=1 // pred_region
      %8696 = dma.done [#allocation13], 32
    $region93: #{encoder_forward.1} parent=1 // pred_fallthru
      _
    %8697 = vsyncpa [#allocation12], 1
    %8698 = vsyncpa [#allocation15], 1
    %8699 = vsyncpa [#allocation13], 1

</llo_original>
